<compile_context>
chip_gen: v7x
topology: tpu7x:2x2x1
jax: 0.10.0
libtpu: 0.0.40
codegen_flags: <defaults>
</compile_context>

<pallas_src>
import functools

import jax
import jax.numpy as jnp
from jax.experimental import pallas as pl
from jax.experimental.pallas import tpu as pltpu

# normalization constants (GANVGGFeatures: pred uses gan_mean/std, target uses
# ImageNet mean/std when real_mean/real_std are None)
PRED_MEAN = (0.5, 0.5, 0.5)
PRED_STD = (0.225, 0.225, 0.225)
REAL_MEAN = (0.485, 0.456, 0.406)
REAL_STD = (0.229, 0.224, 0.225)

LAYERS = (2, 5)
C1 = 64        # conv1_1 / conv1_2 output channels
C2 = 128       # conv2_1 output channels
CPAD = 128     # lane-dense channel padding
K1PAD = 32     # conv1_1 im2col depth (27) padded to 32


# ----------------------------------------------------------------------------
# tiling helpers (trace-time Python)
# ----------------------------------------------------------------------------
def _divisors_mult8(x):
    return [d for d in range(8, x + 1, 8) if x % d == 0]


def _pick_tile(x, target):
    """Largest multiple-of-8 divisor of x that is <= target (fallback: the
    smallest such divisor, then x itself)."""
    divs = _divisors_mult8(x)
    if not divs:
        return x
    small = [d for d in divs if d <= target]
    return max(small) if small else min(divs)


def _pick_conv_tiles(rq, wp, target=512):
    """Row tile tq (divides rq) and halo block hb (divides tq, >= 2*wp+2)."""
    min_halo = 2 * wp + 2
    divs = [d for d in _divisors_mult8(rq) if d >= min_halo]
    if not divs:
        raise ValueError(f"cannot tile conv rows: rq={rq}, wp={wp}")
    small = [d for d in divs if d <= target]
    tq = max(small) if small else min(divs)
    hdivs = [d for d in _divisors_mult8(tq) if d >= min_halo]
    if not hdivs:
        raise ValueError(f"cannot pick halo block: tq={tq}, wp={wp}")
    return tq, min(hdivs)


def _pick_pool_tile(hp, wp, budget_bytes=8 * 1024 * 1024):
    best = 1
    for d in range(1, hp + 1):
        if hp % d == 0 and d * wp * CPAD * 4 <= budget_bytes:
            best = d
    return best


# ----------------------------------------------------------------------------
# Pallas kernels
# ----------------------------------------------------------------------------
def _conv3x3_kernel(xa_ref, xh_ref, w_ref, b_ref, o_ref, xs_ref, *,
                    wp, valid_w, cin, hb, apply_relu):
    """3x3 conv as 9 accumulated MXU dots over a flattened zero-padded image.

    xa_ref : (1, tq, cin)   current row window
    xh_ref : (1, hb, cin)   small halo block (hb >= 2*wp + 2 rows)
    w_ref  : (9*cin, co)    per-tap weight matrices (bf16)
    b_ref  : (1, co)        f32 bias
    o_ref  : (1, tq, co)    bf16 output (scratch columns zeroed)
    xs_ref : (tq + hb, cin) VMEM scratch stitching window + halo
    """
    tq = o_ref.shape[1]
    co = o_ref.shape[2]

    xs_ref[0:tq, :] = xa_ref[0]
    xs_ref[tq:tq + hb, :] = xh_ref[0]

    acc = jnp.zeros((tq, co), jnp.float32)
    for kh in range(3):
        for kw in range(3):
            off = kh * wp + kw                                 # static offset
            a = xs_ref[off:off + tq, :]                        # (tq, cin) bf16
            wk = w_ref[(kh * 3 + kw) * cin:(kh * 3 + kw + 1) * cin, :]
            acc = acc + jnp.dot(a, wk, preferred_element_type=jnp.float32)

    acc = acc + b_ref[...]
    if apply_relu:
        acc = jnp.maximum(acc, 0.0)

    # zero the two scratch columns of every image row (exact zero padding for
    # the next conv's border, the pool and the L1 sum)
    q0 = pl.program_id(1) * tq
    col = jax.lax.rem(q0 + jax.lax.broadcasted_iota(jnp.int32, (tq, 1), 0), wp)
    acc = jnp.where(col < valid_w, acc, 0.0)
    o_ref[0] = acc.astype(o_ref.dtype)


def _conv_in_kernel(x_ref, w_ref, b_ref, o_ref, *, wp, valid_w, apply_relu):
    """conv1_1 as one (tq, 32) x (32, co) matmul over a prebuilt im2col."""
    tq = o_ref.shape[1]
    acc = jnp.dot(x_ref[0], w_ref[...], preferred_element_type=jnp.float32)
    acc = acc + b_ref[...]
    if apply_relu:
        acc = jnp.maximum(acc, 0.0)
    q0 = pl.program_id(1) * tq
    col = jax.lax.rem(q0 + jax.lax.broadcasted_iota(jnp.int32, (tq, 1), 0), wp)
    acc = jnp.where(col < valid_w, acc, 0.0)
    o_ref[0] = acc.astype(o_ref.dtype)


def _maxpool2x2_relu_kernel(x_ref, o_ref):
    """Fused ReLU + 2x2 max-pool.

    x_ref : (1, tph, 2, wq, 2, C)  conv1_2 rows with explicit 2x2 window dims
                                   (wq = (w+2)//2; last column pair = scratch)
    o_ref : (1, tph, w//2 + 2, C)  pooled rows with 2 zeroed scratch columns
    """
    x = x_ref[0]                                           # (tph, 2, wq, 2, C)
    a = jnp.maximum(x[:, 0, :, 0, :], x[:, 0, :, 1, :])
    b = jnp.maximum(x[:, 1, :, 0, :], x[:, 1, :, 1, :])
    m = jnp.maximum(a, b)                                  # (tph, wq, C)
    # ReLU is monotone: relu(maxpool(x)) == maxpool(relu(x))
    m = jnp.maximum(m, jnp.zeros_like(m))
    # last column of m came from the (zero) scratch pair -> already 0; append
    # one more zero column so rows have 2 scratch columns for the next conv.
    zcol = jnp.zeros((m.shape[0], 1, m.shape[2]), m.dtype)
    o_ref[0] = jnp.concatenate([m, zcol], axis=1).astype(o_ref.dtype)


def _l1_partial_kernel(p_ref, t_ref, o_ref):
    """Lane-dense partial L1 sum.  Resident (1, 1, C) f32 accumulator per
    parallel slice; only a sublane reduction per grid step."""
    step = pl.program_id(1)

    @pl.when(step == 0)
    def _():
        o_ref[...] = jnp.zeros(o_ref.shape, jnp.float32)

    d = jnp.abs(p_ref[...].astype(jnp.float32) - t_ref[...].astype(jnp.float32))
    o_ref[0] = o_ref[0] + jnp.sum(d, axis=0, keepdims=True)


# ----------------------------------------------------------------------------
# Pallas wrappers
# ----------------------------------------------------------------------------
def conv3x3(x_flat, w_flat, b_row, *, h, w, apply_relu, target_rows=512):
    """x_flat: (N, h*(w+2), cin) bf16 -- previous stage output layout (w valid
    + 2 zero scratch columns per image row).  Returns the same layout with co
    channels.  The padded conv input is built by ONE jnp.pad: shifting by wp+1
    turns the (valid,0,0)-per-row layout into (0,valid,0)-per-row + top border;
    trailing zeros give the bottom border and the halo rows."""
    n, rq, cin = x_flat.shape
    wp = w + 2
    assert rq == h * wp
    co = w_flat.shape[1]
    tq, hb = _pick_conv_tiles(rq, wp, target_rows)
    xin = jnp.pad(x_flat, ((0, 0), (wp + 1, tq - wp - 1), (0, 0)))
    nq = rq // tq
    hstep = tq // hb

    kernel = functools.partial(_conv3x3_kernel, wp=wp, valid_w=w, cin=cin,
                               hb=hb, apply_relu=apply_relu)
    return pl.pallas_call(
        kernel,
        out_shape=jax.ShapeDtypeStruct((n, rq, co), jnp.bfloat16),
        grid=(n, nq),
        in_specs=[
            pl.BlockSpec((1, tq, cin), lambda b, q: (b, q, 0)),
            pl.BlockSpec((1, hb, cin), lambda b, q: (b, (q + 1) * hstep, 0)),
            pl.BlockSpec((9 * cin, co), lambda b, q: (0, 0)),
            pl.BlockSpec((1, co), lambda b, q: (0, 0)),
        ],
        out_specs=pl.BlockSpec((1, tq, co), lambda b, q: (b, q, 0)),
        scratch_shapes=[pltpu.VMEM((tq + hb, cin), jnp.bfloat16)],
        compiler_params=pltpu.CompilerParams(
            dimension_semantics=("parallel", "parallel")),
    )(xin, xin, w_flat, b_row)


def conv_in(x_cols, w_mat, b_row, *, h, w, apply_relu, target_rows=512):
    """conv1_1: single-dot matmul over the prebuilt (N, h*(w+2), 32) im2col."""
    n, rq, kdim = x_cols.shape
    wp = w + 2
    assert rq == h * wp
    co = w_mat.shape[1]
    tq = _pick_tile(rq, target_rows)
    nq = rq // tq
    kernel = functools.partial(_conv_in_kernel, wp=wp, valid_w=w,
                               apply_relu=apply_relu)
    return pl.pallas_call(
        kernel,
        out_shape=jax.ShapeDtypeStruct((n, rq, co), jnp.bfloat16),
        grid=(n, nq),
        in_specs=[
            pl.BlockSpec((1, tq, kdim), lambda b, q: (b, q, 0)),
            pl.BlockSpec((kdim, co), lambda b, q: (0, 0)),
            pl.BlockSpec((1, co), lambda b, q: (0, 0)),
        ],
        out_specs=pl.BlockSpec((1, tq, co), lambda b, q: (b, q, 0)),
        compiler_params=pltpu.CompilerParams(
            dimension_semantics=("parallel", "parallel")),
    )(x_cols, w_mat, b_row)


def maxpool2x2_relu(f2_flat, n, h, w):
    """f2_flat: (N, h*(w+2), CPAD) bf16 -> (N, h/2, w/2 + 2, CPAD) bf16
    (pooled rows in the next conv's scratch-column layout)."""
    wp = w + 2
    wq = wp // 2                      # = w//2 + 1
    hp, wpo = h // 2, w // 2
    x6 = f2_flat.reshape(n, hp, 2, wq, 2, CPAD)     # free row-major reshape
    tph = _pick_pool_tile(hp, wp)
    return pl.pallas_call(
        _maxpool2x2_relu_kernel,
        out_shape=jax.ShapeDtypeStruct((n, hp, wpo + 2, CPAD), jnp.bfloat16),
        grid=(n, hp // tph),
        in_specs=[pl.BlockSpec((1, tph, 2, wq, 2, CPAD),
                               lambda b, p: (b, p, 0, 0, 0, 0))],
        out_specs=pl.BlockSpec((1, tph, wpo + 2, CPAD),
                               lambda b, p: (b, p, 0, 0)),
        compiler_params=pltpu.CompilerParams(
            dimension_semantics=("parallel", "parallel")),
    )(x6)


def l1_mean(p, t, true_count, target_rows=2048):
    """p, t: (N, R, CPAD) bf16 with identical zero padding (scratch columns /
    padded channels are exact zeros in both -> contribute 0 to |diff|)."""
    n, r, c = p.shape
    m = n * r
    p2 = p.reshape(m, c)
    t2 = t.reshape(m, c)
    split = 2 if m % 2 == 0 else 1        # 2 parallel slices (v7x dual-TC)
    mh = m // split
    if not _divisors_mult8(mh):
        split, mh = 1, m
    tm = _pick_tile(mh, target_rows)
    nsteps = mh // tm
    out = pl.pallas_call(
        _l1_partial_kernel,
        out_shape=jax.ShapeDtypeStruct((split, 1, c), jnp.float32),
        grid=(split, nsteps),
        in_specs=[pl.BlockSpec((tm, c), lambda i, j: (i * nsteps + j, 0)),
                  pl.BlockSpec((tm, c), lambda i, j: (i * nsteps + j, 0))],
        out_specs=pl.BlockSpec((1, 1, c), lambda i, j: (i, 0, 0)),
        compiler_params=pltpu.CompilerParams(
            dimension_semantics=("parallel", "arbitrary")),
    )(p2, t2)
    return jnp.sum(out) * (1.0 / float(true_count))


# ----------------------------------------------------------------------------
# parameter packing / input prep (tiny XLA passes on <= 32-channel data)
# ----------------------------------------------------------------------------
def _pack_conv(w, b, cin_pad, co_pad):
    # w: (3, 3, cin, co) HWIO f32, b: (co,) f32
    _, _, cin, co = w.shape
    wfull = jnp.zeros((3, 3, cin_pad, co_pad), jnp.float32).at[:, :, :cin, :co].set(w)
    bfull = jnp.zeros((co_pad,), jnp.float32).at[:co].set(b)
    return (wfull.reshape(9 * cin_pad, co_pad).astype(jnp.bfloat16),
            bfull.reshape(1, co_pad))


def _pack_conv_in(w, b, k_pad, co_pad):
    kh, kw, cin, co = w.shape
    k = kh * kw * cin
    wm = jnp.zeros((k_pad, co_pad), jnp.float32).at[:k, :co].set(w.reshape(k, co))
    bfull = jnp.zeros((co_pad,), jnp.float32).at[:co].set(b)
    return wm.astype(jnp.bfloat16), bfull.reshape(1, co_pad)


def _prep_input(x_nchw, mean, std):
    """NCHW -> normalized NHWC -> 3x3 im2col laid out with the 2 scratch
    columns per image row, K padded 27 -> 32, bf16."""
    n, c, h, w = x_nchw.shape
    mean = jnp.asarray(mean, jnp.float32)
    inv_std = 1.0 / jnp.asarray(std, jnp.float32)
    x = (jnp.transpose(x_nchw, (0, 2, 3, 1)).astype(jnp.float32) - mean) * inv_std
    xp = jnp.pad(x, ((0, 0), (1, 1), (1, 1), (0, 0)))
    cols = jnp.concatenate(
        [xp[:, kh:kh + h, kw:kw + w, :] for kh in range(3) for kw in range(3)],
        axis=-1)                                            # (n, h, w, 27)
    cols = jnp.pad(cols, ((0, 0), (0, 0), (0, 2), (0, K1PAD - 9 * c)))
    return cols.reshape(n, h * (w + 2), K1PAD).astype(jnp.bfloat16)


# ----------------------------------------------------------------------------
# feature extractor + content loss
# ----------------------------------------------------------------------------
def vgg_features(x_nchw, params, mean, std):
    n, c, h, w = x_nchw.shape
    assert c == 3 and h % 2 == 0 and w % 2 == 0 and h >= 4 and w >= 4

    w0, b0 = _pack_conv_in(params["w0"], params["b0"], K1PAD, CPAD)
    w1, b1 = _pack_conv(params["w1"], params["b1"], CPAD, CPAD)
    w2, b2 = _pack_conv(params["w2"], params["b2"], CPAD, CPAD)

    x_cols = _prep_input(x_nchw, mean, std)
    h1 = conv_in(x_cols, w0, b0, h=h, w=w, apply_relu=True)          # modules 0+1
    f2 = conv3x3(h1, w1, b1, h=h, w=w, apply_relu=False)             # module 2
    p1 = maxpool2x2_relu(f2, n, h, w)                                # modules 3+4
    p1_flat = p1.reshape(n, (h // 2) * (w // 2 + 2), CPAD)           # free reshape
    f5 = conv3x3(p1_flat, w2, b2, h=h // 2, w=w // 2, apply_relu=False)  # module 5
    return {2: f2, 5: f5}


def layer_weights(layers=LAYERS, weight_scaler=2, reverse_weights=False):
    weights = list(reversed([1 / weight_scaler ** i for i in range(len(layers))]))
    if reverse_weights:
        weights = list(reversed(weights))
    s = sum(weights)
    return dict(zip(list(layers), [wt / s for wt in weights]))


def content_loss(pred_nchw, target_nchw, params):
    n, _, h, w = pred_nchw.shape
    pred_feats = vgg_features(pred_nchw, params, PRED_MEAN, PRED_STD)
    # PyTorch: target features computed under torch.no_grad()
    tgt_feats = jax.lax.stop_gradient(
        vgg_features(target_nchw, params, REAL_MEAN, REAL_STD))

    # true (unpadded) element counts for the L1 mean; scratch columns / padded
    # channels are exact zeros in both branches so they add 0 to the sum.
    counts = {2: n * h * w * C1, 5: n * (h // 2) * (w // 2) * C2}

    # TODO(synk): apply_norm=False (module default) so nn.InstanceNorm2d is
    # constructed but never applied in forward; not implemented here.
    loss = jnp.float32(0.0)
    for layer, wt in layer_weights().items():
        loss = loss + jnp.float32(wt) * l1_mean(pred_feats[layer],
                                                tgt_feats[layer],
                                                counts[layer])
    return loss


# ----------------------------------------------------------------------------
# deterministic synthetic parameters (He-style init; no checkpoint load)
# ----------------------------------------------------------------------------
def make_params(key, c_in=3, c1=C1, c2=C2):
    k0, k1, k2 = jax.random.split(key, 3)

    def conv_init(k, ci, co):
        scale = jnp.sqrt(2.0 / (9 * ci))
        return jax.random.normal(k, (3, 3, ci, co), jnp.float32) * scale

    return {
        "w0": conv_init(k0, c_in, c1), "b0": jnp.zeros((c1,), jnp.float32),
        "w1": conv_init(k1, c1, c1),   "b1": jnp.zeros((c1,), jnp.float32),
        "w2": conv_init(k2, c1, c2),   "b2": jnp.zeros((c2,), jnp.float32),
    }


if __name__ == "__main__":
    key = jax.random.PRNGKey(0)
    k_params, k_pred, k_tgt = jax.random.split(key, 3)

    params = make_params(k_params)
    pred = jax.random.uniform(k_pred, (2, 3, 16, 16), jnp.float32)    # NCHW
    target = jax.random.uniform(k_tgt, (2, 3, 16, 16), jnp.float32)   # NCHW

    loss = jax.jit(content_loss)(pred, target, params)
    jax.block_until_ready(loss)
    assert loss.shape == () and bool(jnp.isfinite(loss))
    print("KERNEL_OK")
</pallas_src>

<mosaic_0001>
module attributes {stable_mosaic.version = 11 : i64} {
  func.func @_conv_in_kernel(%arg0: i32, %arg1: i32, %arg2: memref<1x288x32xbf16, #tpu.memory_space<vmem>>, %arg3: memref<32x128xbf16, #tpu.memory_space<vmem>>, %arg4: memref<1x128xf32, #tpu.memory_space<vmem>>, %arg5: memref<1x288x128xbf16, #tpu.memory_space<vmem>>) attributes {dimension_semantics = [#tpu.dimension_semantics<parallel>, #tpu.dimension_semantics<parallel>], iteration_bounds = array<i64: 2, 1>, scalar_prefetch = 0 : i64, scratch_operands = 0 : i64, tpu.core_type = #tpu.core_type<tc>, window_params = [{transform_indices = @transform_0, window_bounds = array<i64: 1, 288, 32>}, {pipeline_mode = #tpu.pipeline_mode<synchronous>, transform_indices = @transform_1, window_bounds = array<i64: 32, 128>}, {pipeline_mode = #tpu.pipeline_mode<synchronous>, transform_indices = @transform_2, window_bounds = array<i64: 1, 128>}, {transform_indices = @transform_3, window_bounds = array<i64: 1, 288, 128>}]} {
    %c0 = arith.constant 0 : index
    %c0_0 = arith.constant 0 : index
    %c0_1 = arith.constant 0 : index
    %0 = vector.load %arg2[%c0, %c0_0, %c0_1] : memref<1x288x32xbf16, #tpu.memory_space<vmem>>, vector<1x288x32xbf16>
    %1 = vector.shape_cast %0 : vector<1x288x32xbf16> to vector<288x32xbf16>
    %c0_2 = arith.constant 0 : index
    %c0_3 = arith.constant 0 : index
    %2 = vector.load %arg3[%c0_2, %c0_3] : memref<32x128xbf16, #tpu.memory_space<vmem>>, vector<32x128xbf16>
    %cst = arith.constant dense<0.000000e+00> : vector<288x128xf32>
    %3 = tpu.matmul %1, %2, %cst {dimension_numbers = #tpu.dot_dimension_numbers<[1], [0], [0], [1], [0, 0, 1, 1], [], []>} : vector<288x32xbf16>, vector<32x128xbf16>, vector<288x128xf32> -> vector<288x128xf32>
    %c0_4 = arith.constant 0 : index
    %c0_5 = arith.constant 0 : index
    %4 = vector.load %arg4[%c0_4, %c0_5] : memref<1x128xf32, #tpu.memory_space<vmem>>, vector<1x128xf32>
    %5 = vector.broadcast %4 : vector<1x128xf32> to vector<288x128xf32>
    %6 = arith.addf %3, %5 : vector<288x128xf32>
    %cst_6 = arith.constant 0.000000e+00 : f32
    %7 = vector.broadcast %cst_6 : f32 to vector<288x128xf32>
    %8 = arith.maximumf %6, %7 : vector<288x128xf32>
    %c288_i32 = arith.constant 288 : i32
    %9 = arith.muli %arg1, %c288_i32 : i32
    %10 = tpu.iota {dimensions = array<i32: 0>} : vector<288x1xi32>
    %11 = vector.broadcast %9 : i32 to vector<288x1xi32>
    %12 = arith.addi %11, %10 : vector<288x1xi32>
    %c18_i32 = arith.constant 18 : i32
    %13 = vector.broadcast %c18_i32 : i32 to vector<288x1xi32>
    %14 = arith.remsi %12, %13 : vector<288x1xi32>
    %c16_i32 = arith.constant 16 : i32
    %15 = vector.broadcast %c16_i32 : i32 to vector<288x1xi32>
    %16 = arith.cmpi slt, %14, %15 : vector<288x1xi32>
    %cst_7 = arith.constant 0.000000e+00 : f32
    %17 = vector.shape_cast %16 : vector<288x1xi1> to vector<288x1xi1>
    %18 = vector.broadcast %17 : vector<288x1xi1> to vector<288x128xi1>
    %19 = vector.broadcast %cst_7 : f32 to vector<288x128xf32>
    %20 = arith.select %18, %8, %19 : vector<288x128xi1>, vector<288x128xf32>
    %21 = arith.truncf %20 : vector<288x128xf32> to vector<288x128xbf16>
    %c0_8 = arith.constant 0 : index
    %c0_9 = arith.constant 0 : index
    %c0_10 = arith.constant 0 : index
    %22 = vector.load %arg5[%c0_8, %c0_9, %c0_10] : memref<1x288x128xbf16, #tpu.memory_space<vmem>>, vector<1x288x128xbf16>
    %23 = vector.shape_cast %22 : vector<1x288x128xbf16> to vector<288x128xbf16>
    %24 = vector.shape_cast %21 : vector<288x128xbf16> to vector<1x288x128xbf16>
    tpu.vector_store %arg5[%c0_8, %c0_9, %c0_10], %24 {strides = array<i32>} : memref<1x288x128xbf16, #tpu.memory_space<vmem>>, vector<1x288x128xbf16>,
    return
  }
  func.func @transform_0(%arg0: i32, %arg1: i32) -> (i32, i32, i32) {
    %c0_i32 = arith.constant 0 : i32
    %c0_i32_0 = arith.constant 0 : i32
    return %arg0, %arg1, %c0_i32 : i32, i32, i32
  }
  func.func @transform_1(%arg0: i32, %arg1: i32) -> (i32, i32) {
    %c0_i32 = arith.constant 0 : i32
    %c0_i32_0 = arith.constant 0 : i32
    %c0_i32_1 = arith.constant 0 : i32
    return %c0_i32, %c0_i32_0 : i32, i32
  }
  func.func @transform_2(%arg0: i32, %arg1: i32) -> (i32, i32) {
    %c0_i32 = arith.constant 0 : i32
    %c0_i32_0 = arith.constant 0 : i32
    %c0_i32_1 = arith.constant 0 : i32
    return %c0_i32, %c0_i32_0 : i32, i32
  }
  func.func @transform_3(%arg0: i32, %arg1: i32) -> (i32, i32, i32) {
    %c0_i32 = arith.constant 0 : i32
    %c0_i32_0 = arith.constant 0 : i32
    return %arg0, %arg1, %c0_i32 : i32, i32, i32
  }
}

module attributes {stable_mosaic.version = 11 : i64} {
  func.func @_conv3x3_kernel(%arg0: i32, %arg1: i32, %arg2: memref<1x288x128xbf16, #tpu.memory_space<vmem>>, %arg3: memref<1x48x128xbf16, #tpu.memory_space<vmem>>, %arg4: memref<1152x128xbf16, #tpu.memory_space<vmem>>, %arg5: memref<1x128xf32, #tpu.memory_space<vmem>>, %arg6: memref<1x288x128xbf16, #tpu.memory_space<vmem>>, %arg7: memref<336x128xbf16, #tpu.memory_space<vmem>>) attributes {dimension_semantics = [#tpu.dimension_semantics<parallel>, #tpu.dimension_semantics<parallel>], iteration_bounds = array<i64: 2, 1>, scalar_prefetch = 0 : i64, scratch_operands = 1 : i64, tpu.core_type = #tpu.core_type<tc>, window_params = [{transform_indices = @transform_0, window_bounds = array<i64: 1, 288, 128>}, {transform_indices = @transform_1, window_bounds = array<i64: 1, 48, 128>}, {pipeline_mode = #tpu.pipeline_mode<synchronous>, transform_indices = @transform_2, window_bounds = array<i64: 1152, 128>}, {pipeline_mode = #tpu.pipeline_mode<synchronous>, transform_indices = @transform_3, window_bounds = array<i64: 1, 128>}, {transform_indices = @transform_4, window_bounds = array<i64: 1, 288, 128>}]} {
    %c0 = arith.constant 0 : index
    %c0_0 = arith.constant 0 : index
    %c0_1 = arith.constant 0 : index
    %0 = vector.load %arg2[%c0, %c0_0, %c0_1] : memref<1x288x128xbf16, #tpu.memory_space<vmem>>, vector<1x288x128xbf16>
    %1 = vector.shape_cast %0 : vector<1x288x128xbf16> to vector<288x128xbf16>
    %c0_2 = arith.constant 0 : index
    %c0_3 = arith.constant 0 : index
    %2 = vector.load %arg7[%c0_2, %c0_3] : memref<336x128xbf16, #tpu.memory_space<vmem>>, vector<288x128xbf16>
    tpu.vector_store %arg7[%c0_2, %c0_3], %1 {strides = array<i32>} : memref<336x128xbf16, #tpu.memory_space<vmem>>, vector<288x128xbf16>,
    %c0_4 = arith.constant 0 : index
    %c0_5 = arith.constant 0 : index
    %c0_6 = arith.constant 0 : index
    %3 = vector.load %arg3[%c0_4, %c0_5, %c0_6] : memref<1x48x128xbf16, #tpu.memory_space<vmem>>, vector<1x48x128xbf16>
    %4 = vector.shape_cast %3 : vector<1x48x128xbf16> to vector<48x128xbf16>
    %c288 = arith.constant 288 : index
    %c0_7 = arith.constant 0 : index
    %5 = vector.load %arg7[%c288, %c0_7] : memref<336x128xbf16, #tpu.memory_space<vmem>>, vector<48x128xbf16>
    tpu.vector_store %arg7[%c288, %c0_7], %4 {strides = array<i32>} : memref<336x128xbf16, #tpu.memory_space<vmem>>, vector<48x128xbf16>,
    %cst = arith.constant 0.000000e+00 : f32
    %6 = vector.broadcast %cst : f32 to vector<288x128xf32>
    %c0_8 = arith.constant 0 : index
    %c0_9 = arith.constant 0 : index
    %7 = vector.load %arg7[%c0_8, %c0_9] : memref<336x128xbf16, #tpu.memory_space<vmem>>, vector<288x128xbf16>
    %c0_10 = arith.constant 0 : index
    %c0_11 = arith.constant 0 : index
    %8 = vector.load %arg4[%c0_10, %c0_11] : memref<1152x128xbf16, #tpu.memory_space<vmem>>, vector<128x128xbf16>
    %cst_12 = arith.constant dense<0.000000e+00> : vector<288x128xf32>
    %9 = tpu.matmul %7, %8, %cst_12 {dimension_numbers = #tpu.dot_dimension_numbers<[1], [0], [0], [1], [0, 0, 1, 1], [], []>} : vector<288x128xbf16>, vector<128x128xbf16>, vector<288x128xf32> -> vector<288x128xf32>
    %10 = arith.addf %6, %9 : vector<288x128xf32>
    %c1 = arith.constant 1 : index
    %c0_13 = arith.constant 0 : index
    %11 = vector.load %arg7[%c1, %c0_13] : memref<336x128xbf16, #tpu.memory_space<vmem>>, vector<288x128xbf16>
    %c128 = arith.constant 128 : index
    %c0_14 = arith.constant 0 : index
    %12 = vector.load %arg4[%c128, %c0_14] : memref<1152x128xbf16, #tpu.memory_space<vmem>>, vector<128x128xbf16>
    %cst_15 = arith.constant dense<0.000000e+00> : vector<288x128xf32>
    %13 = tpu.matmul %11, %12, %cst_15 {dimension_numbers = #tpu.dot_dimension_numbers<[1], [0], [0], [1], [0, 0, 1, 1], [], []>} : vector<288x128xbf16>, vector<128x128xbf16>, vector<288x128xf32> -> vector<288x128xf32>
    %14 = arith.addf %10, %13 : vector<288x128xf32>
    %c2 = arith.constant 2 : index
    %c0_16 = arith.constant 0 : index
    %15 = vector.load %arg7[%c2, %c0_16] : memref<336x128xbf16, #tpu.memory_space<vmem>>, vector<288x128xbf16>
    %c256 = arith.constant 256 : index
    %c0_17 = arith.constant 0 : index
    %16 = vector.load %arg4[%c256, %c0_17] : memref<1152x128xbf16, #tpu.memory_space<vmem>>, vector<128x128xbf16>
    %cst_18 = arith.constant dense<0.000000e+00> : vector<288x128xf32>
    %17 = tpu.matmul %15, %16, %cst_18 {dimension_numbers = #tpu.dot_dimension_numbers<[1], [0], [0], [1], [0, 0, 1, 1], [], []>} : vector<288x128xbf16>, vector<128x128xbf16>, vector<288x128xf32> -> vector<288x128xf32>
    %18 = arith.addf %14, %17 : vector<288x128xf32>
    %c18 = arith.constant 18 : index
    %c0_19 = arith.constant 0 : index
    %19 = vector.load %arg7[%c18, %c0_19] : memref<336x128xbf16, #tpu.memory_space<vmem>>, vector<288x128xbf16>
    %c384 = arith.constant 384 : index
    %c0_20 = arith.constant 0 : index
    %20 = vector.load %arg4[%c384, %c0_20] : memref<1152x128xbf16, #tpu.memory_space<vmem>>, vector<128x128xbf16>
    %cst_21 = arith.constant dense<0.000000e+00> : vector<288x128xf32>
    %21 = tpu.matmul %19, %20, %cst_21 {dimension_numbers = #tpu.dot_dimension_numbers<[1], [0], [0], [1], [0, 0, 1, 1], [], []>} : vector<288x128xbf16>, vector<128x128xbf16>, vector<288x128xf32> -> vector<288x128xf32>
    %22 = arith.addf %18, %21 : vector<288x128xf32>
    %c19 = arith.constant 19 : index
    %c0_22 = arith.constant 0 : index
    %23 = vector.load %arg7[%c19, %c0_22] : memref<336x128xbf16, #tpu.memory_space<vmem>>, vector<288x128xbf16>
    %c512 = arith.constant 512 : index
    %c0_23 = arith.constant 0 : index
    %24 = vector.load %arg4[%c512, %c0_23] : memref<1152x128xbf16, #tpu.memory_space<vmem>>, vector<128x128xbf16>
    %cst_24 = arith.constant dense<0.000000e+00> : vector<288x128xf32>
    %25 = tpu.matmul %23, %24, %cst_24 {dimension_numbers = #tpu.dot_dimension_numbers<[1], [0], [0], [1], [0, 0, 1, 1], [], []>} : vector<288x128xbf16>, vector<128x128xbf16>, vector<288x128xf32> -> vector<288x128xf32>
    %26 = arith.addf %22, %25 : vector<288x128xf32>
    %c20 = arith.constant 20 : index
    %c0_25 = arith.constant 0 : index
    %27 = vector.load %arg7[%c20, %c0_25] : memref<336x128xbf16, #tpu.memory_space<vmem>>, vector<288x128xbf16>
    %c640 = arith.constant 640 : index
    %c0_26 = arith.constant 0 : index
    %28 = vector.load %arg4[%c640, %c0_26] : memref<1152x128xbf16, #tpu.memory_space<vmem>>, vector<128x128xbf16>
    %cst_27 = arith.constant dense<0.000000e+00> : vector<288x128xf32>
    %29 = tpu.matmul %27, %28, %cst_27 {dimension_numbers = #tpu.dot_dimension_numbers<[1], [0], [0], [1], [0, 0, 1, 1], [], []>} : vector<288x128xbf16>, vector<128x128xbf16>, vector<288x128xf32> -> vector<288x128xf32>
    %30 = arith.addf %26, %29 : vector<288x128xf32>
    %c36 = arith.constant 36 : index
    %c0_28 = arith.constant 0 : index
    %31 = vector.load %arg7[%c36, %c0_28] : memref<336x128xbf16, #tpu.memory_space<vmem>>, vector<288x128xbf16>
    %c768 = arith.constant 768 : index
    %c0_29 = arith.constant 0 : index
    %32 = vector.load %arg4[%c768, %c0_29] : memref<1152x128xbf16, #tpu.memory_space<vmem>>, vector<128x128xbf16>
    %cst_30 = arith.constant dense<0.000000e+00> : vector<288x128xf32>
    %33 = tpu.matmul %31, %32, %cst_30 {dimension_numbers = #tpu.dot_dimension_numbers<[1], [0], [0], [1], [0, 0, 1, 1], [], []>} : vector<288x128xbf16>, vector<128x128xbf16>, vector<288x128xf32> -> vector<288x128xf32>
    %34 = arith.addf %30, %33 : vector<288x128xf32>
    %c37 = arith.constant 37 : index
    %c0_31 = arith.constant 0 : index
    %35 = vector.load %arg7[%c37, %c0_31] : memref<336x128xbf16, #tpu.memory_space<vmem>>, vector<288x128xbf16>
    %c896 = arith.constant 896 : index
    %c0_32 = arith.constant 0 : index
    %36 = vector.load %arg4[%c896, %c0_32] : memref<1152x128xbf16, #tpu.memory_space<vmem>>, vector<128x128xbf16>
    %cst_33 = arith.constant dense<0.000000e+00> : vector<288x128xf32>
    %37 = tpu.matmul %35, %36, %cst_33 {dimension_numbers = #tpu.dot_dimension_numbers<[1], [0], [0], [1], [0, 0, 1, 1], [], []>} : vector<288x128xbf16>, vector<128x128xbf16>, vector<288x128xf32> -> vector<288x128xf32>
    %38 = arith.addf %34, %37 : vector<288x128xf32>
    %c38 = arith.constant 38 : index
    %c0_34 = arith.constant 0 : index
    %39 = vector.load %arg7[%c38, %c0_34] : memref<336x128xbf16, #tpu.memory_space<vmem>>, vector<288x128xbf16>
    %c1024 = arith.constant 1024 : index
    %c0_35 = arith.constant 0 : index
    %40 = vector.load %arg4[%c1024, %c0_35] : memref<1152x128xbf16, #tpu.memory_space<vmem>>, vector<128x128xbf16>
    %cst_36 = arith.constant dense<0.000000e+00> : vector<288x128xf32>
    %41 = tpu.matmul %39, %40, %cst_36 {dimension_numbers = #tpu.dot_dimension_numbers<[1], [0], [0], [1], [0, 0, 1, 1], [], []>} : vector<288x128xbf16>, vector<128x128xbf16>, vector<288x128xf32> -> vector<288x128xf32>
    %42 = arith.addf %38, %41 : vector<288x128xf32>
    %c0_37 = arith.constant 0 : index
    %c0_38 = arith.constant 0 : index
    %43 = vector.load %arg5[%c0_37, %c0_38] : memref<1x128xf32, #tpu.memory_space<vmem>>, vector<1x128xf32>
    %44 = vector.broadcast %43 : vector<1x128xf32> to vector<288x128xf32>
    %45 = arith.addf %42, %44 : vector<288x128xf32>
    %c288_i32 = arith.constant 288 : i32
    %46 = arith.muli %arg1, %c288_i32 : i32
    %47 = tpu.iota {dimensions = array<i32: 0>} : vector<288x1xi32>
    %48 = vector.broadcast %46 : i32 to vector<288x1xi32>
    %49 = arith.addi %48, %47 : vector<288x1xi32>
    %c18_i32 = arith.constant 18 : i32
    %50 = vector.broadcast %c18_i32 : i32 to vector<288x1xi32>
    %51 = arith.remsi %49, %50 : vector<288x1xi32>
    %c16_i32 = arith.constant 16 : i32
    %52 = vector.broadcast %c16_i32 : i32 to vector<288x1xi32>
    %53 = arith.cmpi slt, %51, %52 : vector<288x1xi32>
    %cst_39 = arith.constant 0.000000e+00 : f32
    %54 = vector.shape_cast %53 : vector<288x1xi1> to vector<288x1xi1>
    %55 = vector.broadcast %54 : vector<288x1xi1> to vector<288x128xi1>
    %56 = vector.broadcast %cst_39 : f32 to vector<288x128xf32>
    %57 = arith.select %55, %45, %56 : vector<288x128xi1>, vector<288x128xf32>
    %58 = arith.truncf %57 : vector<288x128xf32> to vector<288x128xbf16>
    %c0_40 = arith.constant 0 : index
    %c0_41 = arith.constant 0 : index
    %c0_42 = arith.constant 0 : index
    %59 = vector.load %arg6[%c0_40, %c0_41, %c0_42] : memref<1x288x128xbf16, #tpu.memory_space<vmem>>, vector<1x288x128xbf16>
    %60 = vector.shape_cast %59 : vector<1x288x128xbf16> to vector<288x128xbf16>
    %61 = vector.shape_cast %58 : vector<288x128xbf16> to vector<1x288x128xbf16>
    tpu.vector_store %arg6[%c0_40, %c0_41, %c0_42], %61 {strides = array<i32>} : memref<1x288x128xbf16, #tpu.memory_space<vmem>>, vector<1x288x128xbf16>,
    return
  }
  func.func @transform_0(%arg0: i32, %arg1: i32) -> (i32, i32, i32) {
    %c0_i32 = arith.constant 0 : i32
    %c0_i32_0 = arith.constant 0 : i32
    return %arg0, %arg1, %c0_i32 : i32, i32, i32
  }
  func.func @transform_1(%arg0: i32, %arg1: i32) -> (i32, i32, i32) {
    %c1_i32 = arith.constant 1 : i32
    %0 = arith.addi %arg1, %c1_i32 : i32
    %c6_i32 = arith.constant 6 : i32
    %1 = arith.muli %0, %c6_i32 : i32
    %c0_i32 = arith.constant 0 : i32
    %c0_i32_0 = arith.constant 0 : i32
    return %arg0, %1, %c0_i32 : i32, i32, i32
  }
  func.func @transform_2(%arg0: i32, %arg1: i32) -> (i32, i32) {
    %c0_i32 = arith.constant 0 : i32
    %c0_i32_0 = arith.constant 0 : i32
    %c0_i32_1 = arith.constant 0 : i32
    return %c0_i32, %c0_i32_0 : i32, i32
  }
  func.func @transform_3(%arg0: i32, %arg1: i32) -> (i32, i32) {
    %c0_i32 = arith.constant 0 : i32
    %c0_i32_0 = arith.constant 0 : i32
    %c0_i32_1 = arith.constant 0 : i32
    return %c0_i32, %c0_i32_0 : i32, i32
  }
  func.func @transform_4(%arg0: i32, %arg1: i32) -> (i32, i32, i32) {
    %c0_i32 = arith.constant 0 : i32
    %c0_i32_0 = arith.constant 0 : i32
    return %arg0, %arg1, %c0_i32 : i32, i32, i32
  }
}

module attributes {stable_mosaic.version = 11 : i64} {
  func.func @_l1_partial_kernel(%arg0: i32, %arg1: i32, %arg2: memref<288x128xbf16, #tpu.memory_space<vmem>>, %arg3: memref<288x128xbf16, #tpu.memory_space<vmem>>, %arg4: memref<1x1x128xf32, #tpu.memory_space<vmem>>) attributes {dimension_semantics = [#tpu.dimension_semantics<parallel>, #tpu.dimension_semantics<arbitrary>], iteration_bounds = array<i64: 2, 1>, scalar_prefetch = 0 : i64, scratch_operands = 0 : i64, tpu.core_type = #tpu.core_type<tc>, window_params = [{transform_indices = @transform_0, window_bounds = array<i64: 288, 128>}, {transform_indices = @transform_1, window_bounds = array<i64: 288, 128>}, {transform_indices = @transform_2, window_bounds = array<i64: 1, 1, 128>}]} {
    %c0_i32 = arith.constant 0 : i32
    %0 = arith.cmpi eq, %arg1, %c0_i32 : i32
    %1 = arith.extui %0 : i1 to i32
    %c0_i32_0 = arith.constant 0 : i32
    %2 = arith.cmpi ne, %1, %c0_i32_0 : i32
    scf.if %2 {
      %cst_10 = arith.constant 0.000000e+00 : f32
      %17 = vector.broadcast %cst_10 : f32 to vector<1x1x128xf32>
      %c0_11 = arith.constant 0 : index
      %c0_12 = arith.constant 0 : index
      %c0_13 = arith.constant 0 : index
      %18 = vector.load %arg4[%c0_11, %c0_12, %c0_13] : memref<1x1x128xf32, #tpu.memory_space<vmem>>, vector<1x1x128xf32>
      tpu.vector_store %arg4[%c0_11, %c0_12, %c0_13], %17 {strides = array<i32>} : memref<1x1x128xf32, #tpu.memory_space<vmem>>, vector<1x1x128xf32>,
    } else {
    }
    %c0 = arith.constant 0 : index
    %c0_1 = arith.constant 0 : index
    %3 = vector.load %arg2[%c0, %c0_1] : memref<288x128xbf16, #tpu.memory_space<vmem>>, vector<288x128xbf16>
    %4 = arith.extf %3 : vector<288x128xbf16> to vector<288x128xf32>
    %c0_2 = arith.constant 0 : index
    %c0_3 = arith.constant 0 : index
    %5 = vector.load %arg3[%c0_2, %c0_3] : memref<288x128xbf16, #tpu.memory_space<vmem>>, vector<288x128xbf16>
    %6 = arith.extf %5 : vector<288x128xbf16> to vector<288x128xf32>
    %7 = arith.subf %4, %6 : vector<288x128xf32>
    %8 = math.absf %7 : vector<288x128xf32>
    %c0_4 = arith.constant 0 : index
    %c0_5 = arith.constant 0 : index
    %c0_6 = arith.constant 0 : index
    %9 = vector.load %arg4[%c0_4, %c0_5, %c0_6] : memref<1x1x128xf32, #tpu.memory_space<vmem>>, vector<1x1x128xf32>
    %10 = vector.shape_cast %9 : vector<1x1x128xf32> to vector<1x128xf32>
    %cst = arith.constant dense<0.000000e+00> : vector<128xf32>
    %11 = vector.multi_reduction <add>, %8, %cst [0] : vector<288x128xf32> to vector<128xf32>
    %12 = vector.shape_cast %11 : vector<128xf32> to vector<1x128xf32>
    %13 = arith.addf %10, %12 : vector<1x128xf32>
    %c0_7 = arith.constant 0 : index
    %c0_8 = arith.constant 0 : index
    %c0_9 = arith.constant 0 : index
    %14 = vector.load %arg4[%c0_7, %c0_8, %c0_9] : memref<1x1x128xf32, #tpu.memory_space<vmem>>, vector<1x1x128xf32>
    %15 = vector.shape_cast %14 : vector<1x1x128xf32> to vector<1x128xf32>
    %16 = vector.shape_cast %13 : vector<1x128xf32> to vector<1x1x128xf32>
    tpu.vector_store %arg4[%c0_7, %c0_8, %c0_9], %16 {strides = array<i32>} : memref<1x1x128xf32, #tpu.memory_space<vmem>>, vector<1x1x128xf32>,
    return
  }
  func.func @transform_0(%arg0: i32, %arg1: i32) -> (i32, i32) {
    %c1_i32 = arith.constant 1 : i32
    %0 = arith.muli %arg0, %c1_i32 : i32
    %1 = arith.addi %0, %arg1 : i32
    %c0_i32 = arith.constant 0 : i32
    %c0_i32_0 = arith.constant 0 : i32
    return %1, %c0_i32 : i32, i32
  }
  func.func @transform_1(%arg0: i32, %arg1: i32) -> (i32, i32) {
    %c1_i32 = arith.constant 1 : i32
    %0 = arith.muli %arg0, %c1_i32 : i32
    %1 = arith.addi %0, %arg1 : i32
    %c0_i32 = arith.constant 0 : i32
    %c0_i32_0 = arith.constant 0 : i32
    return %1, %c0_i32 : i32, i32
  }
  func.func @transform_2(%arg0: i32, %arg1: i32) -> (i32, i32, i32) {
    %c0_i32 = arith.constant 0 : i32
    %c0_i32_0 = arith.constant 0 : i32
    %c0_i32_1 = arith.constant 0 : i32
    return %arg0, %c0_i32, %c0_i32_0 : i32, i32, i32
  }
}

module attributes {stable_mosaic.version = 11 : i64} {
  func.func @_maxpool2x2_relu_kernel(%arg0: i32, %arg1: i32, %arg2: memref<1x8x2x9x2x128xbf16, #tpu.memory_space<vmem>>, %arg3: memref<1x8x10x128xbf16, #tpu.memory_space<vmem>>) attributes {dimension_semantics = [#tpu.dimension_semantics<parallel>, #tpu.dimension_semantics<parallel>], iteration_bounds = array<i64: 2, 1>, scalar_prefetch = 0 : i64, scratch_operands = 0 : i64, tpu.core_type = #tpu.core_type<tc>, window_params = [{transform_indices = @transform_0, window_bounds = array<i64: 1, 8, 2, 9, 2, 128>}, {transform_indices = @transform_1, window_bounds = array<i64: 1, 8, 10, 128>}]} {
    %c0 = arith.constant 0 : index
    %c0_0 = arith.constant 0 : index
    %c0_1 = arith.constant 0 : index
    %c0_2 = arith.constant 0 : index
    %c0_3 = arith.constant 0 : index
    %c0_4 = arith.constant 0 : index
    %0 = vector.load %arg2[%c0, %c0_0, %c0_1, %c0_2, %c0_3, %c0_4] : memref<1x8x2x9x2x128xbf16, #tpu.memory_space<vmem>>, vector<1x8x2x9x2x128xbf16>
    %1 = vector.shape_cast %0 : vector<1x8x2x9x2x128xbf16> to vector<8x2x9x2x128xbf16>
    %2 = vector.extract_strided_slice %1 {offsets = [0, 0, 0, 0, 0], sizes = [8, 1, 9, 1, 128], strides = [1, 1, 1, 1, 1]} : vector<8x2x9x2x128xbf16> to vector<8x1x9x1x128xbf16>
    %3 = vector.shape_cast %2 : vector<8x1x9x1x128xbf16> to vector<8x9x128xbf16>
    %4 = vector.extract_strided_slice %1 {offsets = [0, 0, 0, 1, 0], sizes = [8, 1, 9, 1, 128], strides = [1, 1, 1, 1, 1]} : vector<8x2x9x2x128xbf16> to vector<8x1x9x1x128xbf16>
    %5 = vector.shape_cast %4 : vector<8x1x9x1x128xbf16> to vector<8x9x128xbf16>
    %6 = arith.maximumf %3, %5 : vector<8x9x128xbf16>
    %7 = vector.extract_strided_slice %1 {offsets = [0, 1, 0, 0, 0], sizes = [8, 1, 9, 1, 128], strides = [1, 1, 1, 1, 1]} : vector<8x2x9x2x128xbf16> to vector<8x1x9x1x128xbf16>
    %8 = vector.shape_cast %7 : vector<8x1x9x1x128xbf16> to vector<8x9x128xbf16>
    %9 = vector.extract_strided_slice %1 {offsets = [0, 1, 0, 1, 0], sizes = [8, 1, 9, 1, 128], strides = [1, 1, 1, 1, 1]} : vector<8x2x9x2x128xbf16> to vector<8x1x9x1x128xbf16>
    %10 = vector.shape_cast %9 : vector<8x1x9x1x128xbf16> to vector<8x9x128xbf16>
    %11 = arith.maximumf %8, %10 : vector<8x9x128xbf16>
    %12 = arith.maximumf %6, %11 : vector<8x9x128xbf16>
    %cst = arith.constant 0.000000e+00 : bf16
    %13 = vector.broadcast %cst : bf16 to vector<8x9x128xbf16>
    %14 = arith.maximumf %12, %13 : vector<8x9x128xbf16>
    %cst_5 = arith.constant 0.000000e+00 : bf16
    %15 = vector.broadcast %cst_5 : bf16 to vector<8x1x128xbf16>
    %16 = tpu.concatenate %14, %15 in 1 : vector<8x9x128xbf16>, vector<8x1x128xbf16> -> vector<8x10x128xbf16>
    %c0_6 = arith.constant 0 : index
    %c0_7 = arith.constant 0 : index
    %c0_8 = arith.constant 0 : index
    %c0_9 = arith.constant 0 : index
    %17 = vector.load %arg3[%c0_6, %c0_7, %c0_8, %c0_9] : memref<1x8x10x128xbf16, #tpu.memory_space<vmem>>, vector<1x8x10x128xbf16>
    %18 = vector.shape_cast %17 : vector<1x8x10x128xbf16> to vector<8x10x128xbf16>
    %19 = vector.shape_cast %16 : vector<8x10x128xbf16> to vector<1x8x10x128xbf16>
    tpu.vector_store %arg3[%c0_6, %c0_7, %c0_8, %c0_9], %19 {strides = array<i32>} : memref<1x8x10x128xbf16, #tpu.memory_space<vmem>>, vector<1x8x10x128xbf16>,
    return
  }
  func.func @transform_0(%arg0: i32, %arg1: i32) -> (i32, i32, i32, i32, i32, i32) {
    %c0_i32 = arith.constant 0 : i32
    %c0_i32_0 = arith.constant 0 : i32
    %c0_i32_1 = arith.constant 0 : i32
    %c0_i32_2 = arith.constant 0 : i32
    %c0_i32_3 = arith.constant 0 : i32
    return %arg0, %arg1, %c0_i32, %c0_i32_0, %c0_i32_1, %c0_i32_2 : i32, i32, i32, i32, i32, i32
  }
  func.func @transform_1(%arg0: i32, %arg1: i32) -> (i32, i32, i32, i32) {
    %c0_i32 = arith.constant 0 : i32
    %c0_i32_0 = arith.constant 0 : i32
    %c0_i32_1 = arith.constant 0 : i32
    return %arg0, %arg1, %c0_i32, %c0_i32_0 : i32, i32, i32, i32
  }
}

module attributes {stable_mosaic.version = 11 : i64} {
  func.func @_l1_partial_kernel(%arg0: i32, %arg1: i32, %arg2: memref<80x128xbf16, #tpu.memory_space<vmem>>, %arg3: memref<80x128xbf16, #tpu.memory_space<vmem>>, %arg4: memref<1x1x128xf32, #tpu.memory_space<vmem>>) attributes {dimension_semantics = [#tpu.dimension_semantics<parallel>, #tpu.dimension_semantics<arbitrary>], iteration_bounds = array<i64: 2, 1>, scalar_prefetch = 0 : i64, scratch_operands = 0 : i64, tpu.core_type = #tpu.core_type<tc>, window_params = [{transform_indices = @transform_0, window_bounds = array<i64: 80, 128>}, {transform_indices = @transform_1, window_bounds = array<i64: 80, 128>}, {transform_indices = @transform_2, window_bounds = array<i64: 1, 1, 128>}]} {
    %c0_i32 = arith.constant 0 : i32
    %0 = arith.cmpi eq, %arg1, %c0_i32 : i32
    %1 = arith.extui %0 : i1 to i32
    %c0_i32_0 = arith.constant 0 : i32
    %2 = arith.cmpi ne, %1, %c0_i32_0 : i32
    scf.if %2 {
      %cst_10 = arith.constant 0.000000e+00 : f32
      %17 = vector.broadcast %cst_10 : f32 to vector<1x1x128xf32>
      %c0_11 = arith.constant 0 : index
      %c0_12 = arith.constant 0 : index
      %c0_13 = arith.constant 0 : index
      %18 = vector.load %arg4[%c0_11, %c0_12, %c0_13] : memref<1x1x128xf32, #tpu.memory_space<vmem>>, vector<1x1x128xf32>
      tpu.vector_store %arg4[%c0_11, %c0_12, %c0_13], %17 {strides = array<i32>} : memref<1x1x128xf32, #tpu.memory_space<vmem>>, vector<1x1x128xf32>,
    } else {
    }
    %c0 = arith.constant 0 : index
    %c0_1 = arith.constant 0 : index
    %3 = vector.load %arg2[%c0, %c0_1] : memref<80x128xbf16, #tpu.memory_space<vmem>>, vector<80x128xbf16>
    %4 = arith.extf %3 : vector<80x128xbf16> to vector<80x128xf32>
    %c0_2 = arith.constant 0 : index
    %c0_3 = arith.constant 0 : index
    %5 = vector.load %arg3[%c0_2, %c0_3] : memref<80x128xbf16, #tpu.memory_space<vmem>>, vector<80x128xbf16>
    %6 = arith.extf %5 : vector<80x128xbf16> to vector<80x128xf32>
    %7 = arith.subf %4, %6 : vector<80x128xf32>
    %8 = math.absf %7 : vector<80x128xf32>
    %c0_4 = arith.constant 0 : index
    %c0_5 = arith.constant 0 : index
    %c0_6 = arith.constant 0 : index
    %9 = vector.load %arg4[%c0_4, %c0_5, %c0_6] : memref<1x1x128xf32, #tpu.memory_space<vmem>>, vector<1x1x128xf32>
    %10 = vector.shape_cast %9 : vector<1x1x128xf32> to vector<1x128xf32>
    %cst = arith.constant dense<0.000000e+00> : vector<128xf32>
    %11 = vector.multi_reduction <add>, %8, %cst [0] : vector<80x128xf32> to vector<128xf32>
    %12 = vector.shape_cast %11 : vector<128xf32> to vector<1x128xf32>
    %13 = arith.addf %10, %12 : vector<1x128xf32>
    %c0_7 = arith.constant 0 : index
    %c0_8 = arith.constant 0 : index
    %c0_9 = arith.constant 0 : index
    %14 = vector.load %arg4[%c0_7, %c0_8, %c0_9] : memref<1x1x128xf32, #tpu.memory_space<vmem>>, vector<1x1x128xf32>
    %15 = vector.shape_cast %14 : vector<1x1x128xf32> to vector<1x128xf32>
    %16 = vector.shape_cast %13 : vector<1x128xf32> to vector<1x1x128xf32>
    tpu.vector_store %arg4[%c0_7, %c0_8, %c0_9], %16 {strides = array<i32>} : memref<1x1x128xf32, #tpu.memory_space<vmem>>, vector<1x1x128xf32>,
    return
  }
  func.func @transform_0(%arg0: i32, %arg1: i32) -> (i32, i32) {
    %c1_i32 = arith.constant 1 : i32
    %0 = arith.muli %arg0, %c1_i32 : i32
    %1 = arith.addi %0, %arg1 : i32
    %c0_i32 = arith.constant 0 : i32
    %c0_i32_0 = arith.constant 0 : i32
    return %1, %c0_i32 : i32, i32
  }
  func.func @transform_1(%arg0: i32, %arg1: i32) -> (i32, i32) {
    %c1_i32 = arith.constant 1 : i32
    %0 = arith.muli %arg0, %c1_i32 : i32
    %1 = arith.addi %0, %arg1 : i32
    %c0_i32 = arith.constant 0 : i32
    %c0_i32_0 = arith.constant 0 : i32
    return %1, %c0_i32 : i32, i32
  }
  func.func @transform_2(%arg0: i32, %arg1: i32) -> (i32, i32, i32) {
    %c0_i32 = arith.constant 0 : i32
    %c0_i32_0 = arith.constant 0 : i32
    %c0_i32_1 = arith.constant 0 : i32
    return %arg0, %c0_i32, %c0_i32_0 : i32, i32, i32
  }
}

module attributes {stable_mosaic.version = 11 : i64} {
  func.func @_conv3x3_kernel(%arg0: i32, %arg1: i32, %arg2: memref<1x80x128xbf16, #tpu.memory_space<vmem>>, %arg3: memref<1x40x128xbf16, #tpu.memory_space<vmem>>, %arg4: memref<1152x128xbf16, #tpu.memory_space<vmem>>, %arg5: memref<1x128xf32, #tpu.memory_space<vmem>>, %arg6: memref<1x80x128xbf16, #tpu.memory_space<vmem>>, %arg7: memref<120x128xbf16, #tpu.memory_space<vmem>>) attributes {dimension_semantics = [#tpu.dimension_semantics<parallel>, #tpu.dimension_semantics<parallel>], iteration_bounds = array<i64: 2, 1>, scalar_prefetch = 0 : i64, scratch_operands = 1 : i64, tpu.core_type = #tpu.core_type<tc>, window_params = [{transform_indices = @transform_0, window_bounds = array<i64: 1, 80, 128>}, {transform_indices = @transform_1, window_bounds = array<i64: 1, 40, 128>}, {pipeline_mode = #tpu.pipeline_mode<synchronous>, transform_indices = @transform_2, window_bounds = array<i64: 1152, 128>}, {pipeline_mode = #tpu.pipeline_mode<synchronous>, transform_indices = @transform_3, window_bounds = array<i64: 1, 128>}, {transform_indices = @transform_4, window_bounds = array<i64: 1, 80, 128>}]} {
    %c0 = arith.constant 0 : index
    %c0_0 = arith.constant 0 : index
    %c0_1 = arith.constant 0 : index
    %0 = vector.load %arg2[%c0, %c0_0, %c0_1] : memref<1x80x128xbf16, #tpu.memory_space<vmem>>, vector<1x80x128xbf16>
    %1 = vector.shape_cast %0 : vector<1x80x128xbf16> to vector<80x128xbf16>
    %c0_2 = arith.constant 0 : index
    %c0_3 = arith.constant 0 : index
    %2 = vector.load %arg7[%c0_2, %c0_3] : memref<120x128xbf16, #tpu.memory_space<vmem>>, vector<80x128xbf16>
    tpu.vector_store %arg7[%c0_2, %c0_3], %1 {strides = array<i32>} : memref<120x128xbf16, #tpu.memory_space<vmem>>, vector<80x128xbf16>,
    %c0_4 = arith.constant 0 : index
    %c0_5 = arith.constant 0 : index
    %c0_6 = arith.constant 0 : index
    %3 = vector.load %arg3[%c0_4, %c0_5, %c0_6] : memref<1x40x128xbf16, #tpu.memory_space<vmem>>, vector<1x40x128xbf16>
    %4 = vector.shape_cast %3 : vector<1x40x128xbf16> to vector<40x128xbf16>
    %c80 = arith.constant 80 : index
    %c0_7 = arith.constant 0 : index
    %5 = vector.load %arg7[%c80, %c0_7] : memref<120x128xbf16, #tpu.memory_space<vmem>>, vector<40x128xbf16>
    tpu.vector_store %arg7[%c80, %c0_7], %4 {strides = array<i32>} : memref<120x128xbf16, #tpu.memory_space<vmem>>, vector<40x128xbf16>,
    %cst = arith.constant 0.000000e+00 : f32
    %6 = vector.broadcast %cst : f32 to vector<80x128xf32>
    %c0_8 = arith.constant 0 : index
    %c0_9 = arith.constant 0 : index
    %7 = vector.load %arg7[%c0_8, %c0_9] : memref<120x128xbf16, #tpu.memory_space<vmem>>, vector<80x128xbf16>
    %c0_10 = arith.constant 0 : index
    %c0_11 = arith.constant 0 : index
    %8 = vector.load %arg4[%c0_10, %c0_11] : memref<1152x128xbf16, #tpu.memory_space<vmem>>, vector<128x128xbf16>
    %cst_12 = arith.constant dense<0.000000e+00> : vector<80x128xf32>
    %9 = tpu.matmul %7, %8, %cst_12 {dimension_numbers = #tpu.dot_dimension_numbers<[1], [0], [0], [1], [0, 0, 1, 1], [], []>} : vector<80x128xbf16>, vector<128x128xbf16>, vector<80x128xf32> -> vector<80x128xf32>
    %10 = arith.addf %6, %9 : vector<80x128xf32>
    %c1 = arith.constant 1 : index
    %c0_13 = arith.constant 0 : index
    %11 = vector.load %arg7[%c1, %c0_13] : memref<120x128xbf16, #tpu.memory_space<vmem>>, vector<80x128xbf16>
    %c128 = arith.constant 128 : index
    %c0_14 = arith.constant 0 : index
    %12 = vector.load %arg4[%c128, %c0_14] : memref<1152x128xbf16, #tpu.memory_space<vmem>>, vector<128x128xbf16>
    %cst_15 = arith.constant dense<0.000000e+00> : vector<80x128xf32>
    %13 = tpu.matmul %11, %12, %cst_15 {dimension_numbers = #tpu.dot_dimension_numbers<[1], [0], [0], [1], [0, 0, 1, 1], [], []>} : vector<80x128xbf16>, vector<128x128xbf16>, vector<80x128xf32> -> vector<80x128xf32>
    %14 = arith.addf %10, %13 : vector<80x128xf32>
    %c2 = arith.constant 2 : index
    %c0_16 = arith.constant 0 : index
    %15 = vector.load %arg7[%c2, %c0_16] : memref<120x128xbf16, #tpu.memory_space<vmem>>, vector<80x128xbf16>
    %c256 = arith.constant 256 : index
    %c0_17 = arith.constant 0 : index
    %16 = vector.load %arg4[%c256, %c0_17] : memref<1152x128xbf16, #tpu.memory_space<vmem>>, vector<128x128xbf16>
    %cst_18 = arith.constant dense<0.000000e+00> : vector<80x128xf32>
    %17 = tpu.matmul %15, %16, %cst_18 {dimension_numbers = #tpu.dot_dimension_numbers<[1], [0], [0], [1], [0, 0, 1, 1], [], []>} : vector<80x128xbf16>, vector<128x128xbf16>, vector<80x128xf32> -> vector<80x128xf32>
    %18 = arith.addf %14, %17 : vector<80x128xf32>
    %c10 = arith.constant 10 : index
    %c0_19 = arith.constant 0 : index
    %19 = vector.load %arg7[%c10, %c0_19] : memref<120x128xbf16, #tpu.memory_space<vmem>>, vector<80x128xbf16>
    %c384 = arith.constant 384 : index
    %c0_20 = arith.constant 0 : index
    %20 = vector.load %arg4[%c384, %c0_20] : memref<1152x128xbf16, #tpu.memory_space<vmem>>, vector<128x128xbf16>
    %cst_21 = arith.constant dense<0.000000e+00> : vector<80x128xf32>
    %21 = tpu.matmul %19, %20, %cst_21 {dimension_numbers = #tpu.dot_dimension_numbers<[1], [0], [0], [1], [0, 0, 1, 1], [], []>} : vector<80x128xbf16>, vector<128x128xbf16>, vector<80x128xf32> -> vector<80x128xf32>
    %22 = arith.addf %18, %21 : vector<80x128xf32>
    %c11 = arith.constant 11 : index
    %c0_22 = arith.constant 0 : index
    %23 = vector.load %arg7[%c11, %c0_22] : memref<120x128xbf16, #tpu.memory_space<vmem>>, vector<80x128xbf16>
    %c512 = arith.constant 512 : index
    %c0_23 = arith.constant 0 : index
    %24 = vector.load %arg4[%c512, %c0_23] : memref<1152x128xbf16, #tpu.memory_space<vmem>>, vector<128x128xbf16>
    %cst_24 = arith.constant dense<0.000000e+00> : vector<80x128xf32>
    %25 = tpu.matmul %23, %24, %cst_24 {dimension_numbers = #tpu.dot_dimension_numbers<[1], [0], [0], [1], [0, 0, 1, 1], [], []>} : vector<80x128xbf16>, vector<128x128xbf16>, vector<80x128xf32> -> vector<80x128xf32>
    %26 = arith.addf %22, %25 : vector<80x128xf32>
    %c12 = arith.constant 12 : index
    %c0_25 = arith.constant 0 : index
    %27 = vector.load %arg7[%c12, %c0_25] : memref<120x128xbf16, #tpu.memory_space<vmem>>, vector<80x128xbf16>
    %c640 = arith.constant 640 : index
    %c0_26 = arith.constant 0 : index
    %28 = vector.load %arg4[%c640, %c0_26] : memref<1152x128xbf16, #tpu.memory_space<vmem>>, vector<128x128xbf16>
    %cst_27 = arith.constant dense<0.000000e+00> : vector<80x128xf32>
    %29 = tpu.matmul %27, %28, %cst_27 {dimension_numbers = #tpu.dot_dimension_numbers<[1], [0], [0], [1], [0, 0, 1, 1], [], []>} : vector<80x128xbf16>, vector<128x128xbf16>, vector<80x128xf32> -> vector<80x128xf32>
    %30 = arith.addf %26, %29 : vector<80x128xf32>
    %c20 = arith.constant 20 : index
    %c0_28 = arith.constant 0 : index
    %31 = vector.load %arg7[%c20, %c0_28] : memref<120x128xbf16, #tpu.memory_space<vmem>>, vector<80x128xbf16>
    %c768 = arith.constant 768 : index
    %c0_29 = arith.constant 0 : index
    %32 = vector.load %arg4[%c768, %c0_29] : memref<1152x128xbf16, #tpu.memory_space<vmem>>, vector<128x128xbf16>
    %cst_30 = arith.constant dense<0.000000e+00> : vector<80x128xf32>
    %33 = tpu.matmul %31, %32, %cst_30 {dimension_numbers = #tpu.dot_dimension_numbers<[1], [0], [0], [1], [0, 0, 1, 1], [], []>} : vector<80x128xbf16>, vector<128x128xbf16>, vector<80x128xf32> -> vector<80x128xf32>
    %34 = arith.addf %30, %33 : vector<80x128xf32>
    %c21 = arith.constant 21 : index
    %c0_31 = arith.constant 0 : index
    %35 = vector.load %arg7[%c21, %c0_31] : memref<120x128xbf16, #tpu.memory_space<vmem>>, vector<80x128xbf16>
    %c896 = arith.constant 896 : index
    %c0_32 = arith.constant 0 : index
    %36 = vector.load %arg4[%c896, %c0_32] : memref<1152x128xbf16, #tpu.memory_space<vmem>>, vector<128x128xbf16>
    %cst_33 = arith.constant dense<0.000000e+00> : vector<80x128xf32>
    %37 = tpu.matmul %35, %36, %cst_33 {dimension_numbers = #tpu.dot_dimension_numbers<[1], [0], [0], [1], [0, 0, 1, 1], [], []>} : vector<80x128xbf16>, vector<128x128xbf16>, vector<80x128xf32> -> vector<80x128xf32>
    %38 = arith.addf %34, %37 : vector<80x128xf32>
    %c22 = arith.constant 22 : index
    %c0_34 = arith.constant 0 : index
    %39 = vector.load %arg7[%c22, %c0_34] : memref<120x128xbf16, #tpu.memory_space<vmem>>, vector<80x128xbf16>
    %c1024 = arith.constant 1024 : index
    %c0_35 = arith.constant 0 : index
    %40 = vector.load %arg4[%c1024, %c0_35] : memref<1152x128xbf16, #tpu.memory_space<vmem>>, vector<128x128xbf16>
    %cst_36 = arith.constant dense<0.000000e+00> : vector<80x128xf32>
    %41 = tpu.matmul %39, %40, %cst_36 {dimension_numbers = #tpu.dot_dimension_numbers<[1], [0], [0], [1], [0, 0, 1, 1], [], []>} : vector<80x128xbf16>, vector<128x128xbf16>, vector<80x128xf32> -> vector<80x128xf32>
    %42 = arith.addf %38, %41 : vector<80x128xf32>
    %c0_37 = arith.constant 0 : index
    %c0_38 = arith.constant 0 : index
    %43 = vector.load %arg5[%c0_37, %c0_38] : memref<1x128xf32, #tpu.memory_space<vmem>>, vector<1x128xf32>
    %44 = vector.broadcast %43 : vector<1x128xf32> to vector<80x128xf32>
    %45 = arith.addf %42, %44 : vector<80x128xf32>
    %c80_i32 = arith.constant 80 : i32
    %46 = arith.muli %arg1, %c80_i32 : i32
    %47 = tpu.iota {dimensions = array<i32: 0>} : vector<80x1xi32>
    %48 = vector.broadcast %46 : i32 to vector<80x1xi32>
    %49 = arith.addi %48, %47 : vector<80x1xi32>
    %c10_i32 = arith.constant 10 : i32
    %50 = vector.broadcast %c10_i32 : i32 to vector<80x1xi32>
    %51 = arith.remsi %49, %50 : vector<80x1xi32>
    %c8_i32 = arith.constant 8 : i32
    %52 = vector.broadcast %c8_i32 : i32 to vector<80x1xi32>
    %53 = arith.cmpi slt, %51, %52 : vector<80x1xi32>
    %cst_39 = arith.constant 0.000000e+00 : f32
    %54 = vector.shape_cast %53 : vector<80x1xi1> to vector<80x1xi1>
    %55 = vector.broadcast %54 : vector<80x1xi1> to vector<80x128xi1>
    %56 = vector.broadcast %cst_39 : f32 to vector<80x128xf32>
    %57 = arith.select %55, %45, %56 : vector<80x128xi1>, vector<80x128xf32>
    %58 = arith.truncf %57 : vector<80x128xf32> to vector<80x128xbf16>
    %c0_40 = arith.constant 0 : index
    %c0_41 = arith.constant 0 : index
    %c0_42 = arith.constant 0 : index
    %59 = vector.load %arg6[%c0_40, %c0_41, %c0_42] : memref<1x80x128xbf16, #tpu.memory_space<vmem>>, vector<1x80x128xbf16>
    %60 = vector.shape_cast %59 : vector<1x80x128xbf16> to vector<80x128xbf16>
    %61 = vector.shape_cast %58 : vector<80x128xbf16> to vector<1x80x128xbf16>
    tpu.vector_store %arg6[%c0_40, %c0_41, %c0_42], %61 {strides = array<i32>} : memref<1x80x128xbf16, #tpu.memory_space<vmem>>, vector<1x80x128xbf16>,
    return
  }
  func.func @transform_0(%arg0: i32, %arg1: i32) -> (i32, i32, i32) {
    %c0_i32 = arith.constant 0 : i32
    %c0_i32_0 = arith.constant 0 : i32
    return %arg0, %arg1, %c0_i32 : i32, i32, i32
  }
  func.func @transform_1(%arg0: i32, %arg1: i32) -> (i32, i32, i32) {
    %c1_i32 = arith.constant 1 : i32
    %0 = arith.addi %arg1, %c1_i32 : i32
    %c2_i32 = arith.constant 2 : i32
    %1 = arith.muli %0, %c2_i32 : i32
    %c0_i32 = arith.constant 0 : i32
    %c0_i32_0 = arith.constant 0 : i32
    return %arg0, %1, %c0_i32 : i32, i32, i32
  }
  func.func @transform_2(%arg0: i32, %arg1: i32) -> (i32, i32) {
    %c0_i32 = arith.constant 0 : i32
    %c0_i32_0 = arith.constant 0 : i32
    %c0_i32_1 = arith.constant 0 : i32
    return %c0_i32, %c0_i32_0 : i32, i32
  }
  func.func @transform_3(%arg0: i32, %arg1: i32) -> (i32, i32) {
    %c0_i32 = arith.constant 0 : i32
    %c0_i32_0 = arith.constant 0 : i32
    %c0_i32_1 = arith.constant 0 : i32
    return %c0_i32, %c0_i32_0 : i32, i32
  }
  func.func @transform_4(%arg0: i32, %arg1: i32) -> (i32, i32, i32) {
    %c0_i32 = arith.constant 0 : i32
    %c0_i32_0 = arith.constant 0 : i32
    return %arg0, %arg1, %c0_i32 : i32, i32, i32
  }
}

</mosaic_0001>

<llo_original>
// kernel: content_loss.10
$region0: #{content_loss.10}
  #allocation0 [shape = 'u32[]', space=smem, size = 0x4, offset = 0x4, fixed_abs, tag = 'smem constant byte address 0x4 - core index']
  #allocation1 [shape = 'u32[144,128]{1,0:T(1,128)}', space=vmem, size = 0x12000, scoped, tag = 'internal scratch']
  %s0 = inlined_call_operand.vmem [shape: bf16[2,288,32], index: 0, kind: input, shape index: {}]
  %s1 = inlined_call_operand.vmem [shape: bf16[32,128], index: 1, kind: input, shape index: {}]
  %s2 = inlined_call_operand.vmem [shape: f32[1,128], index: 2, kind: input, shape index: {}]
  %s3 = inlined_call_operand.vmem [shape: bf16[2,288,128], index: 3, kind: output, shape index: {}]
  %s4 = sld [smem:[#allocation0]]
  $region45: #{content_loss.10} parent=0
    _
  %s6 = ssub.s32 1, %s4
  %s7 = scalar_select 0, %s6, %s4
  loop: start=0, step=1, limit=4
  $region2: #{content_loss.10} parent=0 // loop_pre_header
    _
  $region3: #{content_loss.10} parent=0 // loop_header
    %s9 = sphi 0, %s13
    %p10 = scmp.ge.s32.totalorder %s9, 4
    %s16 = sphi 0, %s28
    %s17 = sphi 0, %s24
    %s18 = sphi 0, %s16
    %s19 = sphi 0, %s17
    %s20 = sphi 0, %s18
    %s21 = sphi 0, %s19
    %s33 = sphi 0, %s35
    %s36 = sphi 0, %s33
    %s37 = sphi 0, %s36
    %s53 = sphi 0, %s37
    %s57 = sphi 0, %s57
    %s59 = sphi 0, %s57
    %s60 = sphi 0, %s59
    %s74 = sphi 0, %s60
    %s78 = sphi 0, %s78
    %s80 = sphi 0, %s78
    %s81 = sphi 0, %s80
    %s95 = sphi 0, %s81
    %s103 = sphi 0, %s105
    %s106 = sphi 0, %s103
    %s107 = sphi 0, %s106
    %s123 = sphi 0, %s107
  $region4: #{content_loss.10} parent=0 // loop_header_branch
    %12 = sbr.rel (%p10) target = $region8
  $region5: #{content_loss.10} parent=0 // loop_body
    %s14 = ssub.s32 %s9, 1
    %s15 = ssub.s32 %s9, 2
    %s22 = sadd.s32 1, %s17
    %p23 = scmp.ge.s32.totalorder %s22, 1
    %s24 = scalar_select %p23, 0, %s22
    %s25 = sadd.s32 1, %s16
    %s26 = scalar_select %p23, %s25, %s16
    %p27 = scmp.ge.s32.totalorder %s26, 2
    %s28 = scalar_select %p27, 0, %s26
    %s29 = ssub.s32 %s16, %s28
    %s30 = ssub.s32 %s17, %s24
    %s31 = sor.u32 %s29, %s30
    %p32 = scmp.eq.s32.totalorder %s31, 0
    %s34 = sadd.s32 %s33, 1
    %s35 = scalar_select %p32, %s33, %s34
    %p38 = pneg %p32
    %p39 = scmp.eq.s32.totalorder %s9, 1
    %p40 = por %p38, %p39
    %p41 = scmp.ne.s32.totalorder %s33, %s36
    %p42 = scmp.eq.s32.totalorder %s9, 0
    %p43 = por %p41, %p42
    %p44 = scmp.ne.s32.totalorder %s33, %s36
    %p45 = scmp.eq.s32.totalorder %s14, 1
    %p46 = por %p44, %p45
    %p47 = scmp.ne.s32.totalorder %s36, %s37
    %p48 = scmp.eq.s32.totalorder %s14, 0
    %p49 = por %p47, %p48
    %p50 = scmp.ne.s32.totalorder %s36, %s37
    %p51 = scmp.eq.s32.totalorder %s15, 1
    %p52 = por %p50, %p51
    %p54 = scmp.ne.s32.totalorder %s37, %s53
    %p55 = scmp.eq.s32.totalorder %s15, 0
    %p56 = por %p54, %p55
    %s58 = sadd.s32 %s57, 1
    %p61 = scmp.eq.s32.totalorder %s9, 1
    %p62 = scmp.ne.s32.totalorder %s57, %s59
    %p63 = scmp.eq.s32.totalorder %s9, 0
    %p64 = por %p62, %p63
    %p65 = scmp.ne.s32.totalorder %s57, %s59
    %p66 = scmp.eq.s32.totalorder %s14, 1
    %p67 = por %p65, %p66
    %p68 = scmp.ne.s32.totalorder %s59, %s60
    %p69 = scmp.eq.s32.totalorder %s14, 0
    %p70 = por %p68, %p69
    %p71 = scmp.ne.s32.totalorder %s59, %s60
    %p72 = scmp.eq.s32.totalorder %s15, 1
    %p73 = por %p71, %p72
    %p75 = scmp.ne.s32.totalorder %s60, %s74
    %p76 = scmp.eq.s32.totalorder %s15, 0
    %p77 = por %p75, %p76
    %s79 = sadd.s32 %s78, 1
    %p82 = scmp.eq.s32.totalorder %s9, 1
    %p83 = scmp.ne.s32.totalorder %s78, %s80
    %p84 = scmp.eq.s32.totalorder %s9, 0
    %p85 = por %p83, %p84
    %p86 = scmp.ne.s32.totalorder %s78, %s80
    %p87 = scmp.eq.s32.totalorder %s14, 1
    %p88 = por %p86, %p87
    %p89 = scmp.ne.s32.totalorder %s80, %s81
    %p90 = scmp.eq.s32.totalorder %s14, 0
    %p91 = por %p89, %p90
    %p92 = scmp.ne.s32.totalorder %s80, %s81
    %p93 = scmp.eq.s32.totalorder %s15, 1
    %p94 = por %p92, %p93
    %p96 = scmp.ne.s32.totalorder %s81, %s95
    %p97 = scmp.eq.s32.totalorder %s15, 0
    %p98 = por %p96, %p97
    %s99 = ssub.s32 %s16, %s28
    %s100 = ssub.s32 %s17, %s24
    %s101 = sor.u32 %s99, %s100
    %p102 = scmp.eq.s32.totalorder %s101, 0
    %s104 = sadd.s32 %s103, 1
    %s105 = scalar_select %p102, %s103, %s104
    %p108 = pneg %p102
    %p109 = scmp.eq.s32.totalorder %s9, 1
    %p110 = por %p108, %p109
    %p111 = scmp.ne.s32.totalorder %s103, %s106
    %p112 = scmp.eq.s32.totalorder %s9, 0
    %p113 = por %p111, %p112
    %p114 = scmp.ne.s32.totalorder %s103, %s106
    %p115 = scmp.eq.s32.totalorder %s14, 1
    %p116 = por %p114, %p115
    %p117 = scmp.ne.s32.totalorder %s106, %s107
    %p118 = scmp.eq.s32.totalorder %s14, 0
    %p119 = por %p117, %p118
    %p120 = scmp.ne.s32.totalorder %s106, %s107
    %p121 = scmp.eq.s32.totalorder %s15, 1
    %p122 = por %p120, %p121
    %p124 = scmp.ne.s32.totalorder %s107, %s123
    %p125 = scmp.eq.s32.totalorder %s15, 0
    %p126 = por %p124, %p125
    %p127 = scmp.le.s32.totalorder 1, %s9
    %p128 = scmp.lt.s32.totalorder %s9, 3
    %p129 = pnand %p127, %p128
    %p130 = pneg %p129
    // Predicated region
    $region9: #{content_loss.10} parent=5 // pred_check
      _
    $region10: #{content_loss.10} parent=5 // pred_check_branch
      %132 = sbr.rel (%p129) target = $region12
    $region11: #{content_loss.10} parent=5 // pred_region
      %s133 = ssub.s32 %s9, 1
      // Predicated region
      $region13: #{content_loss.10} parent=11 // pred_check
        %p134 = pneg %p70
      $region14: #{content_loss.10} parent=11 // pred_check_branch
        %136 = sbr.rel (%p134) target = $region16
      $region15: #{content_loss.10} parent=11 // pred_region
        _
      $region16: #{content_loss.10} parent=11 // pred_fallthru
        _
      // Predicated region
      $region17: #{content_loss.10} parent=11 // pred_check
        %p137 = pneg %p91
      $region18: #{content_loss.10} parent=11 // pred_check_branch
        %139 = sbr.rel (%p137) target = $region20
      $region19: #{content_loss.10} parent=11 // pred_region
        _
      $region20: #{content_loss.10} parent=11 // pred_fallthru
        _
    $region12: #{content_loss.10} parent=5 // pred_fallthru
      _
    %p140 = scmp.lt.s32.totalorder %s9, 2
    // Predicated region
    $region21: #{content_loss.10} parent=5 // pred_check
      %p141 = pneg %p140
    $region22: #{content_loss.10} parent=5 // pred_check_branch
      %143 = sbr.rel (%p141) target = $region24
    $region23: #{content_loss.10} parent=5 // pred_region
      // Predicated region
      $region25: #{content_loss.10} parent=23 // pred_check
        %p144 = pneg %p43
      $region26: #{content_loss.10} parent=23 // pred_check_branch
        %146 = sbr.rel (%p144) target = $region28
      $region27: #{content_loss.10} parent=23 // pred_region
        %s147 = smul.u32 36, %s17
        %p148 = scmp.lt.s32.totalorder %s16, 1
        %s149 = scalar_select %p148, %s16, 1
        %p150 = scmp.lt.s32.totalorder %s147, 35
        %s151 = scalar_select %p150, %s147, 35
        %s152 = smul.addr %s149, 36
        %s153 = sadd.s32 %s151, %s152
        %s154 = smul.addr %s153, 4
        %s155 = scalar_lea.vmem %s0, %s154
        %s156 = smul.u32 36, %s17
      $region28: #{content_loss.10} parent=23 // pred_fallthru
        _
    $region24: #{content_loss.10} parent=5 // pred_fallthru
      _
    %p157 = scmp.le.s32.totalorder 1, %s9
    %p158 = scmp.lt.s32.totalorder %s9, 3
    %p159 = pnand %p157, %p158
    %p160 = pneg %p159
    // Predicated region
    $region29: #{content_loss.10} parent=5 // pred_check
      _
    $region30: #{content_loss.10} parent=5 // pred_check_branch
      %162 = sbr.rel (%p159) target = $region32
    $region31: #{content_loss.10} parent=5 // pred_region
      %s163 = ssub.s32 %s9, 1
      %s164 = smul.u32 36, %s19
      %p165 = scmp.lt.s32.totalorder %s18, 1
      %s166 = scalar_select %p165, %s18, 1
      %p167 = scmp.lt.s32.totalorder %s164, 35
      %s168 = scalar_select %p167, %s164, 35
      %s169 = smul.addr %s166, 36
      %s170 = sadd.s32 %s168, %s169
      %s171 = smul.addr %s170, 4
      %s172 = scalar_lea.vmem %s0, %s171
      %p173 = pneg %p49
      %p174 = pneg %p46
      %p175 = pneg %p70
      %p176 = pneg %p67
      %p177 = pneg %p91
      %p178 = pneg %p88
      %p179 = pneg %p119
      %p180 = pneg %p116
      %s181 = smul.u32 36, %s19
      %p182 = scmp.lt.s32.totalorder %s18, 1
      %s183 = scalar_select %p182, %s18, 1
      %p184 = scmp.lt.s32.totalorder %s181, 35
      %s185 = scalar_select %p184, %s181, 35
      %s186 = smul.addr %s183, 36
      %s187 = sadd.s32 %s185, %s186
      %s188 = smul.addr %s187, 4
      %s189 = scalar_lea.vmem %s3, %s188
      %s190 = smul.u32 36, %s19
      %p191 = scmp.lt.s32.totalorder %s18, 1
      %s192 = scalar_select %p191, %s18, 1
      %p193 = scmp.lt.s32.totalorder %s190, 35
      %s194 = scalar_select %p193, %s190, 35
      %s195 = smul.addr %s192, 36
      %s196 = sadd.s32 %s194, %s195
      %s197 = smul.addr %s196, 4
      %s198 = scalar_lea.vmem %s0, %s197
      %s199 = smul.u32 36, %s19
      %s200 = smul.u32 36, %s19
      %p201 = scmp.lt.s32.totalorder %s18, 1
      %s202 = scalar_select %p201, %s18, 1
      %p203 = scmp.lt.s32.totalorder %s200, 35
      %s204 = scalar_select %p203, %s200, 35
      %s205 = smul.addr %s202, 36
      %s206 = sadd.s32 %s204, %s205
      %s207 = smul.addr %s206, 4
      %s208 = scalar_lea.vmem %s3, %s207
      %s209 = smul.u32 36, %s19
      %v211 = vld [vmem:[%s198] sm:$0xf]
      %v212 = vld [vmem:[%s198 + $0x4] sm:$0xf]
      %v213 = vld [vmem:[%s198 + $0x8] sm:$0xf]
      %v214 = vld [vmem:[%s198 + $0xc] sm:$0xf]
      %v215 = vld [vmem:[%s198 + $0x10] sm:$0xf]
      %v216 = vld [vmem:[%s198 + $0x14] sm:$0xf]
      %v217 = vld [vmem:[%s198 + $0x18] sm:$0xf]
      %v218 = vld [vmem:[%s198 + $0x1c] sm:$0xf]
      %v219 = vld [vmem:[%s198 + $0x20] sm:$0xf]
      %v220 = vld [vmem:[%s198 + $0x24] sm:$0xf]
      %v221 = vld [vmem:[%s198 + $0x28] sm:$0xf]
      %v222 = vld [vmem:[%s198 + $0x2c] sm:$0xf]
      %v223 = vld [vmem:[%s198 + $0x30] sm:$0xf]
      %v224 = vld [vmem:[%s198 + $0x34] sm:$0xf]
      %v225 = vld [vmem:[%s198 + $0x38] sm:$0xf]
      %v226 = vld [vmem:[%s198 + $0x3c] sm:$0xf]
      %v227 = vld [vmem:[%s198 + $0x40] sm:$0xf]
      %v228 = vld [vmem:[%s198 + $0x44] sm:$0xf]
      %v229 = vld [vmem:[%s198 + $0x48] sm:$0xf]
      %v230 = vld [vmem:[%s198 + $0x4c] sm:$0xf]
      %v231 = vld [vmem:[%s198 + $0x50] sm:$0xf]
      %v232 = vld [vmem:[%s198 + $0x54] sm:$0xf]
      %v233 = vld [vmem:[%s198 + $0x58] sm:$0xf]
      %v234 = vld [vmem:[%s198 + $0x5c] sm:$0xf]
      %v235 = vld [vmem:[%s198 + $0x60] sm:$0xf]
      %v236 = vld [vmem:[%s198 + $0x64] sm:$0xf]
      %v237 = vld [vmem:[%s198 + $0x68] sm:$0xf]
      %v238 = vld [vmem:[%s198 + $0x6c] sm:$0xf]
      %v239 = vld [vmem:[%s198 + $0x70] sm:$0xf]
      %v240 = vld [vmem:[%s198 + $0x74] sm:$0xf]
      %v241 = vld [vmem:[%s198 + $0x78] sm:$0xf]
      %v242 = vld [vmem:[%s198 + $0x7c] sm:$0xf]
      %v243 = vld [vmem:[%s198 + $0x80] sm:$0xf]
      %v244 = vld [vmem:[%s198 + $0x84] sm:$0xf]
      %v245 = vld [vmem:[%s198 + $0x88] sm:$0xf]
      %v246 = vld [vmem:[%s198 + $0x8c] sm:$0xf]
      %v247 = vld [vmem:[%s1] sm:$0xf]
      %v248 = vld [vmem:[%s1 + $0x4] sm:$0xf]
      %v249 = vld [vmem:[%s1 + $0x8] sm:$0xf]
      %v250 = vld [vmem:[%s1 + $0xc] sm:$0xf]
      %v251 = vld [vmem:[%s2] sm:$0x1]
      %v253 = vlaneseq
      %v254 = vshrl.u32 %v253, 7
      %v255 = vsub.s32 0, %v254
      %v256 = vrot.slane %v251, %v255
      %v294 = vunpack.c.l.b16 %v211
      %v295 = vunpack.c.l.b16 %v212
      %v296 = vunpack.c.l.b16 %v213
      %v297 = vunpack.c.l.b16 %v214
      %v298 = vunpack.c.l.b16 %v215
      %v299 = vunpack.c.l.b16 %v216
      %v300 = vunpack.c.l.b16 %v217
      %v301 = vunpack.c.l.b16 %v218
      %v302 = vunpack.c.l.b16 %v219
      %v303 = vunpack.c.l.b16 %v220
      %v304 = vunpack.c.l.b16 %v221
      %v305 = vunpack.c.l.b16 %v222
      %v306 = vunpack.c.l.b16 %v223
      %v307 = vunpack.c.l.b16 %v224
      %v308 = vunpack.c.l.b16 %v225
      %v309 = vunpack.c.l.b16 %v226
      %v310 = vunpack.c.l.b16 %v227
      %v311 = vunpack.c.l.b16 %v228
      %v312 = vunpack.c.l.b16 %v229
      %v313 = vunpack.c.l.b16 %v230
      %v314 = vunpack.c.l.b16 %v231
      %v315 = vunpack.c.l.b16 %v232
      %v316 = vunpack.c.l.b16 %v233
      %v317 = vunpack.c.l.b16 %v234
      %v318 = vunpack.c.l.b16 %v235
      %v319 = vunpack.c.l.b16 %v236
      %v320 = vunpack.c.l.b16 %v237
      %v321 = vunpack.c.l.b16 %v238
      %v322 = vunpack.c.l.b16 %v239
      %v323 = vunpack.c.l.b16 %v240
      %v324 = vunpack.c.l.b16 %v241
      %v325 = vunpack.c.l.b16 %v242
      %v326 = vunpack.c.l.b16 %v243
      %v327 = vunpack.c.l.b16 %v244
      %v328 = vunpack.c.l.b16 %v245
      %v329 = vunpack.c.l.b16 %v246
      %v330 = vpack.c.b16 %v295, %v294
      %v331 = vpack.c.b16 %v297, %v296
      %v332 = vpack.c.b16 %v299, %v298
      %v333 = vpack.c.b16 %v301, %v300
      %v334 = vpack.c.b16 %v303, %v302
      %v335 = vpack.c.b16 %v305, %v304
      %v336 = vpack.c.b16 %v307, %v306
      %v337 = vpack.c.b16 %v309, %v308
      %v338 = vpack.c.b16 %v311, %v310
      %v339 = vpack.c.b16 %v313, %v312
      %v340 = vpack.c.b16 %v315, %v314
      %v341 = vpack.c.b16 %v317, %v316
      %v342 = vpack.c.b16 %v319, %v318
      %v343 = vpack.c.b16 %v321, %v320
      %v344 = vpack.c.b16 %v323, %v322
      %v345 = vpack.c.b16 %v325, %v324
      %v346 = vpack.c.b16 %v327, %v326
      %v347 = vpack.c.b16 %v329, %v328
      %v352 = vunpack.c.l.b16 %v247
      %v353 = vunpack.c.l.b16 %v248
      %v354 = vunpack.c.l.b16 %v249
      %v355 = vunpack.c.l.b16 %v250
      %v356 = vpack.c.b16 %v353, %v352
      %v357 = vpack.c.b16 %v355, %v354
      %vm360 = vcmask 261120
      %v362 = vsel %vm360, %v330, 0
      %v365 = vsel %vm360, %v331, 0
      %v368 = vsel %vm360, %v332, 0
      %v371 = vsel %vm360, %v333, 0
      %v374 = vsel %vm360, %v334, 0
      %v377 = vsel %vm360, %v335, 0
      %v380 = vsel %vm360, %v336, 0
      %v383 = vsel %vm360, %v337, 0
      %v386 = vsel %vm360, %v338, 0
      %v389 = vsel %vm360, %v339, 0
      %v392 = vsel %vm360, %v340, 0
      %v395 = vsel %vm360, %v341, 0
      %v398 = vsel %vm360, %v342, 0
      %v401 = vsel %vm360, %v343, 0
      %v404 = vsel %vm360, %v344, 0
      %v407 = vsel %vm360, %v345, 0
      %v410 = vsel %vm360, %v346, 0
      %v413 = vsel %vm360, %v347, 0
      %415 = vmatprep.subr.bf16.mxu0 0
      %416 = vmatpush1.bf16.msra.mxu0 %v356
      %417 = vmatprep.subr.bf16.mxu0 0
      %418 = vmatpush1.bf16.msra.mxu0 %v357
      %419 = vmatprep.subr.bf16.mxu0 0
      %420 = vmatpush1.bf16.msra.mxu0 0
      %421 = vmatprep.subr.bf16.mxu0 0
      %422 = vmatpush1.bf16.msra.mxu0 0
      %423 = vmatprep.subr.bf16.mxu0 0
      %424 = vmatpush1.bf16.msra.mxu0 0
      %425 = vmatprep.subr.bf16.mxu0 0
      %426 = vmatpush1.bf16.msra.mxu0 0
      %427 = vmatprep.subr.bf16.mxu0 0
      %428 = vmatpush1.bf16.msra.mxu0 0
      %429 = vmatprep.subr.bf16.mxu0 0
      %430 = vmatpush1.bf16.msra.mxu0 0
      %431 = vmatprep.subr.bf16.mxu0 0
      %432 = vmatpush1.bf16.msra.mxu0 0
      %433 = vmatprep.subr.bf16.mxu0 0
      %434 = vmatpush1.bf16.msra.mxu0 0
      %435 = vmatprep.subr.bf16.mxu0 0
      %436 = vmatpush1.bf16.msra.mxu0 0
      %437 = vmatprep.subr.bf16.mxu0 0
      %438 = vmatpush1.bf16.msra.mxu0 0
      %439 = vmatprep.subr.bf16.mxu0 0
      %440 = vmatpush1.bf16.msra.mxu0 0
      %441 = vmatprep.subr.bf16.mxu0 0
      %442 = vmatpush1.bf16.msra.mxu0 0
      %443 = vmatprep.subr.bf16.mxu0 0
      %444 = vmatpush1.bf16.msra.mxu0 0
      %445 = vmatprep.subr.bf16.mxu0 0
      %446 = vmatpush1.bf16.msra.mxu0 0
      %447 = vmatprep.mubr.bf16.mxu0 0
      %448 = vmatmul.mubr.bf16.gmra.mrb[0].mxu0 %v362
      %v449 = vpop.f32.mrb[0].mxu0
      %v450 = vadd.f32 %v256, %v449
      %v451 = vpop.f32.mrb[0].mxu0
      %v452 = vpop.f32.mrb[0].mxu0
      %v453 = vadd.f32 %v256, %v452
      %v454 = vpop.f32.mrb[0].mxu0
      %455 = vmatprep.mubr.bf16.mxu0 0
      %456 = vmatmul.mubr.bf16.gmra.mrb[0].mxu0 %v365
      %v457 = vpop.f32.mrb[0].mxu0
      %v458 = vadd.f32 %v256, %v457
      %v459 = vpop.f32.mrb[0].mxu0
      %v460 = vpop.f32.mrb[0].mxu0
      %v461 = vadd.f32 %v256, %v460
      %v462 = vpop.f32.mrb[0].mxu0
      %463 = vmatprep.mubr.bf16.mxu0 0
      %464 = vmatmul.mubr.bf16.gmra.mrb[0].mxu0 %v368
      %v465 = vpop.f32.mrb[0].mxu0
      %v466 = vadd.f32 %v256, %v465
      %v467 = vpop.f32.mrb[0].mxu0
      %v468 = vpop.f32.mrb[0].mxu0
      %v469 = vadd.f32 %v256, %v468
      %v470 = vpop.f32.mrb[0].mxu0
      %471 = vmatprep.mubr.bf16.mxu0 0
      %472 = vmatmul.mubr.bf16.gmra.mrb[0].mxu0 %v371
      %v473 = vpop.f32.mrb[0].mxu0
      %v474 = vadd.f32 %v256, %v473
      %v475 = vpop.f32.mrb[0].mxu0
      %v476 = vpop.f32.mrb[0].mxu0
      %v477 = vadd.f32 %v256, %v476
      %v478 = vpop.f32.mrb[0].mxu0
      %479 = vmatprep.mubr.bf16.mxu0 0
      %480 = vmatmul.mubr.bf16.gmra.mrb[0].mxu0 %v374
      %v481 = vpop.f32.mrb[0].mxu0
      %v482 = vadd.f32 %v256, %v481
      %v483 = vpop.f32.mrb[0].mxu0
      %v484 = vpop.f32.mrb[0].mxu0
      %v485 = vadd.f32 %v256, %v484
      %v486 = vpop.f32.mrb[0].mxu0
      %487 = vmatprep.mubr.bf16.mxu0 0
      %488 = vmatmul.mubr.bf16.gmra.mrb[0].mxu0 %v377
      %v489 = vpop.f32.mrb[0].mxu0
      %v490 = vadd.f32 %v256, %v489
      %v491 = vpop.f32.mrb[0].mxu0
      %v492 = vpop.f32.mrb[0].mxu0
      %v493 = vadd.f32 %v256, %v492
      %v494 = vpop.f32.mrb[0].mxu0
      %495 = vmatprep.mubr.bf16.mxu0 0
      %496 = vmatmul.mubr.bf16.gmra.mrb[0].mxu0 %v380
      %v497 = vpop.f32.mrb[0].mxu0
      %v498 = vadd.f32 %v256, %v497
      %v499 = vpop.f32.mrb[0].mxu0
      %v500 = vpop.f32.mrb[0].mxu0
      %v501 = vadd.f32 %v256, %v500
      %v502 = vpop.f32.mrb[0].mxu0
      %503 = vmatprep.mubr.bf16.mxu0 0
      %504 = vmatmul.mubr.bf16.gmra.mrb[0].mxu0 %v383
      %v505 = vpop.f32.mrb[0].mxu0
      %v506 = vadd.f32 %v256, %v505
      %v507 = vpop.f32.mrb[0].mxu0
      %v508 = vpop.f32.mrb[0].mxu0
      %v509 = vadd.f32 %v256, %v508
      %v510 = vpop.f32.mrb[0].mxu0
      %511 = vmatprep.mubr.bf16.mxu0 0
      %512 = vmatmul.mubr.bf16.gmra.mrb[0].mxu0 %v386
      %v513 = vpop.f32.mrb[0].mxu0
      %v514 = vadd.f32 %v256, %v513
      %v515 = vpop.f32.mrb[0].mxu0
      %v516 = vpop.f32.mrb[0].mxu0
      %v517 = vadd.f32 %v256, %v516
      %v518 = vpop.f32.mrb[0].mxu0
      %519 = vmatprep.mubr.bf16.mxu0 0
      %520 = vmatmul.mubr.bf16.gmra.mrb[0].mxu0 %v389
      %v521 = vpop.f32.mrb[0].mxu0
      %v522 = vadd.f32 %v256, %v521
      %v523 = vpop.f32.mrb[0].mxu0
      %v524 = vpop.f32.mrb[0].mxu0
      %v525 = vadd.f32 %v256, %v524
      %v526 = vpop.f32.mrb[0].mxu0
      %527 = vmatprep.mubr.bf16.mxu0 0
      %528 = vmatmul.mubr.bf16.gmra.mrb[0].mxu0 %v392
      %v529 = vpop.f32.mrb[0].mxu0
      %v530 = vadd.f32 %v256, %v529
      %v531 = vpop.f32.mrb[0].mxu0
      %v532 = vpop.f32.mrb[0].mxu0
      %v533 = vadd.f32 %v256, %v532
      %v534 = vpop.f32.mrb[0].mxu0
      %535 = vmatprep.mubr.bf16.mxu0 0
      %536 = vmatmul.mubr.bf16.gmra.mrb[0].mxu0 %v395
      %v537 = vpop.f32.mrb[0].mxu0
      %v538 = vadd.f32 %v256, %v537
      %v539 = vpop.f32.mrb[0].mxu0
      %v540 = vpop.f32.mrb[0].mxu0
      %v541 = vadd.f32 %v256, %v540
      %v542 = vpop.f32.mrb[0].mxu0
      %543 = vmatprep.mubr.bf16.mxu0 0
      %544 = vmatmul.mubr.bf16.gmra.mrb[0].mxu0 %v398
      %v545 = vpop.f32.mrb[0].mxu0
      %v546 = vadd.f32 %v256, %v545
      %v547 = vpop.f32.mrb[0].mxu0
      %v548 = vpop.f32.mrb[0].mxu0
      %v549 = vadd.f32 %v256, %v548
      %v550 = vpop.f32.mrb[0].mxu0
      %551 = vmatprep.mubr.bf16.mxu0 0
      %552 = vmatmul.mubr.bf16.gmra.mrb[0].mxu0 %v401
      %v553 = vpop.f32.mrb[0].mxu0
      %v554 = vadd.f32 %v256, %v553
      %v555 = vpop.f32.mrb[0].mxu0
      %v556 = vpop.f32.mrb[0].mxu0
      %v557 = vadd.f32 %v256, %v556
      %v558 = vpop.f32.mrb[0].mxu0
      %559 = vmatprep.mubr.bf16.mxu0 0
      %560 = vmatmul.mubr.bf16.gmra.mrb[0].mxu0 %v404
      %v561 = vpop.f32.mrb[0].mxu0
      %v562 = vadd.f32 %v256, %v561
      %v563 = vpop.f32.mrb[0].mxu0
      %v564 = vpop.f32.mrb[0].mxu0
      %v565 = vadd.f32 %v256, %v564
      %v566 = vpop.f32.mrb[0].mxu0
      %567 = vmatprep.mubr.bf16.mxu0 0
      %568 = vmatmul.mubr.bf16.gmra.mrb[0].mxu0 %v407
      %v569 = vpop.f32.mrb[0].mxu0
      %v570 = vadd.f32 %v256, %v569
      %v571 = vpop.f32.mrb[0].mxu0
      %v572 = vpop.f32.mrb[0].mxu0
      %v573 = vadd.f32 %v256, %v572
      %v574 = vpop.f32.mrb[0].mxu0
      %575 = vmatprep.mubr.bf16.mxu0 0
      %576 = vmatmul.mubr.bf16.gmra.mrb[0].mxu0 %v410
      %v577 = vpop.f32.mrb[0].mxu0
      %v578 = vadd.f32 %v256, %v577
      %v579 = vpop.f32.mrb[0].mxu0
      %v580 = vpop.f32.mrb[0].mxu0
      %v581 = vadd.f32 %v256, %v580
      %v582 = vpop.f32.mrb[0].mxu0
      %583 = vmatprep.mubr.bf16.mxu0 0
      %584 = vmatmul.mubr.bf16.gmra.mrb[0].mxu0 %v413
      %v585 = vpop.f32.mrb[0].mxu0
      %v586 = vadd.f32 %v256, %v585
      %v587 = vpop.f32.mrb[0].mxu0
      %v588 = vpop.f32.mrb[0].mxu0
      %v589 = vadd.f32 %v256, %v588
      %v590 = vpop.f32.mrb[0].mxu0
      %591 = vdwg.mxu0
      %v592 = vmax.f32 %v450, 0.0
      %v593 = vmax.f32 %v453, 0.0
      %v594 = vmax.f32 %v458, 0.0
      %v595 = vmax.f32 %v461, 0.0
      %v596 = vmax.f32 %v466, 0.0
      %v597 = vmax.f32 %v469, 0.0
      %v598 = vmax.f32 %v474, 0.0
      %v599 = vmax.f32 %v477, 0.0
      %v600 = vmax.f32 %v482, 0.0
      %v601 = vmax.f32 %v485, 0.0
      %v602 = vmax.f32 %v490, 0.0
      %v603 = vmax.f32 %v493, 0.0
      %v604 = vmax.f32 %v498, 0.0
      %v605 = vmax.f32 %v501, 0.0
      %v606 = vmax.f32 %v506, 0.0
      %v607 = vmax.f32 %v509, 0.0
      %v608 = vmax.f32 %v514, 0.0
      %v609 = vmax.f32 %v517, 0.0
      %v610 = vmax.f32 %v522, 0.0
      %v611 = vmax.f32 %v525, 0.0
      %v612 = vmax.f32 %v530, 0.0
      %v613 = vmax.f32 %v533, 0.0
      %v614 = vmax.f32 %v538, 0.0
      %v615 = vmax.f32 %v541, 0.0
      %v616 = vmax.f32 %v546, 0.0
      %v617 = vmax.f32 %v549, 0.0
      %v618 = vmax.f32 %v554, 0.0
      %v619 = vmax.f32 %v557, 0.0
      %v620 = vmax.f32 %v562, 0.0
      %v621 = vmax.f32 %v565, 0.0
      %v622 = vmax.f32 %v570, 0.0
      %v623 = vmax.f32 %v573, 0.0
      %v624 = vmax.f32 %v578, 0.0
      %v625 = vmax.f32 %v581, 0.0
      %v626 = vmax.f32 %v586, 0.0
      %v627 = vmax.f32 %v589, 0.0
      %s628 = smul.u32 %s19, 288
      %v629 = vlaneseq
      %v630 = vshrl.u32 %v629, 7
      %v631 = vadd.s32 %v630, 8
      %v632 = vadd.s32 %v630, 16
      %v633 = vadd.s32 %v630, 24
      %v634 = vadd.s32 %v630, 32
      %v635 = vadd.s32 %v630, 40
      %v636 = vadd.s32 %v630, 48
      %v637 = vadd.s32 %v630, 56
      %v638 = vadd.s32 %v630, 64
      %v639 = vadd.s32 %v630, 72
      %v640 = vadd.s32 %v630, 80
      %v641 = vadd.s32 %v630, 88
      %v642 = vadd.s32 %v630, 96
      %v643 = vadd.s32 %v630, 104
      %v644 = vadd.s32 %v630, 112
      %v645 = vadd.s32 %v630, 120
      %v646 = vadd.s32 %v630, 128
      %v647 = vadd.s32 %v630, 136
      %v648 = vadd.s32 %v630, 144
      %v649 = vadd.s32 %v630, 152
      %v650 = vadd.s32 %v630, 160
      %v651 = vadd.s32 %v630, 168
      %v652 = vadd.s32 %v630, 176
      %v653 = vadd.s32 %v630, 184
      %v654 = vadd.s32 %v630, 192
      %v655 = vadd.s32 %v630, 200
      %v656 = vadd.s32 %v630, 208
      %v657 = vadd.s32 %v630, 216
      %v658 = vadd.s32 %v630, 224
      %v659 = vadd.s32 %v630, 232
      %v660 = vadd.s32 %v630, 240
      %v661 = vadd.s32 %v630, 248
      %v662 = vadd.s32 %v630, 256
      %v663 = vadd.s32 %v630, 264
      %v664 = vadd.s32 %v630, 272
      %v665 = vadd.s32 %v630, 280
      %v666 = vstv %s628
      %v667 = vadd.s32 %v666, %v630
      %v668 = vadd.s32 %v666, %v631
      %v669 = vadd.s32 %v666, %v632
      %v670 = vadd.s32 %v666, %v633
      %v671 = vadd.s32 %v666, %v634
      %v672 = vadd.s32 %v666, %v635
      %v673 = vadd.s32 %v666, %v636
      %v674 = vadd.s32 %v666, %v637
      %v675 = vadd.s32 %v666, %v638
      %v676 = vadd.s32 %v666, %v639
      %v677 = vadd.s32 %v666, %v640
      %v678 = vadd.s32 %v666, %v641
      %v679 = vadd.s32 %v666, %v642
      %v680 = vadd.s32 %v666, %v643
      %v681 = vadd.s32 %v666, %v644
      %v682 = vadd.s32 %v666, %v645
      %v683 = vadd.s32 %v666, %v646
      %v684 = vadd.s32 %v666, %v647
      %v685 = vadd.s32 %v666, %v648
      %v686 = vadd.s32 %v666, %v649
      %v687 = vadd.s32 %v666, %v650
      %v688 = vadd.s32 %v666, %v651
      %v689 = vadd.s32 %v666, %v652
      %v690 = vadd.s32 %v666, %v653
      %v691 = vadd.s32 %v666, %v654
      %v692 = vadd.s32 %v666, %v655
      %v693 = vadd.s32 %v666, %v656
      %v694 = vadd.s32 %v666, %v657
      %v695 = vadd.s32 %v666, %v658
      %v696 = vadd.s32 %v666, %v659
      %v697 = vadd.s32 %v666, %v660
      %v698 = vadd.s32 %v666, %v661
      %v699 = vadd.s32 %v666, %v662
      %v700 = vadd.s32 %v666, %v663
      %v701 = vadd.s32 %v666, %v664
      %v702 = vadd.s32 %v666, %v665
      %vm703 = vcmp.lt.s32.totalorder %v667, 0
      %v704 = vsub.s32 0, %v667
      %v705 = vsel %vm703, %v704, %v667
      %v706 = vmul.u32.u64.compose %v705, 3817748708
      %v707 = vextract.low.u32 %v706
      %v708 = vextract.high.u32 %v706
      %v709 = vshrl.u32 %v708, 4
      %v710 = vmul.u32 %v709, 18
      %v711 = vsub.s32 %v705, %v710
      %v712 = vsub.s32 0, %v711
      %v713 = vsel %vm703, %v712, %v711
      %vm714 = vcmp.lt.s32.totalorder %v668, 0
      %v715 = vsub.s32 0, %v668
      %v716 = vsel %vm714, %v715, %v668
      %v717 = vmul.u32.u64.compose %v716, 3817748708
      %v718 = vextract.low.u32 %v717
      %v719 = vextract.high.u32 %v717
      %v720 = vshrl.u32 %v719, 4
      %v721 = vmul.u32 %v720, 18
      %v722 = vsub.s32 %v716, %v721
      %v723 = vsub.s32 0, %v722
      %v724 = vsel %vm714, %v723, %v722
      %vm725 = vcmp.lt.s32.totalorder %v669, 0
      %v726 = vsub.s32 0, %v669
      %v727 = vsel %vm725, %v726, %v669
      %v728 = vmul.u32.u64.compose %v727, 3817748708
      %v729 = vextract.low.u32 %v728
      %v730 = vextract.high.u32 %v728
      %v731 = vshrl.u32 %v730, 4
      %v732 = vmul.u32 %v731, 18
      %v733 = vsub.s32 %v727, %v732
      %v734 = vsub.s32 0, %v733
      %v735 = vsel %vm725, %v734, %v733
      %vm736 = vcmp.lt.s32.totalorder %v670, 0
      %v737 = vsub.s32 0, %v670
      %v738 = vsel %vm736, %v737, %v670
      %v739 = vmul.u32.u64.compose %v738, 3817748708
      %v740 = vextract.low.u32 %v739
      %v741 = vextract.high.u32 %v739
      %v742 = vshrl.u32 %v741, 4
      %v743 = vmul.u32 %v742, 18
      %v744 = vsub.s32 %v738, %v743
      %v745 = vsub.s32 0, %v744
      %v746 = vsel %vm736, %v745, %v744
      %vm747 = vcmp.lt.s32.totalorder %v671, 0
      %v748 = vsub.s32 0, %v671
      %v749 = vsel %vm747, %v748, %v671
      %v750 = vmul.u32.u64.compose %v749, 3817748708
      %v751 = vextract.low.u32 %v750
      %v752 = vextract.high.u32 %v750
      %v753 = vshrl.u32 %v752, 4
      %v754 = vmul.u32 %v753, 18
      %v755 = vsub.s32 %v749, %v754
      %v756 = vsub.s32 0, %v755
      %v757 = vsel %vm747, %v756, %v755
      %vm758 = vcmp.lt.s32.totalorder %v672, 0
      %v759 = vsub.s32 0, %v672
      %v760 = vsel %vm758, %v759, %v672
      %v761 = vmul.u32.u64.compose %v760, 3817748708
      %v762 = vextract.low.u32 %v761
      %v763 = vextract.high.u32 %v761
      %v764 = vshrl.u32 %v763, 4
      %v765 = vmul.u32 %v764, 18
      %v766 = vsub.s32 %v760, %v765
      %v767 = vsub.s32 0, %v766
      %v768 = vsel %vm758, %v767, %v766
      %vm769 = vcmp.lt.s32.totalorder %v673, 0
      %v770 = vsub.s32 0, %v673
      %v771 = vsel %vm769, %v770, %v673
      %v772 = vmul.u32.u64.compose %v771, 3817748708
      %v773 = vextract.low.u32 %v772
      %v774 = vextract.high.u32 %v772
      %v775 = vshrl.u32 %v774, 4
      %v776 = vmul.u32 %v775, 18
      %v777 = vsub.s32 %v771, %v776
      %v778 = vsub.s32 0, %v777
      %v779 = vsel %vm769, %v778, %v777
      %vm780 = vcmp.lt.s32.totalorder %v674, 0
      %v781 = vsub.s32 0, %v674
      %v782 = vsel %vm780, %v781, %v674
      %v783 = vmul.u32.u64.compose %v782, 3817748708
      %v784 = vextract.low.u32 %v783
      %v785 = vextract.high.u32 %v783
      %v786 = vshrl.u32 %v785, 4
      %v787 = vmul.u32 %v786, 18
      %v788 = vsub.s32 %v782, %v787
      %v789 = vsub.s32 0, %v788
      %v790 = vsel %vm780, %v789, %v788
      %vm791 = vcmp.lt.s32.totalorder %v675, 0
      %v792 = vsub.s32 0, %v675
      %v793 = vsel %vm791, %v792, %v675
      %v794 = vmul.u32.u64.compose %v793, 3817748708
      %v795 = vextract.low.u32 %v794
      %v796 = vextract.high.u32 %v794
      %v797 = vshrl.u32 %v796, 4
      %v798 = vmul.u32 %v797, 18
      %v799 = vsub.s32 %v793, %v798
      %v800 = vsub.s32 0, %v799
      %v801 = vsel %vm791, %v800, %v799
      %vm802 = vcmp.lt.s32.totalorder %v676, 0
      %v803 = vsub.s32 0, %v676
      %v804 = vsel %vm802, %v803, %v676
      %v805 = vmul.u32.u64.compose %v804, 3817748708
      %v806 = vextract.low.u32 %v805
      %v807 = vextract.high.u32 %v805
      %v808 = vshrl.u32 %v807, 4
      %v809 = vmul.u32 %v808, 18
      %v810 = vsub.s32 %v804, %v809
      %v811 = vsub.s32 0, %v810
      %v812 = vsel %vm802, %v811, %v810
      %vm813 = vcmp.lt.s32.totalorder %v677, 0
      %v814 = vsub.s32 0, %v677
      %v815 = vsel %vm813, %v814, %v677
      %v816 = vmul.u32.u64.compose %v815, 3817748708
      %v817 = vextract.low.u32 %v816
      %v818 = vextract.high.u32 %v816
      %v819 = vshrl.u32 %v818, 4
      %v820 = vmul.u32 %v819, 18
      %v821 = vsub.s32 %v815, %v820
      %v822 = vsub.s32 0, %v821
      %v823 = vsel %vm813, %v822, %v821
      %vm824 = vcmp.lt.s32.totalorder %v678, 0
      %v825 = vsub.s32 0, %v678
      %v826 = vsel %vm824, %v825, %v678
      %v827 = vmul.u32.u64.compose %v826, 3817748708
      %v828 = vextract.low.u32 %v827
      %v829 = vextract.high.u32 %v827
      %v830 = vshrl.u32 %v829, 4
      %v831 = vmul.u32 %v830, 18
      %v832 = vsub.s32 %v826, %v831
      %v833 = vsub.s32 0, %v832
      %v834 = vsel %vm824, %v833, %v832
      %vm835 = vcmp.lt.s32.totalorder %v679, 0
      %v836 = vsub.s32 0, %v679
      %v837 = vsel %vm835, %v836, %v679
      %v838 = vmul.u32.u64.compose %v837, 3817748708
      %v839 = vextract.low.u32 %v838
      %v840 = vextract.high.u32 %v838
      %v841 = vshrl.u32 %v840, 4
      %v842 = vmul.u32 %v841, 18
      %v843 = vsub.s32 %v837, %v842
      %v844 = vsub.s32 0, %v843
      %v845 = vsel %vm835, %v844, %v843
      %vm846 = vcmp.lt.s32.totalorder %v680, 0
      %v847 = vsub.s32 0, %v680
      %v848 = vsel %vm846, %v847, %v680
      %v849 = vmul.u32.u64.compose %v848, 3817748708
      %v850 = vextract.low.u32 %v849
      %v851 = vextract.high.u32 %v849
      %v852 = vshrl.u32 %v851, 4
      %v853 = vmul.u32 %v852, 18
      %v854 = vsub.s32 %v848, %v853
      %v855 = vsub.s32 0, %v854
      %v856 = vsel %vm846, %v855, %v854
      %vm857 = vcmp.lt.s32.totalorder %v681, 0
      %v858 = vsub.s32 0, %v681
      %v859 = vsel %vm857, %v858, %v681
      %v860 = vmul.u32.u64.compose %v859, 3817748708
      %v861 = vextract.low.u32 %v860
      %v862 = vextract.high.u32 %v860
      %v863 = vshrl.u32 %v862, 4
      %v864 = vmul.u32 %v863, 18
      %v865 = vsub.s32 %v859, %v864
      %v866 = vsub.s32 0, %v865
      %v867 = vsel %vm857, %v866, %v865
      %vm868 = vcmp.lt.s32.totalorder %v682, 0
      %v869 = vsub.s32 0, %v682
      %v870 = vsel %vm868, %v869, %v682
      %v871 = vmul.u32.u64.compose %v870, 3817748708
      %v872 = vextract.low.u32 %v871
      %v873 = vextract.high.u32 %v871
      %v874 = vshrl.u32 %v873, 4
      %v875 = vmul.u32 %v874, 18
      %v876 = vsub.s32 %v870, %v875
      %v877 = vsub.s32 0, %v876
      %v878 = vsel %vm868, %v877, %v876
      %vm879 = vcmp.lt.s32.totalorder %v683, 0
      %v880 = vsub.s32 0, %v683
      %v881 = vsel %vm879, %v880, %v683
      %v882 = vmul.u32.u64.compose %v881, 3817748708
      %v883 = vextract.low.u32 %v882
      %v884 = vextract.high.u32 %v882
      %v885 = vshrl.u32 %v884, 4
      %v886 = vmul.u32 %v885, 18
      %v887 = vsub.s32 %v881, %v886
      %v888 = vsub.s32 0, %v887
      %v889 = vsel %vm879, %v888, %v887
      %vm890 = vcmp.lt.s32.totalorder %v684, 0
      %v891 = vsub.s32 0, %v684
      %v892 = vsel %vm890, %v891, %v684
      %v893 = vmul.u32.u64.compose %v892, 3817748708
      %v894 = vextract.low.u32 %v893
      %v895 = vextract.high.u32 %v893
      %v896 = vshrl.u32 %v895, 4
      %v897 = vmul.u32 %v896, 18
      %v898 = vsub.s32 %v892, %v897
      %v899 = vsub.s32 0, %v898
      %v900 = vsel %vm890, %v899, %v898
      %vm901 = vcmp.lt.s32.totalorder %v685, 0
      %v902 = vsub.s32 0, %v685
      %v903 = vsel %vm901, %v902, %v685
      %v904 = vmul.u32.u64.compose %v903, 3817748708
      %v905 = vextract.low.u32 %v904
      %v906 = vextract.high.u32 %v904
      %v907 = vshrl.u32 %v906, 4
      %v908 = vmul.u32 %v907, 18
      %v909 = vsub.s32 %v903, %v908
      %v910 = vsub.s32 0, %v909
      %v911 = vsel %vm901, %v910, %v909
      %vm912 = vcmp.lt.s32.totalorder %v686, 0
      %v913 = vsub.s32 0, %v686
      %v914 = vsel %vm912, %v913, %v686
      %v915 = vmul.u32.u64.compose %v914, 3817748708
      %v916 = vextract.low.u32 %v915
      %v917 = vextract.high.u32 %v915
      %v918 = vshrl.u32 %v917, 4
      %v919 = vmul.u32 %v918, 18
      %v920 = vsub.s32 %v914, %v919
      %v921 = vsub.s32 0, %v920
      %v922 = vsel %vm912, %v921, %v920
      %vm923 = vcmp.lt.s32.totalorder %v687, 0
      %v924 = vsub.s32 0, %v687
      %v925 = vsel %vm923, %v924, %v687
      %v926 = vmul.u32.u64.compose %v925, 3817748708
      %v927 = vextract.low.u32 %v926
      %v928 = vextract.high.u32 %v926
      %v929 = vshrl.u32 %v928, 4
      %v930 = vmul.u32 %v929, 18
      %v931 = vsub.s32 %v925, %v930
      %v932 = vsub.s32 0, %v931
      %v933 = vsel %vm923, %v932, %v931
      %vm934 = vcmp.lt.s32.totalorder %v688, 0
      %v935 = vsub.s32 0, %v688
      %v936 = vsel %vm934, %v935, %v688
      %v937 = vmul.u32.u64.compose %v936, 3817748708
      %v938 = vextract.low.u32 %v937
      %v939 = vextract.high.u32 %v937
      %v940 = vshrl.u32 %v939, 4
      %v941 = vmul.u32 %v940, 18
      %v942 = vsub.s32 %v936, %v941
      %v943 = vsub.s32 0, %v942
      %v944 = vsel %vm934, %v943, %v942
      %vm945 = vcmp.lt.s32.totalorder %v689, 0
      %v946 = vsub.s32 0, %v689
      %v947 = vsel %vm945, %v946, %v689
      %v948 = vmul.u32.u64.compose %v947, 3817748708
      %v949 = vextract.low.u32 %v948
      %v950 = vextract.high.u32 %v948
      %v951 = vshrl.u32 %v950, 4
      %v952 = vmul.u32 %v951, 18
      %v953 = vsub.s32 %v947, %v952
      %v954 = vsub.s32 0, %v953
      %v955 = vsel %vm945, %v954, %v953
      %vm956 = vcmp.lt.s32.totalorder %v690, 0
      %v957 = vsub.s32 0, %v690
      %v958 = vsel %vm956, %v957, %v690
      %v959 = vmul.u32.u64.compose %v958, 3817748708
      %v960 = vextract.low.u32 %v959
      %v961 = vextract.high.u32 %v959
      %v962 = vshrl.u32 %v961, 4
      %v963 = vmul.u32 %v962, 18
      %v964 = vsub.s32 %v958, %v963
      %v965 = vsub.s32 0, %v964
      %v966 = vsel %vm956, %v965, %v964
      %vm967 = vcmp.lt.s32.totalorder %v691, 0
      %v968 = vsub.s32 0, %v691
      %v969 = vsel %vm967, %v968, %v691
      %v970 = vmul.u32.u64.compose %v969, 3817748708
      %v971 = vextract.low.u32 %v970
      %v972 = vextract.high.u32 %v970
      %v973 = vshrl.u32 %v972, 4
      %v974 = vmul.u32 %v973, 18
      %v975 = vsub.s32 %v969, %v974
      %v976 = vsub.s32 0, %v975
      %v977 = vsel %vm967, %v976, %v975
      %vm978 = vcmp.lt.s32.totalorder %v692, 0
      %v979 = vsub.s32 0, %v692
      %v980 = vsel %vm978, %v979, %v692
      %v981 = vmul.u32.u64.compose %v980, 3817748708
      %v982 = vextract.low.u32 %v981
      %v983 = vextract.high.u32 %v981
      %v984 = vshrl.u32 %v983, 4
      %v985 = vmul.u32 %v984, 18
      %v986 = vsub.s32 %v980, %v985
      %v987 = vsub.s32 0, %v986
      %v988 = vsel %vm978, %v987, %v986
      %vm989 = vcmp.lt.s32.totalorder %v693, 0
      %v990 = vsub.s32 0, %v693
      %v991 = vsel %vm989, %v990, %v693
      %v992 = vmul.u32.u64.compose %v991, 3817748708
      %v993 = vextract.low.u32 %v992
      %v994 = vextract.high.u32 %v992
      %v995 = vshrl.u32 %v994, 4
      %v996 = vmul.u32 %v995, 18
      %v997 = vsub.s32 %v991, %v996
      %v998 = vsub.s32 0, %v997
      %v999 = vsel %vm989, %v998, %v997
      %vm1000 = vcmp.lt.s32.totalorder %v694, 0
      %v1001 = vsub.s32 0, %v694
      %v1002 = vsel %vm1000, %v1001, %v694
      %v1003 = vmul.u32.u64.compose %v1002, 3817748708
      %v1004 = vextract.low.u32 %v1003
      %v1005 = vextract.high.u32 %v1003
      %v1006 = vshrl.u32 %v1005, 4
      %v1007 = vmul.u32 %v1006, 18
      %v1008 = vsub.s32 %v1002, %v1007
      %v1009 = vsub.s32 0, %v1008
      %v1010 = vsel %vm1000, %v1009, %v1008
      %vm1011 = vcmp.lt.s32.totalorder %v695, 0
      %v1012 = vsub.s32 0, %v695
      %v1013 = vsel %vm1011, %v1012, %v695
      %v1014 = vmul.u32.u64.compose %v1013, 3817748708
      %v1015 = vextract.low.u32 %v1014
      %v1016 = vextract.high.u32 %v1014
      %v1017 = vshrl.u32 %v1016, 4
      %v1018 = vmul.u32 %v1017, 18
      %v1019 = vsub.s32 %v1013, %v1018
      %v1020 = vsub.s32 0, %v1019
      %v1021 = vsel %vm1011, %v1020, %v1019
      %vm1022 = vcmp.lt.s32.totalorder %v696, 0
      %v1023 = vsub.s32 0, %v696
      %v1024 = vsel %vm1022, %v1023, %v696
      %v1025 = vmul.u32.u64.compose %v1024, 3817748708
      %v1026 = vextract.low.u32 %v1025
      %v1027 = vextract.high.u32 %v1025
      %v1028 = vshrl.u32 %v1027, 4
      %v1029 = vmul.u32 %v1028, 18
      %v1030 = vsub.s32 %v1024, %v1029
      %v1031 = vsub.s32 0, %v1030
      %v1032 = vsel %vm1022, %v1031, %v1030
      %vm1033 = vcmp.lt.s32.totalorder %v697, 0
      %v1034 = vsub.s32 0, %v697
      %v1035 = vsel %vm1033, %v1034, %v697
      %v1036 = vmul.u32.u64.compose %v1035, 3817748708
      %v1037 = vextract.low.u32 %v1036
      %v1038 = vextract.high.u32 %v1036
      %v1039 = vshrl.u32 %v1038, 4
      %v1040 = vmul.u32 %v1039, 18
      %v1041 = vsub.s32 %v1035, %v1040
      %v1042 = vsub.s32 0, %v1041
      %v1043 = vsel %vm1033, %v1042, %v1041
      %vm1044 = vcmp.lt.s32.totalorder %v698, 0
      %v1045 = vsub.s32 0, %v698
      %v1046 = vsel %vm1044, %v1045, %v698
      %v1047 = vmul.u32.u64.compose %v1046, 3817748708
      %v1048 = vextract.low.u32 %v1047
      %v1049 = vextract.high.u32 %v1047
      %v1050 = vshrl.u32 %v1049, 4
      %v1051 = vmul.u32 %v1050, 18
      %v1052 = vsub.s32 %v1046, %v1051
      %v1053 = vsub.s32 0, %v1052
      %v1054 = vsel %vm1044, %v1053, %v1052
      %vm1055 = vcmp.lt.s32.totalorder %v699, 0
      %v1056 = vsub.s32 0, %v699
      %v1057 = vsel %vm1055, %v1056, %v699
      %v1058 = vmul.u32.u64.compose %v1057, 3817748708
      %v1059 = vextract.low.u32 %v1058
      %v1060 = vextract.high.u32 %v1058
      %v1061 = vshrl.u32 %v1060, 4
      %v1062 = vmul.u32 %v1061, 18
      %v1063 = vsub.s32 %v1057, %v1062
      %v1064 = vsub.s32 0, %v1063
      %v1065 = vsel %vm1055, %v1064, %v1063
      %vm1066 = vcmp.lt.s32.totalorder %v700, 0
      %v1067 = vsub.s32 0, %v700
      %v1068 = vsel %vm1066, %v1067, %v700
      %v1069 = vmul.u32.u64.compose %v1068, 3817748708
      %v1070 = vextract.low.u32 %v1069
      %v1071 = vextract.high.u32 %v1069
      %v1072 = vshrl.u32 %v1071, 4
      %v1073 = vmul.u32 %v1072, 18
      %v1074 = vsub.s32 %v1068, %v1073
      %v1075 = vsub.s32 0, %v1074
      %v1076 = vsel %vm1066, %v1075, %v1074
      %vm1077 = vcmp.lt.s32.totalorder %v701, 0
      %v1078 = vsub.s32 0, %v701
      %v1079 = vsel %vm1077, %v1078, %v701
      %v1080 = vmul.u32.u64.compose %v1079, 3817748708
      %v1081 = vextract.low.u32 %v1080
      %v1082 = vextract.high.u32 %v1080
      %v1083 = vshrl.u32 %v1082, 4
      %v1084 = vmul.u32 %v1083, 18
      %v1085 = vsub.s32 %v1079, %v1084
      %v1086 = vsub.s32 0, %v1085
      %v1087 = vsel %vm1077, %v1086, %v1085
      %vm1088 = vcmp.lt.s32.totalorder %v702, 0
      %v1089 = vsub.s32 0, %v702
      %v1090 = vsel %vm1088, %v1089, %v702
      %v1091 = vmul.u32.u64.compose %v1090, 3817748708
      %v1092 = vextract.low.u32 %v1091
      %v1093 = vextract.high.u32 %v1091
      %v1094 = vshrl.u32 %v1093, 4
      %v1095 = vmul.u32 %v1094, 18
      %v1096 = vsub.s32 %v1090, %v1095
      %v1097 = vsub.s32 0, %v1096
      %v1098 = vsel %vm1088, %v1097, %v1096
      %vm1099 = vcmp.lt.s32.totalorder %v713, 16
      %vm1100 = vcmp.lt.s32.totalorder %v724, 16
      %vm1101 = vcmp.lt.s32.totalorder %v735, 16
      %vm1102 = vcmp.lt.s32.totalorder %v746, 16
      %vm1103 = vcmp.lt.s32.totalorder %v757, 16
      %vm1104 = vcmp.lt.s32.totalorder %v768, 16
      %vm1105 = vcmp.lt.s32.totalorder %v779, 16
      %vm1106 = vcmp.lt.s32.totalorder %v790, 16
      %vm1107 = vcmp.lt.s32.totalorder %v801, 16
      %vm1108 = vcmp.lt.s32.totalorder %v812, 16
      %vm1109 = vcmp.lt.s32.totalorder %v823, 16
      %vm1110 = vcmp.lt.s32.totalorder %v834, 16
      %vm1111 = vcmp.lt.s32.totalorder %v845, 16
      %vm1112 = vcmp.lt.s32.totalorder %v856, 16
      %vm1113 = vcmp.lt.s32.totalorder %v867, 16
      %vm1114 = vcmp.lt.s32.totalorder %v878, 16
      %vm1115 = vcmp.lt.s32.totalorder %v889, 16
      %vm1116 = vcmp.lt.s32.totalorder %v900, 16
      %vm1117 = vcmp.lt.s32.totalorder %v911, 16
      %vm1118 = vcmp.lt.s32.totalorder %v922, 16
      %vm1119 = vcmp.lt.s32.totalorder %v933, 16
      %vm1120 = vcmp.lt.s32.totalorder %v944, 16
      %vm1121 = vcmp.lt.s32.totalorder %v955, 16
      %vm1122 = vcmp.lt.s32.totalorder %v966, 16
      %vm1123 = vcmp.lt.s32.totalorder %v977, 16
      %vm1124 = vcmp.lt.s32.totalorder %v988, 16
      %vm1125 = vcmp.lt.s32.totalorder %v999, 16
      %vm1126 = vcmp.lt.s32.totalorder %v1010, 16
      %vm1127 = vcmp.lt.s32.totalorder %v1021, 16
      %vm1128 = vcmp.lt.s32.totalorder %v1032, 16
      %vm1129 = vcmp.lt.s32.totalorder %v1043, 16
      %vm1130 = vcmp.lt.s32.totalorder %v1054, 16
      %vm1131 = vcmp.lt.s32.totalorder %v1065, 16
      %vm1132 = vcmp.lt.s32.totalorder %v1076, 16
      %vm1133 = vcmp.lt.s32.totalorder %v1087, 16
      %vm1134 = vcmp.lt.s32.totalorder %v1098, 16
      %v1135 = vsel %vm1099, 1, 0
      %v1136 = vsel %vm1100, 1, 0
      %v1137 = vsel %vm1101, 1, 0
      %v1138 = vsel %vm1102, 1, 0
      %v1139 = vsel %vm1103, 1, 0
      %v1140 = vsel %vm1104, 1, 0
      %v1141 = vsel %vm1105, 1, 0
      %v1142 = vsel %vm1106, 1, 0
      %v1143 = vsel %vm1107, 1, 0
      %v1144 = vsel %vm1108, 1, 0
      %v1145 = vsel %vm1109, 1, 0
      %v1146 = vsel %vm1110, 1, 0
      %v1147 = vsel %vm1111, 1, 0
      %v1148 = vsel %vm1112, 1, 0
      %v1149 = vsel %vm1113, 1, 0
      %v1150 = vsel %vm1114, 1, 0
      %v1151 = vsel %vm1115, 1, 0
      %v1152 = vsel %vm1116, 1, 0
      %v1153 = vsel %vm1117, 1, 0
      %v1154 = vsel %vm1118, 1, 0
      %v1155 = vsel %vm1119, 1, 0
      %v1156 = vsel %vm1120, 1, 0
      %v1157 = vsel %vm1121, 1, 0
      %v1158 = vsel %vm1122, 1, 0
      %v1159 = vsel %vm1123, 1, 0
      %v1160 = vsel %vm1124, 1, 0
      %v1161 = vsel %vm1125, 1, 0
      %v1162 = vsel %vm1126, 1, 0
      %v1163 = vsel %vm1127, 1, 0
      %v1164 = vsel %vm1128, 1, 0
      %v1165 = vsel %vm1129, 1, 0
      %v1166 = vsel %vm1130, 1, 0
      %v1167 = vsel %vm1131, 1, 0
      %v1168 = vsel %vm1132, 1, 0
      %v1169 = vsel %vm1133, 1, 0
      %v1170 = vsel %vm1134, 1, 0
      %vm1171 = vcmp.eq.s32.totalorder %v1135, 1
      %vm1172 = vcmp.eq.s32.totalorder %v1136, 1
      %vm1173 = vcmp.eq.s32.totalorder %v1137, 1
      %vm1174 = vcmp.eq.s32.totalorder %v1138, 1
      %vm1175 = vcmp.eq.s32.totalorder %v1139, 1
      %vm1176 = vcmp.eq.s32.totalorder %v1140, 1
      %vm1177 = vcmp.eq.s32.totalorder %v1141, 1
      %vm1178 = vcmp.eq.s32.totalorder %v1142, 1
      %vm1179 = vcmp.eq.s32.totalorder %v1143, 1
      %vm1180 = vcmp.eq.s32.totalorder %v1144, 1
      %vm1181 = vcmp.eq.s32.totalorder %v1145, 1
      %vm1182 = vcmp.eq.s32.totalorder %v1146, 1
      %vm1183 = vcmp.eq.s32.totalorder %v1147, 1
      %vm1184 = vcmp.eq.s32.totalorder %v1148, 1
      %vm1185 = vcmp.eq.s32.totalorder %v1149, 1
      %vm1186 = vcmp.eq.s32.totalorder %v1150, 1
      %vm1187 = vcmp.eq.s32.totalorder %v1151, 1
      %vm1188 = vcmp.eq.s32.totalorder %v1152, 1
      %vm1189 = vcmp.eq.s32.totalorder %v1153, 1
      %vm1190 = vcmp.eq.s32.totalorder %v1154, 1
      %vm1191 = vcmp.eq.s32.totalorder %v1155, 1
      %vm1192 = vcmp.eq.s32.totalorder %v1156, 1
      %vm1193 = vcmp.eq.s32.totalorder %v1157, 1
      %vm1194 = vcmp.eq.s32.totalorder %v1158, 1
      %vm1195 = vcmp.eq.s32.totalorder %v1159, 1
      %vm1196 = vcmp.eq.s32.totalorder %v1160, 1
      %vm1197 = vcmp.eq.s32.totalorder %v1161, 1
      %vm1198 = vcmp.eq.s32.totalorder %v1162, 1
      %vm1199 = vcmp.eq.s32.totalorder %v1163, 1
      %vm1200 = vcmp.eq.s32.totalorder %v1164, 1
      %vm1201 = vcmp.eq.s32.totalorder %v1165, 1
      %vm1202 = vcmp.eq.s32.totalorder %v1166, 1
      %vm1203 = vcmp.eq.s32.totalorder %v1167, 1
      %vm1204 = vcmp.eq.s32.totalorder %v1168, 1
      %vm1205 = vcmp.eq.s32.totalorder %v1169, 1
      %vm1206 = vcmp.eq.s32.totalorder %v1170, 1
      %v1207 = vsel %vm1171, %v592, 0.0
      %v1208 = vsel %vm1172, %v593, 0.0
      %v1209 = vsel %vm1173, %v594, 0.0
      %v1210 = vsel %vm1174, %v595, 0.0
      %v1211 = vsel %vm1175, %v596, 0.0
      %v1212 = vsel %vm1176, %v597, 0.0
      %v1213 = vsel %vm1177, %v598, 0.0
      %v1214 = vsel %vm1178, %v599, 0.0
      %v1215 = vsel %vm1179, %v600, 0.0
      %v1216 = vsel %vm1180, %v601, 0.0
      %v1217 = vsel %vm1181, %v602, 0.0
      %v1218 = vsel %vm1182, %v603, 0.0
      %v1219 = vsel %vm1183, %v604, 0.0
      %v1220 = vsel %vm1184, %v605, 0.0
      %v1221 = vsel %vm1185, %v606, 0.0
      %v1222 = vsel %vm1186, %v607, 0.0
      %v1223 = vsel %vm1187, %v608, 0.0
      %v1224 = vsel %vm1188, %v609, 0.0
      %v1225 = vsel %vm1189, %v610, 0.0
      %v1226 = vsel %vm1190, %v611, 0.0
      %v1227 = vsel %vm1191, %v612, 0.0
      %v1228 = vsel %vm1192, %v613, 0.0
      %v1229 = vsel %vm1193, %v614, 0.0
      %v1230 = vsel %vm1194, %v615, 0.0
      %v1231 = vsel %vm1195, %v616, 0.0
      %v1232 = vsel %vm1196, %v617, 0.0
      %v1233 = vsel %vm1197, %v618, 0.0
      %v1234 = vsel %vm1198, %v619, 0.0
      %v1235 = vsel %vm1199, %v620, 0.0
      %v1236 = vsel %vm1200, %v621, 0.0
      %v1237 = vsel %vm1201, %v622, 0.0
      %v1238 = vsel %vm1202, %v623, 0.0
      %v1239 = vsel %vm1203, %v624, 0.0
      %v1240 = vsel %vm1204, %v625, 0.0
      %v1241 = vsel %vm1205, %v626, 0.0
      %v1242 = vsel %vm1206, %v627, 0.0
      %v1243 = vpack.c.bf16 %v1208, %v1207
      %v1244 = vpack.c.bf16 %v1210, %v1209
      %v1245 = vpack.c.bf16 %v1212, %v1211
      %v1246 = vpack.c.bf16 %v1214, %v1213
      %v1247 = vpack.c.bf16 %v1216, %v1215
      %v1248 = vpack.c.bf16 %v1218, %v1217
      %v1249 = vpack.c.bf16 %v1220, %v1219
      %v1250 = vpack.c.bf16 %v1222, %v1221
      %v1251 = vpack.c.bf16 %v1224, %v1223
      %v1252 = vpack.c.bf16 %v1226, %v1225
      %v1253 = vpack.c.bf16 %v1228, %v1227
      %v1254 = vpack.c.bf16 %v1230, %v1229
      %v1255 = vpack.c.bf16 %v1232, %v1231
      %v1256 = vpack.c.bf16 %v1234, %v1233
      %v1257 = vpack.c.bf16 %v1236, %v1235
      %v1258 = vpack.c.bf16 %v1238, %v1237
      %v1259 = vpack.c.bf16 %v1240, %v1239
      %v1260 = vpack.c.bf16 %v1242, %v1241
      %v1279 = vunpack.c.l.b16 %v1243
      %v1280 = vunpack.c.h.b16 %v1243
      %v1281 = vunpack.c.l.b16 %v1244
      %v1282 = vunpack.c.h.b16 %v1244
      %v1283 = vunpack.c.l.b16 %v1245
      %v1284 = vunpack.c.h.b16 %v1245
      %v1285 = vunpack.c.l.b16 %v1246
      %v1286 = vunpack.c.h.b16 %v1246
      %v1287 = vunpack.c.l.b16 %v1247
      %v1288 = vunpack.c.h.b16 %v1247
      %v1289 = vunpack.c.l.b16 %v1248
      %v1290 = vunpack.c.h.b16 %v1248
      %v1291 = vunpack.c.l.b16 %v1249
      %v1292 = vunpack.c.h.b16 %v1249
      %v1293 = vunpack.c.l.b16 %v1250
      %v1294 = vunpack.c.h.b16 %v1250
      %v1295 = vunpack.c.l.b16 %v1251
      %v1296 = vunpack.c.h.b16 %v1251
      %v1297 = vunpack.c.l.b16 %v1252
      %v1298 = vunpack.c.h.b16 %v1252
      %v1299 = vunpack.c.l.b16 %v1253
      %v1300 = vunpack.c.h.b16 %v1253
      %v1301 = vunpack.c.l.b16 %v1254
      %v1302 = vunpack.c.h.b16 %v1254
      %v1303 = vunpack.c.l.b16 %v1255
      %v1304 = vunpack.c.h.b16 %v1255
      %v1305 = vunpack.c.l.b16 %v1256
      %v1306 = vunpack.c.h.b16 %v1256
      %v1307 = vunpack.c.l.b16 %v1257
      %v1308 = vunpack.c.h.b16 %v1257
      %v1309 = vunpack.c.l.b16 %v1258
      %v1310 = vunpack.c.h.b16 %v1258
      %v1311 = vunpack.c.l.b16 %v1259
      %v1312 = vunpack.c.h.b16 %v1259
      %v1313 = vunpack.c.l.b16 %v1260
      %v1314 = vunpack.c.h.b16 %v1260
      %v1315 = vpack.c.b16 %v1279, %v1279
      %v1316 = vpack.c.b16 %v1280, %v1280
      %v1317 = vpack.c.b16 %v1281, %v1281
      %v1318 = vpack.c.b16 %v1282, %v1282
      %v1319 = vpack.c.b16 %v1283, %v1283
      %v1320 = vpack.c.b16 %v1284, %v1284
      %v1321 = vpack.c.b16 %v1285, %v1285
      %v1322 = vpack.c.b16 %v1286, %v1286
      %v1323 = vpack.c.b16 %v1287, %v1287
      %v1324 = vpack.c.b16 %v1288, %v1288
      %v1325 = vpack.c.b16 %v1289, %v1289
      %v1326 = vpack.c.b16 %v1290, %v1290
      %v1327 = vpack.c.b16 %v1291, %v1291
      %v1328 = vpack.c.b16 %v1292, %v1292
      %v1329 = vpack.c.b16 %v1293, %v1293
      %v1330 = vpack.c.b16 %v1294, %v1294
      %v1331 = vpack.c.b16 %v1295, %v1295
      %v1332 = vpack.c.b16 %v1296, %v1296
      %v1333 = vpack.c.b16 %v1297, %v1297
      %v1334 = vpack.c.b16 %v1298, %v1298
      %v1335 = vpack.c.b16 %v1299, %v1299
      %v1336 = vpack.c.b16 %v1300, %v1300
      %v1337 = vpack.c.b16 %v1301, %v1301
      %v1338 = vpack.c.b16 %v1302, %v1302
      %v1339 = vpack.c.b16 %v1303, %v1303
      %v1340 = vpack.c.b16 %v1304, %v1304
      %v1341 = vpack.c.b16 %v1305, %v1305
      %v1342 = vpack.c.b16 %v1306, %v1306
      %v1343 = vpack.c.b16 %v1307, %v1307
      %v1344 = vpack.c.b16 %v1308, %v1308
      %v1345 = vpack.c.b16 %v1309, %v1309
      %v1346 = vpack.c.b16 %v1310, %v1310
      %v1347 = vpack.c.b16 %v1311, %v1311
      %v1348 = vpack.c.b16 %v1312, %v1312
      %v1349 = vpack.c.b16 %v1313, %v1313
      %v1350 = vpack.c.b16 %v1314, %v1314
      %1387 = vst [vmem:[%s208] sm:$0xf] %v1315
      %1388 = vst [vmem:[%s208 + $0x4] sm:$0xf] %v1316
      %1389 = vst [vmem:[%s208 + $0x8] sm:$0xf] %v1317
      %1390 = vst [vmem:[%s208 + $0xc] sm:$0xf] %v1318
      %1391 = vst [vmem:[%s208 + $0x10] sm:$0xf] %v1319
      %1392 = vst [vmem:[%s208 + $0x14] sm:$0xf] %v1320
      %1393 = vst [vmem:[%s208 + $0x18] sm:$0xf] %v1321
      %1394 = vst [vmem:[%s208 + $0x1c] sm:$0xf] %v1322
      %1395 = vst [vmem:[%s208 + $0x20] sm:$0xf] %v1323
      %1396 = vst [vmem:[%s208 + $0x24] sm:$0xf] %v1324
      %1397 = vst [vmem:[%s208 + $0x28] sm:$0xf] %v1325
      %1398 = vst [vmem:[%s208 + $0x2c] sm:$0xf] %v1326
      %1399 = vst [vmem:[%s208 + $0x30] sm:$0xf] %v1327
      %1400 = vst [vmem:[%s208 + $0x34] sm:$0xf] %v1328
      %1401 = vst [vmem:[%s208 + $0x38] sm:$0xf] %v1329
      %1402 = vst [vmem:[%s208 + $0x3c] sm:$0xf] %v1330
      %1403 = vst [vmem:[%s208 + $0x40] sm:$0xf] %v1331
      %1404 = vst [vmem:[%s208 + $0x44] sm:$0xf] %v1332
      %1405 = vst [vmem:[%s208 + $0x48] sm:$0xf] %v1333
      %1406 = vst [vmem:[%s208 + $0x4c] sm:$0xf] %v1334
      %1407 = vst [vmem:[%s208 + $0x50] sm:$0xf] %v1335
      %1408 = vst [vmem:[%s208 + $0x54] sm:$0xf] %v1336
      %1409 = vst [vmem:[%s208 + $0x58] sm:$0xf] %v1337
      %1410 = vst [vmem:[%s208 + $0x5c] sm:$0xf] %v1338
      %1411 = vst [vmem:[%s208 + $0x60] sm:$0xf] %v1339
      %1412 = vst [vmem:[%s208 + $0x64] sm:$0xf] %v1340
      %1413 = vst [vmem:[%s208 + $0x68] sm:$0xf] %v1341
      %1414 = vst [vmem:[%s208 + $0x6c] sm:$0xf] %v1342
      %1415 = vst [vmem:[%s208 + $0x70] sm:$0xf] %v1343
      %1416 = vst [vmem:[%s208 + $0x74] sm:$0xf] %v1344
      %1417 = vst [vmem:[%s208 + $0x78] sm:$0xf] %v1345
      %1418 = vst [vmem:[%s208 + $0x7c] sm:$0xf] %v1346
      %1419 = vst [vmem:[%s208 + $0x80] sm:$0xf] %v1347
      %1420 = vst [vmem:[%s208 + $0x84] sm:$0xf] %v1348
      %1421 = vst [vmem:[%s208 + $0x88] sm:$0xf] %v1349
      %1422 = vst [vmem:[%s208 + $0x8c] sm:$0xf] %v1350
      %s1423 = smul.u32 36, %s19
      %p1424 = scmp.lt.s32.totalorder %s18, 1
      %s1425 = scalar_select %p1424, %s18, 1
      %p1426 = scmp.lt.s32.totalorder %s1423, 35
      %s1427 = scalar_select %p1426, %s1423, 35
      %s1428 = smul.addr %s1425, 36
      %s1429 = sadd.s32 %s1427, %s1428
      %s1430 = smul.addr %s1429, 4
      %s1431 = scalar_lea.vmem %s3, %s1430
      // Predicated region
      $region33: #{content_loss.10} parent=31 // pred_check
        %p1432 = pneg %p116
      $region34: #{content_loss.10} parent=31 // pred_check_branch
        %1434 = sbr.rel (%p1432) target = $region36
      $region35: #{content_loss.10} parent=31 // pred_region
        %s1435 = smul.u32 36, %s19
      $region36: #{content_loss.10} parent=31 // pred_fallthru
        _
    $region32: #{content_loss.10} parent=5 // pred_fallthru
      _
    %p1436 = scmp.le.s32.totalorder 2, %s9
    // Predicated region
    $region37: #{content_loss.10} parent=5 // pred_check
      %p1437 = pneg %p1436
    $region38: #{content_loss.10} parent=5 // pred_check_branch
      %1439 = sbr.rel (%p1437) target = $region40
    $region39: #{content_loss.10} parent=5 // pred_region
      %s1440 = ssub.s32 %s9, 2
      // Predicated region
      $region41: #{content_loss.10} parent=39 // pred_check
        %p1441 = pneg %p122
      $region42: #{content_loss.10} parent=39 // pred_check_branch
        %1443 = sbr.rel (%p1441) target = $region44
      $region43: #{content_loss.10} parent=39 // pred_region
        %s1444 = smul.u32 36, %s21
        %p1445 = scmp.lt.s32.totalorder %s20, 1
        %s1446 = scalar_select %p1445, %s20, 1
        %p1447 = scmp.lt.s32.totalorder %s1444, 35
        %s1448 = scalar_select %p1447, %s1444, 35
        %s1449 = smul.addr %s1446, 36
        %s1450 = sadd.s32 %s1448, %s1449
        %s1451 = smul.addr %s1450, 4
        %s1452 = scalar_lea.vmem %s3, %s1451
      $region44: #{content_loss.10} parent=39 // pred_fallthru
        _
    $region40: #{content_loss.10} parent=5 // pred_fallthru
      _
  $region6: #{content_loss.10} parent=0 // loop_footer
    %s13 = sadd.s32 1, %s9
  $region7: #{content_loss.10} parent=0 // loop_footer_branch
    %8 = sbr.rel target = $region3
  $region8: #{content_loss.10} parent=0 // loop_exit
    _

// kernel: content_loss.18
$region0: #{content_loss.18}
  #allocation0 [shape = 'u32[]', space=smem, size = 0x4, offset = 0x4, fixed_abs, tag = 'smem constant byte address 0x4 - core index']
  #allocation1 [shape = 'u32[144,128]{1,0:T(1,128)}', space=vmem, size = 0x12000, scoped, tag = 'internal scratch']
  %s0 = inlined_call_operand.vmem [shape: bf16[576,128], index: 0, kind: input, shape index: {}]
  %s1 = inlined_call_operand.vmem [shape: bf16[576,128], index: 1, kind: input, shape index: {}]
  %s2 = inlined_call_operand.vmem [shape: f32[2,1,128], index: 2, kind: output, shape index: {}]
  %s3 = sld [smem:[#allocation0]]
  $region45: #{content_loss.18} parent=0
    _
  %s5 = ssub.s32 1, %s3
  %s6 = scalar_select 0, %s5, %s3
  loop: start=0, step=1, limit=4
  $region2: #{content_loss.18} parent=0 // loop_pre_header
    _
  $region3: #{content_loss.18} parent=0 // loop_header
    %s8 = sphi 0, %s12
    %p9 = scmp.ge.s32.totalorder %s8, 4
    %s15 = sphi 0, %s27
    %s16 = sphi 0, %s23
    %s17 = sphi 0, %s15
    %s18 = sphi 0, %s16
    %s19 = sphi 0, %s17
    %s20 = sphi 0, %s18
    %s32 = sphi 0, %s34
    %s35 = sphi 0, %s32
    %s36 = sphi 0, %s35
    %s52 = sphi 0, %s36
    %s60 = sphi 0, %s62
    %s63 = sphi 0, %s60
    %s64 = sphi 0, %s63
    %s80 = sphi 0, %s64
    %s86 = sphi 0, %s88
    %s89 = sphi 0, %s86
    %s90 = sphi 0, %s89
    %s106 = sphi 0, %s90
  $region4: #{content_loss.18} parent=0 // loop_header_branch
    %11 = sbr.rel (%p9) target = $region8
  $region5: #{content_loss.18} parent=0 // loop_body
    %s13 = ssub.s32 %s8, 1
    %s14 = ssub.s32 %s8, 2
    %s21 = sadd.s32 1, %s16
    %p22 = scmp.ge.s32.totalorder %s21, 1
    %s23 = scalar_select %p22, 0, %s21
    %s24 = sadd.s32 1, %s15
    %s25 = scalar_select %p22, %s24, %s15
    %p26 = scmp.ge.s32.totalorder %s25, 2
    %s27 = scalar_select %p26, 0, %s25
    %s28 = sadd.s32 %s15, %s16
    %s29 = sadd.s32 %s27, %s23
    %s30 = ssub.s32 %s28, %s29
    %p31 = scmp.eq.s32.totalorder %s30, 0
    %s33 = sadd.s32 %s32, 1
    %s34 = scalar_select %p31, %s32, %s33
    %p37 = pneg %p31
    %p38 = scmp.eq.s32.totalorder %s8, 1
    %p39 = por %p37, %p38
    %p40 = scmp.ne.s32.totalorder %s32, %s35
    %p41 = scmp.eq.s32.totalorder %s8, 0
    %p42 = por %p40, %p41
    %p43 = scmp.ne.s32.totalorder %s32, %s35
    %p44 = scmp.eq.s32.totalorder %s13, 1
    %p45 = por %p43, %p44
    %p46 = scmp.ne.s32.totalorder %s35, %s36
    %p47 = scmp.eq.s32.totalorder %s13, 0
    %p48 = por %p46, %p47
    %p49 = scmp.ne.s32.totalorder %s35, %s36
    %p50 = scmp.eq.s32.totalorder %s14, 1
    %p51 = por %p49, %p50
    %p53 = scmp.ne.s32.totalorder %s36, %s52
    %p54 = scmp.eq.s32.totalorder %s14, 0
    %p55 = por %p53, %p54
    %s56 = sadd.s32 %s15, %s16
    %s57 = sadd.s32 %s27, %s23
    %s58 = ssub.s32 %s56, %s57
    %p59 = scmp.eq.s32.totalorder %s58, 0
    %s61 = sadd.s32 %s60, 1
    %s62 = scalar_select %p59, %s60, %s61
    %p65 = pneg %p59
    %p66 = scmp.eq.s32.totalorder %s8, 1
    %p67 = por %p65, %p66
    %p68 = scmp.ne.s32.totalorder %s60, %s63
    %p69 = scmp.eq.s32.totalorder %s8, 0
    %p70 = por %p68, %p69
    %p71 = scmp.ne.s32.totalorder %s60, %s63
    %p72 = scmp.eq.s32.totalorder %s13, 1
    %p73 = por %p71, %p72
    %p74 = scmp.ne.s32.totalorder %s63, %s64
    %p75 = scmp.eq.s32.totalorder %s13, 0
    %p76 = por %p74, %p75
    %p77 = scmp.ne.s32.totalorder %s63, %s64
    %p78 = scmp.eq.s32.totalorder %s14, 1
    %p79 = por %p77, %p78
    %p81 = scmp.ne.s32.totalorder %s64, %s80
    %p82 = scmp.eq.s32.totalorder %s14, 0
    %p83 = por %p81, %p82
    %s84 = ssub.s32 %s15, %s27
    %p85 = scmp.eq.s32.totalorder %s84, 0
    %s87 = sadd.s32 %s86, 1
    %s88 = scalar_select %p85, %s86, %s87
    %p91 = pneg %p85
    %p92 = scmp.eq.s32.totalorder %s8, 1
    %p93 = por %p91, %p92
    %p94 = scmp.ne.s32.totalorder %s86, %s89
    %p95 = scmp.eq.s32.totalorder %s8, 0
    %p96 = por %p94, %p95
    %p97 = scmp.ne.s32.totalorder %s86, %s89
    %p98 = scmp.eq.s32.totalorder %s13, 1
    %p99 = por %p97, %p98
    %p100 = scmp.ne.s32.totalorder %s89, %s90
    %p101 = scmp.eq.s32.totalorder %s13, 0
    %p102 = por %p100, %p101
    %p103 = scmp.ne.s32.totalorder %s89, %s90
    %p104 = scmp.eq.s32.totalorder %s14, 1
    %p105 = por %p103, %p104
    %p107 = scmp.ne.s32.totalorder %s90, %s106
    %p108 = scmp.eq.s32.totalorder %s14, 0
    %p109 = por %p107, %p108
    %p110 = scmp.le.s32.totalorder 1, %s8
    %p111 = scmp.lt.s32.totalorder %s8, 3
    %p112 = pnand %p110, %p111
    %p113 = pneg %p112
    // Predicated region
    $region9: #{content_loss.18} parent=5 // pred_check
      _
    $region10: #{content_loss.18} parent=5 // pred_check_branch
      %115 = sbr.rel (%p112) target = $region12
    $region11: #{content_loss.18} parent=5 // pred_region
      %s116 = ssub.s32 %s8, 1
    $region12: #{content_loss.18} parent=5 // pred_fallthru
      _
    %p117 = scmp.lt.s32.totalorder %s8, 2
    // Predicated region
    $region13: #{content_loss.18} parent=5 // pred_check
      %p118 = pneg %p117
    $region14: #{content_loss.18} parent=5 // pred_check_branch
      %120 = sbr.rel (%p118) target = $region16
    $region15: #{content_loss.18} parent=5 // pred_region
      // Predicated region
      $region17: #{content_loss.18} parent=15 // pred_check
        %p121 = pneg %p42
      $region18: #{content_loss.18} parent=15 // pred_check_branch
        %123 = sbr.rel (%p121) target = $region20
      $region19: #{content_loss.18} parent=15 // pred_region
        %s124 = sadd.s32 %s15, %s16
        %s125 = smul.u32 36, %s124
        %p126 = scmp.lt.s32.totalorder %s125, 71
        %s127 = scalar_select %p126, %s125, 71
        %s128 = smul.addr %s127, 4
        %s129 = scalar_lea.vmem %s0, %s128
        %s130 = sadd.s32 %s15, %s16
        %s131 = smul.u32 36, %s130
      $region20: #{content_loss.18} parent=15 // pred_fallthru
        _
      // Predicated region
      $region21: #{content_loss.18} parent=15 // pred_check
        %p132 = pneg %p70
      $region22: #{content_loss.18} parent=15 // pred_check_branch
        %134 = sbr.rel (%p132) target = $region24
      $region23: #{content_loss.18} parent=15 // pred_region
        %s135 = sadd.s32 %s15, %s16
        %s136 = smul.u32 36, %s135
        %p137 = scmp.lt.s32.totalorder %s136, 71
        %s138 = scalar_select %p137, %s136, 71
        %s139 = smul.addr %s138, 4
        %s140 = scalar_lea.vmem %s1, %s139
        %s141 = sadd.s32 %s15, %s16
        %s142 = smul.u32 36, %s141
      $region24: #{content_loss.18} parent=15 // pred_fallthru
        _
    $region16: #{content_loss.18} parent=5 // pred_fallthru
      _
    %p143 = scmp.le.s32.totalorder 1, %s8
    %p144 = scmp.lt.s32.totalorder %s8, 3
    %p145 = pnand %p143, %p144
    %p146 = pneg %p145
    // Predicated region
    $region25: #{content_loss.18} parent=5 // pred_check
      _
    $region26: #{content_loss.18} parent=5 // pred_check_branch
      %148 = sbr.rel (%p145) target = $region28
    $region27: #{content_loss.18} parent=5 // pred_region
      %s149 = ssub.s32 %s8, 1
      %s150 = sadd.s32 %s17, %s18
      %s151 = smul.u32 36, %s150
      %p152 = scmp.lt.s32.totalorder %s151, 71
      %s153 = scalar_select %p152, %s151, 71
      %s154 = smul.addr %s153, 4
      %s155 = scalar_lea.vmem %s0, %s154
      %p156 = pneg %p48
      %p157 = pneg %p45
      %s158 = sadd.s32 %s17, %s18
      %s159 = smul.u32 36, %s158
      %p160 = scmp.lt.s32.totalorder %s159, 71
      %s161 = scalar_select %p160, %s159, 71
      %s162 = smul.addr %s161, 4
      %s163 = scalar_lea.vmem %s1, %s162
      %p164 = pneg %p76
      %p165 = pneg %p73
      %p166 = pneg %p102
      %p167 = pneg %p99
      %p168 = scmp.lt.s32.totalorder %s17, 1
      %s169 = scalar_select %p168, %s17, 1
      %s170 = scalar_lea.vmem %s2, %s169
      %s171 = sadd.s32 %s17, %s18
      %s172 = smul.u32 36, %s171
      %p173 = scmp.lt.s32.totalorder %s172, 71
      %s174 = scalar_select %p173, %s172, 71
      %s175 = smul.addr %s174, 4
      %s176 = scalar_lea.vmem %s0, %s175
      %s177 = sadd.s32 %s17, %s18
      %s178 = smul.u32 36, %s177
      %s179 = sadd.s32 %s17, %s18
      %s180 = smul.u32 36, %s179
      %p181 = scmp.lt.s32.totalorder %s180, 71
      %s182 = scalar_select %p181, %s180, 71
      %s183 = smul.addr %s182, 4
      %s184 = scalar_lea.vmem %s1, %s183
      %s185 = sadd.s32 %s17, %s18
      %s186 = smul.u32 36, %s185
      %p187 = scmp.lt.s32.totalorder %s17, 1
      %s188 = scalar_select %p187, %s17, 1
      %s189 = scalar_lea.vmem %s2, %s188
      %p190 = scmp.eq.s32.totalorder %s18, 0
      // Predicated region
      $region29: #{content_loss.18} parent=27 // pred_check
        %p191 = pneg %p190
      $region30: #{content_loss.18} parent=27 // pred_check_branch
        %193 = sbr.rel (%p191) target = $region32
      $region31: #{content_loss.18} parent=27 // pred_region
        %194 = vst [vmem:[%s189] sm:$0x1] 0.0
      $region32: #{content_loss.18} parent=27 // pred_fallthru
        _
      %v195 = vld [vmem:[%s176] sm:$0xf]
      %v196 = vld [vmem:[%s176 + $0x4] sm:$0xf]
      %v197 = vld [vmem:[%s176 + $0x8] sm:$0xf]
      %v198 = vld [vmem:[%s176 + $0xc] sm:$0xf]
      %v199 = vld [vmem:[%s176 + $0x10] sm:$0xf]
      %v200 = vld [vmem:[%s176 + $0x14] sm:$0xf]
      %v201 = vld [vmem:[%s176 + $0x18] sm:$0xf]
      %v202 = vld [vmem:[%s176 + $0x1c] sm:$0xf]
      %v203 = vld [vmem:[%s176 + $0x20] sm:$0xf]
      %v204 = vld [vmem:[%s176 + $0x24] sm:$0xf]
      %v205 = vld [vmem:[%s176 + $0x28] sm:$0xf]
      %v206 = vld [vmem:[%s176 + $0x2c] sm:$0xf]
      %v207 = vld [vmem:[%s176 + $0x30] sm:$0xf]
      %v208 = vld [vmem:[%s176 + $0x34] sm:$0xf]
      %v209 = vld [vmem:[%s176 + $0x38] sm:$0xf]
      %v210 = vld [vmem:[%s176 + $0x3c] sm:$0xf]
      %v211 = vld [vmem:[%s176 + $0x40] sm:$0xf]
      %v212 = vld [vmem:[%s176 + $0x44] sm:$0xf]
      %v213 = vld [vmem:[%s176 + $0x48] sm:$0xf]
      %v214 = vld [vmem:[%s176 + $0x4c] sm:$0xf]
      %v215 = vld [vmem:[%s176 + $0x50] sm:$0xf]
      %v216 = vld [vmem:[%s176 + $0x54] sm:$0xf]
      %v217 = vld [vmem:[%s176 + $0x58] sm:$0xf]
      %v218 = vld [vmem:[%s176 + $0x5c] sm:$0xf]
      %v219 = vld [vmem:[%s176 + $0x60] sm:$0xf]
      %v220 = vld [vmem:[%s176 + $0x64] sm:$0xf]
      %v221 = vld [vmem:[%s176 + $0x68] sm:$0xf]
      %v222 = vld [vmem:[%s176 + $0x6c] sm:$0xf]
      %v223 = vld [vmem:[%s176 + $0x70] sm:$0xf]
      %v224 = vld [vmem:[%s176 + $0x74] sm:$0xf]
      %v225 = vld [vmem:[%s176 + $0x78] sm:$0xf]
      %v226 = vld [vmem:[%s176 + $0x7c] sm:$0xf]
      %v227 = vld [vmem:[%s176 + $0x80] sm:$0xf]
      %v228 = vld [vmem:[%s176 + $0x84] sm:$0xf]
      %v229 = vld [vmem:[%s176 + $0x88] sm:$0xf]
      %v230 = vld [vmem:[%s176 + $0x8c] sm:$0xf]
      %v231 = vunpack.c.l.bf16 %v195
      %v232 = vunpack.c.l.bf16 %v196
      %v233 = vunpack.c.l.bf16 %v197
      %v234 = vunpack.c.l.bf16 %v198
      %v235 = vunpack.c.l.bf16 %v199
      %v236 = vunpack.c.l.bf16 %v200
      %v237 = vunpack.c.l.bf16 %v201
      %v238 = vunpack.c.l.bf16 %v202
      %v239 = vunpack.c.l.bf16 %v203
      %v240 = vunpack.c.l.bf16 %v204
      %v241 = vunpack.c.l.bf16 %v205
      %v242 = vunpack.c.l.bf16 %v206
      %v243 = vunpack.c.l.bf16 %v207
      %v244 = vunpack.c.l.bf16 %v208
      %v245 = vunpack.c.l.bf16 %v209
      %v246 = vunpack.c.l.bf16 %v210
      %v247 = vunpack.c.l.bf16 %v211
      %v248 = vunpack.c.l.bf16 %v212
      %v249 = vunpack.c.l.bf16 %v213
      %v250 = vunpack.c.l.bf16 %v214
      %v251 = vunpack.c.l.bf16 %v215
      %v252 = vunpack.c.l.bf16 %v216
      %v253 = vunpack.c.l.bf16 %v217
      %v254 = vunpack.c.l.bf16 %v218
      %v255 = vunpack.c.l.bf16 %v219
      %v256 = vunpack.c.l.bf16 %v220
      %v257 = vunpack.c.l.bf16 %v221
      %v258 = vunpack.c.l.bf16 %v222
      %v259 = vunpack.c.l.bf16 %v223
      %v260 = vunpack.c.l.bf16 %v224
      %v261 = vunpack.c.l.bf16 %v225
      %v262 = vunpack.c.l.bf16 %v226
      %v263 = vunpack.c.l.bf16 %v227
      %v264 = vunpack.c.l.bf16 %v228
      %v265 = vunpack.c.l.bf16 %v229
      %v266 = vunpack.c.l.bf16 %v230
      %v267 = vld [vmem:[%s184] sm:$0xf]
      %v268 = vld [vmem:[%s184 + $0x4] sm:$0xf]
      %v269 = vld [vmem:[%s184 + $0x8] sm:$0xf]
      %v270 = vld [vmem:[%s184 + $0xc] sm:$0xf]
      %v271 = vld [vmem:[%s184 + $0x10] sm:$0xf]
      %v272 = vld [vmem:[%s184 + $0x14] sm:$0xf]
      %v273 = vld [vmem:[%s184 + $0x18] sm:$0xf]
      %v274 = vld [vmem:[%s184 + $0x1c] sm:$0xf]
      %v275 = vld [vmem:[%s184 + $0x20] sm:$0xf]
      %v276 = vld [vmem:[%s184 + $0x24] sm:$0xf]
      %v277 = vld [vmem:[%s184 + $0x28] sm:$0xf]
      %v278 = vld [vmem:[%s184 + $0x2c] sm:$0xf]
      %v279 = vld [vmem:[%s184 + $0x30] sm:$0xf]
      %v280 = vld [vmem:[%s184 + $0x34] sm:$0xf]
      %v281 = vld [vmem:[%s184 + $0x38] sm:$0xf]
      %v282 = vld [vmem:[%s184 + $0x3c] sm:$0xf]
      %v283 = vld [vmem:[%s184 + $0x40] sm:$0xf]
      %v284 = vld [vmem:[%s184 + $0x44] sm:$0xf]
      %v285 = vld [vmem:[%s184 + $0x48] sm:$0xf]
      %v286 = vld [vmem:[%s184 + $0x4c] sm:$0xf]
      %v287 = vld [vmem:[%s184 + $0x50] sm:$0xf]
      %v288 = vld [vmem:[%s184 + $0x54] sm:$0xf]
      %v289 = vld [vmem:[%s184 + $0x58] sm:$0xf]
      %v290 = vld [vmem:[%s184 + $0x5c] sm:$0xf]
      %v291 = vld [vmem:[%s184 + $0x60] sm:$0xf]
      %v292 = vld [vmem:[%s184 + $0x64] sm:$0xf]
      %v293 = vld [vmem:[%s184 + $0x68] sm:$0xf]
      %v294 = vld [vmem:[%s184 + $0x6c] sm:$0xf]
      %v295 = vld [vmem:[%s184 + $0x70] sm:$0xf]
      %v296 = vld [vmem:[%s184 + $0x74] sm:$0xf]
      %v297 = vld [vmem:[%s184 + $0x78] sm:$0xf]
      %v298 = vld [vmem:[%s184 + $0x7c] sm:$0xf]
      %v299 = vld [vmem:[%s184 + $0x80] sm:$0xf]
      %v300 = vld [vmem:[%s184 + $0x84] sm:$0xf]
      %v301 = vld [vmem:[%s184 + $0x88] sm:$0xf]
      %v302 = vld [vmem:[%s184 + $0x8c] sm:$0xf]
      %v303 = vunpack.c.l.bf16 %v267
      %v304 = vunpack.c.l.bf16 %v268
      %v305 = vunpack.c.l.bf16 %v269
      %v306 = vunpack.c.l.bf16 %v270
      %v307 = vunpack.c.l.bf16 %v271
      %v308 = vunpack.c.l.bf16 %v272
      %v309 = vunpack.c.l.bf16 %v273
      %v310 = vunpack.c.l.bf16 %v274
      %v311 = vunpack.c.l.bf16 %v275
      %v312 = vunpack.c.l.bf16 %v276
      %v313 = vunpack.c.l.bf16 %v277
      %v314 = vunpack.c.l.bf16 %v278
      %v315 = vunpack.c.l.bf16 %v279
      %v316 = vunpack.c.l.bf16 %v280
      %v317 = vunpack.c.l.bf16 %v281
      %v318 = vunpack.c.l.bf16 %v282
      %v319 = vunpack.c.l.bf16 %v283
      %v320 = vunpack.c.l.bf16 %v284
      %v321 = vunpack.c.l.bf16 %v285
      %v322 = vunpack.c.l.bf16 %v286
      %v323 = vunpack.c.l.bf16 %v287
      %v324 = vunpack.c.l.bf16 %v288
      %v325 = vunpack.c.l.bf16 %v289
      %v326 = vunpack.c.l.bf16 %v290
      %v327 = vunpack.c.l.bf16 %v291
      %v328 = vunpack.c.l.bf16 %v292
      %v329 = vunpack.c.l.bf16 %v293
      %v330 = vunpack.c.l.bf16 %v294
      %v331 = vunpack.c.l.bf16 %v295
      %v332 = vunpack.c.l.bf16 %v296
      %v333 = vunpack.c.l.bf16 %v297
      %v334 = vunpack.c.l.bf16 %v298
      %v335 = vunpack.c.l.bf16 %v299
      %v336 = vunpack.c.l.bf16 %v300
      %v337 = vunpack.c.l.bf16 %v301
      %v338 = vunpack.c.l.bf16 %v302
      %v339 = vsub.f32 %v231, %v303
      %v340 = vsub.f32 %v232, %v304
      %v341 = vsub.f32 %v233, %v305
      %v342 = vsub.f32 %v234, %v306
      %v343 = vsub.f32 %v235, %v307
      %v344 = vsub.f32 %v236, %v308
      %v345 = vsub.f32 %v237, %v309
      %v346 = vsub.f32 %v238, %v310
      %v347 = vsub.f32 %v239, %v311
      %v348 = vsub.f32 %v240, %v312
      %v349 = vsub.f32 %v241, %v313
      %v350 = vsub.f32 %v242, %v314
      %v351 = vsub.f32 %v243, %v315
      %v352 = vsub.f32 %v244, %v316
      %v353 = vsub.f32 %v245, %v317
      %v354 = vsub.f32 %v246, %v318
      %v355 = vsub.f32 %v247, %v319
      %v356 = vsub.f32 %v248, %v320
      %v357 = vsub.f32 %v249, %v321
      %v358 = vsub.f32 %v250, %v322
      %v359 = vsub.f32 %v251, %v323
      %v360 = vsub.f32 %v252, %v324
      %v361 = vsub.f32 %v253, %v325
      %v362 = vsub.f32 %v254, %v326
      %v363 = vsub.f32 %v255, %v327
      %v364 = vsub.f32 %v256, %v328
      %v365 = vsub.f32 %v257, %v329
      %v366 = vsub.f32 %v258, %v330
      %v367 = vsub.f32 %v259, %v331
      %v368 = vsub.f32 %v260, %v332
      %v369 = vsub.f32 %v261, %v333
      %v370 = vsub.f32 %v262, %v334
      %v371 = vsub.f32 %v263, %v335
      %v372 = vsub.f32 %v264, %v336
      %v373 = vsub.f32 %v265, %v337
      %v374 = vsub.f32 %v266, %v338
      %v375 = vand.u32 2147483647, %v339
      %v376 = vand.u32 2147483647, %v340
      %v377 = vand.u32 2147483647, %v341
      %v378 = vand.u32 2147483647, %v342
      %v379 = vand.u32 2147483647, %v343
      %v380 = vand.u32 2147483647, %v344
      %v381 = vand.u32 2147483647, %v345
      %v382 = vand.u32 2147483647, %v346
      %v383 = vand.u32 2147483647, %v347
      %v384 = vand.u32 2147483647, %v348
      %v385 = vand.u32 2147483647, %v349
      %v386 = vand.u32 2147483647, %v350
      %v387 = vand.u32 2147483647, %v351
      %v388 = vand.u32 2147483647, %v352
      %v389 = vand.u32 2147483647, %v353
      %v390 = vand.u32 2147483647, %v354
      %v391 = vand.u32 2147483647, %v355
      %v392 = vand.u32 2147483647, %v356
      %v393 = vand.u32 2147483647, %v357
      %v394 = vand.u32 2147483647, %v358
      %v395 = vand.u32 2147483647, %v359
      %v396 = vand.u32 2147483647, %v360
      %v397 = vand.u32 2147483647, %v361
      %v398 = vand.u32 2147483647, %v362
      %v399 = vand.u32 2147483647, %v363
      %v400 = vand.u32 2147483647, %v364
      %v401 = vand.u32 2147483647, %v365
      %v402 = vand.u32 2147483647, %v366
      %v403 = vand.u32 2147483647, %v367
      %v404 = vand.u32 2147483647, %v368
      %v405 = vand.u32 2147483647, %v369
      %v406 = vand.u32 2147483647, %v370
      %v407 = vand.u32 2147483647, %v371
      %v408 = vand.u32 2147483647, %v372
      %v409 = vand.u32 2147483647, %v373
      %v410 = vand.u32 2147483647, %v374
      %v411 = vld [vmem:[%s189] sm:$0x1]
      %v412 = vadd.f32 %v375, %v376
      %v413 = vadd.f32 %v412, %v377
      %v414 = vadd.f32 %v413, %v378
      %v415 = vadd.f32 %v414, %v379
      %v416 = vadd.f32 %v415, %v380
      %v417 = vadd.f32 %v416, %v381
      %v418 = vadd.f32 %v417, %v382
      %v419 = vadd.f32 %v418, %v383
      %v420 = vadd.f32 %v419, %v384
      %v421 = vadd.f32 %v420, %v385
      %v422 = vadd.f32 %v421, %v386
      %v423 = vadd.f32 %v422, %v387
      %v424 = vadd.f32 %v423, %v388
      %v425 = vadd.f32 %v424, %v389
      %v426 = vadd.f32 %v425, %v390
      %v427 = vadd.f32 %v426, %v391
      %v428 = vadd.f32 %v427, %v392
      %v429 = vadd.f32 %v428, %v393
      %v430 = vadd.f32 %v429, %v394
      %v431 = vadd.f32 %v430, %v395
      %v432 = vadd.f32 %v431, %v396
      %v433 = vadd.f32 %v432, %v397
      %v434 = vadd.f32 %v433, %v398
      %v435 = vadd.f32 %v434, %v399
      %v436 = vadd.f32 %v435, %v400
      %v437 = vadd.f32 %v436, %v401
      %v438 = vadd.f32 %v437, %v402
      %v439 = vadd.f32 %v438, %v403
      %v440 = vadd.f32 %v439, %v404
      %v441 = vadd.f32 %v440, %v405
      %v442 = vadd.f32 %v441, %v406
      %v443 = vadd.f32 %v442, %v407
      %v444 = vadd.f32 %v443, %v408
      %v445 = vadd.f32 %v444, %v409
      %v446 = vadd.f32 %v445, %v410
      %v447 = vrot.slane %v446, 4
      %v448 = vadd.f32 %v446, %v447
      %v449 = vrot.slane %v448, 2
      %v450 = vadd.f32 %v448, %v449
      %v451 = vrot.slane %v450, 1
      %v452 = vadd.f32 %v450, %v451
      %v453 = vadd.f32 %v411, %v452
      %454 = vst [vmem:[%s189] sm:$0x1] %v453
      %p455 = scmp.lt.s32.totalorder %s17, 1
      %s456 = scalar_select %p455, %s17, 1
      %s457 = scalar_lea.vmem %s2, %s456
      // Predicated region
      $region33: #{content_loss.18} parent=27 // pred_check
        %p458 = pneg %p99
      $region34: #{content_loss.18} parent=27 // pred_check_branch
        %460 = sbr.rel (%p458) target = $region36
      $region35: #{content_loss.18} parent=27 // pred_region
        _
      $region36: #{content_loss.18} parent=27 // pred_fallthru
        _
    $region28: #{content_loss.18} parent=5 // pred_fallthru
      _
    %p461 = scmp.le.s32.totalorder 2, %s8
    // Predicated region
    $region37: #{content_loss.18} parent=5 // pred_check
      %p462 = pneg %p461
    $region38: #{content_loss.18} parent=5 // pred_check_branch
      %464 = sbr.rel (%p462) target = $region40
    $region39: #{content_loss.18} parent=5 // pred_region
      %s465 = ssub.s32 %s8, 2
      // Predicated region
      $region41: #{content_loss.18} parent=39 // pred_check
        %p466 = pneg %p105
      $region42: #{content_loss.18} parent=39 // pred_check_branch
        %468 = sbr.rel (%p466) target = $region44
      $region43: #{content_loss.18} parent=39 // pred_region
        %p469 = scmp.lt.s32.totalorder %s19, 1
        %s470 = scalar_select %p469, %s19, 1
        %s471 = scalar_lea.vmem %s2, %s470
      $region44: #{content_loss.18} parent=39 // pred_fallthru
        _
    $region40: #{content_loss.18} parent=5 // pred_fallthru
      _
  $region6: #{content_loss.18} parent=0 // loop_footer
    %s12 = sadd.s32 1, %s8
  $region7: #{content_loss.18} parent=0 // loop_footer_branch
    %7 = sbr.rel target = $region3
  $region8: #{content_loss.18} parent=0 // loop_exit
    _

// kernel: content_loss.19
$region0: #{content_loss.19}
  #allocation0 [shape = 'u32[]', space=smem, size = 0x4, offset = 0x4, fixed_abs, tag = 'smem constant byte address 0x4 - core index']
  #allocation1 [shape = 'u32[144,128]{1,0:T(1,128)}', space=vmem, size = 0x12000, scoped, tag = 'internal scratch']
  %s0 = inlined_call_operand.vmem [shape: bf16[160,128], index: 0, kind: input, shape index: {}]
  %s1 = inlined_call_operand.vmem [shape: bf16[160,128], index: 1, kind: input, shape index: {}]
  %s2 = inlined_call_operand.vmem [shape: f32[2,1,128], index: 2, kind: output, shape index: {}]
  %s3 = sld [smem:[#allocation0]]
  $region45: #{content_loss.19} parent=0
    _
  %s5 = ssub.s32 1, %s3
  %s6 = scalar_select 0, %s5, %s3
  loop: start=0, step=1, limit=4
  $region2: #{content_loss.19} parent=0 // loop_pre_header
    _
  $region3: #{content_loss.19} parent=0 // loop_header
    %s8 = sphi 0, %s12
    %p9 = scmp.ge.s32.totalorder %s8, 4
    %s15 = sphi 0, %s27
    %s16 = sphi 0, %s23
    %s17 = sphi 0, %s15
    %s18 = sphi 0, %s16
    %s19 = sphi 0, %s17
    %s20 = sphi 0, %s18
    %s32 = sphi 0, %s34
    %s35 = sphi 0, %s32
    %s36 = sphi 0, %s35
    %s52 = sphi 0, %s36
    %s60 = sphi 0, %s62
    %s63 = sphi 0, %s60
    %s64 = sphi 0, %s63
    %s80 = sphi 0, %s64
    %s86 = sphi 0, %s88
    %s89 = sphi 0, %s86
    %s90 = sphi 0, %s89
    %s106 = sphi 0, %s90
  $region4: #{content_loss.19} parent=0 // loop_header_branch
    %11 = sbr.rel (%p9) target = $region8
  $region5: #{content_loss.19} parent=0 // loop_body
    %s13 = ssub.s32 %s8, 1
    %s14 = ssub.s32 %s8, 2
    %s21 = sadd.s32 1, %s16
    %p22 = scmp.ge.s32.totalorder %s21, 1
    %s23 = scalar_select %p22, 0, %s21
    %s24 = sadd.s32 1, %s15
    %s25 = scalar_select %p22, %s24, %s15
    %p26 = scmp.ge.s32.totalorder %s25, 2
    %s27 = scalar_select %p26, 0, %s25
    %s28 = sadd.s32 %s15, %s16
    %s29 = sadd.s32 %s27, %s23
    %s30 = ssub.s32 %s28, %s29
    %p31 = scmp.eq.s32.totalorder %s30, 0
    %s33 = sadd.s32 %s32, 1
    %s34 = scalar_select %p31, %s32, %s33
    %p37 = pneg %p31
    %p38 = scmp.eq.s32.totalorder %s8, 1
    %p39 = por %p37, %p38
    %p40 = scmp.ne.s32.totalorder %s32, %s35
    %p41 = scmp.eq.s32.totalorder %s8, 0
    %p42 = por %p40, %p41
    %p43 = scmp.ne.s32.totalorder %s32, %s35
    %p44 = scmp.eq.s32.totalorder %s13, 1
    %p45 = por %p43, %p44
    %p46 = scmp.ne.s32.totalorder %s35, %s36
    %p47 = scmp.eq.s32.totalorder %s13, 0
    %p48 = por %p46, %p47
    %p49 = scmp.ne.s32.totalorder %s35, %s36
    %p50 = scmp.eq.s32.totalorder %s14, 1
    %p51 = por %p49, %p50
    %p53 = scmp.ne.s32.totalorder %s36, %s52
    %p54 = scmp.eq.s32.totalorder %s14, 0
    %p55 = por %p53, %p54
    %s56 = sadd.s32 %s15, %s16
    %s57 = sadd.s32 %s27, %s23
    %s58 = ssub.s32 %s56, %s57
    %p59 = scmp.eq.s32.totalorder %s58, 0
    %s61 = sadd.s32 %s60, 1
    %s62 = scalar_select %p59, %s60, %s61
    %p65 = pneg %p59
    %p66 = scmp.eq.s32.totalorder %s8, 1
    %p67 = por %p65, %p66
    %p68 = scmp.ne.s32.totalorder %s60, %s63
    %p69 = scmp.eq.s32.totalorder %s8, 0
    %p70 = por %p68, %p69
    %p71 = scmp.ne.s32.totalorder %s60, %s63
    %p72 = scmp.eq.s32.totalorder %s13, 1
    %p73 = por %p71, %p72
    %p74 = scmp.ne.s32.totalorder %s63, %s64
    %p75 = scmp.eq.s32.totalorder %s13, 0
    %p76 = por %p74, %p75
    %p77 = scmp.ne.s32.totalorder %s63, %s64
    %p78 = scmp.eq.s32.totalorder %s14, 1
    %p79 = por %p77, %p78
    %p81 = scmp.ne.s32.totalorder %s64, %s80
    %p82 = scmp.eq.s32.totalorder %s14, 0
    %p83 = por %p81, %p82
    %s84 = ssub.s32 %s15, %s27
    %p85 = scmp.eq.s32.totalorder %s84, 0
    %s87 = sadd.s32 %s86, 1
    %s88 = scalar_select %p85, %s86, %s87
    %p91 = pneg %p85
    %p92 = scmp.eq.s32.totalorder %s8, 1
    %p93 = por %p91, %p92
    %p94 = scmp.ne.s32.totalorder %s86, %s89
    %p95 = scmp.eq.s32.totalorder %s8, 0
    %p96 = por %p94, %p95
    %p97 = scmp.ne.s32.totalorder %s86, %s89
    %p98 = scmp.eq.s32.totalorder %s13, 1
    %p99 = por %p97, %p98
    %p100 = scmp.ne.s32.totalorder %s89, %s90
    %p101 = scmp.eq.s32.totalorder %s13, 0
    %p102 = por %p100, %p101
    %p103 = scmp.ne.s32.totalorder %s89, %s90
    %p104 = scmp.eq.s32.totalorder %s14, 1
    %p105 = por %p103, %p104
    %p107 = scmp.ne.s32.totalorder %s90, %s106
    %p108 = scmp.eq.s32.totalorder %s14, 0
    %p109 = por %p107, %p108
    %p110 = scmp.le.s32.totalorder 1, %s8
    %p111 = scmp.lt.s32.totalorder %s8, 3
    %p112 = pnand %p110, %p111
    %p113 = pneg %p112
    // Predicated region
    $region9: #{content_loss.19} parent=5 // pred_check
      _
    $region10: #{content_loss.19} parent=5 // pred_check_branch
      %115 = sbr.rel (%p112) target = $region12
    $region11: #{content_loss.19} parent=5 // pred_region
      %s116 = ssub.s32 %s8, 1
    $region12: #{content_loss.19} parent=5 // pred_fallthru
      _
    %p117 = scmp.lt.s32.totalorder %s8, 2
    // Predicated region
    $region13: #{content_loss.19} parent=5 // pred_check
      %p118 = pneg %p117
    $region14: #{content_loss.19} parent=5 // pred_check_branch
      %120 = sbr.rel (%p118) target = $region16
    $region15: #{content_loss.19} parent=5 // pred_region
      // Predicated region
      $region17: #{content_loss.19} parent=15 // pred_check
        %p121 = pneg %p42
      $region18: #{content_loss.19} parent=15 // pred_check_branch
        %123 = sbr.rel (%p121) target = $region20
      $region19: #{content_loss.19} parent=15 // pred_region
        %s124 = sadd.s32 %s15, %s16
        %s125 = smul.u32 10, %s124
        %p126 = scmp.lt.s32.totalorder %s125, 19
        %s127 = scalar_select %p126, %s125, 19
        %s128 = smul.addr %s127, 4
        %s129 = scalar_lea.vmem %s0, %s128
        %s130 = sadd.s32 %s15, %s16
        %s131 = smul.u32 10, %s130
      $region20: #{content_loss.19} parent=15 // pred_fallthru
        _
      // Predicated region
      $region21: #{content_loss.19} parent=15 // pred_check
        %p132 = pneg %p70
      $region22: #{content_loss.19} parent=15 // pred_check_branch
        %134 = sbr.rel (%p132) target = $region24
      $region23: #{content_loss.19} parent=15 // pred_region
        %s135 = sadd.s32 %s15, %s16
        %s136 = smul.u32 10, %s135
        %p137 = scmp.lt.s32.totalorder %s136, 19
        %s138 = scalar_select %p137, %s136, 19
        %s139 = smul.addr %s138, 4
        %s140 = scalar_lea.vmem %s1, %s139
        %s141 = sadd.s32 %s15, %s16
        %s142 = smul.u32 10, %s141
      $region24: #{content_loss.19} parent=15 // pred_fallthru
        _
    $region16: #{content_loss.19} parent=5 // pred_fallthru
      _
    %p143 = scmp.le.s32.totalorder 1, %s8
    %p144 = scmp.lt.s32.totalorder %s8, 3
    %p145 = pnand %p143, %p144
    %p146 = pneg %p145
    // Predicated region
    $region25: #{content_loss.19} parent=5 // pred_check
      _
    $region26: #{content_loss.19} parent=5 // pred_check_branch
      %148 = sbr.rel (%p145) target = $region28
    $region27: #{content_loss.19} parent=5 // pred_region
      %s149 = ssub.s32 %s8, 1
      %s150 = sadd.s32 %s17, %s18
      %s151 = smul.u32 10, %s150
      %p152 = scmp.lt.s32.totalorder %s151, 19
      %s153 = scalar_select %p152, %s151, 19
      %s154 = smul.addr %s153, 4
      %s155 = scalar_lea.vmem %s0, %s154
      %p156 = pneg %p48
      %p157 = pneg %p45
      %s158 = sadd.s32 %s17, %s18
      %s159 = smul.u32 10, %s158
      %p160 = scmp.lt.s32.totalorder %s159, 19
      %s161 = scalar_select %p160, %s159, 19
      %s162 = smul.addr %s161, 4
      %s163 = scalar_lea.vmem %s1, %s162
      %p164 = pneg %p76
      %p165 = pneg %p73
      %p166 = pneg %p102
      %p167 = pneg %p99
      %p168 = scmp.lt.s32.totalorder %s17, 1
      %s169 = scalar_select %p168, %s17, 1
      %s170 = scalar_lea.vmem %s2, %s169
      %s171 = sadd.s32 %s17, %s18
      %s172 = smul.u32 10, %s171
      %p173 = scmp.lt.s32.totalorder %s172, 19
      %s174 = scalar_select %p173, %s172, 19
      %s175 = smul.addr %s174, 4
      %s176 = scalar_lea.vmem %s0, %s175
      %s177 = sadd.s32 %s17, %s18
      %s178 = smul.u32 10, %s177
      %s179 = sadd.s32 %s17, %s18
      %s180 = smul.u32 10, %s179
      %p181 = scmp.lt.s32.totalorder %s180, 19
      %s182 = scalar_select %p181, %s180, 19
      %s183 = smul.addr %s182, 4
      %s184 = scalar_lea.vmem %s1, %s183
      %s185 = sadd.s32 %s17, %s18
      %s186 = smul.u32 10, %s185
      %p187 = scmp.lt.s32.totalorder %s17, 1
      %s188 = scalar_select %p187, %s17, 1
      %s189 = scalar_lea.vmem %s2, %s188
      %p190 = scmp.eq.s32.totalorder %s18, 0
      // Predicated region
      $region29: #{content_loss.19} parent=27 // pred_check
        %p191 = pneg %p190
      $region30: #{content_loss.19} parent=27 // pred_check_branch
        %193 = sbr.rel (%p191) target = $region32
      $region31: #{content_loss.19} parent=27 // pred_region
        %194 = vst [vmem:[%s189] sm:$0x1] 0.0
      $region32: #{content_loss.19} parent=27 // pred_fallthru
        _
      %v195 = vld [vmem:[%s176] sm:$0xf]
      %v196 = vld [vmem:[%s176 + $0x4] sm:$0xf]
      %v197 = vld [vmem:[%s176 + $0x8] sm:$0xf]
      %v198 = vld [vmem:[%s176 + $0xc] sm:$0xf]
      %v199 = vld [vmem:[%s176 + $0x10] sm:$0xf]
      %v200 = vld [vmem:[%s176 + $0x14] sm:$0xf]
      %v201 = vld [vmem:[%s176 + $0x18] sm:$0xf]
      %v202 = vld [vmem:[%s176 + $0x1c] sm:$0xf]
      %v203 = vld [vmem:[%s176 + $0x20] sm:$0xf]
      %v204 = vld [vmem:[%s176 + $0x24] sm:$0xf]
      %v205 = vunpack.c.l.bf16 %v195
      %v206 = vunpack.c.l.bf16 %v196
      %v207 = vunpack.c.l.bf16 %v197
      %v208 = vunpack.c.l.bf16 %v198
      %v209 = vunpack.c.l.bf16 %v199
      %v210 = vunpack.c.l.bf16 %v200
      %v211 = vunpack.c.l.bf16 %v201
      %v212 = vunpack.c.l.bf16 %v202
      %v213 = vunpack.c.l.bf16 %v203
      %v214 = vunpack.c.l.bf16 %v204
      %v215 = vld [vmem:[%s184] sm:$0xf]
      %v216 = vld [vmem:[%s184 + $0x4] sm:$0xf]
      %v217 = vld [vmem:[%s184 + $0x8] sm:$0xf]
      %v218 = vld [vmem:[%s184 + $0xc] sm:$0xf]
      %v219 = vld [vmem:[%s184 + $0x10] sm:$0xf]
      %v220 = vld [vmem:[%s184 + $0x14] sm:$0xf]
      %v221 = vld [vmem:[%s184 + $0x18] sm:$0xf]
      %v222 = vld [vmem:[%s184 + $0x1c] sm:$0xf]
      %v223 = vld [vmem:[%s184 + $0x20] sm:$0xf]
      %v224 = vld [vmem:[%s184 + $0x24] sm:$0xf]
      %v225 = vunpack.c.l.bf16 %v215
      %v226 = vunpack.c.l.bf16 %v216
      %v227 = vunpack.c.l.bf16 %v217
      %v228 = vunpack.c.l.bf16 %v218
      %v229 = vunpack.c.l.bf16 %v219
      %v230 = vunpack.c.l.bf16 %v220
      %v231 = vunpack.c.l.bf16 %v221
      %v232 = vunpack.c.l.bf16 %v222
      %v233 = vunpack.c.l.bf16 %v223
      %v234 = vunpack.c.l.bf16 %v224
      %v235 = vsub.f32 %v205, %v225
      %v236 = vsub.f32 %v206, %v226
      %v237 = vsub.f32 %v207, %v227
      %v238 = vsub.f32 %v208, %v228
      %v239 = vsub.f32 %v209, %v229
      %v240 = vsub.f32 %v210, %v230
      %v241 = vsub.f32 %v211, %v231
      %v242 = vsub.f32 %v212, %v232
      %v243 = vsub.f32 %v213, %v233
      %v244 = vsub.f32 %v214, %v234
      %v245 = vand.u32 2147483647, %v235
      %v246 = vand.u32 2147483647, %v236
      %v247 = vand.u32 2147483647, %v237
      %v248 = vand.u32 2147483647, %v238
      %v249 = vand.u32 2147483647, %v239
      %v250 = vand.u32 2147483647, %v240
      %v251 = vand.u32 2147483647, %v241
      %v252 = vand.u32 2147483647, %v242
      %v253 = vand.u32 2147483647, %v243
      %v254 = vand.u32 2147483647, %v244
      %v255 = vld [vmem:[%s189] sm:$0x1]
      %v256 = vadd.f32 %v245, %v246
      %v257 = vadd.f32 %v256, %v247
      %v258 = vadd.f32 %v257, %v248
      %v259 = vadd.f32 %v258, %v249
      %v260 = vadd.f32 %v259, %v250
      %v261 = vadd.f32 %v260, %v251
      %v262 = vadd.f32 %v261, %v252
      %v263 = vadd.f32 %v262, %v253
      %v264 = vadd.f32 %v263, %v254
      %v265 = vrot.slane %v264, 4
      %v266 = vadd.f32 %v264, %v265
      %v267 = vrot.slane %v266, 2
      %v268 = vadd.f32 %v266, %v267
      %v269 = vrot.slane %v268, 1
      %v270 = vadd.f32 %v268, %v269
      %v271 = vadd.f32 %v255, %v270
      %272 = vst [vmem:[%s189] sm:$0x1] %v271
      %p273 = scmp.lt.s32.totalorder %s17, 1
      %s274 = scalar_select %p273, %s17, 1
      %s275 = scalar_lea.vmem %s2, %s274
      // Predicated region
      $region33: #{content_loss.19} parent=27 // pred_check
        %p276 = pneg %p99
      $region34: #{content_loss.19} parent=27 // pred_check_branch
        %278 = sbr.rel (%p276) target = $region36
      $region35: #{content_loss.19} parent=27 // pred_region
        _
      $region36: #{content_loss.19} parent=27 // pred_fallthru
        _
    $region28: #{content_loss.19} parent=5 // pred_fallthru
      _
    %p279 = scmp.le.s32.totalorder 2, %s8
    // Predicated region
    $region37: #{content_loss.19} parent=5 // pred_check
      %p280 = pneg %p279
    $region38: #{content_loss.19} parent=5 // pred_check_branch
      %282 = sbr.rel (%p280) target = $region40
    $region39: #{content_loss.19} parent=5 // pred_region
      %s283 = ssub.s32 %s8, 2
      // Predicated region
      $region41: #{content_loss.19} parent=39 // pred_check
        %p284 = pneg %p105
      $region42: #{content_loss.19} parent=39 // pred_check_branch
        %286 = sbr.rel (%p284) target = $region44
      $region43: #{content_loss.19} parent=39 // pred_region
        %p287 = scmp.lt.s32.totalorder %s19, 1
        %s288 = scalar_select %p287, %s19, 1
        %s289 = scalar_lea.vmem %s2, %s288
      $region44: #{content_loss.19} parent=39 // pred_fallthru
        _
    $region40: #{content_loss.19} parent=5 // pred_fallthru
      _
  $region6: #{content_loss.19} parent=0 // loop_footer
    %s12 = sadd.s32 1, %s8
  $region7: #{content_loss.19} parent=0 // loop_footer_branch
    %7 = sbr.rel target = $region3
  $region8: #{content_loss.19} parent=0 // loop_exit
    _

// kernel: content_loss.12
$region0: #{content_loss.12}
  #allocation0 [shape = 'u32[]', space=smem, size = 0x4, offset = 0x4, fixed_abs, tag = 'smem constant byte address 0x4 - core index']
  #allocation1 [shape = 'u32[144,128]{1,0:T(1,128)}', space=vmem, size = 0x12000, scoped, tag = 'internal scratch']
  %s0 = inlined_call_operand.vmem [shape: bf16[2,8,2,9,2,128], index: 0, kind: input, shape index: {}]
  %s1 = inlined_call_operand.vmem [shape: bf16[2,8,10,128], index: 1, kind: output, shape index: {}]
  %s2 = sld [smem:[#allocation0]]
  $region37: #{content_loss.12} parent=0
    _
  %s4 = ssub.s32 1, %s2
  %s5 = scalar_select 0, %s4, %s2
  loop: start=0, step=1, limit=4
  $region2: #{content_loss.12} parent=0 // loop_pre_header
    _
  $region3: #{content_loss.12} parent=0 // loop_header
    %s7 = sphi 0, %s11
    %p8 = scmp.ge.s32.totalorder %s7, 4
    %s14 = sphi 0, %s26
    %s15 = sphi 0, %s22
    %s16 = sphi 0, %s14
    %s17 = sphi 0, %s15
    %s18 = sphi 0, %s16
    %s19 = sphi 0, %s17
    %s31 = sphi 0, %s33
    %s34 = sphi 0, %s31
    %s35 = sphi 0, %s34
    %s51 = sphi 0, %s35
    %s59 = sphi 0, %s61
    %s62 = sphi 0, %s59
    %s63 = sphi 0, %s62
    %s79 = sphi 0, %s63
  $region4: #{content_loss.12} parent=0 // loop_header_branch
    %10 = sbr.rel (%p8) target = $region8
  $region5: #{content_loss.12} parent=0 // loop_body
    %s12 = ssub.s32 %s7, 1
    %s13 = ssub.s32 %s7, 2
    %s20 = sadd.s32 1, %s15
    %p21 = scmp.ge.s32.totalorder %s20, 1
    %s22 = scalar_select %p21, 0, %s20
    %s23 = sadd.s32 1, %s14
    %s24 = scalar_select %p21, %s23, %s14
    %p25 = scmp.ge.s32.totalorder %s24, 2
    %s26 = scalar_select %p25, 0, %s24
    %s27 = ssub.s32 %s14, %s26
    %s28 = ssub.s32 %s15, %s22
    %s29 = sor.u32 %s27, %s28
    %p30 = scmp.eq.s32.totalorder %s29, 0
    %s32 = sadd.s32 %s31, 1
    %s33 = scalar_select %p30, %s31, %s32
    %p36 = pneg %p30
    %p37 = scmp.eq.s32.totalorder %s7, 1
    %p38 = por %p36, %p37
    %p39 = scmp.ne.s32.totalorder %s31, %s34
    %p40 = scmp.eq.s32.totalorder %s7, 0
    %p41 = por %p39, %p40
    %p42 = scmp.ne.s32.totalorder %s31, %s34
    %p43 = scmp.eq.s32.totalorder %s12, 1
    %p44 = por %p42, %p43
    %p45 = scmp.ne.s32.totalorder %s34, %s35
    %p46 = scmp.eq.s32.totalorder %s12, 0
    %p47 = por %p45, %p46
    %p48 = scmp.ne.s32.totalorder %s34, %s35
    %p49 = scmp.eq.s32.totalorder %s13, 1
    %p50 = por %p48, %p49
    %p52 = scmp.ne.s32.totalorder %s35, %s51
    %p53 = scmp.eq.s32.totalorder %s13, 0
    %p54 = por %p52, %p53
    %s55 = ssub.s32 %s14, %s26
    %s56 = ssub.s32 %s15, %s22
    %s57 = sor.u32 %s55, %s56
    %p58 = scmp.eq.s32.totalorder %s57, 0
    %s60 = sadd.s32 %s59, 1
    %s61 = scalar_select %p58, %s59, %s60
    %p64 = pneg %p58
    %p65 = scmp.eq.s32.totalorder %s7, 1
    %p66 = por %p64, %p65
    %p67 = scmp.ne.s32.totalorder %s59, %s62
    %p68 = scmp.eq.s32.totalorder %s7, 0
    %p69 = por %p67, %p68
    %p70 = scmp.ne.s32.totalorder %s59, %s62
    %p71 = scmp.eq.s32.totalorder %s12, 1
    %p72 = por %p70, %p71
    %p73 = scmp.ne.s32.totalorder %s62, %s63
    %p74 = scmp.eq.s32.totalorder %s12, 0
    %p75 = por %p73, %p74
    %p76 = scmp.ne.s32.totalorder %s62, %s63
    %p77 = scmp.eq.s32.totalorder %s13, 1
    %p78 = por %p76, %p77
    %p80 = scmp.ne.s32.totalorder %s63, %s79
    %p81 = scmp.eq.s32.totalorder %s13, 0
    %p82 = por %p80, %p81
    %p83 = scmp.le.s32.totalorder 1, %s7
    %p84 = scmp.lt.s32.totalorder %s7, 3
    %p85 = pnand %p83, %p84
    %p86 = pneg %p85
    // Predicated region
    $region9: #{content_loss.12} parent=5 // pred_check
      _
    $region10: #{content_loss.12} parent=5 // pred_check_branch
      %88 = sbr.rel (%p85) target = $region12
    $region11: #{content_loss.12} parent=5 // pred_region
      %s89 = ssub.s32 %s7, 1
    $region12: #{content_loss.12} parent=5 // pred_fallthru
      _
    %p90 = scmp.lt.s32.totalorder %s7, 2
    // Predicated region
    $region13: #{content_loss.12} parent=5 // pred_check
      %p91 = pneg %p90
    $region14: #{content_loss.12} parent=5 // pred_check_branch
      %93 = sbr.rel (%p91) target = $region16
    $region15: #{content_loss.12} parent=5 // pred_region
      // Predicated region
      $region17: #{content_loss.12} parent=15 // pred_check
        %p94 = pneg %p41
      $region18: #{content_loss.12} parent=15 // pred_check_branch
        %96 = sbr.rel (%p94) target = $region20
      $region19: #{content_loss.12} parent=15 // pred_region
        %s97 = smul.u32 8, %s15
        %p98 = scmp.lt.s32.totalorder %s14, 1
        %s99 = scalar_select %p98, %s14, 1
        %p100 = scmp.lt.s32.totalorder %s97, 7
        %s101 = scalar_select %p100, %s97, 7
        %s102 = smul.addr %s101, 18
        %s103 = smul.addr %s99, 144
        %s104 = sadd.s32 %s102, %s103
        %s105 = scalar_lea.vmem %s0, %s104
        %s106 = smul.u32 8, %s15
      $region20: #{content_loss.12} parent=15 // pred_fallthru
        _
    $region16: #{content_loss.12} parent=5 // pred_fallthru
      _
    %p107 = scmp.le.s32.totalorder 1, %s7
    %p108 = scmp.lt.s32.totalorder %s7, 3
    %p109 = pnand %p107, %p108
    %p110 = pneg %p109
    // Predicated region
    $region21: #{content_loss.12} parent=5 // pred_check
      _
    $region22: #{content_loss.12} parent=5 // pred_check_branch
      %112 = sbr.rel (%p109) target = $region24
    $region23: #{content_loss.12} parent=5 // pred_region
      %s113 = ssub.s32 %s7, 1
      %s114 = smul.u32 8, %s17
      %p115 = scmp.lt.s32.totalorder %s16, 1
      %s116 = scalar_select %p115, %s16, 1
      %p117 = scmp.lt.s32.totalorder %s114, 7
      %s118 = scalar_select %p117, %s114, 7
      %s119 = smul.addr %s118, 18
      %s120 = smul.addr %s116, 144
      %s121 = sadd.s32 %s119, %s120
      %s122 = scalar_lea.vmem %s0, %s121
      %p123 = pneg %p47
      %p124 = pneg %p44
      %p125 = pneg %p75
      %p126 = pneg %p72
      %s127 = smul.u32 8, %s17
      %p128 = scmp.lt.s32.totalorder %s16, 1
      %s129 = scalar_select %p128, %s16, 1
      %p130 = scmp.lt.s32.totalorder %s127, 7
      %s131 = scalar_select %p130, %s127, 7
      %s132 = smul.addr %s131, 2
      %s133 = smul.addr %s129, 16
      %s134 = sadd.s32 %s132, %s133
      %s135 = smul.addr %s134, 4
      %s136 = scalar_lea.vmem %s1, %s135
      %s137 = smul.u32 8, %s17
      %p138 = scmp.lt.s32.totalorder %s16, 1
      %s139 = scalar_select %p138, %s16, 1
      %p140 = scmp.lt.s32.totalorder %s137, 7
      %s141 = scalar_select %p140, %s137, 7
      %s142 = smul.addr %s141, 18
      %s143 = smul.addr %s139, 144
      %s144 = sadd.s32 %s142, %s143
      %s145 = scalar_lea.vmem %s0, %s144
      %s146 = smul.u32 8, %s17
      %s147 = smul.u32 8, %s17
      %p148 = scmp.lt.s32.totalorder %s16, 1
      %s149 = scalar_select %p148, %s16, 1
      %p150 = scmp.lt.s32.totalorder %s147, 7
      %s151 = scalar_select %p150, %s147, 7
      %s152 = smul.addr %s151, 2
      %s153 = smul.addr %s149, 16
      %s154 = sadd.s32 %s152, %s153
      %s155 = smul.addr %s154, 4
      %s156 = scalar_lea.vmem %s1, %s155
      %s157 = smul.u32 8, %s17
      %v159 = vld [vmem:[%s145] sm:$0x1]
      %v160 = vld [vmem:[%s145 + $0x1] sm:$0x1]
      %v161 = vld [vmem:[%s145 + $0x2] sm:$0x1]
      %v162 = vld [vmem:[%s145 + $0x3] sm:$0x1]
      %v163 = vld [vmem:[%s145 + $0x4] sm:$0x1]
      %v164 = vld [vmem:[%s145 + $0x5] sm:$0x1]
      %v165 = vld [vmem:[%s145 + $0x6] sm:$0x1]
      %v166 = vld [vmem:[%s145 + $0x7] sm:$0x1]
      %v167 = vld [vmem:[%s145 + $0x8] sm:$0x1]
      %v168 = vld [vmem:[%s145 + $0x9] sm:$0x1]
      %v169 = vld [vmem:[%s145 + $0xa] sm:$0x1]
      %v170 = vld [vmem:[%s145 + $0xb] sm:$0x1]
      %v171 = vld [vmem:[%s145 + $0xc] sm:$0x1]
      %v172 = vld [vmem:[%s145 + $0xd] sm:$0x1]
      %v173 = vld [vmem:[%s145 + $0xe] sm:$0x1]
      %v174 = vld [vmem:[%s145 + $0xf] sm:$0x1]
      %v175 = vld [vmem:[%s145 + $0x10] sm:$0x1]
      %v176 = vld [vmem:[%s145 + $0x11] sm:$0x1]
      %v177 = vld [vmem:[%s145 + $0x12] sm:$0x1]
      %v178 = vld [vmem:[%s145 + $0x13] sm:$0x1]
      %v179 = vld [vmem:[%s145 + $0x14] sm:$0x1]
      %v180 = vld [vmem:[%s145 + $0x15] sm:$0x1]
      %v181 = vld [vmem:[%s145 + $0x16] sm:$0x1]
      %v182 = vld [vmem:[%s145 + $0x17] sm:$0x1]
      %v183 = vld [vmem:[%s145 + $0x18] sm:$0x1]
      %v184 = vld [vmem:[%s145 + $0x19] sm:$0x1]
      %v185 = vld [vmem:[%s145 + $0x1a] sm:$0x1]
      %v186 = vld [vmem:[%s145 + $0x1b] sm:$0x1]
      %v187 = vld [vmem:[%s145 + $0x1c] sm:$0x1]
      %v188 = vld [vmem:[%s145 + $0x1d] sm:$0x1]
      %v189 = vld [vmem:[%s145 + $0x1e] sm:$0x1]
      %v190 = vld [vmem:[%s145 + $0x1f] sm:$0x1]
      %v191 = vld [vmem:[%s145 + $0x20] sm:$0x1]
      %v192 = vld [vmem:[%s145 + $0x21] sm:$0x1]
      %v193 = vld [vmem:[%s145 + $0x22] sm:$0x1]
      %v194 = vld [vmem:[%s145 + $0x23] sm:$0x1]
      %v195 = vld [vmem:[%s145 + $0x24] sm:$0x1]
      %v196 = vld [vmem:[%s145 + $0x25] sm:$0x1]
      %v197 = vld [vmem:[%s145 + $0x26] sm:$0x1]
      %v198 = vld [vmem:[%s145 + $0x27] sm:$0x1]
      %v199 = vld [vmem:[%s145 + $0x28] sm:$0x1]
      %v200 = vld [vmem:[%s145 + $0x29] sm:$0x1]
      %v201 = vld [vmem:[%s145 + $0x2a] sm:$0x1]
      %v202 = vld [vmem:[%s145 + $0x2b] sm:$0x1]
      %v203 = vld [vmem:[%s145 + $0x2c] sm:$0x1]
      %v204 = vld [vmem:[%s145 + $0x2d] sm:$0x1]
      %v205 = vld [vmem:[%s145 + $0x2e] sm:$0x1]
      %v206 = vld [vmem:[%s145 + $0x2f] sm:$0x1]
      %v207 = vld [vmem:[%s145 + $0x30] sm:$0x1]
      %v208 = vld [vmem:[%s145 + $0x31] sm:$0x1]
      %v209 = vld [vmem:[%s145 + $0x32] sm:$0x1]
      %v210 = vld [vmem:[%s145 + $0x33] sm:$0x1]
      %v211 = vld [vmem:[%s145 + $0x34] sm:$0x1]
      %v212 = vld [vmem:[%s145 + $0x35] sm:$0x1]
      %v213 = vld [vmem:[%s145 + $0x36] sm:$0x1]
      %v214 = vld [vmem:[%s145 + $0x37] sm:$0x1]
      %v215 = vld [vmem:[%s145 + $0x38] sm:$0x1]
      %v216 = vld [vmem:[%s145 + $0x39] sm:$0x1]
      %v217 = vld [vmem:[%s145 + $0x3a] sm:$0x1]
      %v218 = vld [vmem:[%s145 + $0x3b] sm:$0x1]
      %v219 = vld [vmem:[%s145 + $0x3c] sm:$0x1]
      %v220 = vld [vmem:[%s145 + $0x3d] sm:$0x1]
      %v221 = vld [vmem:[%s145 + $0x3e] sm:$0x1]
      %v222 = vld [vmem:[%s145 + $0x3f] sm:$0x1]
      %v223 = vld [vmem:[%s145 + $0x40] sm:$0x1]
      %v224 = vld [vmem:[%s145 + $0x41] sm:$0x1]
      %v225 = vld [vmem:[%s145 + $0x42] sm:$0x1]
      %v226 = vld [vmem:[%s145 + $0x43] sm:$0x1]
      %v227 = vld [vmem:[%s145 + $0x44] sm:$0x1]
      %v228 = vld [vmem:[%s145 + $0x45] sm:$0x1]
      %v229 = vld [vmem:[%s145 + $0x46] sm:$0x1]
      %v230 = vld [vmem:[%s145 + $0x47] sm:$0x1]
      %v231 = vld [vmem:[%s145 + $0x48] sm:$0x1]
      %v232 = vld [vmem:[%s145 + $0x49] sm:$0x1]
      %v233 = vld [vmem:[%s145 + $0x4a] sm:$0x1]
      %v234 = vld [vmem:[%s145 + $0x4b] sm:$0x1]
      %v235 = vld [vmem:[%s145 + $0x4c] sm:$0x1]
      %v236 = vld [vmem:[%s145 + $0x4d] sm:$0x1]
      %v237 = vld [vmem:[%s145 + $0x4e] sm:$0x1]
      %v238 = vld [vmem:[%s145 + $0x4f] sm:$0x1]
      %v239 = vld [vmem:[%s145 + $0x50] sm:$0x1]
      %v240 = vld [vmem:[%s145 + $0x51] sm:$0x1]
      %v241 = vld [vmem:[%s145 + $0x52] sm:$0x1]
      %v242 = vld [vmem:[%s145 + $0x53] sm:$0x1]
      %v243 = vld [vmem:[%s145 + $0x54] sm:$0x1]
      %v244 = vld [vmem:[%s145 + $0x55] sm:$0x1]
      %v245 = vld [vmem:[%s145 + $0x56] sm:$0x1]
      %v246 = vld [vmem:[%s145 + $0x57] sm:$0x1]
      %v247 = vld [vmem:[%s145 + $0x58] sm:$0x1]
      %v248 = vld [vmem:[%s145 + $0x59] sm:$0x1]
      %v249 = vld [vmem:[%s145 + $0x5a] sm:$0x1]
      %v250 = vld [vmem:[%s145 + $0x5b] sm:$0x1]
      %v251 = vld [vmem:[%s145 + $0x5c] sm:$0x1]
      %v252 = vld [vmem:[%s145 + $0x5d] sm:$0x1]
      %v253 = vld [vmem:[%s145 + $0x5e] sm:$0x1]
      %v254 = vld [vmem:[%s145 + $0x5f] sm:$0x1]
      %v255 = vld [vmem:[%s145 + $0x60] sm:$0x1]
      %v256 = vld [vmem:[%s145 + $0x61] sm:$0x1]
      %v257 = vld [vmem:[%s145 + $0x62] sm:$0x1]
      %v258 = vld [vmem:[%s145 + $0x63] sm:$0x1]
      %v259 = vld [vmem:[%s145 + $0x64] sm:$0x1]
      %v260 = vld [vmem:[%s145 + $0x65] sm:$0x1]
      %v261 = vld [vmem:[%s145 + $0x66] sm:$0x1]
      %v262 = vld [vmem:[%s145 + $0x67] sm:$0x1]
      %v263 = vld [vmem:[%s145 + $0x68] sm:$0x1]
      %v264 = vld [vmem:[%s145 + $0x69] sm:$0x1]
      %v265 = vld [vmem:[%s145 + $0x6a] sm:$0x1]
      %v266 = vld [vmem:[%s145 + $0x6b] sm:$0x1]
      %v267 = vld [vmem:[%s145 + $0x6c] sm:$0x1]
      %v268 = vld [vmem:[%s145 + $0x6d] sm:$0x1]
      %v269 = vld [vmem:[%s145 + $0x6e] sm:$0x1]
      %v270 = vld [vmem:[%s145 + $0x6f] sm:$0x1]
      %v271 = vld [vmem:[%s145 + $0x70] sm:$0x1]
      %v272 = vld [vmem:[%s145 + $0x71] sm:$0x1]
      %v273 = vld [vmem:[%s145 + $0x72] sm:$0x1]
      %v274 = vld [vmem:[%s145 + $0x73] sm:$0x1]
      %v275 = vld [vmem:[%s145 + $0x74] sm:$0x1]
      %v276 = vld [vmem:[%s145 + $0x75] sm:$0x1]
      %v277 = vld [vmem:[%s145 + $0x76] sm:$0x1]
      %v278 = vld [vmem:[%s145 + $0x77] sm:$0x1]
      %v279 = vld [vmem:[%s145 + $0x78] sm:$0x1]
      %v280 = vld [vmem:[%s145 + $0x79] sm:$0x1]
      %v281 = vld [vmem:[%s145 + $0x7a] sm:$0x1]
      %v282 = vld [vmem:[%s145 + $0x7b] sm:$0x1]
      %v283 = vld [vmem:[%s145 + $0x7c] sm:$0x1]
      %v284 = vld [vmem:[%s145 + $0x7d] sm:$0x1]
      %v285 = vld [vmem:[%s145 + $0x7e] sm:$0x1]
      %v286 = vld [vmem:[%s145 + $0x7f] sm:$0x1]
      %v287 = vld [vmem:[%s145 + $0x80] sm:$0x1]
      %v288 = vld [vmem:[%s145 + $0x81] sm:$0x1]
      %v289 = vld [vmem:[%s145 + $0x82] sm:$0x1]
      %v290 = vld [vmem:[%s145 + $0x83] sm:$0x1]
      %v291 = vld [vmem:[%s145 + $0x84] sm:$0x1]
      %v292 = vld [vmem:[%s145 + $0x85] sm:$0x1]
      %v293 = vld [vmem:[%s145 + $0x86] sm:$0x1]
      %v294 = vld [vmem:[%s145 + $0x87] sm:$0x1]
      %v295 = vld [vmem:[%s145 + $0x88] sm:$0x1]
      %v296 = vld [vmem:[%s145 + $0x89] sm:$0x1]
      %v297 = vld [vmem:[%s145 + $0x8a] sm:$0x1]
      %v298 = vld [vmem:[%s145 + $0x8b] sm:$0x1]
      %v299 = vld [vmem:[%s145 + $0x8c] sm:$0x1]
      %v300 = vld [vmem:[%s145 + $0x8d] sm:$0x1]
      %v301 = vld [vmem:[%s145 + $0x8e] sm:$0x1]
      %v302 = vld [vmem:[%s145 + $0x8f] sm:$0x1]
      %v304 = vshrl.u32 %v159, 16
      %v306 = vrot.slane %v304, 7
      %v307 = vrot.slane %v306, 1
      %v309 = vshrl.u32 %v160, 16
      %v311 = vrot.slane %v309, 7
      %v312 = vrot.slane %v311, 1
      %v314 = vshrl.u32 %v161, 16
      %v316 = vrot.slane %v314, 7
      %v317 = vrot.slane %v316, 1
      %v319 = vshrl.u32 %v162, 16
      %v321 = vrot.slane %v319, 7
      %v322 = vrot.slane %v321, 1
      %v324 = vshrl.u32 %v163, 16
      %v326 = vrot.slane %v324, 7
      %v327 = vrot.slane %v326, 1
      %v329 = vshrl.u32 %v164, 16
      %v331 = vrot.slane %v329, 7
      %v332 = vrot.slane %v331, 1
      %v334 = vshrl.u32 %v165, 16
      %v336 = vrot.slane %v334, 7
      %v337 = vrot.slane %v336, 1
      %v339 = vshrl.u32 %v166, 16
      %v341 = vrot.slane %v339, 7
      %v342 = vrot.slane %v341, 1
      %v344 = vshrl.u32 %v167, 16
      %v346 = vrot.slane %v344, 7
      %v347 = vrot.slane %v346, 1
      %v349 = vshrl.u32 %v177, 16
      %v351 = vrot.slane %v349, 7
      %v352 = vrot.slane %v351, 1
      %v354 = vshrl.u32 %v178, 16
      %v356 = vrot.slane %v354, 7
      %v357 = vrot.slane %v356, 1
      %v359 = vshrl.u32 %v179, 16
      %v361 = vrot.slane %v359, 7
      %v362 = vrot.slane %v361, 1
      %v364 = vshrl.u32 %v180, 16
      %v366 = vrot.slane %v364, 7
      %v367 = vrot.slane %v366, 1
      %v369 = vshrl.u32 %v181, 16
      %v371 = vrot.slane %v369, 7
      %v372 = vrot.slane %v371, 1
      %v374 = vshrl.u32 %v182, 16
      %v376 = vrot.slane %v374, 7
      %v377 = vrot.slane %v376, 1
      %v379 = vshrl.u32 %v183, 16
      %v381 = vrot.slane %v379, 7
      %v382 = vrot.slane %v381, 1
      %v384 = vshrl.u32 %v184, 16
      %v386 = vrot.slane %v384, 7
      %v387 = vrot.slane %v386, 1
      %v389 = vshrl.u32 %v185, 16
      %v391 = vrot.slane %v389, 7
      %v392 = vrot.slane %v391, 1
      %v394 = vshrl.u32 %v195, 16
      %v396 = vrot.slane %v394, 7
      %v397 = vrot.slane %v396, 1
      %v399 = vshrl.u32 %v196, 16
      %v401 = vrot.slane %v399, 7
      %v402 = vrot.slane %v401, 1
      %v404 = vshrl.u32 %v197, 16
      %v406 = vrot.slane %v404, 7
      %v407 = vrot.slane %v406, 1
      %v409 = vshrl.u32 %v198, 16
      %v411 = vrot.slane %v409, 7
      %v412 = vrot.slane %v411, 1
      %v414 = vshrl.u32 %v199, 16
      %v416 = vrot.slane %v414, 7
      %v417 = vrot.slane %v416, 1
      %v419 = vshrl.u32 %v200, 16
      %v421 = vrot.slane %v419, 7
      %v422 = vrot.slane %v421, 1
      %v424 = vshrl.u32 %v201, 16
      %v426 = vrot.slane %v424, 7
      %v427 = vrot.slane %v426, 1
      %v429 = vshrl.u32 %v202, 16
      %v431 = vrot.slane %v429, 7
      %v432 = vrot.slane %v431, 1
      %v434 = vshrl.u32 %v203, 16
      %v436 = vrot.slane %v434, 7
      %v437 = vrot.slane %v436, 1
      %v439 = vshrl.u32 %v213, 16
      %v441 = vrot.slane %v439, 7
      %v442 = vrot.slane %v441, 1
      %v444 = vshrl.u32 %v214, 16
      %v446 = vrot.slane %v444, 7
      %v447 = vrot.slane %v446, 1
      %v449 = vshrl.u32 %v215, 16
      %v451 = vrot.slane %v449, 7
      %v452 = vrot.slane %v451, 1
      %v454 = vshrl.u32 %v216, 16
      %v456 = vrot.slane %v454, 7
      %v457 = vrot.slane %v456, 1
      %v459 = vshrl.u32 %v217, 16
      %v461 = vrot.slane %v459, 7
      %v462 = vrot.slane %v461, 1
      %v464 = vshrl.u32 %v218, 16
      %v466 = vrot.slane %v464, 7
      %v467 = vrot.slane %v466, 1
      %v469 = vshrl.u32 %v219, 16
      %v471 = vrot.slane %v469, 7
      %v472 = vrot.slane %v471, 1
      %v474 = vshrl.u32 %v220, 16
      %v476 = vrot.slane %v474, 7
      %v477 = vrot.slane %v476, 1
      %v479 = vshrl.u32 %v221, 16
      %v481 = vrot.slane %v479, 7
      %v482 = vrot.slane %v481, 1
      %v484 = vshrl.u32 %v231, 16
      %v486 = vrot.slane %v484, 7
      %v487 = vrot.slane %v486, 1
      %v489 = vshrl.u32 %v232, 16
      %v491 = vrot.slane %v489, 7
      %v492 = vrot.slane %v491, 1
      %v494 = vshrl.u32 %v233, 16
      %v496 = vrot.slane %v494, 7
      %v497 = vrot.slane %v496, 1
      %v499 = vshrl.u32 %v234, 16
      %v501 = vrot.slane %v499, 7
      %v502 = vrot.slane %v501, 1
      %v504 = vshrl.u32 %v235, 16
      %v506 = vrot.slane %v504, 7
      %v507 = vrot.slane %v506, 1
      %v509 = vshrl.u32 %v236, 16
      %v511 = vrot.slane %v509, 7
      %v512 = vrot.slane %v511, 1
      %v514 = vshrl.u32 %v237, 16
      %v516 = vrot.slane %v514, 7
      %v517 = vrot.slane %v516, 1
      %v519 = vshrl.u32 %v238, 16
      %v521 = vrot.slane %v519, 7
      %v522 = vrot.slane %v521, 1
      %v524 = vshrl.u32 %v239, 16
      %v526 = vrot.slane %v524, 7
      %v527 = vrot.slane %v526, 1
      %v529 = vshrl.u32 %v249, 16
      %v531 = vrot.slane %v529, 7
      %v532 = vrot.slane %v531, 1
      %v534 = vshrl.u32 %v250, 16
      %v536 = vrot.slane %v534, 7
      %v537 = vrot.slane %v536, 1
      %v539 = vshrl.u32 %v251, 16
      %v541 = vrot.slane %v539, 7
      %v542 = vrot.slane %v541, 1
      %v544 = vshrl.u32 %v252, 16
      %v546 = vrot.slane %v544, 7
      %v547 = vrot.slane %v546, 1
      %v549 = vshrl.u32 %v253, 16
      %v551 = vrot.slane %v549, 7
      %v552 = vrot.slane %v551, 1
      %v554 = vshrl.u32 %v254, 16
      %v556 = vrot.slane %v554, 7
      %v557 = vrot.slane %v556, 1
      %v559 = vshrl.u32 %v255, 16
      %v561 = vrot.slane %v559, 7
      %v562 = vrot.slane %v561, 1
      %v564 = vshrl.u32 %v256, 16
      %v566 = vrot.slane %v564, 7
      %v567 = vrot.slane %v566, 1
      %v569 = vshrl.u32 %v257, 16
      %v571 = vrot.slane %v569, 7
      %v572 = vrot.slane %v571, 1
      %v574 = vshrl.u32 %v267, 16
      %v576 = vrot.slane %v574, 7
      %v577 = vrot.slane %v576, 1
      %v579 = vshrl.u32 %v268, 16
      %v581 = vrot.slane %v579, 7
      %v582 = vrot.slane %v581, 1
      %v584 = vshrl.u32 %v269, 16
      %v586 = vrot.slane %v584, 7
      %v587 = vrot.slane %v586, 1
      %v589 = vshrl.u32 %v270, 16
      %v591 = vrot.slane %v589, 7
      %v592 = vrot.slane %v591, 1
      %v594 = vshrl.u32 %v271, 16
      %v596 = vrot.slane %v594, 7
      %v597 = vrot.slane %v596, 1
      %v599 = vshrl.u32 %v272, 16
      %v601 = vrot.slane %v599, 7
      %v602 = vrot.slane %v601, 1
      %v604 = vshrl.u32 %v273, 16
      %v606 = vrot.slane %v604, 7
      %v607 = vrot.slane %v606, 1
      %v609 = vshrl.u32 %v274, 16
      %v611 = vrot.slane %v609, 7
      %v612 = vrot.slane %v611, 1
      %v614 = vshrl.u32 %v275, 16
      %v616 = vrot.slane %v614, 7
      %v617 = vrot.slane %v616, 1
      %v619 = vshrl.u32 %v285, 16
      %v621 = vrot.slane %v619, 7
      %v622 = vrot.slane %v621, 1
      %v624 = vshrl.u32 %v286, 16
      %v626 = vrot.slane %v624, 7
      %v627 = vrot.slane %v626, 1
      %v629 = vshrl.u32 %v287, 16
      %v631 = vrot.slane %v629, 7
      %v632 = vrot.slane %v631, 1
      %v634 = vshrl.u32 %v288, 16
      %v636 = vrot.slane %v634, 7
      %v637 = vrot.slane %v636, 1
      %v639 = vshrl.u32 %v289, 16
      %v641 = vrot.slane %v639, 7
      %v642 = vrot.slane %v641, 1
      %v644 = vshrl.u32 %v290, 16
      %v646 = vrot.slane %v644, 7
      %v647 = vrot.slane %v646, 1
      %v649 = vshrl.u32 %v291, 16
      %v651 = vrot.slane %v649, 7
      %v652 = vrot.slane %v651, 1
      %v654 = vshrl.u32 %v292, 16
      %v656 = vrot.slane %v654, 7
      %v657 = vrot.slane %v656, 1
      %v659 = vshrl.u32 %v293, 16
      %v661 = vrot.slane %v659, 7
      %v662 = vrot.slane %v661, 1
      %v735 = vmax.bf16 %v159, %v307
      %v736 = vmax.bf16 %v160, %v312
      %v737 = vmax.bf16 %v161, %v317
      %v738 = vmax.bf16 %v162, %v322
      %v739 = vmax.bf16 %v163, %v327
      %v740 = vmax.bf16 %v164, %v332
      %v741 = vmax.bf16 %v165, %v337
      %v742 = vmax.bf16 %v166, %v342
      %v743 = vmax.bf16 %v167, %v347
      %v744 = vmax.bf16 %v177, %v352
      %v745 = vmax.bf16 %v178, %v357
      %v746 = vmax.bf16 %v179, %v362
      %v747 = vmax.bf16 %v180, %v367
      %v748 = vmax.bf16 %v181, %v372
      %v749 = vmax.bf16 %v182, %v377
      %v750 = vmax.bf16 %v183, %v382
      %v751 = vmax.bf16 %v184, %v387
      %v752 = vmax.bf16 %v185, %v392
      %v753 = vmax.bf16 %v195, %v397
      %v754 = vmax.bf16 %v196, %v402
      %v755 = vmax.bf16 %v197, %v407
      %v756 = vmax.bf16 %v198, %v412
      %v757 = vmax.bf16 %v199, %v417
      %v758 = vmax.bf16 %v200, %v422
      %v759 = vmax.bf16 %v201, %v427
      %v760 = vmax.bf16 %v202, %v432
      %v761 = vmax.bf16 %v203, %v437
      %v762 = vmax.bf16 %v213, %v442
      %v763 = vmax.bf16 %v214, %v447
      %v764 = vmax.bf16 %v215, %v452
      %v765 = vmax.bf16 %v216, %v457
      %v766 = vmax.bf16 %v217, %v462
      %v767 = vmax.bf16 %v218, %v467
      %v768 = vmax.bf16 %v219, %v472
      %v769 = vmax.bf16 %v220, %v477
      %v770 = vmax.bf16 %v221, %v482
      %v771 = vmax.bf16 %v231, %v487
      %v772 = vmax.bf16 %v232, %v492
      %v773 = vmax.bf16 %v233, %v497
      %v774 = vmax.bf16 %v234, %v502
      %v775 = vmax.bf16 %v235, %v507
      %v776 = vmax.bf16 %v236, %v512
      %v777 = vmax.bf16 %v237, %v517
      %v778 = vmax.bf16 %v238, %v522
      %v779 = vmax.bf16 %v239, %v527
      %v780 = vmax.bf16 %v249, %v532
      %v781 = vmax.bf16 %v250, %v537
      %v782 = vmax.bf16 %v251, %v542
      %v783 = vmax.bf16 %v252, %v547
      %v784 = vmax.bf16 %v253, %v552
      %v785 = vmax.bf16 %v254, %v557
      %v786 = vmax.bf16 %v255, %v562
      %v787 = vmax.bf16 %v256, %v567
      %v788 = vmax.bf16 %v257, %v572
      %v789 = vmax.bf16 %v267, %v577
      %v790 = vmax.bf16 %v268, %v582
      %v791 = vmax.bf16 %v269, %v587
      %v792 = vmax.bf16 %v270, %v592
      %v793 = vmax.bf16 %v271, %v597
      %v794 = vmax.bf16 %v272, %v602
      %v795 = vmax.bf16 %v273, %v607
      %v796 = vmax.bf16 %v274, %v612
      %v797 = vmax.bf16 %v275, %v617
      %v798 = vmax.bf16 %v285, %v622
      %v799 = vmax.bf16 %v286, %v627
      %v800 = vmax.bf16 %v287, %v632
      %v801 = vmax.bf16 %v288, %v637
      %v802 = vmax.bf16 %v289, %v642
      %v803 = vmax.bf16 %v290, %v647
      %v804 = vmax.bf16 %v291, %v652
      %v805 = vmax.bf16 %v292, %v657
      %v806 = vmax.bf16 %v293, %v662
      %v808 = vshrl.u32 %v168, 16
      %v810 = vrot.slane %v808, 7
      %v811 = vrot.slane %v810, 1
      %v813 = vshrl.u32 %v169, 16
      %v815 = vrot.slane %v813, 7
      %v816 = vrot.slane %v815, 1
      %v818 = vshrl.u32 %v170, 16
      %v820 = vrot.slane %v818, 7
      %v821 = vrot.slane %v820, 1
      %v823 = vshrl.u32 %v171, 16
      %v825 = vrot.slane %v823, 7
      %v826 = vrot.slane %v825, 1
      %v828 = vshrl.u32 %v172, 16
      %v830 = vrot.slane %v828, 7
      %v831 = vrot.slane %v830, 1
      %v833 = vshrl.u32 %v173, 16
      %v835 = vrot.slane %v833, 7
      %v836 = vrot.slane %v835, 1
      %v838 = vshrl.u32 %v174, 16
      %v840 = vrot.slane %v838, 7
      %v841 = vrot.slane %v840, 1
      %v843 = vshrl.u32 %v175, 16
      %v845 = vrot.slane %v843, 7
      %v846 = vrot.slane %v845, 1
      %v848 = vshrl.u32 %v176, 16
      %v850 = vrot.slane %v848, 7
      %v851 = vrot.slane %v850, 1
      %v853 = vshrl.u32 %v186, 16
      %v855 = vrot.slane %v853, 7
      %v856 = vrot.slane %v855, 1
      %v858 = vshrl.u32 %v187, 16
      %v860 = vrot.slane %v858, 7
      %v861 = vrot.slane %v860, 1
      %v863 = vshrl.u32 %v188, 16
      %v865 = vrot.slane %v863, 7
      %v866 = vrot.slane %v865, 1
      %v868 = vshrl.u32 %v189, 16
      %v870 = vrot.slane %v868, 7
      %v871 = vrot.slane %v870, 1
      %v873 = vshrl.u32 %v190, 16
      %v875 = vrot.slane %v873, 7
      %v876 = vrot.slane %v875, 1
      %v878 = vshrl.u32 %v191, 16
      %v880 = vrot.slane %v878, 7
      %v881 = vrot.slane %v880, 1
      %v883 = vshrl.u32 %v192, 16
      %v885 = vrot.slane %v883, 7
      %v886 = vrot.slane %v885, 1
      %v888 = vshrl.u32 %v193, 16
      %v890 = vrot.slane %v888, 7
      %v891 = vrot.slane %v890, 1
      %v893 = vshrl.u32 %v194, 16
      %v895 = vrot.slane %v893, 7
      %v896 = vrot.slane %v895, 1
      %v898 = vshrl.u32 %v204, 16
      %v900 = vrot.slane %v898, 7
      %v901 = vrot.slane %v900, 1
      %v903 = vshrl.u32 %v205, 16
      %v905 = vrot.slane %v903, 7
      %v906 = vrot.slane %v905, 1
      %v908 = vshrl.u32 %v206, 16
      %v910 = vrot.slane %v908, 7
      %v911 = vrot.slane %v910, 1
      %v913 = vshrl.u32 %v207, 16
      %v915 = vrot.slane %v913, 7
      %v916 = vrot.slane %v915, 1
      %v918 = vshrl.u32 %v208, 16
      %v920 = vrot.slane %v918, 7
      %v921 = vrot.slane %v920, 1
      %v923 = vshrl.u32 %v209, 16
      %v925 = vrot.slane %v923, 7
      %v926 = vrot.slane %v925, 1
      %v928 = vshrl.u32 %v210, 16
      %v930 = vrot.slane %v928, 7
      %v931 = vrot.slane %v930, 1
      %v933 = vshrl.u32 %v211, 16
      %v935 = vrot.slane %v933, 7
      %v936 = vrot.slane %v935, 1
      %v938 = vshrl.u32 %v212, 16
      %v940 = vrot.slane %v938, 7
      %v941 = vrot.slane %v940, 1
      %v943 = vshrl.u32 %v222, 16
      %v945 = vrot.slane %v943, 7
      %v946 = vrot.slane %v945, 1
      %v948 = vshrl.u32 %v223, 16
      %v950 = vrot.slane %v948, 7
      %v951 = vrot.slane %v950, 1
      %v953 = vshrl.u32 %v224, 16
      %v955 = vrot.slane %v953, 7
      %v956 = vrot.slane %v955, 1
      %v958 = vshrl.u32 %v225, 16
      %v960 = vrot.slane %v958, 7
      %v961 = vrot.slane %v960, 1
      %v963 = vshrl.u32 %v226, 16
      %v965 = vrot.slane %v963, 7
      %v966 = vrot.slane %v965, 1
      %v968 = vshrl.u32 %v227, 16
      %v970 = vrot.slane %v968, 7
      %v971 = vrot.slane %v970, 1
      %v973 = vshrl.u32 %v228, 16
      %v975 = vrot.slane %v973, 7
      %v976 = vrot.slane %v975, 1
      %v978 = vshrl.u32 %v229, 16
      %v980 = vrot.slane %v978, 7
      %v981 = vrot.slane %v980, 1
      %v983 = vshrl.u32 %v230, 16
      %v985 = vrot.slane %v983, 7
      %v986 = vrot.slane %v985, 1
      %v988 = vshrl.u32 %v240, 16
      %v990 = vrot.slane %v988, 7
      %v991 = vrot.slane %v990, 1
      %v993 = vshrl.u32 %v241, 16
      %v995 = vrot.slane %v993, 7
      %v996 = vrot.slane %v995, 1
      %v998 = vshrl.u32 %v242, 16
      %v1000 = vrot.slane %v998, 7
      %v1001 = vrot.slane %v1000, 1
      %v1003 = vshrl.u32 %v243, 16
      %v1005 = vrot.slane %v1003, 7
      %v1006 = vrot.slane %v1005, 1
      %v1008 = vshrl.u32 %v244, 16
      %v1010 = vrot.slane %v1008, 7
      %v1011 = vrot.slane %v1010, 1
      %v1013 = vshrl.u32 %v245, 16
      %v1015 = vrot.slane %v1013, 7
      %v1016 = vrot.slane %v1015, 1
      %v1018 = vshrl.u32 %v246, 16
      %v1020 = vrot.slane %v1018, 7
      %v1021 = vrot.slane %v1020, 1
      %v1023 = vshrl.u32 %v247, 16
      %v1025 = vrot.slane %v1023, 7
      %v1026 = vrot.slane %v1025, 1
      %v1028 = vshrl.u32 %v248, 16
      %v1030 = vrot.slane %v1028, 7
      %v1031 = vrot.slane %v1030, 1
      %v1033 = vshrl.u32 %v258, 16
      %v1035 = vrot.slane %v1033, 7
      %v1036 = vrot.slane %v1035, 1
      %v1038 = vshrl.u32 %v259, 16
      %v1040 = vrot.slane %v1038, 7
      %v1041 = vrot.slane %v1040, 1
      %v1043 = vshrl.u32 %v260, 16
      %v1045 = vrot.slane %v1043, 7
      %v1046 = vrot.slane %v1045, 1
      %v1048 = vshrl.u32 %v261, 16
      %v1050 = vrot.slane %v1048, 7
      %v1051 = vrot.slane %v1050, 1
      %v1053 = vshrl.u32 %v262, 16
      %v1055 = vrot.slane %v1053, 7
      %v1056 = vrot.slane %v1055, 1
      %v1058 = vshrl.u32 %v263, 16
      %v1060 = vrot.slane %v1058, 7
      %v1061 = vrot.slane %v1060, 1
      %v1063 = vshrl.u32 %v264, 16
      %v1065 = vrot.slane %v1063, 7
      %v1066 = vrot.slane %v1065, 1
      %v1068 = vshrl.u32 %v265, 16
      %v1070 = vrot.slane %v1068, 7
      %v1071 = vrot.slane %v1070, 1
      %v1073 = vshrl.u32 %v266, 16
      %v1075 = vrot.slane %v1073, 7
      %v1076 = vrot.slane %v1075, 1
      %v1078 = vshrl.u32 %v276, 16
      %v1080 = vrot.slane %v1078, 7
      %v1081 = vrot.slane %v1080, 1
      %v1083 = vshrl.u32 %v277, 16
      %v1085 = vrot.slane %v1083, 7
      %v1086 = vrot.slane %v1085, 1
      %v1088 = vshrl.u32 %v278, 16
      %v1090 = vrot.slane %v1088, 7
      %v1091 = vrot.slane %v1090, 1
      %v1093 = vshrl.u32 %v279, 16
      %v1095 = vrot.slane %v1093, 7
      %v1096 = vrot.slane %v1095, 1
      %v1098 = vshrl.u32 %v280, 16
      %v1100 = vrot.slane %v1098, 7
      %v1101 = vrot.slane %v1100, 1
      %v1103 = vshrl.u32 %v281, 16
      %v1105 = vrot.slane %v1103, 7
      %v1106 = vrot.slane %v1105, 1
      %v1108 = vshrl.u32 %v282, 16
      %v1110 = vrot.slane %v1108, 7
      %v1111 = vrot.slane %v1110, 1
      %v1113 = vshrl.u32 %v283, 16
      %v1115 = vrot.slane %v1113, 7
      %v1116 = vrot.slane %v1115, 1
      %v1118 = vshrl.u32 %v284, 16
      %v1120 = vrot.slane %v1118, 7
      %v1121 = vrot.slane %v1120, 1
      %v1123 = vshrl.u32 %v294, 16
      %v1125 = vrot.slane %v1123, 7
      %v1126 = vrot.slane %v1125, 1
      %v1128 = vshrl.u32 %v295, 16
      %v1130 = vrot.slane %v1128, 7
      %v1131 = vrot.slane %v1130, 1
      %v1133 = vshrl.u32 %v296, 16
      %v1135 = vrot.slane %v1133, 7
      %v1136 = vrot.slane %v1135, 1
      %v1138 = vshrl.u32 %v297, 16
      %v1140 = vrot.slane %v1138, 7
      %v1141 = vrot.slane %v1140, 1
      %v1143 = vshrl.u32 %v298, 16
      %v1145 = vrot.slane %v1143, 7
      %v1146 = vrot.slane %v1145, 1
      %v1148 = vshrl.u32 %v299, 16
      %v1150 = vrot.slane %v1148, 7
      %v1151 = vrot.slane %v1150, 1
      %v1153 = vshrl.u32 %v300, 16
      %v1155 = vrot.slane %v1153, 7
      %v1156 = vrot.slane %v1155, 1
      %v1158 = vshrl.u32 %v301, 16
      %v1160 = vrot.slane %v1158, 7
      %v1161 = vrot.slane %v1160, 1
      %v1163 = vshrl.u32 %v302, 16
      %v1165 = vrot.slane %v1163, 7
      %v1166 = vrot.slane %v1165, 1
      %v1239 = vmax.bf16 %v168, %v811
      %v1240 = vmax.bf16 %v169, %v816
      %v1241 = vmax.bf16 %v170, %v821
      %v1242 = vmax.bf16 %v171, %v826
      %v1243 = vmax.bf16 %v172, %v831
      %v1244 = vmax.bf16 %v173, %v836
      %v1245 = vmax.bf16 %v174, %v841
      %v1246 = vmax.bf16 %v175, %v846
      %v1247 = vmax.bf16 %v176, %v851
      %v1248 = vmax.bf16 %v186, %v856
      %v1249 = vmax.bf16 %v187, %v861
      %v1250 = vmax.bf16 %v188, %v866
      %v1251 = vmax.bf16 %v189, %v871
      %v1252 = vmax.bf16 %v190, %v876
      %v1253 = vmax.bf16 %v191, %v881
      %v1254 = vmax.bf16 %v192, %v886
      %v1255 = vmax.bf16 %v193, %v891
      %v1256 = vmax.bf16 %v194, %v896
      %v1257 = vmax.bf16 %v204, %v901
      %v1258 = vmax.bf16 %v205, %v906
      %v1259 = vmax.bf16 %v206, %v911
      %v1260 = vmax.bf16 %v207, %v916
      %v1261 = vmax.bf16 %v208, %v921
      %v1262 = vmax.bf16 %v209, %v926
      %v1263 = vmax.bf16 %v210, %v931
      %v1264 = vmax.bf16 %v211, %v936
      %v1265 = vmax.bf16 %v212, %v941
      %v1266 = vmax.bf16 %v222, %v946
      %v1267 = vmax.bf16 %v223, %v951
      %v1268 = vmax.bf16 %v224, %v956
      %v1269 = vmax.bf16 %v225, %v961
      %v1270 = vmax.bf16 %v226, %v966
      %v1271 = vmax.bf16 %v227, %v971
      %v1272 = vmax.bf16 %v228, %v976
      %v1273 = vmax.bf16 %v229, %v981
      %v1274 = vmax.bf16 %v230, %v986
      %v1275 = vmax.bf16 %v240, %v991
      %v1276 = vmax.bf16 %v241, %v996
      %v1277 = vmax.bf16 %v242, %v1001
      %v1278 = vmax.bf16 %v243, %v1006
      %v1279 = vmax.bf16 %v244, %v1011
      %v1280 = vmax.bf16 %v245, %v1016
      %v1281 = vmax.bf16 %v246, %v1021
      %v1282 = vmax.bf16 %v247, %v1026
      %v1283 = vmax.bf16 %v248, %v1031
      %v1284 = vmax.bf16 %v258, %v1036
      %v1285 = vmax.bf16 %v259, %v1041
      %v1286 = vmax.bf16 %v260, %v1046
      %v1287 = vmax.bf16 %v261, %v1051
      %v1288 = vmax.bf16 %v262, %v1056
      %v1289 = vmax.bf16 %v263, %v1061
      %v1290 = vmax.bf16 %v264, %v1066
      %v1291 = vmax.bf16 %v265, %v1071
      %v1292 = vmax.bf16 %v266, %v1076
      %v1293 = vmax.bf16 %v276, %v1081
      %v1294 = vmax.bf16 %v277, %v1086
      %v1295 = vmax.bf16 %v278, %v1091
      %v1296 = vmax.bf16 %v279, %v1096
      %v1297 = vmax.bf16 %v280, %v1101
      %v1298 = vmax.bf16 %v281, %v1106
      %v1299 = vmax.bf16 %v282, %v1111
      %v1300 = vmax.bf16 %v283, %v1116
      %v1301 = vmax.bf16 %v284, %v1121
      %v1302 = vmax.bf16 %v294, %v1126
      %v1303 = vmax.bf16 %v295, %v1131
      %v1304 = vmax.bf16 %v296, %v1136
      %v1305 = vmax.bf16 %v297, %v1141
      %v1306 = vmax.bf16 %v298, %v1146
      %v1307 = vmax.bf16 %v299, %v1151
      %v1308 = vmax.bf16 %v300, %v1156
      %v1309 = vmax.bf16 %v301, %v1161
      %v1310 = vmax.bf16 %v302, %v1166
      %v1311 = vmax.bf16 %v735, %v1239
      %v1312 = vmax.bf16 %v736, %v1240
      %v1313 = vmax.bf16 %v737, %v1241
      %v1314 = vmax.bf16 %v738, %v1242
      %v1315 = vmax.bf16 %v739, %v1243
      %v1316 = vmax.bf16 %v740, %v1244
      %v1317 = vmax.bf16 %v741, %v1245
      %v1318 = vmax.bf16 %v742, %v1246
      %v1319 = vmax.bf16 %v743, %v1247
      %v1320 = vmax.bf16 %v744, %v1248
      %v1321 = vmax.bf16 %v745, %v1249
      %v1322 = vmax.bf16 %v746, %v1250
      %v1323 = vmax.bf16 %v747, %v1251
      %v1324 = vmax.bf16 %v748, %v1252
      %v1325 = vmax.bf16 %v749, %v1253
      %v1326 = vmax.bf16 %v750, %v1254
      %v1327 = vmax.bf16 %v751, %v1255
      %v1328 = vmax.bf16 %v752, %v1256
      %v1329 = vmax.bf16 %v753, %v1257
      %v1330 = vmax.bf16 %v754, %v1258
      %v1331 = vmax.bf16 %v755, %v1259
      %v1332 = vmax.bf16 %v756, %v1260
      %v1333 = vmax.bf16 %v757, %v1261
      %v1334 = vmax.bf16 %v758, %v1262
      %v1335 = vmax.bf16 %v759, %v1263
      %v1336 = vmax.bf16 %v760, %v1264
      %v1337 = vmax.bf16 %v761, %v1265
      %v1338 = vmax.bf16 %v762, %v1266
      %v1339 = vmax.bf16 %v763, %v1267
      %v1340 = vmax.bf16 %v764, %v1268
      %v1341 = vmax.bf16 %v765, %v1269
      %v1342 = vmax.bf16 %v766, %v1270
      %v1343 = vmax.bf16 %v767, %v1271
      %v1344 = vmax.bf16 %v768, %v1272
      %v1345 = vmax.bf16 %v769, %v1273
      %v1346 = vmax.bf16 %v770, %v1274
      %v1347 = vmax.bf16 %v771, %v1275
      %v1348 = vmax.bf16 %v772, %v1276
      %v1349 = vmax.bf16 %v773, %v1277
      %v1350 = vmax.bf16 %v774, %v1278
      %v1351 = vmax.bf16 %v775, %v1279
      %v1352 = vmax.bf16 %v776, %v1280
      %v1353 = vmax.bf16 %v777, %v1281
      %v1354 = vmax.bf16 %v778, %v1282
      %v1355 = vmax.bf16 %v779, %v1283
      %v1356 = vmax.bf16 %v780, %v1284
      %v1357 = vmax.bf16 %v781, %v1285
      %v1358 = vmax.bf16 %v782, %v1286
      %v1359 = vmax.bf16 %v783, %v1287
      %v1360 = vmax.bf16 %v784, %v1288
      %v1361 = vmax.bf16 %v785, %v1289
      %v1362 = vmax.bf16 %v786, %v1290
      %v1363 = vmax.bf16 %v787, %v1291
      %v1364 = vmax.bf16 %v788, %v1292
      %v1365 = vmax.bf16 %v789, %v1293
      %v1366 = vmax.bf16 %v790, %v1294
      %v1367 = vmax.bf16 %v791, %v1295
      %v1368 = vmax.bf16 %v792, %v1296
      %v1369 = vmax.bf16 %v793, %v1297
      %v1370 = vmax.bf16 %v794, %v1298
      %v1371 = vmax.bf16 %v795, %v1299
      %v1372 = vmax.bf16 %v796, %v1300
      %v1373 = vmax.bf16 %v797, %v1301
      %v1374 = vmax.bf16 %v798, %v1302
      %v1375 = vmax.bf16 %v799, %v1303
      %v1376 = vmax.bf16 %v800, %v1304
      %v1377 = vmax.bf16 %v801, %v1305
      %v1378 = vmax.bf16 %v802, %v1306
      %v1379 = vmax.bf16 %v803, %v1307
      %v1380 = vmax.bf16 %v804, %v1308
      %v1381 = vmax.bf16 %v805, %v1309
      %v1382 = vmax.bf16 %v806, %v1310
      %v1383 = vmax.bf16 %v1311, 0
      %v1384 = vmax.bf16 %v1312, 0
      %v1385 = vmax.bf16 %v1313, 0
      %v1386 = vmax.bf16 %v1314, 0
      %v1387 = vmax.bf16 %v1315, 0
      %v1388 = vmax.bf16 %v1316, 0
      %v1389 = vmax.bf16 %v1317, 0
      %v1390 = vmax.bf16 %v1318, 0
      %v1391 = vmax.bf16 %v1319, 0
      %v1392 = vmax.bf16 %v1320, 0
      %v1393 = vmax.bf16 %v1321, 0
      %v1394 = vmax.bf16 %v1322, 0
      %v1395 = vmax.bf16 %v1323, 0
      %v1396 = vmax.bf16 %v1324, 0
      %v1397 = vmax.bf16 %v1325, 0
      %v1398 = vmax.bf16 %v1326, 0
      %v1399 = vmax.bf16 %v1327, 0
      %v1400 = vmax.bf16 %v1328, 0
      %v1401 = vmax.bf16 %v1329, 0
      %v1402 = vmax.bf16 %v1330, 0
      %v1403 = vmax.bf16 %v1331, 0
      %v1404 = vmax.bf16 %v1332, 0
      %v1405 = vmax.bf16 %v1333, 0
      %v1406 = vmax.bf16 %v1334, 0
      %v1407 = vmax.bf16 %v1335, 0
      %v1408 = vmax.bf16 %v1336, 0
      %v1409 = vmax.bf16 %v1337, 0
      %v1410 = vmax.bf16 %v1338, 0
      %v1411 = vmax.bf16 %v1339, 0
      %v1412 = vmax.bf16 %v1340, 0
      %v1413 = vmax.bf16 %v1341, 0
      %v1414 = vmax.bf16 %v1342, 0
      %v1415 = vmax.bf16 %v1343, 0
      %v1416 = vmax.bf16 %v1344, 0
      %v1417 = vmax.bf16 %v1345, 0
      %v1418 = vmax.bf16 %v1346, 0
      %v1419 = vmax.bf16 %v1347, 0
      %v1420 = vmax.bf16 %v1348, 0
      %v1421 = vmax.bf16 %v1349, 0
      %v1422 = vmax.bf16 %v1350, 0
      %v1423 = vmax.bf16 %v1351, 0
      %v1424 = vmax.bf16 %v1352, 0
      %v1425 = vmax.bf16 %v1353, 0
      %v1426 = vmax.bf16 %v1354, 0
      %v1427 = vmax.bf16 %v1355, 0
      %v1428 = vmax.bf16 %v1356, 0
      %v1429 = vmax.bf16 %v1357, 0
      %v1430 = vmax.bf16 %v1358, 0
      %v1431 = vmax.bf16 %v1359, 0
      %v1432 = vmax.bf16 %v1360, 0
      %v1433 = vmax.bf16 %v1361, 0
      %v1434 = vmax.bf16 %v1362, 0
      %v1435 = vmax.bf16 %v1363, 0
      %v1436 = vmax.bf16 %v1364, 0
      %v1437 = vmax.bf16 %v1365, 0
      %v1438 = vmax.bf16 %v1366, 0
      %v1439 = vmax.bf16 %v1367, 0
      %v1440 = vmax.bf16 %v1368, 0
      %v1441 = vmax.bf16 %v1369, 0
      %v1442 = vmax.bf16 %v1370, 0
      %v1443 = vmax.bf16 %v1371, 0
      %v1444 = vmax.bf16 %v1372, 0
      %v1445 = vmax.bf16 %v1373, 0
      %v1446 = vmax.bf16 %v1374, 0
      %v1447 = vmax.bf16 %v1375, 0
      %v1448 = vmax.bf16 %v1376, 0
      %v1449 = vmax.bf16 %v1377, 0
      %v1450 = vmax.bf16 %v1378, 0
      %v1451 = vmax.bf16 %v1379, 0
      %v1452 = vmax.bf16 %v1380, 0
      %v1453 = vmax.bf16 %v1381, 0
      %v1454 = vmax.bf16 %v1382, 0
      %v1528 = vunpack.c.l.s4 1966171168
      %v1529 = vunpack.c.0.s8 %v1528
      %v1530 = vlaneseq
      %v1531 = vshrl.u32 %v1530, 7
      %v1532 = vsub.s32 %v1529, %v1531
      %v1533 = vrot.slane %v1383, %v1532
      %v1535 = vunpack.c.l.s4 1966171168
      %v1536 = vunpack.c.0.s8 %v1535
      %v1537 = vlaneseq
      %v1538 = vshrl.u32 %v1537, 7
      %v1539 = vsub.s32 %v1536, %v1538
      %v1540 = vrot.slane %v1533, %v1539
      %v1542 = vunpack.c.l.s4 1966171168
      %v1543 = vunpack.c.0.s8 %v1542
      %v1544 = vlaneseq
      %v1545 = vshrl.u32 %v1544, 7
      %v1546 = vsub.s32 %v1543, %v1545
      %v1547 = vrot.slane %v1384, %v1546
      %v1549 = vunpack.c.l.s4 1966171168
      %v1550 = vunpack.c.0.s8 %v1549
      %v1551 = vlaneseq
      %v1552 = vshrl.u32 %v1551, 7
      %v1553 = vsub.s32 %v1550, %v1552
      %v1554 = vrot.slane %v1547, %v1553
      %v1556 = vunpack.c.l.s4 1966171168
      %v1557 = vunpack.c.0.s8 %v1556
      %v1558 = vlaneseq
      %v1559 = vshrl.u32 %v1558, 7
      %v1560 = vsub.s32 %v1557, %v1559
      %v1561 = vrot.slane %v1385, %v1560
      %v1563 = vunpack.c.l.s4 1966171168
      %v1564 = vunpack.c.0.s8 %v1563
      %v1565 = vlaneseq
      %v1566 = vshrl.u32 %v1565, 7
      %v1567 = vsub.s32 %v1564, %v1566
      %v1568 = vrot.slane %v1561, %v1567
      %v1570 = vunpack.c.l.s4 1966171168
      %v1571 = vunpack.c.0.s8 %v1570
      %v1572 = vlaneseq
      %v1573 = vshrl.u32 %v1572, 7
      %v1574 = vsub.s32 %v1571, %v1573
      %v1575 = vrot.slane %v1386, %v1574
      %v1577 = vunpack.c.l.s4 1966171168
      %v1578 = vunpack.c.0.s8 %v1577
      %v1579 = vlaneseq
      %v1580 = vshrl.u32 %v1579, 7
      %v1581 = vsub.s32 %v1578, %v1580
      %v1582 = vrot.slane %v1575, %v1581
      %v1584 = vunpack.c.l.s4 1966171168
      %v1585 = vunpack.c.0.s8 %v1584
      %v1586 = vlaneseq
      %v1587 = vshrl.u32 %v1586, 7
      %v1588 = vsub.s32 %v1585, %v1587
      %v1589 = vrot.slane %v1387, %v1588
      %v1591 = vunpack.c.l.s4 1966171168
      %v1592 = vunpack.c.0.s8 %v1591
      %v1593 = vlaneseq
      %v1594 = vshrl.u32 %v1593, 7
      %v1595 = vsub.s32 %v1592, %v1594
      %v1596 = vrot.slane %v1589, %v1595
      %v1598 = vunpack.c.l.s4 1966171168
      %v1599 = vunpack.c.0.s8 %v1598
      %v1600 = vlaneseq
      %v1601 = vshrl.u32 %v1600, 7
      %v1602 = vsub.s32 %v1599, %v1601
      %v1603 = vrot.slane %v1388, %v1602
      %v1605 = vunpack.c.l.s4 1966171168
      %v1606 = vunpack.c.0.s8 %v1605
      %v1607 = vlaneseq
      %v1608 = vshrl.u32 %v1607, 7
      %v1609 = vsub.s32 %v1606, %v1608
      %v1610 = vrot.slane %v1603, %v1609
      %v1612 = vunpack.c.l.s4 1966171168
      %v1613 = vunpack.c.0.s8 %v1612
      %v1614 = vlaneseq
      %v1615 = vshrl.u32 %v1614, 7
      %v1616 = vsub.s32 %v1613, %v1615
      %v1617 = vrot.slane %v1389, %v1616
      %v1619 = vunpack.c.l.s4 1966171168
      %v1620 = vunpack.c.0.s8 %v1619
      %v1621 = vlaneseq
      %v1622 = vshrl.u32 %v1621, 7
      %v1623 = vsub.s32 %v1620, %v1622
      %v1624 = vrot.slane %v1617, %v1623
      %v1626 = vunpack.c.l.s4 1966171168
      %v1627 = vunpack.c.0.s8 %v1626
      %v1628 = vlaneseq
      %v1629 = vshrl.u32 %v1628, 7
      %v1630 = vsub.s32 %v1627, %v1629
      %v1631 = vrot.slane %v1390, %v1630
      %v1633 = vunpack.c.l.s4 1966171168
      %v1634 = vunpack.c.0.s8 %v1633
      %v1635 = vlaneseq
      %v1636 = vshrl.u32 %v1635, 7
      %v1637 = vsub.s32 %v1634, %v1636
      %v1638 = vrot.slane %v1631, %v1637
      %v1640 = vunpack.c.l.s4 1966171168
      %v1641 = vunpack.c.0.s8 %v1640
      %v1642 = vlaneseq
      %v1643 = vshrl.u32 %v1642, 7
      %v1644 = vsub.s32 %v1641, %v1643
      %v1645 = vrot.slane %v1391, %v1644
      %v1647 = vunpack.c.l.s4 1966171168
      %v1648 = vunpack.c.0.s8 %v1647
      %v1649 = vlaneseq
      %v1650 = vshrl.u32 %v1649, 7
      %v1651 = vsub.s32 %v1648, %v1650
      %v1652 = vrot.slane %v1645, %v1651
      %v1654 = vunpack.c.l.s4 1966171168
      %v1655 = vunpack.c.0.s8 %v1654
      %v1656 = vlaneseq
      %v1657 = vshrl.u32 %v1656, 7
      %v1658 = vsub.s32 %v1655, %v1657
      %v1659 = vrot.slane %v1392, %v1658
      %v1661 = vunpack.c.l.s4 1966171168
      %v1662 = vunpack.c.0.s8 %v1661
      %v1663 = vlaneseq
      %v1664 = vshrl.u32 %v1663, 7
      %v1665 = vsub.s32 %v1662, %v1664
      %v1666 = vrot.slane %v1659, %v1665
      %v1668 = vunpack.c.l.s4 1966171168
      %v1669 = vunpack.c.0.s8 %v1668
      %v1670 = vlaneseq
      %v1671 = vshrl.u32 %v1670, 7
      %v1672 = vsub.s32 %v1669, %v1671
      %v1673 = vrot.slane %v1393, %v1672
      %v1675 = vunpack.c.l.s4 1966171168
      %v1676 = vunpack.c.0.s8 %v1675
      %v1677 = vlaneseq
      %v1678 = vshrl.u32 %v1677, 7
      %v1679 = vsub.s32 %v1676, %v1678
      %v1680 = vrot.slane %v1673, %v1679
      %v1682 = vunpack.c.l.s4 1966171168
      %v1683 = vunpack.c.0.s8 %v1682
      %v1684 = vlaneseq
      %v1685 = vshrl.u32 %v1684, 7
      %v1686 = vsub.s32 %v1683, %v1685
      %v1687 = vrot.slane %v1394, %v1686
      %v1689 = vunpack.c.l.s4 1966171168
      %v1690 = vunpack.c.0.s8 %v1689
      %v1691 = vlaneseq
      %v1692 = vshrl.u32 %v1691, 7
      %v1693 = vsub.s32 %v1690, %v1692
      %v1694 = vrot.slane %v1687, %v1693
      %v1696 = vunpack.c.l.s4 1966171168
      %v1697 = vunpack.c.0.s8 %v1696
      %v1698 = vlaneseq
      %v1699 = vshrl.u32 %v1698, 7
      %v1700 = vsub.s32 %v1697, %v1699
      %v1701 = vrot.slane %v1395, %v1700
      %v1703 = vunpack.c.l.s4 1966171168
      %v1704 = vunpack.c.0.s8 %v1703
      %v1705 = vlaneseq
      %v1706 = vshrl.u32 %v1705, 7
      %v1707 = vsub.s32 %v1704, %v1706
      %v1708 = vrot.slane %v1701, %v1707
      %v1710 = vunpack.c.l.s4 1966171168
      %v1711 = vunpack.c.0.s8 %v1710
      %v1712 = vlaneseq
      %v1713 = vshrl.u32 %v1712, 7
      %v1714 = vsub.s32 %v1711, %v1713
      %v1715 = vrot.slane %v1396, %v1714
      %v1717 = vunpack.c.l.s4 1966171168
      %v1718 = vunpack.c.0.s8 %v1717
      %v1719 = vlaneseq
      %v1720 = vshrl.u32 %v1719, 7
      %v1721 = vsub.s32 %v1718, %v1720
      %v1722 = vrot.slane %v1715, %v1721
      %v1724 = vunpack.c.l.s4 1966171168
      %v1725 = vunpack.c.0.s8 %v1724
      %v1726 = vlaneseq
      %v1727 = vshrl.u32 %v1726, 7
      %v1728 = vsub.s32 %v1725, %v1727
      %v1729 = vrot.slane %v1397, %v1728
      %v1731 = vunpack.c.l.s4 1966171168
      %v1732 = vunpack.c.0.s8 %v1731
      %v1733 = vlaneseq
      %v1734 = vshrl.u32 %v1733, 7
      %v1735 = vsub.s32 %v1732, %v1734
      %v1736 = vrot.slane %v1729, %v1735
      %v1738 = vunpack.c.l.s4 1966171168
      %v1739 = vunpack.c.0.s8 %v1738
      %v1740 = vlaneseq
      %v1741 = vshrl.u32 %v1740, 7
      %v1742 = vsub.s32 %v1739, %v1741
      %v1743 = vrot.slane %v1398, %v1742
      %v1745 = vunpack.c.l.s4 1966171168
      %v1746 = vunpack.c.0.s8 %v1745
      %v1747 = vlaneseq
      %v1748 = vshrl.u32 %v1747, 7
      %v1749 = vsub.s32 %v1746, %v1748
      %v1750 = vrot.slane %v1743, %v1749
      %v1752 = vunpack.c.l.s4 1966171168
      %v1753 = vunpack.c.0.s8 %v1752
      %v1754 = vlaneseq
      %v1755 = vshrl.u32 %v1754, 7
      %v1756 = vsub.s32 %v1753, %v1755
      %v1757 = vrot.slane %v1399, %v1756
      %v1759 = vunpack.c.l.s4 1966171168
      %v1760 = vunpack.c.0.s8 %v1759
      %v1761 = vlaneseq
      %v1762 = vshrl.u32 %v1761, 7
      %v1763 = vsub.s32 %v1760, %v1762
      %v1764 = vrot.slane %v1757, %v1763
      %v1766 = vunpack.c.l.s4 1966171168
      %v1767 = vunpack.c.0.s8 %v1766
      %v1768 = vlaneseq
      %v1769 = vshrl.u32 %v1768, 7
      %v1770 = vsub.s32 %v1767, %v1769
      %v1771 = vrot.slane %v1400, %v1770
      %v1773 = vunpack.c.l.s4 1966171168
      %v1774 = vunpack.c.0.s8 %v1773
      %v1775 = vlaneseq
      %v1776 = vshrl.u32 %v1775, 7
      %v1777 = vsub.s32 %v1774, %v1776
      %v1778 = vrot.slane %v1771, %v1777
      %v1780 = vunpack.c.l.s4 1966171168
      %v1781 = vunpack.c.0.s8 %v1780
      %v1782 = vlaneseq
      %v1783 = vshrl.u32 %v1782, 7
      %v1784 = vsub.s32 %v1781, %v1783
      %v1785 = vrot.slane %v1401, %v1784
      %v1787 = vunpack.c.l.s4 1966171168
      %v1788 = vunpack.c.0.s8 %v1787
      %v1789 = vlaneseq
      %v1790 = vshrl.u32 %v1789, 7
      %v1791 = vsub.s32 %v1788, %v1790
      %v1792 = vrot.slane %v1785, %v1791
      %v1794 = vunpack.c.l.s4 1966171168
      %v1795 = vunpack.c.0.s8 %v1794
      %v1796 = vlaneseq
      %v1797 = vshrl.u32 %v1796, 7
      %v1798 = vsub.s32 %v1795, %v1797
      %v1799 = vrot.slane %v1402, %v1798
      %v1801 = vunpack.c.l.s4 1966171168
      %v1802 = vunpack.c.0.s8 %v1801
      %v1803 = vlaneseq
      %v1804 = vshrl.u32 %v1803, 7
      %v1805 = vsub.s32 %v1802, %v1804
      %v1806 = vrot.slane %v1799, %v1805
      %v1808 = vunpack.c.l.s4 1966171168
      %v1809 = vunpack.c.0.s8 %v1808
      %v1810 = vlaneseq
      %v1811 = vshrl.u32 %v1810, 7
      %v1812 = vsub.s32 %v1809, %v1811
      %v1813 = vrot.slane %v1403, %v1812
      %v1815 = vunpack.c.l.s4 1966171168
      %v1816 = vunpack.c.0.s8 %v1815
      %v1817 = vlaneseq
      %v1818 = vshrl.u32 %v1817, 7
      %v1819 = vsub.s32 %v1816, %v1818
      %v1820 = vrot.slane %v1813, %v1819
      %v1822 = vunpack.c.l.s4 1966171168
      %v1823 = vunpack.c.0.s8 %v1822
      %v1824 = vlaneseq
      %v1825 = vshrl.u32 %v1824, 7
      %v1826 = vsub.s32 %v1823, %v1825
      %v1827 = vrot.slane %v1404, %v1826
      %v1829 = vunpack.c.l.s4 1966171168
      %v1830 = vunpack.c.0.s8 %v1829
      %v1831 = vlaneseq
      %v1832 = vshrl.u32 %v1831, 7
      %v1833 = vsub.s32 %v1830, %v1832
      %v1834 = vrot.slane %v1827, %v1833
      %v1836 = vunpack.c.l.s4 1966171168
      %v1837 = vunpack.c.0.s8 %v1836
      %v1838 = vlaneseq
      %v1839 = vshrl.u32 %v1838, 7
      %v1840 = vsub.s32 %v1837, %v1839
      %v1841 = vrot.slane %v1405, %v1840
      %v1843 = vunpack.c.l.s4 1966171168
      %v1844 = vunpack.c.0.s8 %v1843
      %v1845 = vlaneseq
      %v1846 = vshrl.u32 %v1845, 7
      %v1847 = vsub.s32 %v1844, %v1846
      %v1848 = vrot.slane %v1841, %v1847
      %v1850 = vunpack.c.l.s4 1966171168
      %v1851 = vunpack.c.0.s8 %v1850
      %v1852 = vlaneseq
      %v1853 = vshrl.u32 %v1852, 7
      %v1854 = vsub.s32 %v1851, %v1853
      %v1855 = vrot.slane %v1406, %v1854
      %v1857 = vunpack.c.l.s4 1966171168
      %v1858 = vunpack.c.0.s8 %v1857
      %v1859 = vlaneseq
      %v1860 = vshrl.u32 %v1859, 7
      %v1861 = vsub.s32 %v1858, %v1860
      %v1862 = vrot.slane %v1855, %v1861
      %v1864 = vunpack.c.l.s4 1966171168
      %v1865 = vunpack.c.0.s8 %v1864
      %v1866 = vlaneseq
      %v1867 = vshrl.u32 %v1866, 7
      %v1868 = vsub.s32 %v1865, %v1867
      %v1869 = vrot.slane %v1407, %v1868
      %v1871 = vunpack.c.l.s4 1966171168
      %v1872 = vunpack.c.0.s8 %v1871
      %v1873 = vlaneseq
      %v1874 = vshrl.u32 %v1873, 7
      %v1875 = vsub.s32 %v1872, %v1874
      %v1876 = vrot.slane %v1869, %v1875
      %v1878 = vunpack.c.l.s4 1966171168
      %v1879 = vunpack.c.0.s8 %v1878
      %v1880 = vlaneseq
      %v1881 = vshrl.u32 %v1880, 7
      %v1882 = vsub.s32 %v1879, %v1881
      %v1883 = vrot.slane %v1408, %v1882
      %v1885 = vunpack.c.l.s4 1966171168
      %v1886 = vunpack.c.0.s8 %v1885
      %v1887 = vlaneseq
      %v1888 = vshrl.u32 %v1887, 7
      %v1889 = vsub.s32 %v1886, %v1888
      %v1890 = vrot.slane %v1883, %v1889
      %v1892 = vunpack.c.l.s4 1966171168
      %v1893 = vunpack.c.0.s8 %v1892
      %v1894 = vlaneseq
      %v1895 = vshrl.u32 %v1894, 7
      %v1896 = vsub.s32 %v1893, %v1895
      %v1897 = vrot.slane %v1409, %v1896
      %v1899 = vunpack.c.l.s4 1966171168
      %v1900 = vunpack.c.0.s8 %v1899
      %v1901 = vlaneseq
      %v1902 = vshrl.u32 %v1901, 7
      %v1903 = vsub.s32 %v1900, %v1902
      %v1904 = vrot.slane %v1897, %v1903
      %v1906 = vunpack.c.l.s4 1966171168
      %v1907 = vunpack.c.0.s8 %v1906
      %v1908 = vlaneseq
      %v1909 = vshrl.u32 %v1908, 7
      %v1910 = vsub.s32 %v1907, %v1909
      %v1911 = vrot.slane %v1410, %v1910
      %v1913 = vunpack.c.l.s4 1966171168
      %v1914 = vunpack.c.0.s8 %v1913
      %v1915 = vlaneseq
      %v1916 = vshrl.u32 %v1915, 7
      %v1917 = vsub.s32 %v1914, %v1916
      %v1918 = vrot.slane %v1911, %v1917
      %v1920 = vunpack.c.l.s4 1966171168
      %v1921 = vunpack.c.0.s8 %v1920
      %v1922 = vlaneseq
      %v1923 = vshrl.u32 %v1922, 7
      %v1924 = vsub.s32 %v1921, %v1923
      %v1925 = vrot.slane %v1411, %v1924
      %v1927 = vunpack.c.l.s4 1966171168
      %v1928 = vunpack.c.0.s8 %v1927
      %v1929 = vlaneseq
      %v1930 = vshrl.u32 %v1929, 7
      %v1931 = vsub.s32 %v1928, %v1930
      %v1932 = vrot.slane %v1925, %v1931
      %v1934 = vunpack.c.l.s4 1966171168
      %v1935 = vunpack.c.0.s8 %v1934
      %v1936 = vlaneseq
      %v1937 = vshrl.u32 %v1936, 7
      %v1938 = vsub.s32 %v1935, %v1937
      %v1939 = vrot.slane %v1412, %v1938
      %v1941 = vunpack.c.l.s4 1966171168
      %v1942 = vunpack.c.0.s8 %v1941
      %v1943 = vlaneseq
      %v1944 = vshrl.u32 %v1943, 7
      %v1945 = vsub.s32 %v1942, %v1944
      %v1946 = vrot.slane %v1939, %v1945
      %v1948 = vunpack.c.l.s4 1966171168
      %v1949 = vunpack.c.0.s8 %v1948
      %v1950 = vlaneseq
      %v1951 = vshrl.u32 %v1950, 7
      %v1952 = vsub.s32 %v1949, %v1951
      %v1953 = vrot.slane %v1413, %v1952
      %v1955 = vunpack.c.l.s4 1966171168
      %v1956 = vunpack.c.0.s8 %v1955
      %v1957 = vlaneseq
      %v1958 = vshrl.u32 %v1957, 7
      %v1959 = vsub.s32 %v1956, %v1958
      %v1960 = vrot.slane %v1953, %v1959
      %v1962 = vunpack.c.l.s4 1966171168
      %v1963 = vunpack.c.0.s8 %v1962
      %v1964 = vlaneseq
      %v1965 = vshrl.u32 %v1964, 7
      %v1966 = vsub.s32 %v1963, %v1965
      %v1967 = vrot.slane %v1414, %v1966
      %v1969 = vunpack.c.l.s4 1966171168
      %v1970 = vunpack.c.0.s8 %v1969
      %v1971 = vlaneseq
      %v1972 = vshrl.u32 %v1971, 7
      %v1973 = vsub.s32 %v1970, %v1972
      %v1974 = vrot.slane %v1967, %v1973
      %v1976 = vunpack.c.l.s4 1966171168
      %v1977 = vunpack.c.0.s8 %v1976
      %v1978 = vlaneseq
      %v1979 = vshrl.u32 %v1978, 7
      %v1980 = vsub.s32 %v1977, %v1979
      %v1981 = vrot.slane %v1415, %v1980
      %v1983 = vunpack.c.l.s4 1966171168
      %v1984 = vunpack.c.0.s8 %v1983
      %v1985 = vlaneseq
      %v1986 = vshrl.u32 %v1985, 7
      %v1987 = vsub.s32 %v1984, %v1986
      %v1988 = vrot.slane %v1981, %v1987
      %v1990 = vunpack.c.l.s4 1966171168
      %v1991 = vunpack.c.0.s8 %v1990
      %v1992 = vlaneseq
      %v1993 = vshrl.u32 %v1992, 7
      %v1994 = vsub.s32 %v1991, %v1993
      %v1995 = vrot.slane %v1416, %v1994
      %v1997 = vunpack.c.l.s4 1966171168
      %v1998 = vunpack.c.0.s8 %v1997
      %v1999 = vlaneseq
      %v2000 = vshrl.u32 %v1999, 7
      %v2001 = vsub.s32 %v1998, %v2000
      %v2002 = vrot.slane %v1995, %v2001
      %v2004 = vunpack.c.l.s4 1966171168
      %v2005 = vunpack.c.0.s8 %v2004
      %v2006 = vlaneseq
      %v2007 = vshrl.u32 %v2006, 7
      %v2008 = vsub.s32 %v2005, %v2007
      %v2009 = vrot.slane %v1417, %v2008
      %v2011 = vunpack.c.l.s4 1966171168
      %v2012 = vunpack.c.0.s8 %v2011
      %v2013 = vlaneseq
      %v2014 = vshrl.u32 %v2013, 7
      %v2015 = vsub.s32 %v2012, %v2014
      %v2016 = vrot.slane %v2009, %v2015
      %v2018 = vunpack.c.l.s4 1966171168
      %v2019 = vunpack.c.0.s8 %v2018
      %v2020 = vlaneseq
      %v2021 = vshrl.u32 %v2020, 7
      %v2022 = vsub.s32 %v2019, %v2021
      %v2023 = vrot.slane %v1418, %v2022
      %v2025 = vunpack.c.l.s4 1966171168
      %v2026 = vunpack.c.0.s8 %v2025
      %v2027 = vlaneseq
      %v2028 = vshrl.u32 %v2027, 7
      %v2029 = vsub.s32 %v2026, %v2028
      %v2030 = vrot.slane %v2023, %v2029
      %v2032 = vunpack.c.l.s4 1966171168
      %v2033 = vunpack.c.0.s8 %v2032
      %v2034 = vlaneseq
      %v2035 = vshrl.u32 %v2034, 7
      %v2036 = vsub.s32 %v2033, %v2035
      %v2037 = vrot.slane %v1419, %v2036
      %v2039 = vunpack.c.l.s4 1966171168
      %v2040 = vunpack.c.0.s8 %v2039
      %v2041 = vlaneseq
      %v2042 = vshrl.u32 %v2041, 7
      %v2043 = vsub.s32 %v2040, %v2042
      %v2044 = vrot.slane %v2037, %v2043
      %v2046 = vunpack.c.l.s4 1966171168
      %v2047 = vunpack.c.0.s8 %v2046
      %v2048 = vlaneseq
      %v2049 = vshrl.u32 %v2048, 7
      %v2050 = vsub.s32 %v2047, %v2049
      %v2051 = vrot.slane %v1420, %v2050
      %v2053 = vunpack.c.l.s4 1966171168
      %v2054 = vunpack.c.0.s8 %v2053
      %v2055 = vlaneseq
      %v2056 = vshrl.u32 %v2055, 7
      %v2057 = vsub.s32 %v2054, %v2056
      %v2058 = vrot.slane %v2051, %v2057
      %v2060 = vunpack.c.l.s4 1966171168
      %v2061 = vunpack.c.0.s8 %v2060
      %v2062 = vlaneseq
      %v2063 = vshrl.u32 %v2062, 7
      %v2064 = vsub.s32 %v2061, %v2063
      %v2065 = vrot.slane %v1421, %v2064
      %v2067 = vunpack.c.l.s4 1966171168
      %v2068 = vunpack.c.0.s8 %v2067
      %v2069 = vlaneseq
      %v2070 = vshrl.u32 %v2069, 7
      %v2071 = vsub.s32 %v2068, %v2070
      %v2072 = vrot.slane %v2065, %v2071
      %v2074 = vunpack.c.l.s4 1966171168
      %v2075 = vunpack.c.0.s8 %v2074
      %v2076 = vlaneseq
      %v2077 = vshrl.u32 %v2076, 7
      %v2078 = vsub.s32 %v2075, %v2077
      %v2079 = vrot.slane %v1422, %v2078
      %v2081 = vunpack.c.l.s4 1966171168
      %v2082 = vunpack.c.0.s8 %v2081
      %v2083 = vlaneseq
      %v2084 = vshrl.u32 %v2083, 7
      %v2085 = vsub.s32 %v2082, %v2084
      %v2086 = vrot.slane %v2079, %v2085
      %v2088 = vunpack.c.l.s4 1966171168
      %v2089 = vunpack.c.0.s8 %v2088
      %v2090 = vlaneseq
      %v2091 = vshrl.u32 %v2090, 7
      %v2092 = vsub.s32 %v2089, %v2091
      %v2093 = vrot.slane %v1423, %v2092
      %v2095 = vunpack.c.l.s4 1966171168
      %v2096 = vunpack.c.0.s8 %v2095
      %v2097 = vlaneseq
      %v2098 = vshrl.u32 %v2097, 7
      %v2099 = vsub.s32 %v2096, %v2098
      %v2100 = vrot.slane %v2093, %v2099
      %v2102 = vunpack.c.l.s4 1966171168
      %v2103 = vunpack.c.0.s8 %v2102
      %v2104 = vlaneseq
      %v2105 = vshrl.u32 %v2104, 7
      %v2106 = vsub.s32 %v2103, %v2105
      %v2107 = vrot.slane %v1424, %v2106
      %v2109 = vunpack.c.l.s4 1966171168
      %v2110 = vunpack.c.0.s8 %v2109
      %v2111 = vlaneseq
      %v2112 = vshrl.u32 %v2111, 7
      %v2113 = vsub.s32 %v2110, %v2112
      %v2114 = vrot.slane %v2107, %v2113
      %v2116 = vunpack.c.l.s4 1966171168
      %v2117 = vunpack.c.0.s8 %v2116
      %v2118 = vlaneseq
      %v2119 = vshrl.u32 %v2118, 7
      %v2120 = vsub.s32 %v2117, %v2119
      %v2121 = vrot.slane %v1425, %v2120
      %v2123 = vunpack.c.l.s4 1966171168
      %v2124 = vunpack.c.0.s8 %v2123
      %v2125 = vlaneseq
      %v2126 = vshrl.u32 %v2125, 7
      %v2127 = vsub.s32 %v2124, %v2126
      %v2128 = vrot.slane %v2121, %v2127
      %v2130 = vunpack.c.l.s4 1966171168
      %v2131 = vunpack.c.0.s8 %v2130
      %v2132 = vlaneseq
      %v2133 = vshrl.u32 %v2132, 7
      %v2134 = vsub.s32 %v2131, %v2133
      %v2135 = vrot.slane %v1426, %v2134
      %v2137 = vunpack.c.l.s4 1966171168
      %v2138 = vunpack.c.0.s8 %v2137
      %v2139 = vlaneseq
      %v2140 = vshrl.u32 %v2139, 7
      %v2141 = vsub.s32 %v2138, %v2140
      %v2142 = vrot.slane %v2135, %v2141
      %v2144 = vunpack.c.l.s4 1966171168
      %v2145 = vunpack.c.0.s8 %v2144
      %v2146 = vlaneseq
      %v2147 = vshrl.u32 %v2146, 7
      %v2148 = vsub.s32 %v2145, %v2147
      %v2149 = vrot.slane %v1427, %v2148
      %v2151 = vunpack.c.l.s4 1966171168
      %v2152 = vunpack.c.0.s8 %v2151
      %v2153 = vlaneseq
      %v2154 = vshrl.u32 %v2153, 7
      %v2155 = vsub.s32 %v2152, %v2154
      %v2156 = vrot.slane %v2149, %v2155
      %v2158 = vunpack.c.l.s4 1966171168
      %v2159 = vunpack.c.0.s8 %v2158
      %v2160 = vlaneseq
      %v2161 = vshrl.u32 %v2160, 7
      %v2162 = vsub.s32 %v2159, %v2161
      %v2163 = vrot.slane %v1428, %v2162
      %v2165 = vunpack.c.l.s4 1966171168
      %v2166 = vunpack.c.0.s8 %v2165
      %v2167 = vlaneseq
      %v2168 = vshrl.u32 %v2167, 7
      %v2169 = vsub.s32 %v2166, %v2168
      %v2170 = vrot.slane %v2163, %v2169
      %v2172 = vunpack.c.l.s4 1966171168
      %v2173 = vunpack.c.0.s8 %v2172
      %v2174 = vlaneseq
      %v2175 = vshrl.u32 %v2174, 7
      %v2176 = vsub.s32 %v2173, %v2175
      %v2177 = vrot.slane %v1429, %v2176
      %v2179 = vunpack.c.l.s4 1966171168
      %v2180 = vunpack.c.0.s8 %v2179
      %v2181 = vlaneseq
      %v2182 = vshrl.u32 %v2181, 7
      %v2183 = vsub.s32 %v2180, %v2182
      %v2184 = vrot.slane %v2177, %v2183
      %v2186 = vunpack.c.l.s4 1966171168
      %v2187 = vunpack.c.0.s8 %v2186
      %v2188 = vlaneseq
      %v2189 = vshrl.u32 %v2188, 7
      %v2190 = vsub.s32 %v2187, %v2189
      %v2191 = vrot.slane %v1430, %v2190
      %v2193 = vunpack.c.l.s4 1966171168
      %v2194 = vunpack.c.0.s8 %v2193
      %v2195 = vlaneseq
      %v2196 = vshrl.u32 %v2195, 7
      %v2197 = vsub.s32 %v2194, %v2196
      %v2198 = vrot.slane %v2191, %v2197
      %v2200 = vunpack.c.l.s4 1966171168
      %v2201 = vunpack.c.0.s8 %v2200
      %v2202 = vlaneseq
      %v2203 = vshrl.u32 %v2202, 7
      %v2204 = vsub.s32 %v2201, %v2203
      %v2205 = vrot.slane %v1431, %v2204
      %v2207 = vunpack.c.l.s4 1966171168
      %v2208 = vunpack.c.0.s8 %v2207
      %v2209 = vlaneseq
      %v2210 = vshrl.u32 %v2209, 7
      %v2211 = vsub.s32 %v2208, %v2210
      %v2212 = vrot.slane %v2205, %v2211
      %v2214 = vunpack.c.l.s4 1966171168
      %v2215 = vunpack.c.0.s8 %v2214
      %v2216 = vlaneseq
      %v2217 = vshrl.u32 %v2216, 7
      %v2218 = vsub.s32 %v2215, %v2217
      %v2219 = vrot.slane %v1432, %v2218
      %v2221 = vunpack.c.l.s4 1966171168
      %v2222 = vunpack.c.0.s8 %v2221
      %v2223 = vlaneseq
      %v2224 = vshrl.u32 %v2223, 7
      %v2225 = vsub.s32 %v2222, %v2224
      %v2226 = vrot.slane %v2219, %v2225
      %v2228 = vunpack.c.l.s4 1966171168
      %v2229 = vunpack.c.0.s8 %v2228
      %v2230 = vlaneseq
      %v2231 = vshrl.u32 %v2230, 7
      %v2232 = vsub.s32 %v2229, %v2231
      %v2233 = vrot.slane %v1433, %v2232
      %v2235 = vunpack.c.l.s4 1966171168
      %v2236 = vunpack.c.0.s8 %v2235
      %v2237 = vlaneseq
      %v2238 = vshrl.u32 %v2237, 7
      %v2239 = vsub.s32 %v2236, %v2238
      %v2240 = vrot.slane %v2233, %v2239
      %v2242 = vunpack.c.l.s4 1966171168
      %v2243 = vunpack.c.0.s8 %v2242
      %v2244 = vlaneseq
      %v2245 = vshrl.u32 %v2244, 7
      %v2246 = vsub.s32 %v2243, %v2245
      %v2247 = vrot.slane %v1434, %v2246
      %v2249 = vunpack.c.l.s4 1966171168
      %v2250 = vunpack.c.0.s8 %v2249
      %v2251 = vlaneseq
      %v2252 = vshrl.u32 %v2251, 7
      %v2253 = vsub.s32 %v2250, %v2252
      %v2254 = vrot.slane %v2247, %v2253
      %v2256 = vunpack.c.l.s4 1966171168
      %v2257 = vunpack.c.0.s8 %v2256
      %v2258 = vlaneseq
      %v2259 = vshrl.u32 %v2258, 7
      %v2260 = vsub.s32 %v2257, %v2259
      %v2261 = vrot.slane %v1435, %v2260
      %v2263 = vunpack.c.l.s4 1966171168
      %v2264 = vunpack.c.0.s8 %v2263
      %v2265 = vlaneseq
      %v2266 = vshrl.u32 %v2265, 7
      %v2267 = vsub.s32 %v2264, %v2266
      %v2268 = vrot.slane %v2261, %v2267
      %v2270 = vunpack.c.l.s4 1966171168
      %v2271 = vunpack.c.0.s8 %v2270
      %v2272 = vlaneseq
      %v2273 = vshrl.u32 %v2272, 7
      %v2274 = vsub.s32 %v2271, %v2273
      %v2275 = vrot.slane %v1436, %v2274
      %v2277 = vunpack.c.l.s4 1966171168
      %v2278 = vunpack.c.0.s8 %v2277
      %v2279 = vlaneseq
      %v2280 = vshrl.u32 %v2279, 7
      %v2281 = vsub.s32 %v2278, %v2280
      %v2282 = vrot.slane %v2275, %v2281
      %v2284 = vunpack.c.l.s4 1966171168
      %v2285 = vunpack.c.0.s8 %v2284
      %v2286 = vlaneseq
      %v2287 = vshrl.u32 %v2286, 7
      %v2288 = vsub.s32 %v2285, %v2287
      %v2289 = vrot.slane %v1437, %v2288
      %v2291 = vunpack.c.l.s4 1966171168
      %v2292 = vunpack.c.0.s8 %v2291
      %v2293 = vlaneseq
      %v2294 = vshrl.u32 %v2293, 7
      %v2295 = vsub.s32 %v2292, %v2294
      %v2296 = vrot.slane %v2289, %v2295
      %v2298 = vunpack.c.l.s4 1966171168
      %v2299 = vunpack.c.0.s8 %v2298
      %v2300 = vlaneseq
      %v2301 = vshrl.u32 %v2300, 7
      %v2302 = vsub.s32 %v2299, %v2301
      %v2303 = vrot.slane %v1438, %v2302
      %v2305 = vunpack.c.l.s4 1966171168
      %v2306 = vunpack.c.0.s8 %v2305
      %v2307 = vlaneseq
      %v2308 = vshrl.u32 %v2307, 7
      %v2309 = vsub.s32 %v2306, %v2308
      %v2310 = vrot.slane %v2303, %v2309
      %v2312 = vunpack.c.l.s4 1966171168
      %v2313 = vunpack.c.0.s8 %v2312
      %v2314 = vlaneseq
      %v2315 = vshrl.u32 %v2314, 7
      %v2316 = vsub.s32 %v2313, %v2315
      %v2317 = vrot.slane %v1439, %v2316
      %v2319 = vunpack.c.l.s4 1966171168
      %v2320 = vunpack.c.0.s8 %v2319
      %v2321 = vlaneseq
      %v2322 = vshrl.u32 %v2321, 7
      %v2323 = vsub.s32 %v2320, %v2322
      %v2324 = vrot.slane %v2317, %v2323
      %v2326 = vunpack.c.l.s4 1966171168
      %v2327 = vunpack.c.0.s8 %v2326
      %v2328 = vlaneseq
      %v2329 = vshrl.u32 %v2328, 7
      %v2330 = vsub.s32 %v2327, %v2329
      %v2331 = vrot.slane %v1440, %v2330
      %v2333 = vunpack.c.l.s4 1966171168
      %v2334 = vunpack.c.0.s8 %v2333
      %v2335 = vlaneseq
      %v2336 = vshrl.u32 %v2335, 7
      %v2337 = vsub.s32 %v2334, %v2336
      %v2338 = vrot.slane %v2331, %v2337
      %v2340 = vunpack.c.l.s4 1966171168
      %v2341 = vunpack.c.0.s8 %v2340
      %v2342 = vlaneseq
      %v2343 = vshrl.u32 %v2342, 7
      %v2344 = vsub.s32 %v2341, %v2343
      %v2345 = vrot.slane %v1441, %v2344
      %v2347 = vunpack.c.l.s4 1966171168
      %v2348 = vunpack.c.0.s8 %v2347
      %v2349 = vlaneseq
      %v2350 = vshrl.u32 %v2349, 7
      %v2351 = vsub.s32 %v2348, %v2350
      %v2352 = vrot.slane %v2345, %v2351
      %v2354 = vunpack.c.l.s4 1966171168
      %v2355 = vunpack.c.0.s8 %v2354
      %v2356 = vlaneseq
      %v2357 = vshrl.u32 %v2356, 7
      %v2358 = vsub.s32 %v2355, %v2357
      %v2359 = vrot.slane %v1442, %v2358
      %v2361 = vunpack.c.l.s4 1966171168
      %v2362 = vunpack.c.0.s8 %v2361
      %v2363 = vlaneseq
      %v2364 = vshrl.u32 %v2363, 7
      %v2365 = vsub.s32 %v2362, %v2364
      %v2366 = vrot.slane %v2359, %v2365
      %v2368 = vunpack.c.l.s4 1966171168
      %v2369 = vunpack.c.0.s8 %v2368
      %v2370 = vlaneseq
      %v2371 = vshrl.u32 %v2370, 7
      %v2372 = vsub.s32 %v2369, %v2371
      %v2373 = vrot.slane %v1443, %v2372
      %v2375 = vunpack.c.l.s4 1966171168
      %v2376 = vunpack.c.0.s8 %v2375
      %v2377 = vlaneseq
      %v2378 = vshrl.u32 %v2377, 7
      %v2379 = vsub.s32 %v2376, %v2378
      %v2380 = vrot.slane %v2373, %v2379
      %v2382 = vunpack.c.l.s4 1966171168
      %v2383 = vunpack.c.0.s8 %v2382
      %v2384 = vlaneseq
      %v2385 = vshrl.u32 %v2384, 7
      %v2386 = vsub.s32 %v2383, %v2385
      %v2387 = vrot.slane %v1444, %v2386
      %v2389 = vunpack.c.l.s4 1966171168
      %v2390 = vunpack.c.0.s8 %v2389
      %v2391 = vlaneseq
      %v2392 = vshrl.u32 %v2391, 7
      %v2393 = vsub.s32 %v2390, %v2392
      %v2394 = vrot.slane %v2387, %v2393
      %v2396 = vunpack.c.l.s4 1966171168
      %v2397 = vunpack.c.0.s8 %v2396
      %v2398 = vlaneseq
      %v2399 = vshrl.u32 %v2398, 7
      %v2400 = vsub.s32 %v2397, %v2399
      %v2401 = vrot.slane %v1445, %v2400
      %v2403 = vunpack.c.l.s4 1966171168
      %v2404 = vunpack.c.0.s8 %v2403
      %v2405 = vlaneseq
      %v2406 = vshrl.u32 %v2405, 7
      %v2407 = vsub.s32 %v2404, %v2406
      %v2408 = vrot.slane %v2401, %v2407
      %v2410 = vunpack.c.l.s4 1966171168
      %v2411 = vunpack.c.0.s8 %v2410
      %v2412 = vlaneseq
      %v2413 = vshrl.u32 %v2412, 7
      %v2414 = vsub.s32 %v2411, %v2413
      %v2415 = vrot.slane %v1446, %v2414
      %v2417 = vunpack.c.l.s4 1966171168
      %v2418 = vunpack.c.0.s8 %v2417
      %v2419 = vlaneseq
      %v2420 = vshrl.u32 %v2419, 7
      %v2421 = vsub.s32 %v2418, %v2420
      %v2422 = vrot.slane %v2415, %v2421
      %v2424 = vunpack.c.l.s4 1966171168
      %v2425 = vunpack.c.0.s8 %v2424
      %v2426 = vlaneseq
      %v2427 = vshrl.u32 %v2426, 7
      %v2428 = vsub.s32 %v2425, %v2427
      %v2429 = vrot.slane %v1447, %v2428
      %v2431 = vunpack.c.l.s4 1966171168
      %v2432 = vunpack.c.0.s8 %v2431
      %v2433 = vlaneseq
      %v2434 = vshrl.u32 %v2433, 7
      %v2435 = vsub.s32 %v2432, %v2434
      %v2436 = vrot.slane %v2429, %v2435
      %v2438 = vunpack.c.l.s4 1966171168
      %v2439 = vunpack.c.0.s8 %v2438
      %v2440 = vlaneseq
      %v2441 = vshrl.u32 %v2440, 7
      %v2442 = vsub.s32 %v2439, %v2441
      %v2443 = vrot.slane %v1448, %v2442
      %v2445 = vunpack.c.l.s4 1966171168
      %v2446 = vunpack.c.0.s8 %v2445
      %v2447 = vlaneseq
      %v2448 = vshrl.u32 %v2447, 7
      %v2449 = vsub.s32 %v2446, %v2448
      %v2450 = vrot.slane %v2443, %v2449
      %v2452 = vunpack.c.l.s4 1966171168
      %v2453 = vunpack.c.0.s8 %v2452
      %v2454 = vlaneseq
      %v2455 = vshrl.u32 %v2454, 7
      %v2456 = vsub.s32 %v2453, %v2455
      %v2457 = vrot.slane %v1449, %v2456
      %v2459 = vunpack.c.l.s4 1966171168
      %v2460 = vunpack.c.0.s8 %v2459
      %v2461 = vlaneseq
      %v2462 = vshrl.u32 %v2461, 7
      %v2463 = vsub.s32 %v2460, %v2462
      %v2464 = vrot.slane %v2457, %v2463
      %v2466 = vunpack.c.l.s4 1966171168
      %v2467 = vunpack.c.0.s8 %v2466
      %v2468 = vlaneseq
      %v2469 = vshrl.u32 %v2468, 7
      %v2470 = vsub.s32 %v2467, %v2469
      %v2471 = vrot.slane %v1450, %v2470
      %v2473 = vunpack.c.l.s4 1966171168
      %v2474 = vunpack.c.0.s8 %v2473
      %v2475 = vlaneseq
      %v2476 = vshrl.u32 %v2475, 7
      %v2477 = vsub.s32 %v2474, %v2476
      %v2478 = vrot.slane %v2471, %v2477
      %v2480 = vunpack.c.l.s4 1966171168
      %v2481 = vunpack.c.0.s8 %v2480
      %v2482 = vlaneseq
      %v2483 = vshrl.u32 %v2482, 7
      %v2484 = vsub.s32 %v2481, %v2483
      %v2485 = vrot.slane %v1451, %v2484
      %v2487 = vunpack.c.l.s4 1966171168
      %v2488 = vunpack.c.0.s8 %v2487
      %v2489 = vlaneseq
      %v2490 = vshrl.u32 %v2489, 7
      %v2491 = vsub.s32 %v2488, %v2490
      %v2492 = vrot.slane %v2485, %v2491
      %v2494 = vunpack.c.l.s4 1966171168
      %v2495 = vunpack.c.0.s8 %v2494
      %v2496 = vlaneseq
      %v2497 = vshrl.u32 %v2496, 7
      %v2498 = vsub.s32 %v2495, %v2497
      %v2499 = vrot.slane %v1452, %v2498
      %v2501 = vunpack.c.l.s4 1966171168
      %v2502 = vunpack.c.0.s8 %v2501
      %v2503 = vlaneseq
      %v2504 = vshrl.u32 %v2503, 7
      %v2505 = vsub.s32 %v2502, %v2504
      %v2506 = vrot.slane %v2499, %v2505
      %v2508 = vunpack.c.l.s4 1966171168
      %v2509 = vunpack.c.0.s8 %v2508
      %v2510 = vlaneseq
      %v2511 = vshrl.u32 %v2510, 7
      %v2512 = vsub.s32 %v2509, %v2511
      %v2513 = vrot.slane %v1453, %v2512
      %v2515 = vunpack.c.l.s4 1966171168
      %v2516 = vunpack.c.0.s8 %v2515
      %v2517 = vlaneseq
      %v2518 = vshrl.u32 %v2517, 7
      %v2519 = vsub.s32 %v2516, %v2518
      %v2520 = vrot.slane %v2513, %v2519
      %v2522 = vunpack.c.l.s4 1966171168
      %v2523 = vunpack.c.0.s8 %v2522
      %v2524 = vlaneseq
      %v2525 = vshrl.u32 %v2524, 7
      %v2526 = vsub.s32 %v2523, %v2525
      %v2527 = vrot.slane %v1454, %v2526
      %v2529 = vunpack.c.l.s4 1966171168
      %v2530 = vunpack.c.0.s8 %v2529
      %v2531 = vlaneseq
      %v2532 = vshrl.u32 %v2531, 7
      %v2533 = vsub.s32 %v2530, %v2532
      %v2534 = vrot.slane %v2527, %v2533
      %v2535 = vunpack.c.l.b16 %v1540
      %v2536 = vunpack.c.l.b16 %v1554
      %v2537 = vunpack.c.l.b16 %v1568
      %v2538 = vunpack.c.l.b16 %v1582
      %v2539 = vunpack.c.l.b16 %v1596
      %v2540 = vunpack.c.l.b16 %v1610
      %v2541 = vunpack.c.l.b16 %v1624
      %v2542 = vunpack.c.l.b16 %v1638
      %v2543 = vunpack.c.l.b16 %v1652
      %v2544 = vunpack.c.l.b16 %v1666
      %v2545 = vunpack.c.l.b16 %v1680
      %v2546 = vunpack.c.l.b16 %v1694
      %v2547 = vunpack.c.l.b16 %v1708
      %v2548 = vunpack.c.l.b16 %v1722
      %v2549 = vunpack.c.l.b16 %v1736
      %v2550 = vunpack.c.l.b16 %v1750
      %v2551 = vunpack.c.l.b16 %v1764
      %v2552 = vunpack.c.l.b16 %v1778
      %v2553 = vunpack.c.l.b16 %v1792
      %v2554 = vunpack.c.l.b16 %v1806
      %v2555 = vunpack.c.l.b16 %v1820
      %v2556 = vunpack.c.l.b16 %v1834
      %v2557 = vunpack.c.l.b16 %v1848
      %v2558 = vunpack.c.l.b16 %v1862
      %v2559 = vunpack.c.l.b16 %v1876
      %v2560 = vunpack.c.l.b16 %v1890
      %v2561 = vunpack.c.l.b16 %v1904
      %v2562 = vunpack.c.l.b16 %v1918
      %v2563 = vunpack.c.l.b16 %v1932
      %v2564 = vunpack.c.l.b16 %v1946
      %v2565 = vunpack.c.l.b16 %v1960
      %v2566 = vunpack.c.l.b16 %v1974
      %v2567 = vunpack.c.l.b16 %v1988
      %v2568 = vunpack.c.l.b16 %v2002
      %v2569 = vunpack.c.l.b16 %v2016
      %v2570 = vunpack.c.l.b16 %v2030
      %v2571 = vunpack.c.l.b16 %v2044
      %v2572 = vunpack.c.l.b16 %v2058
      %v2573 = vunpack.c.l.b16 %v2072
      %v2574 = vunpack.c.l.b16 %v2086
      %v2575 = vunpack.c.l.b16 %v2100
      %v2576 = vunpack.c.l.b16 %v2114
      %v2577 = vunpack.c.l.b16 %v2128
      %v2578 = vunpack.c.l.b16 %v2142
      %v2579 = vunpack.c.l.b16 %v2156
      %v2580 = vunpack.c.l.b16 %v2170
      %v2581 = vunpack.c.l.b16 %v2184
      %v2582 = vunpack.c.l.b16 %v2198
      %v2583 = vunpack.c.l.b16 %v2212
      %v2584 = vunpack.c.l.b16 %v2226
      %v2585 = vunpack.c.l.b16 %v2240
      %v2586 = vunpack.c.l.b16 %v2254
      %v2587 = vunpack.c.l.b16 %v2268
      %v2588 = vunpack.c.l.b16 %v2282
      %v2589 = vunpack.c.l.b16 %v2296
      %v2590 = vunpack.c.l.b16 %v2310
      %v2591 = vunpack.c.l.b16 %v2324
      %v2592 = vunpack.c.l.b16 %v2338
      %v2593 = vunpack.c.l.b16 %v2352
      %v2594 = vunpack.c.l.b16 %v2366
      %v2595 = vunpack.c.l.b16 %v2380
      %v2596 = vunpack.c.l.b16 %v2394
      %v2597 = vunpack.c.l.b16 %v2408
      %v2598 = vunpack.c.l.b16 %v2422
      %v2599 = vunpack.c.l.b16 %v2436
      %v2600 = vunpack.c.l.b16 %v2450
      %v2601 = vunpack.c.l.b16 %v2464
      %v2602 = vunpack.c.l.b16 %v2478
      %v2603 = vunpack.c.l.b16 %v2492
      %v2604 = vunpack.c.l.b16 %v2506
      %v2605 = vunpack.c.l.b16 %v2520
      %v2606 = vunpack.c.l.b16 %v2534
      %v2607 = vrot.slane %v2536, 7
      %vm2608 = vcmask 1041409
      %v2609 = vsel %vm2608, %v2607, %v2535
      %v2610 = vrot.slane %v2537, 6
      %vm2611 = vcmask 1042434
      %v2612 = vsel %vm2611, %v2610, %v2609
      %v2613 = vrot.slane %v2538, 5
      %vm2614 = vcmask 1043459
      %v2615 = vsel %vm2614, %v2613, %v2612
      %v2616 = vrot.slane %v2539, 4
      %vm2617 = vcmask 1044484
      %v2618 = vsel %vm2617, %v2616, %v2615
      %v2619 = vrot.slane %v2540, 3
      %vm2620 = vcmask 1045509
      %v2621 = vsel %vm2620, %v2619, %v2618
      %v2622 = vrot.slane %v2541, 2
      %vm2623 = vcmask 1046534
      %v2624 = vsel %vm2623, %v2622, %v2621
      %v2625 = vrot.slane %v2542, 1
      %vm2626 = vcmask 1047559
      %v2627 = vsel %vm2626, %v2625, %v2624
      %v2628 = vrot.slane %v2545, 7
      %v2629 = vsel %vm2608, %v2628, %v2544
      %v2630 = vrot.slane %v2546, 6
      %v2631 = vsel %vm2611, %v2630, %v2629
      %v2632 = vrot.slane %v2547, 5
      %v2633 = vsel %vm2614, %v2632, %v2631
      %v2634 = vrot.slane %v2548, 4
      %v2635 = vsel %vm2617, %v2634, %v2633
      %v2636 = vrot.slane %v2549, 3
      %v2637 = vsel %vm2620, %v2636, %v2635
      %v2638 = vrot.slane %v2550, 2
      %v2639 = vsel %vm2623, %v2638, %v2637
      %v2640 = vrot.slane %v2551, 1
      %v2641 = vsel %vm2626, %v2640, %v2639
      %v2642 = vrot.slane %v2554, 7
      %v2643 = vsel %vm2608, %v2642, %v2553
      %v2644 = vrot.slane %v2555, 6
      %v2645 = vsel %vm2611, %v2644, %v2643
      %v2646 = vrot.slane %v2556, 5
      %v2647 = vsel %vm2614, %v2646, %v2645
      %v2648 = vrot.slane %v2557, 4
      %v2649 = vsel %vm2617, %v2648, %v2647
      %v2650 = vrot.slane %v2558, 3
      %v2651 = vsel %vm2620, %v2650, %v2649
      %v2652 = vrot.slane %v2559, 2
      %v2653 = vsel %vm2623, %v2652, %v2651
      %v2654 = vrot.slane %v2560, 1
      %v2655 = vsel %vm2626, %v2654, %v2653
      %v2656 = vrot.slane %v2563, 7
      %v2657 = vsel %vm2608, %v2656, %v2562
      %v2658 = vrot.slane %v2564, 6
      %v2659 = vsel %vm2611, %v2658, %v2657
      %v2660 = vrot.slane %v2565, 5
      %v2661 = vsel %vm2614, %v2660, %v2659
      %v2662 = vrot.slane %v2566, 4
      %v2663 = vsel %vm2617, %v2662, %v2661
      %v2664 = vrot.slane %v2567, 3
      %v2665 = vsel %vm2620, %v2664, %v2663
      %v2666 = vrot.slane %v2568, 2
      %v2667 = vsel %vm2623, %v2666, %v2665
      %v2668 = vrot.slane %v2569, 1
      %v2669 = vsel %vm2626, %v2668, %v2667
      %v2670 = vrot.slane %v2572, 7
      %v2671 = vsel %vm2608, %v2670, %v2571
      %v2672 = vrot.slane %v2573, 6
      %v2673 = vsel %vm2611, %v2672, %v2671
      %v2674 = vrot.slane %v2574, 5
      %v2675 = vsel %vm2614, %v2674, %v2673
      %v2676 = vrot.slane %v2575, 4
      %v2677 = vsel %vm2617, %v2676, %v2675
      %v2678 = vrot.slane %v2576, 3
      %v2679 = vsel %vm2620, %v2678, %v2677
      %v2680 = vrot.slane %v2577, 2
      %v2681 = vsel %vm2623, %v2680, %v2679
      %v2682 = vrot.slane %v2578, 1
      %v2683 = vsel %vm2626, %v2682, %v2681
      %v2684 = vrot.slane %v2581, 7
      %v2685 = vsel %vm2608, %v2684, %v2580
      %v2686 = vrot.slane %v2582, 6
      %v2687 = vsel %vm2611, %v2686, %v2685
      %v2688 = vrot.slane %v2583, 5
      %v2689 = vsel %vm2614, %v2688, %v2687
      %v2690 = vrot.slane %v2584, 4
      %v2691 = vsel %vm2617, %v2690, %v2689
      %v2692 = vrot.slane %v2585, 3
      %v2693 = vsel %vm2620, %v2692, %v2691
      %v2694 = vrot.slane %v2586, 2
      %v2695 = vsel %vm2623, %v2694, %v2693
      %v2696 = vrot.slane %v2587, 1
      %v2697 = vsel %vm2626, %v2696, %v2695
      %v2698 = vrot.slane %v2590, 7
      %v2699 = vsel %vm2608, %v2698, %v2589
      %v2700 = vrot.slane %v2591, 6
      %v2701 = vsel %vm2611, %v2700, %v2699
      %v2702 = vrot.slane %v2592, 5
      %v2703 = vsel %vm2614, %v2702, %v2701
      %v2704 = vrot.slane %v2593, 4
      %v2705 = vsel %vm2617, %v2704, %v2703
      %v2706 = vrot.slane %v2594, 3
      %v2707 = vsel %vm2620, %v2706, %v2705
      %v2708 = vrot.slane %v2595, 2
      %v2709 = vsel %vm2623, %v2708, %v2707
      %v2710 = vrot.slane %v2596, 1
      %v2711 = vsel %vm2626, %v2710, %v2709
      %v2712 = vrot.slane %v2599, 7
      %v2713 = vsel %vm2608, %v2712, %v2598
      %v2714 = vrot.slane %v2600, 6
      %v2715 = vsel %vm2611, %v2714, %v2713
      %v2716 = vrot.slane %v2601, 5
      %v2717 = vsel %vm2614, %v2716, %v2715
      %v2718 = vrot.slane %v2602, 4
      %v2719 = vsel %vm2617, %v2718, %v2717
      %v2720 = vrot.slane %v2603, 3
      %v2721 = vsel %vm2620, %v2720, %v2719
      %v2722 = vrot.slane %v2604, 2
      %v2723 = vsel %vm2623, %v2722, %v2721
      %v2724 = vrot.slane %v2605, 1
      %v2725 = vsel %vm2626, %v2724, %v2723
      %v2726 = vpack.c.b16 %v2543, %v2627
      %v2727 = vpack.c.b16 %v2552, %v2641
      %v2728 = vpack.c.b16 %v2561, %v2655
      %v2729 = vpack.c.b16 %v2570, %v2669
      %v2730 = vpack.c.b16 %v2579, %v2683
      %v2731 = vpack.c.b16 %v2588, %v2697
      %v2732 = vpack.c.b16 %v2597, %v2711
      %v2733 = vpack.c.b16 %v2606, %v2725
      %vm2742 = vcmask 1044480
      %vm2743 = vsmask.f32 4352
      %vm2744 = vmand %vm2742, %vm2743
      %v2745 = vsel %vm2744, %v2726, 0
      %v2746 = vsel %vm2744, %v2727, 0
      %v2747 = vsel %vm2744, %v2728, 0
      %v2748 = vsel %vm2744, %v2729, 0
      %v2749 = vsel %vm2744, %v2730, 0
      %v2750 = vsel %vm2744, %v2731, 0
      %v2751 = vsel %vm2744, %v2732, 0
      %v2752 = vsel %vm2744, %v2733, 0
      %v2761 = vunpack.c.l.b16 %v2745
      %v2762 = vunpack.c.h.b16 %v2745
      %v2763 = vunpack.c.l.b16 %v2746
      %v2764 = vunpack.c.h.b16 %v2746
      %v2765 = vunpack.c.l.b16 %v2747
      %v2766 = vunpack.c.h.b16 %v2747
      %v2767 = vunpack.c.l.b16 %v2748
      %v2768 = vunpack.c.h.b16 %v2748
      %v2769 = vunpack.c.l.b16 %v2749
      %v2770 = vunpack.c.h.b16 %v2749
      %v2771 = vunpack.c.l.b16 %v2750
      %v2772 = vunpack.c.h.b16 %v2750
      %v2773 = vunpack.c.l.b16 %v2751
      %v2774 = vunpack.c.h.b16 %v2751
      %v2775 = vunpack.c.l.b16 %v2752
      %v2776 = vunpack.c.h.b16 %v2752
      %v2777 = vpack.c.b16 %v2761, %v2761
      %v2778 = vpack.c.b16 %v2762, %v2762
      %v2779 = vpack.c.b16 %v2763, %v2763
      %v2780 = vpack.c.b16 %v2764, %v2764
      %v2781 = vpack.c.b16 %v2765, %v2765
      %v2782 = vpack.c.b16 %v2766, %v2766
      %v2783 = vpack.c.b16 %v2767, %v2767
      %v2784 = vpack.c.b16 %v2768, %v2768
      %v2785 = vpack.c.b16 %v2769, %v2769
      %v2786 = vpack.c.b16 %v2770, %v2770
      %v2787 = vpack.c.b16 %v2771, %v2771
      %v2788 = vpack.c.b16 %v2772, %v2772
      %v2789 = vpack.c.b16 %v2773, %v2773
      %v2790 = vpack.c.b16 %v2774, %v2774
      %v2791 = vpack.c.b16 %v2775, %v2775
      %v2792 = vpack.c.b16 %v2776, %v2776
      %2809 = vst [vmem:[%s156] sm:$0xf] %v2777
      %2810 = vst [vmem:[%s156 + $0x4] sm:$0x1] %v2778
      %2811 = vst [vmem:[%s156 + $0x8] sm:$0xf] %v2779
      %2812 = vst [vmem:[%s156 + $0xc] sm:$0x1] %v2780
      %2813 = vst [vmem:[%s156 + $0x10] sm:$0xf] %v2781
      %2814 = vst [vmem:[%s156 + $0x14] sm:$0x1] %v2782
      %2815 = vst [vmem:[%s156 + $0x18] sm:$0xf] %v2783
      %2816 = vst [vmem:[%s156 + $0x1c] sm:$0x1] %v2784
      %2817 = vst [vmem:[%s156 + $0x20] sm:$0xf] %v2785
      %2818 = vst [vmem:[%s156 + $0x24] sm:$0x1] %v2786
      %2819 = vst [vmem:[%s156 + $0x28] sm:$0xf] %v2787
      %2820 = vst [vmem:[%s156 + $0x2c] sm:$0x1] %v2788
      %2821 = vst [vmem:[%s156 + $0x30] sm:$0xf] %v2789
      %2822 = vst [vmem:[%s156 + $0x34] sm:$0x1] %v2790
      %2823 = vst [vmem:[%s156 + $0x38] sm:$0xf] %v2791
      %2824 = vst [vmem:[%s156 + $0x3c] sm:$0x1] %v2792
      %s2825 = smul.u32 8, %s17
      %p2826 = scmp.lt.s32.totalorder %s16, 1
      %s2827 = scalar_select %p2826, %s16, 1
      %p2828 = scmp.lt.s32.totalorder %s2825, 7
      %s2829 = scalar_select %p2828, %s2825, 7
      %s2830 = smul.addr %s2829, 2
      %s2831 = smul.addr %s2827, 16
      %s2832 = sadd.s32 %s2830, %s2831
      %s2833 = smul.addr %s2832, 4
      %s2834 = scalar_lea.vmem %s1, %s2833
      // Predicated region
      $region25: #{content_loss.12} parent=23 // pred_check
        %p2835 = pneg %p72
      $region26: #{content_loss.12} parent=23 // pred_check_branch
        %2837 = sbr.rel (%p2835) target = $region28
      $region27: #{content_loss.12} parent=23 // pred_region
        %s2838 = smul.u32 8, %s17
      $region28: #{content_loss.12} parent=23 // pred_fallthru
        _
    $region24: #{content_loss.12} parent=5 // pred_fallthru
      _
    %p2839 = scmp.le.s32.totalorder 2, %s7
    // Predicated region
    $region29: #{content_loss.12} parent=5 // pred_check
      %p2840 = pneg %p2839
    $region30: #{content_loss.12} parent=5 // pred_check_branch
      %2842 = sbr.rel (%p2840) target = $region32
    $region31: #{content_loss.12} parent=5 // pred_region
      %s2843 = ssub.s32 %s7, 2
      // Predicated region
      $region33: #{content_loss.12} parent=31 // pred_check
        %p2844 = pneg %p78
      $region34: #{content_loss.12} parent=31 // pred_check_branch
        %2846 = sbr.rel (%p2844) target = $region36
      $region35: #{content_loss.12} parent=31 // pred_region
        %s2847 = smul.u32 8, %s19
        %p2848 = scmp.lt.s32.totalorder %s18, 1
        %s2849 = scalar_select %p2848, %s18, 1
        %p2850 = scmp.lt.s32.totalorder %s2847, 7
        %s2851 = scalar_select %p2850, %s2847, 7
        %s2852 = smul.addr %s2851, 2
        %s2853 = smul.addr %s2849, 16
        %s2854 = sadd.s32 %s2852, %s2853
        %s2855 = smul.addr %s2854, 4
        %s2856 = scalar_lea.vmem %s1, %s2855
      $region36: #{content_loss.12} parent=31 // pred_fallthru
        _
    $region32: #{content_loss.12} parent=5 // pred_fallthru
      _
  $region6: #{content_loss.12} parent=0 // loop_footer
    %s11 = sadd.s32 1, %s7
  $region7: #{content_loss.12} parent=0 // loop_footer_branch
    %6 = sbr.rel target = $region3
  $region8: #{content_loss.12} parent=0 // loop_exit
    _

// kernel: content_loss.11
$region0: #{content_loss.11}
  #allocation0 [shape = 'u32[]', space=smem, size = 0x4, offset = 0x4, fixed_abs, tag = 'smem constant byte address 0x4 - core index']
  #allocation1 [shape = 'u32[144,128]{1,0:T(1,128)}', space=vmem, size = 0x12000, scoped, tag = 'internal scratch']
  #allocation2 [shape = 'bf16[336,128]{1,0:T(16,128)(2,1)}', space=vmem, size = 0x15000, scoped, tag = 'scratch operand']
  %s0 = inlined_call_operand.vmem [shape: bf16[2,576,128], index: 0, kind: input, shape index: {}, may-alias: {0,1}]
  %s1 = inlined_call_operand.vmem [shape: bf16[2,576,128], index: 1, kind: input, shape index: {}, may-alias: {0,1}]
  %s2 = inlined_call_operand.vmem [shape: bf16[1152,128], index: 2, kind: input, shape index: {}]
  %s3 = inlined_call_operand.vmem [shape: f32[1,128], index: 3, kind: input, shape index: {}]
  %s4 = inlined_call_operand.vmem [shape: bf16[2,288,128], index: 4, kind: output, shape index: {}]
  %s5 = sld [smem:[#allocation0]]
  $region49: #{content_loss.11} parent=0
    _
  %s7 = ssub.s32 1, %s5
  %s8 = scalar_select 0, %s7, %s5
  loop: start=0, step=1, limit=4
  $region2: #{content_loss.11} parent=0 // loop_pre_header
    _
  $region3: #{content_loss.11} parent=0 // loop_header
    %s10 = sphi 0, %s14
    %p11 = scmp.ge.s32.totalorder %s10, 4
    %s17 = sphi 0, %s29
    %s18 = sphi 0, %s25
    %s19 = sphi 0, %s17
    %s20 = sphi 0, %s18
    %s21 = sphi 0, %s19
    %s22 = sphi 0, %s20
    %s34 = sphi 0, %s36
    %s37 = sphi 0, %s34
    %s38 = sphi 0, %s37
    %s54 = sphi 0, %s38
    %s66 = sphi 0, %s68
    %s69 = sphi 0, %s66
    %s70 = sphi 0, %s69
    %s86 = sphi 0, %s70
    %s90 = sphi 0, %s90
    %s92 = sphi 0, %s90
    %s93 = sphi 0, %s92
    %s107 = sphi 0, %s93
    %s111 = sphi 0, %s111
    %s113 = sphi 0, %s111
    %s114 = sphi 0, %s113
    %s128 = sphi 0, %s114
    %s136 = sphi 0, %s138
    %s139 = sphi 0, %s136
    %s140 = sphi 0, %s139
    %s156 = sphi 0, %s140
  $region4: #{content_loss.11} parent=0 // loop_header_branch
    %13 = sbr.rel (%p11) target = $region8
  $region5: #{content_loss.11} parent=0 // loop_body
    %s15 = ssub.s32 %s10, 1
    %s16 = ssub.s32 %s10, 2
    %s23 = sadd.s32 1, %s18
    %p24 = scmp.ge.s32.totalorder %s23, 1
    %s25 = scalar_select %p24, 0, %s23
    %s26 = sadd.s32 1, %s17
    %s27 = scalar_select %p24, %s26, %s17
    %p28 = scmp.ge.s32.totalorder %s27, 2
    %s29 = scalar_select %p28, 0, %s27
    %s30 = ssub.s32 %s17, %s29
    %s31 = ssub.s32 %s18, %s25
    %s32 = sor.u32 %s30, %s31
    %p33 = scmp.eq.s32.totalorder %s32, 0
    %s35 = sadd.s32 %s34, 1
    %s36 = scalar_select %p33, %s34, %s35
    %p39 = pneg %p33
    %p40 = scmp.eq.s32.totalorder %s10, 1
    %p41 = por %p39, %p40
    %p42 = scmp.ne.s32.totalorder %s34, %s37
    %p43 = scmp.eq.s32.totalorder %s10, 0
    %p44 = por %p42, %p43
    %p45 = scmp.ne.s32.totalorder %s34, %s37
    %p46 = scmp.eq.s32.totalorder %s15, 1
    %p47 = por %p45, %p46
    %p48 = scmp.ne.s32.totalorder %s37, %s38
    %p49 = scmp.eq.s32.totalorder %s15, 0
    %p50 = por %p48, %p49
    %p51 = scmp.ne.s32.totalorder %s37, %s38
    %p52 = scmp.eq.s32.totalorder %s16, 1
    %p53 = por %p51, %p52
    %p55 = scmp.ne.s32.totalorder %s38, %s54
    %p56 = scmp.eq.s32.totalorder %s16, 0
    %p57 = por %p55, %p56
    %s58 = sadd.s32 %s18, 1
    %s59 = smul.u32 %s58, 6
    %s60 = sadd.s32 %s25, 1
    %s61 = smul.u32 %s60, 6
    %s62 = ssub.s32 %s17, %s29
    %s63 = ssub.s32 %s59, %s61
    %s64 = sor.u32 %s62, %s63
    %p65 = scmp.eq.s32.totalorder %s64, 0
    %s67 = sadd.s32 %s66, 1
    %s68 = scalar_select %p65, %s66, %s67
    %p71 = pneg %p65
    %p72 = scmp.eq.s32.totalorder %s10, 1
    %p73 = por %p71, %p72
    %p74 = scmp.ne.s32.totalorder %s66, %s69
    %p75 = scmp.eq.s32.totalorder %s10, 0
    %p76 = por %p74, %p75
    %p77 = scmp.ne.s32.totalorder %s66, %s69
    %p78 = scmp.eq.s32.totalorder %s15, 1
    %p79 = por %p77, %p78
    %p80 = scmp.ne.s32.totalorder %s69, %s70
    %p81 = scmp.eq.s32.totalorder %s15, 0
    %p82 = por %p80, %p81
    %p83 = scmp.ne.s32.totalorder %s69, %s70
    %p84 = scmp.eq.s32.totalorder %s16, 1
    %p85 = por %p83, %p84
    %p87 = scmp.ne.s32.totalorder %s70, %s86
    %p88 = scmp.eq.s32.totalorder %s16, 0
    %p89 = por %p87, %p88
    %s91 = sadd.s32 %s90, 1
    %p94 = scmp.eq.s32.totalorder %s10, 1
    %p95 = scmp.ne.s32.totalorder %s90, %s92
    %p96 = scmp.eq.s32.totalorder %s10, 0
    %p97 = por %p95, %p96
    %p98 = scmp.ne.s32.totalorder %s90, %s92
    %p99 = scmp.eq.s32.totalorder %s15, 1
    %p100 = por %p98, %p99
    %p101 = scmp.ne.s32.totalorder %s92, %s93
    %p102 = scmp.eq.s32.totalorder %s15, 0
    %p103 = por %p101, %p102
    %p104 = scmp.ne.s32.totalorder %s92, %s93
    %p105 = scmp.eq.s32.totalorder %s16, 1
    %p106 = por %p104, %p105
    %p108 = scmp.ne.s32.totalorder %s93, %s107
    %p109 = scmp.eq.s32.totalorder %s16, 0
    %p110 = por %p108, %p109
    %s112 = sadd.s32 %s111, 1
    %p115 = scmp.eq.s32.totalorder %s10, 1
    %p116 = scmp.ne.s32.totalorder %s111, %s113
    %p117 = scmp.eq.s32.totalorder %s10, 0
    %p118 = por %p116, %p117
    %p119 = scmp.ne.s32.totalorder %s111, %s113
    %p120 = scmp.eq.s32.totalorder %s15, 1
    %p121 = por %p119, %p120
    %p122 = scmp.ne.s32.totalorder %s113, %s114
    %p123 = scmp.eq.s32.totalorder %s15, 0
    %p124 = por %p122, %p123
    %p125 = scmp.ne.s32.totalorder %s113, %s114
    %p126 = scmp.eq.s32.totalorder %s16, 1
    %p127 = por %p125, %p126
    %p129 = scmp.ne.s32.totalorder %s114, %s128
    %p130 = scmp.eq.s32.totalorder %s16, 0
    %p131 = por %p129, %p130
    %s132 = ssub.s32 %s17, %s29
    %s133 = ssub.s32 %s18, %s25
    %s134 = sor.u32 %s132, %s133
    %p135 = scmp.eq.s32.totalorder %s134, 0
    %s137 = sadd.s32 %s136, 1
    %s138 = scalar_select %p135, %s136, %s137
    %p141 = pneg %p135
    %p142 = scmp.eq.s32.totalorder %s10, 1
    %p143 = por %p141, %p142
    %p144 = scmp.ne.s32.totalorder %s136, %s139
    %p145 = scmp.eq.s32.totalorder %s10, 0
    %p146 = por %p144, %p145
    %p147 = scmp.ne.s32.totalorder %s136, %s139
    %p148 = scmp.eq.s32.totalorder %s15, 1
    %p149 = por %p147, %p148
    %p150 = scmp.ne.s32.totalorder %s139, %s140
    %p151 = scmp.eq.s32.totalorder %s15, 0
    %p152 = por %p150, %p151
    %p153 = scmp.ne.s32.totalorder %s139, %s140
    %p154 = scmp.eq.s32.totalorder %s16, 1
    %p155 = por %p153, %p154
    %p157 = scmp.ne.s32.totalorder %s140, %s156
    %p158 = scmp.eq.s32.totalorder %s16, 0
    %p159 = por %p157, %p158
    %p160 = scmp.le.s32.totalorder 1, %s10
    %p161 = scmp.lt.s32.totalorder %s10, 3
    %p162 = pnand %p160, %p161
    %p163 = pneg %p162
    // Predicated region
    $region9: #{content_loss.11} parent=5 // pred_check
      _
    $region10: #{content_loss.11} parent=5 // pred_check_branch
      %165 = sbr.rel (%p162) target = $region12
    $region11: #{content_loss.11} parent=5 // pred_region
      %s166 = ssub.s32 %s10, 1
      // Predicated region
      $region13: #{content_loss.11} parent=11 // pred_check
        %p167 = pneg %p103
      $region14: #{content_loss.11} parent=11 // pred_check_branch
        %169 = sbr.rel (%p167) target = $region16
      $region15: #{content_loss.11} parent=11 // pred_region
        _
      $region16: #{content_loss.11} parent=11 // pred_fallthru
        _
      // Predicated region
      $region17: #{content_loss.11} parent=11 // pred_check
        %p170 = pneg %p124
      $region18: #{content_loss.11} parent=11 // pred_check_branch
        %172 = sbr.rel (%p170) target = $region20
      $region19: #{content_loss.11} parent=11 // pred_region
        _
      $region20: #{content_loss.11} parent=11 // pred_fallthru
        _
    $region12: #{content_loss.11} parent=5 // pred_fallthru
      _
    %p173 = scmp.lt.s32.totalorder %s10, 2
    // Predicated region
    $region21: #{content_loss.11} parent=5 // pred_check
      %p174 = pneg %p173
    $region22: #{content_loss.11} parent=5 // pred_check_branch
      %176 = sbr.rel (%p174) target = $region24
    $region23: #{content_loss.11} parent=5 // pred_region
      // Predicated region
      $region25: #{content_loss.11} parent=23 // pred_check
        %p177 = pneg %p44
      $region26: #{content_loss.11} parent=23 // pred_check_branch
        %179 = sbr.rel (%p177) target = $region28
      $region27: #{content_loss.11} parent=23 // pred_region
        %s180 = smul.u32 36, %s18
        %p181 = scmp.lt.s32.totalorder %s17, 1
        %s182 = scalar_select %p181, %s17, 1
        %p183 = scmp.lt.s32.totalorder %s180, 71
        %s184 = scalar_select %p183, %s180, 71
        %s185 = smul.addr %s182, 72
        %s186 = sadd.s32 %s184, %s185
        %s187 = smul.addr %s186, 4
        %s188 = scalar_lea.vmem %s0, %s187
        %s189 = smul.u32 36, %s18
      $region28: #{content_loss.11} parent=23 // pred_fallthru
        _
      // Predicated region
      $region29: #{content_loss.11} parent=23 // pred_check
        %p190 = pneg %p76
      $region30: #{content_loss.11} parent=23 // pred_check_branch
        %192 = sbr.rel (%p190) target = $region32
      $region31: #{content_loss.11} parent=23 // pred_region
        %s193 = sadd.s32 %s18, 1
        %s194 = smul.u32 %s193, 6
        %s195 = smul.u32 6, %s194
        %p196 = scmp.lt.s32.totalorder %s17, 1
        %s197 = scalar_select %p196, %s17, 1
        %p198 = scmp.lt.s32.totalorder %s195, 71
        %s199 = scalar_select %p198, %s195, 71
        %s200 = smul.addr %s197, 72
        %s201 = sadd.s32 %s199, %s200
        %s202 = smul.addr %s201, 4
        %s203 = scalar_lea.vmem %s1, %s202
        %s204 = sadd.s32 %s18, 1
        %s205 = smul.u32 %s204, 6
        %s206 = smul.u32 6, %s205
      $region32: #{content_loss.11} parent=23 // pred_fallthru
        _
    $region24: #{content_loss.11} parent=5 // pred_fallthru
      _
    %p207 = scmp.le.s32.totalorder 1, %s10
    %p208 = scmp.lt.s32.totalorder %s10, 3
    %p209 = pnand %p207, %p208
    %p210 = pneg %p209
    // Predicated region
    $region33: #{content_loss.11} parent=5 // pred_check
      _
    $region34: #{content_loss.11} parent=5 // pred_check_branch
      %212 = sbr.rel (%p209) target = $region36
    $region35: #{content_loss.11} parent=5 // pred_region
      %s213 = ssub.s32 %s10, 1
      %s214 = smul.u32 36, %s20
      %p215 = scmp.lt.s32.totalorder %s19, 1
      %s216 = scalar_select %p215, %s19, 1
      %p217 = scmp.lt.s32.totalorder %s214, 71
      %s218 = scalar_select %p217, %s214, 71
      %s219 = smul.addr %s216, 72
      %s220 = sadd.s32 %s218, %s219
      %s221 = smul.addr %s220, 4
      %s222 = scalar_lea.vmem %s0, %s221
      %p223 = pneg %p50
      %p224 = pneg %p47
      %s225 = sadd.s32 %s20, 1
      %s226 = smul.u32 %s225, 6
      %s227 = smul.u32 6, %s226
      %p228 = scmp.lt.s32.totalorder %s19, 1
      %s229 = scalar_select %p228, %s19, 1
      %p230 = scmp.lt.s32.totalorder %s227, 71
      %s231 = scalar_select %p230, %s227, 71
      %s232 = smul.addr %s229, 72
      %s233 = sadd.s32 %s231, %s232
      %s234 = smul.addr %s233, 4
      %s235 = scalar_lea.vmem %s1, %s234
      %p236 = pneg %p82
      %p237 = pneg %p79
      %p238 = pneg %p103
      %p239 = pneg %p100
      %p240 = pneg %p124
      %p241 = pneg %p121
      %p242 = pneg %p152
      %p243 = pneg %p149
      %s244 = smul.u32 36, %s20
      %p245 = scmp.lt.s32.totalorder %s19, 1
      %s246 = scalar_select %p245, %s19, 1
      %p247 = scmp.lt.s32.totalorder %s244, 35
      %s248 = scalar_select %p247, %s244, 35
      %s249 = smul.addr %s246, 36
      %s250 = sadd.s32 %s248, %s249
      %s251 = smul.addr %s250, 4
      %s252 = scalar_lea.vmem %s4, %s251
      %s253 = smul.u32 36, %s20
      %p254 = scmp.lt.s32.totalorder %s19, 1
      %s255 = scalar_select %p254, %s19, 1
      %p256 = scmp.lt.s32.totalorder %s253, 71
      %s257 = scalar_select %p256, %s253, 71
      %s258 = smul.addr %s255, 72
      %s259 = sadd.s32 %s257, %s258
      %s260 = smul.addr %s259, 4
      %s261 = scalar_lea.vmem %s0, %s260
      %s262 = smul.u32 36, %s20
      %s263 = sadd.s32 %s20, 1
      %s264 = smul.u32 %s263, 6
      %s265 = smul.u32 6, %s264
      %p266 = scmp.lt.s32.totalorder %s19, 1
      %s267 = scalar_select %p266, %s19, 1
      %p268 = scmp.lt.s32.totalorder %s265, 71
      %s269 = scalar_select %p268, %s265, 71
      %s270 = smul.addr %s267, 72
      %s271 = sadd.s32 %s269, %s270
      %s272 = smul.addr %s271, 4
      %s273 = scalar_lea.vmem %s1, %s272
      %s274 = sadd.s32 %s20, 1
      %s275 = smul.u32 %s274, 6
      %s276 = smul.u32 6, %s275
      %s277 = smul.u32 36, %s20
      %p278 = scmp.lt.s32.totalorder %s19, 1
      %s279 = scalar_select %p278, %s19, 1
      %p280 = scmp.lt.s32.totalorder %s277, 35
      %s281 = scalar_select %p280, %s277, 35
      %s282 = smul.addr %s279, 36
      %s283 = sadd.s32 %s281, %s282
      %s284 = smul.addr %s283, 4
      %s285 = scalar_lea.vmem %s4, %s284
      %s286 = smul.u32 36, %s20
      %v288 = vld [vmem:[%s261] sm:$0xf]
      %v289 = vld [vmem:[%s261 + $0x4] sm:$0xf]
      %v290 = vld [vmem:[%s261 + $0x8] sm:$0xf]
      %v291 = vld [vmem:[%s261 + $0xc] sm:$0xf]
      %v292 = vld [vmem:[%s261 + $0x10] sm:$0xf]
      %v293 = vld [vmem:[%s261 + $0x14] sm:$0xf]
      %v294 = vld [vmem:[%s261 + $0x18] sm:$0xf]
      %v295 = vld [vmem:[%s261 + $0x1c] sm:$0xf]
      %v296 = vld [vmem:[%s261 + $0x20] sm:$0xf]
      %v297 = vld [vmem:[%s261 + $0x24] sm:$0xf]
      %v298 = vld [vmem:[%s261 + $0x28] sm:$0xf]
      %v299 = vld [vmem:[%s261 + $0x2c] sm:$0xf]
      %v300 = vld [vmem:[%s261 + $0x30] sm:$0xf]
      %v301 = vld [vmem:[%s261 + $0x34] sm:$0xf]
      %v302 = vld [vmem:[%s261 + $0x38] sm:$0xf]
      %v303 = vld [vmem:[%s261 + $0x3c] sm:$0xf]
      %v304 = vld [vmem:[%s261 + $0x40] sm:$0xf]
      %v305 = vld [vmem:[%s261 + $0x44] sm:$0xf]
      %v306 = vld [vmem:[%s261 + $0x48] sm:$0xf]
      %v307 = vld [vmem:[%s261 + $0x4c] sm:$0xf]
      %v308 = vld [vmem:[%s261 + $0x50] sm:$0xf]
      %v309 = vld [vmem:[%s261 + $0x54] sm:$0xf]
      %v310 = vld [vmem:[%s261 + $0x58] sm:$0xf]
      %v311 = vld [vmem:[%s261 + $0x5c] sm:$0xf]
      %v312 = vld [vmem:[%s261 + $0x60] sm:$0xf]
      %v313 = vld [vmem:[%s261 + $0x64] sm:$0xf]
      %v314 = vld [vmem:[%s261 + $0x68] sm:$0xf]
      %v315 = vld [vmem:[%s261 + $0x6c] sm:$0xf]
      %v316 = vld [vmem:[%s261 + $0x70] sm:$0xf]
      %v317 = vld [vmem:[%s261 + $0x74] sm:$0xf]
      %v318 = vld [vmem:[%s261 + $0x78] sm:$0xf]
      %v319 = vld [vmem:[%s261 + $0x7c] sm:$0xf]
      %v320 = vld [vmem:[%s261 + $0x80] sm:$0xf]
      %v321 = vld [vmem:[%s261 + $0x84] sm:$0xf]
      %v322 = vld [vmem:[%s261 + $0x88] sm:$0xf]
      %v323 = vld [vmem:[%s261 + $0x8c] sm:$0xf]
      %v360 = vunpack.c.l.b16 %v288
      %v361 = vunpack.c.l.b16 %v289
      %v362 = vunpack.c.l.b16 %v290
      %v363 = vunpack.c.l.b16 %v291
      %v364 = vunpack.c.l.b16 %v292
      %v365 = vunpack.c.l.b16 %v293
      %v366 = vunpack.c.l.b16 %v294
      %v367 = vunpack.c.l.b16 %v295
      %v368 = vunpack.c.l.b16 %v296
      %v369 = vunpack.c.l.b16 %v297
      %v370 = vunpack.c.l.b16 %v298
      %v371 = vunpack.c.l.b16 %v299
      %v372 = vunpack.c.l.b16 %v300
      %v373 = vunpack.c.l.b16 %v301
      %v374 = vunpack.c.l.b16 %v302
      %v375 = vunpack.c.l.b16 %v303
      %v376 = vunpack.c.l.b16 %v304
      %v377 = vunpack.c.l.b16 %v305
      %v378 = vunpack.c.l.b16 %v306
      %v379 = vunpack.c.l.b16 %v307
      %v380 = vunpack.c.l.b16 %v308
      %v381 = vunpack.c.l.b16 %v309
      %v382 = vunpack.c.l.b16 %v310
      %v383 = vunpack.c.l.b16 %v311
      %v384 = vunpack.c.l.b16 %v312
      %v385 = vunpack.c.l.b16 %v313
      %v386 = vunpack.c.l.b16 %v314
      %v387 = vunpack.c.l.b16 %v315
      %v388 = vunpack.c.l.b16 %v316
      %v389 = vunpack.c.l.b16 %v317
      %v390 = vunpack.c.l.b16 %v318
      %v391 = vunpack.c.l.b16 %v319
      %v392 = vunpack.c.l.b16 %v320
      %v393 = vunpack.c.l.b16 %v321
      %v394 = vunpack.c.l.b16 %v322
      %v395 = vunpack.c.l.b16 %v323
      %v396 = vpack.c.b16 %v361, %v360
      %v397 = vpack.c.b16 %v363, %v362
      %v398 = vpack.c.b16 %v365, %v364
      %v399 = vpack.c.b16 %v367, %v366
      %v400 = vpack.c.b16 %v369, %v368
      %v401 = vpack.c.b16 %v371, %v370
      %v402 = vpack.c.b16 %v373, %v372
      %v403 = vpack.c.b16 %v375, %v374
      %v404 = vpack.c.b16 %v377, %v376
      %v405 = vpack.c.b16 %v379, %v378
      %v406 = vpack.c.b16 %v381, %v380
      %v407 = vpack.c.b16 %v383, %v382
      %v408 = vpack.c.b16 %v385, %v384
      %v409 = vpack.c.b16 %v387, %v386
      %v410 = vpack.c.b16 %v389, %v388
      %v411 = vpack.c.b16 %v391, %v390
      %v412 = vpack.c.b16 %v393, %v392
      %v413 = vpack.c.b16 %v395, %v394
      %432 = vst [vmem:[#allocation2] sm:$0xff] %v396
      %433 = vst [vmem:[#allocation2 + $0x8] sm:$0xff] %v397
      %434 = vst [vmem:[#allocation2 + $0x10] sm:$0xff] %v398
      %435 = vst [vmem:[#allocation2 + $0x18] sm:$0xff] %v399
      %436 = vst [vmem:[#allocation2 + $0x20] sm:$0xff] %v400
      %437 = vst [vmem:[#allocation2 + $0x28] sm:$0xff] %v401
      %438 = vst [vmem:[#allocation2 + $0x30] sm:$0xff] %v402
      %439 = vst [vmem:[#allocation2 + $0x38] sm:$0xff] %v403
      %440 = vst [vmem:[#allocation2 + $0x40] sm:$0xff] %v404
      %441 = vst [vmem:[#allocation2 + $0x48] sm:$0xff] %v405
      %442 = vst [vmem:[#allocation2 + $0x50] sm:$0xff] %v406
      %443 = vst [vmem:[#allocation2 + $0x58] sm:$0xff] %v407
      %444 = vst [vmem:[#allocation2 + $0x60] sm:$0xff] %v408
      %445 = vst [vmem:[#allocation2 + $0x68] sm:$0xff] %v409
      %446 = vst [vmem:[#allocation2 + $0x70] sm:$0xff] %v410
      %447 = vst [vmem:[#allocation2 + $0x78] sm:$0xff] %v411
      %448 = vst [vmem:[#allocation2 + $0x80] sm:$0xff] %v412
      %449 = vst [vmem:[#allocation2 + $0x88] sm:$0xff] %v413
      %v450 = vld [vmem:[%s273] sm:$0xf]
      %v451 = vld [vmem:[%s273 + $0x4] sm:$0xf]
      %v452 = vld [vmem:[%s273 + $0x8] sm:$0xf]
      %v453 = vld [vmem:[%s273 + $0xc] sm:$0xf]
      %v454 = vld [vmem:[%s273 + $0x10] sm:$0xf]
      %v455 = vld [vmem:[%s273 + $0x14] sm:$0xf]
      %v462 = vunpack.c.l.b16 %v450
      %v463 = vunpack.c.l.b16 %v451
      %v464 = vunpack.c.l.b16 %v452
      %v465 = vunpack.c.l.b16 %v453
      %v466 = vunpack.c.l.b16 %v454
      %v467 = vunpack.c.l.b16 %v455
      %v468 = vpack.c.b16 %v463, %v462
      %v469 = vpack.c.b16 %v465, %v464
      %v470 = vpack.c.b16 %v467, %v466
      %474 = vst [vmem:[#allocation2 + $0x90] sm:$0xff] %v468
      %475 = vst [vmem:[#allocation2 + $0x98] sm:$0xff] %v469
      %476 = vst [vmem:[#allocation2 + $0xa0] sm:$0xff] %v470
      %v477 = vld [vmem:[#allocation2] sm:$0xff]
      %v478 = vld [vmem:[#allocation2 + $0x8] sm:$0xff]
      %v479 = vld [vmem:[#allocation2 + $0x10] sm:$0xff]
      %v480 = vld [vmem:[#allocation2 + $0x18] sm:$0xff]
      %v481 = vld [vmem:[#allocation2 + $0x20] sm:$0xff]
      %v482 = vld [vmem:[#allocation2 + $0x28] sm:$0xff]
      %v483 = vld [vmem:[#allocation2 + $0x30] sm:$0xff]
      %v484 = vld [vmem:[#allocation2 + $0x38] sm:$0xff]
      %v485 = vld [vmem:[#allocation2 + $0x40] sm:$0xff]
      %v486 = vld [vmem:[#allocation2 + $0x48] sm:$0xff]
      %v487 = vld [vmem:[#allocation2 + $0x50] sm:$0xff]
      %v488 = vld [vmem:[#allocation2 + $0x58] sm:$0xff]
      %v489 = vld [vmem:[#allocation2 + $0x60] sm:$0xff]
      %v490 = vld [vmem:[#allocation2 + $0x68] sm:$0xff]
      %v491 = vld [vmem:[#allocation2 + $0x70] sm:$0xff]
      %v492 = vld [vmem:[#allocation2 + $0x78] sm:$0xff]
      %v493 = vld [vmem:[#allocation2 + $0x80] sm:$0xff]
      %v494 = vld [vmem:[#allocation2 + $0x88] sm:$0xff]
      %v495 = vld [vmem:[%s2] sm:$0xf]
      %v496 = vld [vmem:[%s2 + $0x4] sm:$0xf]
      %v497 = vld [vmem:[%s2 + $0x8] sm:$0xf]
      %v498 = vld [vmem:[%s2 + $0xc] sm:$0xf]
      %v499 = vld [vmem:[%s2 + $0x10] sm:$0xf]
      %v500 = vld [vmem:[%s2 + $0x14] sm:$0xf]
      %v501 = vld [vmem:[%s2 + $0x18] sm:$0xf]
      %v502 = vld [vmem:[%s2 + $0x1c] sm:$0xf]
      %v503 = vld [vmem:[%s2 + $0x20] sm:$0xf]
      %v504 = vld [vmem:[%s2 + $0x24] sm:$0xf]
      %v505 = vld [vmem:[%s2 + $0x28] sm:$0xf]
      %v506 = vld [vmem:[%s2 + $0x2c] sm:$0xf]
      %v507 = vld [vmem:[%s2 + $0x30] sm:$0xf]
      %v508 = vld [vmem:[%s2 + $0x34] sm:$0xf]
      %v509 = vld [vmem:[%s2 + $0x38] sm:$0xf]
      %v510 = vld [vmem:[%s2 + $0x3c] sm:$0xf]
      %v511 = vld [vmem:[#allocation2 + $0x90] sm:$0x1]
      %v512 = vld [vmem:[%s2 + $0x40] sm:$0xf]
      %v513 = vld [vmem:[%s2 + $0x44] sm:$0xf]
      %v514 = vld [vmem:[%s2 + $0x48] sm:$0xf]
      %v515 = vld [vmem:[%s2 + $0x4c] sm:$0xf]
      %v516 = vld [vmem:[%s2 + $0x50] sm:$0xf]
      %v517 = vld [vmem:[%s2 + $0x54] sm:$0xf]
      %v518 = vld [vmem:[%s2 + $0x58] sm:$0xf]
      %v519 = vld [vmem:[%s2 + $0x5c] sm:$0xf]
      %v520 = vld [vmem:[%s2 + $0x60] sm:$0xf]
      %v521 = vld [vmem:[%s2 + $0x64] sm:$0xf]
      %v522 = vld [vmem:[%s2 + $0x68] sm:$0xf]
      %v523 = vld [vmem:[%s2 + $0x6c] sm:$0xf]
      %v524 = vld [vmem:[%s2 + $0x70] sm:$0xf]
      %v525 = vld [vmem:[%s2 + $0x74] sm:$0xf]
      %v526 = vld [vmem:[%s2 + $0x78] sm:$0xf]
      %v527 = vld [vmem:[%s2 + $0x7c] sm:$0xf]
      %vm528 = vsmask.f32 7424
      %v530 = vshrl.u32 %v477, 16
      %v532 = vshll.u32 %v477, 16
      %v534 = vrot.slane %v532, 1
      %v535 = vor.u32 %v530, %v534
      %v537 = vshll.u32 %v478, 16
      %v539 = vrot.slane %v537, 1
      %v540 = vsel %vm528, %v535, %v539
      %v541 = vshrl.u32 %v478, 16
      %v543 = vor.u32 %v541, %v539
      %v545 = vshll.u32 %v479, 16
      %v547 = vrot.slane %v545, 1
      %v548 = vsel %vm528, %v543, %v547
      %v549 = vshrl.u32 %v479, 16
      %v551 = vor.u32 %v549, %v547
      %v553 = vshll.u32 %v480, 16
      %v555 = vrot.slane %v553, 1
      %v556 = vsel %vm528, %v551, %v555
      %v557 = vshrl.u32 %v480, 16
      %v559 = vor.u32 %v557, %v555
      %v561 = vshll.u32 %v481, 16
      %v563 = vrot.slane %v561, 1
      %v564 = vsel %vm528, %v559, %v563
      %v565 = vshrl.u32 %v481, 16
      %v567 = vor.u32 %v565, %v563
      %v569 = vshll.u32 %v482, 16
      %v571 = vrot.slane %v569, 1
      %v572 = vsel %vm528, %v567, %v571
      %v573 = vshrl.u32 %v482, 16
      %v575 = vor.u32 %v573, %v571
      %v577 = vshll.u32 %v483, 16
      %v579 = vrot.slane %v577, 1
      %v580 = vsel %vm528, %v575, %v579
      %v581 = vshrl.u32 %v483, 16
      %v583 = vor.u32 %v581, %v579
      %v585 = vshll.u32 %v484, 16
      %v587 = vrot.slane %v585, 1
      %v588 = vsel %vm528, %v583, %v587
      %v589 = vshrl.u32 %v484, 16
      %v591 = vor.u32 %v589, %v587
      %v593 = vshll.u32 %v485, 16
      %v595 = vrot.slane %v593, 1
      %v596 = vsel %vm528, %v591, %v595
      %v597 = vshrl.u32 %v485, 16
      %v599 = vor.u32 %v597, %v595
      %v601 = vshll.u32 %v486, 16
      %v603 = vrot.slane %v601, 1
      %v604 = vsel %vm528, %v599, %v603
      %v605 = vshrl.u32 %v486, 16
      %v607 = vor.u32 %v605, %v603
      %v609 = vshll.u32 %v487, 16
      %v611 = vrot.slane %v609, 1
      %v612 = vsel %vm528, %v607, %v611
      %v613 = vshrl.u32 %v487, 16
      %v615 = vor.u32 %v613, %v611
      %v617 = vshll.u32 %v488, 16
      %v619 = vrot.slane %v617, 1
      %v620 = vsel %vm528, %v615, %v619
      %v621 = vshrl.u32 %v488, 16
      %v623 = vor.u32 %v621, %v619
      %v625 = vshll.u32 %v489, 16
      %v627 = vrot.slane %v625, 1
      %v628 = vsel %vm528, %v623, %v627
      %v629 = vshrl.u32 %v489, 16
      %v631 = vor.u32 %v629, %v627
      %v633 = vshll.u32 %v490, 16
      %v635 = vrot.slane %v633, 1
      %v636 = vsel %vm528, %v631, %v635
      %v637 = vshrl.u32 %v490, 16
      %v639 = vor.u32 %v637, %v635
      %v641 = vshll.u32 %v491, 16
      %v643 = vrot.slane %v641, 1
      %v644 = vsel %vm528, %v639, %v643
      %v645 = vshrl.u32 %v491, 16
      %v647 = vor.u32 %v645, %v643
      %v649 = vshll.u32 %v492, 16
      %v651 = vrot.slane %v649, 1
      %v652 = vsel %vm528, %v647, %v651
      %v653 = vshrl.u32 %v492, 16
      %v655 = vor.u32 %v653, %v651
      %v657 = vshll.u32 %v493, 16
      %v659 = vrot.slane %v657, 1
      %v660 = vsel %vm528, %v655, %v659
      %v661 = vshrl.u32 %v493, 16
      %v663 = vor.u32 %v661, %v659
      %v665 = vshll.u32 %v494, 16
      %v667 = vrot.slane %v665, 1
      %v668 = vsel %vm528, %v663, %v667
      %v669 = vshrl.u32 %v494, 16
      %v671 = vor.u32 %v669, %v667
      %v673 = vshll.u32 %v511, 16
      %v675 = vrot.slane %v673, 1
      %v676 = vsel %vm528, %v671, %v675
      %v711 = vunpack.c.l.b16 %v512
      %v712 = vunpack.c.l.b16 %v513
      %v713 = vunpack.c.l.b16 %v514
      %v714 = vunpack.c.l.b16 %v515
      %v715 = vunpack.c.l.b16 %v516
      %v716 = vunpack.c.l.b16 %v517
      %v717 = vunpack.c.l.b16 %v518
      %v718 = vunpack.c.l.b16 %v519
      %v719 = vunpack.c.l.b16 %v520
      %v720 = vunpack.c.l.b16 %v521
      %v721 = vunpack.c.l.b16 %v522
      %v722 = vunpack.c.l.b16 %v523
      %v723 = vunpack.c.l.b16 %v524
      %v724 = vunpack.c.l.b16 %v525
      %v725 = vunpack.c.l.b16 %v526
      %v726 = vunpack.c.l.b16 %v527
      %v727 = vpack.c.b16 %v712, %v711
      %v728 = vpack.c.b16 %v714, %v713
      %v729 = vpack.c.b16 %v716, %v715
      %v730 = vpack.c.b16 %v718, %v717
      %v731 = vpack.c.b16 %v720, %v719
      %v732 = vpack.c.b16 %v722, %v721
      %v733 = vpack.c.b16 %v724, %v723
      %v734 = vpack.c.b16 %v726, %v725
      %743 = vmatprep.subr.bf16.mxu0 0
      %744 = vmatpush1.bf16.msra.mxu0 %v727
      %745 = vmatprep.subr.bf16.mxu0 0
      %746 = vmatpush1.bf16.msra.mxu0 %v728
      %747 = vmatprep.subr.bf16.mxu0 0
      %748 = vmatpush1.bf16.msra.mxu0 %v729
      %749 = vmatprep.subr.bf16.mxu0 0
      %750 = vmatpush1.bf16.msra.mxu0 %v730
      %751 = vmatprep.subr.bf16.mxu0 0
      %752 = vmatpush1.bf16.msra.mxu0 %v731
      %753 = vmatprep.subr.bf16.mxu0 0
      %754 = vmatpush1.bf16.msra.mxu0 %v732
      %755 = vmatprep.subr.bf16.mxu0 0
      %756 = vmatpush1.bf16.msra.mxu0 %v733
      %757 = vmatprep.subr.bf16.mxu0 0
      %758 = vmatpush1.bf16.msra.mxu0 %v734
      %759 = vmatprep.subr.bf16.mxu0 0
      %760 = vmatpush1.bf16.msra.mxu0 0
      %761 = vmatprep.subr.bf16.mxu0 0
      %762 = vmatpush1.bf16.msra.mxu0 0
      %763 = vmatprep.subr.bf16.mxu0 0
      %764 = vmatpush1.bf16.msra.mxu0 0
      %765 = vmatprep.subr.bf16.mxu0 0
      %766 = vmatpush1.bf16.msra.mxu0 0
      %767 = vmatprep.subr.bf16.mxu0 0
      %768 = vmatpush1.bf16.msra.mxu0 0
      %769 = vmatprep.subr.bf16.mxu0 0
      %770 = vmatpush1.bf16.msra.mxu0 0
      %771 = vmatprep.subr.bf16.mxu0 0
      %772 = vmatpush1.bf16.msra.mxu0 0
      %773 = vmatprep.subr.bf16.mxu0 0
      %774 = vmatpush1.bf16.msra.mxu0 0
      %775 = vmatprep.mubr.bf16.mxu0 0
      %776 = vmatmul.mubr.bf16.gmra.mrb[0].mxu0 %v540
      %v777 = vpop.f32.mrb[0].mxu0
      %v778 = vadd.f32 0.0, %v777
      %v779 = vpop.f32.mrb[0].mxu0
      %v780 = vpop.f32.mrb[0].mxu0
      %v781 = vadd.f32 0.0, %v780
      %v782 = vpop.f32.mrb[0].mxu0
      %783 = vmatprep.mubr.bf16.mxu0 0
      %784 = vmatmul.mubr.bf16.gmra.mrb[0].mxu0 %v548
      %v785 = vpop.f32.mrb[0].mxu0
      %v786 = vadd.f32 0.0, %v785
      %v787 = vpop.f32.mrb[0].mxu0
      %v788 = vpop.f32.mrb[0].mxu0
      %v789 = vadd.f32 0.0, %v788
      %v790 = vpop.f32.mrb[0].mxu0
      %791 = vmatprep.mubr.bf16.mxu0 0
      %792 = vmatmul.mubr.bf16.gmra.mrb[0].mxu0 %v556
      %v793 = vpop.f32.mrb[0].mxu0
      %v794 = vadd.f32 0.0, %v793
      %v795 = vpop.f32.mrb[0].mxu0
      %v796 = vpop.f32.mrb[0].mxu0
      %v797 = vadd.f32 0.0, %v796
      %v798 = vpop.f32.mrb[0].mxu0
      %799 = vmatprep.mubr.bf16.mxu0 0
      %800 = vmatmul.mubr.bf16.gmra.mrb[0].mxu0 %v564
      %v801 = vpop.f32.mrb[0].mxu0
      %v802 = vadd.f32 0.0, %v801
      %v803 = vpop.f32.mrb[0].mxu0
      %v804 = vpop.f32.mrb[0].mxu0
      %v805 = vadd.f32 0.0, %v804
      %v806 = vpop.f32.mrb[0].mxu0
      %807 = vmatprep.mubr.bf16.mxu0 0
      %808 = vmatmul.mubr.bf16.gmra.mrb[0].mxu0 %v572
      %v809 = vpop.f32.mrb[0].mxu0
      %v810 = vadd.f32 0.0, %v809
      %v811 = vpop.f32.mrb[0].mxu0
      %v812 = vpop.f32.mrb[0].mxu0
      %v813 = vadd.f32 0.0, %v812
      %v814 = vpop.f32.mrb[0].mxu0
      %815 = vmatprep.mubr.bf16.mxu0 0
      %816 = vmatmul.mubr.bf16.gmra.mrb[0].mxu0 %v580
      %v817 = vpop.f32.mrb[0].mxu0
      %v818 = vadd.f32 0.0, %v817
      %v819 = vpop.f32.mrb[0].mxu0
      %v820 = vpop.f32.mrb[0].mxu0
      %v821 = vadd.f32 0.0, %v820
      %v822 = vpop.f32.mrb[0].mxu0
      %823 = vmatprep.mubr.bf16.mxu0 0
      %824 = vmatmul.mubr.bf16.gmra.mrb[0].mxu0 %v588
      %v825 = vpop.f32.mrb[0].mxu0
      %v826 = vadd.f32 0.0, %v825
      %v827 = vpop.f32.mrb[0].mxu0
      %v828 = vpop.f32.mrb[0].mxu0
      %v829 = vadd.f32 0.0, %v828
      %v830 = vpop.f32.mrb[0].mxu0
      %831 = vmatprep.mubr.bf16.mxu0 0
      %832 = vmatmul.mubr.bf16.gmra.mrb[0].mxu0 %v596
      %v833 = vpop.f32.mrb[0].mxu0
      %v834 = vadd.f32 0.0, %v833
      %v835 = vpop.f32.mrb[0].mxu0
      %v836 = vpop.f32.mrb[0].mxu0
      %v837 = vadd.f32 0.0, %v836
      %v838 = vpop.f32.mrb[0].mxu0
      %839 = vmatprep.mubr.bf16.mxu0 0
      %840 = vmatmul.mubr.bf16.gmra.mrb[0].mxu0 %v604
      %v841 = vpop.f32.mrb[0].mxu0
      %v842 = vadd.f32 0.0, %v841
      %v843 = vpop.f32.mrb[0].mxu0
      %v844 = vpop.f32.mrb[0].mxu0
      %v845 = vadd.f32 0.0, %v844
      %v846 = vpop.f32.mrb[0].mxu0
      %847 = vmatprep.mubr.bf16.mxu0 0
      %848 = vmatmul.mubr.bf16.gmra.mrb[0].mxu0 %v612
      %v849 = vpop.f32.mrb[0].mxu0
      %v850 = vadd.f32 0.0, %v849
      %v851 = vpop.f32.mrb[0].mxu0
      %v852 = vpop.f32.mrb[0].mxu0
      %v853 = vadd.f32 0.0, %v852
      %v854 = vpop.f32.mrb[0].mxu0
      %855 = vmatprep.mubr.bf16.mxu0 0
      %856 = vmatmul.mubr.bf16.gmra.mrb[0].mxu0 %v620
      %v857 = vpop.f32.mrb[0].mxu0
      %v858 = vadd.f32 0.0, %v857
      %v859 = vpop.f32.mrb[0].mxu0
      %v860 = vpop.f32.mrb[0].mxu0
      %v861 = vadd.f32 0.0, %v860
      %v862 = vpop.f32.mrb[0].mxu0
      %863 = vmatprep.mubr.bf16.mxu0 0
      %864 = vmatmul.mubr.bf16.gmra.mrb[0].mxu0 %v628
      %v865 = vpop.f32.mrb[0].mxu0
      %v866 = vadd.f32 0.0, %v865
      %v867 = vpop.f32.mrb[0].mxu0
      %v868 = vpop.f32.mrb[0].mxu0
      %v869 = vadd.f32 0.0, %v868
      %v870 = vpop.f32.mrb[0].mxu0
      %871 = vmatprep.mubr.bf16.mxu0 0
      %872 = vmatmul.mubr.bf16.gmra.mrb[0].mxu0 %v636
      %v873 = vpop.f32.mrb[0].mxu0
      %v874 = vadd.f32 0.0, %v873
      %v875 = vpop.f32.mrb[0].mxu0
      %v876 = vpop.f32.mrb[0].mxu0
      %v877 = vadd.f32 0.0, %v876
      %v878 = vpop.f32.mrb[0].mxu0
      %879 = vmatprep.mubr.bf16.mxu0 0
      %880 = vmatmul.mubr.bf16.gmra.mrb[0].mxu0 %v644
      %v881 = vpop.f32.mrb[0].mxu0
      %v882 = vadd.f32 0.0, %v881
      %v883 = vpop.f32.mrb[0].mxu0
      %v884 = vpop.f32.mrb[0].mxu0
      %v885 = vadd.f32 0.0, %v884
      %v886 = vpop.f32.mrb[0].mxu0
      %887 = vmatprep.mubr.bf16.mxu0 0
      %888 = vmatmul.mubr.bf16.gmra.mrb[0].mxu0 %v652
      %v889 = vpop.f32.mrb[0].mxu0
      %v890 = vadd.f32 0.0, %v889
      %v891 = vpop.f32.mrb[0].mxu0
      %v892 = vpop.f32.mrb[0].mxu0
      %v893 = vadd.f32 0.0, %v892
      %v894 = vpop.f32.mrb[0].mxu0
      %895 = vmatprep.mubr.bf16.mxu0 0
      %896 = vmatmul.mubr.bf16.gmra.mrb[0].mxu0 %v660
      %v897 = vpop.f32.mrb[0].mxu0
      %v898 = vadd.f32 0.0, %v897
      %v899 = vpop.f32.mrb[0].mxu0
      %v900 = vpop.f32.mrb[0].mxu0
      %v901 = vadd.f32 0.0, %v900
      %v902 = vpop.f32.mrb[0].mxu0
      %903 = vmatprep.mubr.bf16.mxu0 0
      %904 = vmatmul.mubr.bf16.gmra.mrb[0].mxu0 %v668
      %v905 = vpop.f32.mrb[0].mxu0
      %v906 = vadd.f32 0.0, %v905
      %v907 = vpop.f32.mrb[0].mxu0
      %v908 = vpop.f32.mrb[0].mxu0
      %v909 = vadd.f32 0.0, %v908
      %v910 = vpop.f32.mrb[0].mxu0
      %911 = vmatprep.mubr.bf16.mxu0 0
      %912 = vmatmul.mubr.bf16.gmra.mrb[0].mxu0 %v676
      %v913 = vpop.f32.mrb[0].mxu0
      %v914 = vadd.f32 0.0, %v913
      %v915 = vpop.f32.mrb[0].mxu0
      %v916 = vpop.f32.mrb[0].mxu0
      %v917 = vadd.f32 0.0, %v916
      %v918 = vpop.f32.mrb[0].mxu0
      %919 = vdwg.mxu0
      %v936 = vunpack.c.l.b16 %v495
      %v937 = vunpack.c.l.b16 %v496
      %v938 = vunpack.c.l.b16 %v497
      %v939 = vunpack.c.l.b16 %v498
      %v940 = vunpack.c.l.b16 %v499
      %v941 = vunpack.c.l.b16 %v500
      %v942 = vunpack.c.l.b16 %v501
      %v943 = vunpack.c.l.b16 %v502
      %v944 = vunpack.c.l.b16 %v503
      %v945 = vunpack.c.l.b16 %v504
      %v946 = vunpack.c.l.b16 %v505
      %v947 = vunpack.c.l.b16 %v506
      %v948 = vunpack.c.l.b16 %v507
      %v949 = vunpack.c.l.b16 %v508
      %v950 = vunpack.c.l.b16 %v509
      %v951 = vunpack.c.l.b16 %v510
      %v952 = vpack.c.b16 %v937, %v936
      %v953 = vpack.c.b16 %v939, %v938
      %v954 = vpack.c.b16 %v941, %v940
      %v955 = vpack.c.b16 %v943, %v942
      %v956 = vpack.c.b16 %v945, %v944
      %v957 = vpack.c.b16 %v947, %v946
      %v958 = vpack.c.b16 %v949, %v948
      %v959 = vpack.c.b16 %v951, %v950
      %968 = vmatprep.subr.bf16.mxu0 0
      %969 = vmatpush1.bf16.msra.mxu0 %v952
      %970 = vmatprep.subr.bf16.mxu0 0
      %971 = vmatpush1.bf16.msra.mxu0 %v953
      %972 = vmatprep.subr.bf16.mxu0 0
      %973 = vmatpush1.bf16.msra.mxu0 %v954
      %974 = vmatprep.subr.bf16.mxu0 0
      %975 = vmatpush1.bf16.msra.mxu0 %v955
      %976 = vmatprep.subr.bf16.mxu0 0
      %977 = vmatpush1.bf16.msra.mxu0 %v956
      %978 = vmatprep.subr.bf16.mxu0 0
      %979 = vmatpush1.bf16.msra.mxu0 %v957
      %980 = vmatprep.subr.bf16.mxu0 0
      %981 = vmatpush1.bf16.msra.mxu0 %v958
      %982 = vmatprep.subr.bf16.mxu0 0
      %983 = vmatpush1.bf16.msra.mxu0 %v959
      %984 = vmatprep.subr.bf16.mxu0 0
      %985 = vmatpush1.bf16.msra.mxu0 0
      %986 = vmatprep.subr.bf16.mxu0 0
      %987 = vmatpush1.bf16.msra.mxu0 0
      %988 = vmatprep.subr.bf16.mxu0 0
      %989 = vmatpush1.bf16.msra.mxu0 0
      %990 = vmatprep.subr.bf16.mxu0 0
      %991 = vmatpush1.bf16.msra.mxu0 0
      %992 = vmatprep.subr.bf16.mxu0 0
      %993 = vmatpush1.bf16.msra.mxu0 0
      %994 = vmatprep.subr.bf16.mxu0 0
      %995 = vmatpush1.bf16.msra.mxu0 0
      %996 = vmatprep.subr.bf16.mxu0 0
      %997 = vmatpush1.bf16.msra.mxu0 0
      %998 = vmatprep.subr.bf16.mxu0 0
      %999 = vmatpush1.bf16.msra.mxu0 0
      %1000 = vmatprep.mubr.bf16.mxu0 0
      %1001 = vmatmul.mubr.bf16.gmra.mrb[0].mxu0 %v477
      %v1002 = vpop.f32.mrb[0].mxu0
      %v1003 = vadd.f32 %v778, %v1002
      %v1004 = vpop.f32.mrb[0].mxu0
      %v1005 = vpop.f32.mrb[0].mxu0
      %v1006 = vadd.f32 %v781, %v1005
      %v1007 = vpop.f32.mrb[0].mxu0
      %1008 = vmatprep.mubr.bf16.mxu0 0
      %1009 = vmatmul.mubr.bf16.gmra.mrb[0].mxu0 %v478
      %v1010 = vpop.f32.mrb[0].mxu0
      %v1011 = vadd.f32 %v786, %v1010
      %v1012 = vpop.f32.mrb[0].mxu0
      %v1013 = vpop.f32.mrb[0].mxu0
      %v1014 = vadd.f32 %v789, %v1013
      %v1015 = vpop.f32.mrb[0].mxu0
      %1016 = vmatprep.mubr.bf16.mxu0 0
      %1017 = vmatmul.mubr.bf16.gmra.mrb[0].mxu0 %v479
      %v1018 = vpop.f32.mrb[0].mxu0
      %v1019 = vadd.f32 %v794, %v1018
      %v1020 = vpop.f32.mrb[0].mxu0
      %v1021 = vpop.f32.mrb[0].mxu0
      %v1022 = vadd.f32 %v797, %v1021
      %v1023 = vpop.f32.mrb[0].mxu0
      %1024 = vmatprep.mubr.bf16.mxu0 0
      %1025 = vmatmul.mubr.bf16.gmra.mrb[0].mxu0 %v480
      %v1026 = vpop.f32.mrb[0].mxu0
      %v1027 = vadd.f32 %v802, %v1026
      %v1028 = vpop.f32.mrb[0].mxu0
      %v1029 = vpop.f32.mrb[0].mxu0
      %v1030 = vadd.f32 %v805, %v1029
      %v1031 = vpop.f32.mrb[0].mxu0
      %1032 = vmatprep.mubr.bf16.mxu0 0
      %1033 = vmatmul.mubr.bf16.gmra.mrb[0].mxu0 %v481
      %v1034 = vpop.f32.mrb[0].mxu0
      %v1035 = vadd.f32 %v810, %v1034
      %v1036 = vpop.f32.mrb[0].mxu0
      %v1037 = vpop.f32.mrb[0].mxu0
      %v1038 = vadd.f32 %v813, %v1037
      %v1039 = vpop.f32.mrb[0].mxu0
      %1040 = vmatprep.mubr.bf16.mxu0 0
      %1041 = vmatmul.mubr.bf16.gmra.mrb[0].mxu0 %v482
      %v1042 = vpop.f32.mrb[0].mxu0
      %v1043 = vadd.f32 %v818, %v1042
      %v1044 = vpop.f32.mrb[0].mxu0
      %v1045 = vpop.f32.mrb[0].mxu0
      %v1046 = vadd.f32 %v821, %v1045
      %v1047 = vpop.f32.mrb[0].mxu0
      %1048 = vmatprep.mubr.bf16.mxu0 0
      %1049 = vmatmul.mubr.bf16.gmra.mrb[0].mxu0 %v483
      %v1050 = vpop.f32.mrb[0].mxu0
      %v1051 = vadd.f32 %v826, %v1050
      %v1052 = vpop.f32.mrb[0].mxu0
      %v1053 = vpop.f32.mrb[0].mxu0
      %v1054 = vadd.f32 %v829, %v1053
      %v1055 = vpop.f32.mrb[0].mxu0
      %1056 = vmatprep.mubr.bf16.mxu0 0
      %1057 = vmatmul.mubr.bf16.gmra.mrb[0].mxu0 %v484
      %v1058 = vpop.f32.mrb[0].mxu0
      %v1059 = vadd.f32 %v834, %v1058
      %v1060 = vpop.f32.mrb[0].mxu0
      %v1061 = vpop.f32.mrb[0].mxu0
      %v1062 = vadd.f32 %v837, %v1061
      %v1063 = vpop.f32.mrb[0].mxu0
      %1064 = vmatprep.mubr.bf16.mxu0 0
      %1065 = vmatmul.mubr.bf16.gmra.mrb[0].mxu0 %v485
      %v1066 = vpop.f32.mrb[0].mxu0
      %v1067 = vadd.f32 %v842, %v1066
      %v1068 = vpop.f32.mrb[0].mxu0
      %v1069 = vpop.f32.mrb[0].mxu0
      %v1070 = vadd.f32 %v845, %v1069
      %v1071 = vpop.f32.mrb[0].mxu0
      %1072 = vmatprep.mubr.bf16.mxu0 0
      %1073 = vmatmul.mubr.bf16.gmra.mrb[0].mxu0 %v486
      %v1074 = vpop.f32.mrb[0].mxu0
      %v1075 = vadd.f32 %v850, %v1074
      %v1076 = vpop.f32.mrb[0].mxu0
      %v1077 = vpop.f32.mrb[0].mxu0
      %v1078 = vadd.f32 %v853, %v1077
      %v1079 = vpop.f32.mrb[0].mxu0
      %1080 = vmatprep.mubr.bf16.mxu0 0
      %1081 = vmatmul.mubr.bf16.gmra.mrb[0].mxu0 %v487
      %v1082 = vpop.f32.mrb[0].mxu0
      %v1083 = vadd.f32 %v858, %v1082
      %v1084 = vpop.f32.mrb[0].mxu0
      %v1085 = vpop.f32.mrb[0].mxu0
      %v1086 = vadd.f32 %v861, %v1085
      %v1087 = vpop.f32.mrb[0].mxu0
      %1088 = vmatprep.mubr.bf16.mxu0 0
      %1089 = vmatmul.mubr.bf16.gmra.mrb[0].mxu0 %v488
      %v1090 = vpop.f32.mrb[0].mxu0
      %v1091 = vadd.f32 %v866, %v1090
      %v1092 = vpop.f32.mrb[0].mxu0
      %v1093 = vpop.f32.mrb[0].mxu0
      %v1094 = vadd.f32 %v869, %v1093
      %v1095 = vpop.f32.mrb[0].mxu0
      %1096 = vmatprep.mubr.bf16.mxu0 0
      %1097 = vmatmul.mubr.bf16.gmra.mrb[0].mxu0 %v489
      %v1098 = vpop.f32.mrb[0].mxu0
      %v1099 = vadd.f32 %v874, %v1098
      %v1100 = vpop.f32.mrb[0].mxu0
      %v1101 = vpop.f32.mrb[0].mxu0
      %v1102 = vadd.f32 %v877, %v1101
      %v1103 = vpop.f32.mrb[0].mxu0
      %1104 = vmatprep.mubr.bf16.mxu0 0
      %1105 = vmatmul.mubr.bf16.gmra.mrb[0].mxu0 %v490
      %v1106 = vpop.f32.mrb[0].mxu0
      %v1107 = vadd.f32 %v882, %v1106
      %v1108 = vpop.f32.mrb[0].mxu0
      %v1109 = vpop.f32.mrb[0].mxu0
      %v1110 = vadd.f32 %v885, %v1109
      %v1111 = vpop.f32.mrb[0].mxu0
      %1112 = vmatprep.mubr.bf16.mxu0 0
      %1113 = vmatmul.mubr.bf16.gmra.mrb[0].mxu0 %v491
      %v1114 = vpop.f32.mrb[0].mxu0
      %v1115 = vadd.f32 %v890, %v1114
      %v1116 = vpop.f32.mrb[0].mxu0
      %v1117 = vpop.f32.mrb[0].mxu0
      %v1118 = vadd.f32 %v893, %v1117
      %v1119 = vpop.f32.mrb[0].mxu0
      %1120 = vmatprep.mubr.bf16.mxu0 0
      %1121 = vmatmul.mubr.bf16.gmra.mrb[0].mxu0 %v492
      %v1122 = vpop.f32.mrb[0].mxu0
      %v1123 = vadd.f32 %v898, %v1122
      %v1124 = vpop.f32.mrb[0].mxu0
      %v1125 = vpop.f32.mrb[0].mxu0
      %v1126 = vadd.f32 %v901, %v1125
      %v1127 = vpop.f32.mrb[0].mxu0
      %1128 = vmatprep.mubr.bf16.mxu0 0
      %1129 = vmatmul.mubr.bf16.gmra.mrb[0].mxu0 %v493
      %v1130 = vpop.f32.mrb[0].mxu0
      %v1131 = vadd.f32 %v906, %v1130
      %v1132 = vpop.f32.mrb[0].mxu0
      %v1133 = vpop.f32.mrb[0].mxu0
      %v1134 = vadd.f32 %v909, %v1133
      %v1135 = vpop.f32.mrb[0].mxu0
      %1136 = vmatprep.mubr.bf16.mxu0 0
      %1137 = vmatmul.mubr.bf16.gmra.mrb[0].mxu0 %v494
      %v1138 = vpop.f32.mrb[0].mxu0
      %v1139 = vadd.f32 %v914, %v1138
      %v1140 = vpop.f32.mrb[0].mxu0
      %v1141 = vpop.f32.mrb[0].mxu0
      %v1142 = vadd.f32 %v917, %v1141
      %v1143 = vpop.f32.mrb[0].mxu0
      %1144 = vdwg.mxu0
      %v1145 = vld [vmem:[#allocation2] sm:$0xfe]
      %v1146 = vld [vmem:[%s2 + $0x80] sm:$0xf]
      %v1147 = vld [vmem:[%s2 + $0x84] sm:$0xf]
      %v1148 = vld [vmem:[%s2 + $0x88] sm:$0xf]
      %v1149 = vld [vmem:[%s2 + $0x8c] sm:$0xf]
      %v1150 = vld [vmem:[%s2 + $0x90] sm:$0xf]
      %v1151 = vld [vmem:[%s2 + $0x94] sm:$0xf]
      %v1152 = vld [vmem:[%s2 + $0x98] sm:$0xf]
      %v1153 = vld [vmem:[%s2 + $0x9c] sm:$0xf]
      %v1154 = vld [vmem:[%s2 + $0xa0] sm:$0xf]
      %v1155 = vld [vmem:[%s2 + $0xa4] sm:$0xf]
      %v1156 = vld [vmem:[%s2 + $0xa8] sm:$0xf]
      %v1157 = vld [vmem:[%s2 + $0xac] sm:$0xf]
      %v1158 = vld [vmem:[%s2 + $0xb0] sm:$0xf]
      %v1159 = vld [vmem:[%s2 + $0xb4] sm:$0xf]
      %v1160 = vld [vmem:[%s2 + $0xb8] sm:$0xf]
      %v1161 = vld [vmem:[%s2 + $0xbc] sm:$0xf]
      %vm1181 = vcmask 1046528
      %v1182 = vrot.slane %v1145, 1
      %v1183 = vrot.slane %v478, 1
      %v1184 = vsel %vm1181, %v1182, %v1183
      %v1185 = vrot.slane %v479, 1
      %v1186 = vsel %vm1181, %v1183, %v1185
      %v1187 = vrot.slane %v480, 1
      %v1188 = vsel %vm1181, %v1185, %v1187
      %v1189 = vrot.slane %v481, 1
      %v1190 = vsel %vm1181, %v1187, %v1189
      %v1191 = vrot.slane %v482, 1
      %v1192 = vsel %vm1181, %v1189, %v1191
      %v1193 = vrot.slane %v483, 1
      %v1194 = vsel %vm1181, %v1191, %v1193
      %v1195 = vrot.slane %v484, 1
      %v1196 = vsel %vm1181, %v1193, %v1195
      %v1197 = vrot.slane %v485, 1
      %v1198 = vsel %vm1181, %v1195, %v1197
      %v1199 = vrot.slane %v486, 1
      %v1200 = vsel %vm1181, %v1197, %v1199
      %v1201 = vrot.slane %v487, 1
      %v1202 = vsel %vm1181, %v1199, %v1201
      %v1203 = vrot.slane %v488, 1
      %v1204 = vsel %vm1181, %v1201, %v1203
      %v1205 = vrot.slane %v489, 1
      %v1206 = vsel %vm1181, %v1203, %v1205
      %v1207 = vrot.slane %v490, 1
      %v1208 = vsel %vm1181, %v1205, %v1207
      %v1209 = vrot.slane %v491, 1
      %v1210 = vsel %vm1181, %v1207, %v1209
      %v1211 = vrot.slane %v492, 1
      %v1212 = vsel %vm1181, %v1209, %v1211
      %v1213 = vrot.slane %v493, 1
      %v1214 = vsel %vm1181, %v1211, %v1213
      %v1215 = vrot.slane %v494, 1
      %v1216 = vsel %vm1181, %v1213, %v1215
      %v1217 = vrot.slane %v511, 1
      %v1218 = vsel %vm1181, %v1215, %v1217
      %v1253 = vunpack.c.l.b16 %v1146
      %v1254 = vunpack.c.l.b16 %v1147
      %v1255 = vunpack.c.l.b16 %v1148
      %v1256 = vunpack.c.l.b16 %v1149
      %v1257 = vunpack.c.l.b16 %v1150
      %v1258 = vunpack.c.l.b16 %v1151
      %v1259 = vunpack.c.l.b16 %v1152
      %v1260 = vunpack.c.l.b16 %v1153
      %v1261 = vunpack.c.l.b16 %v1154
      %v1262 = vunpack.c.l.b16 %v1155
      %v1263 = vunpack.c.l.b16 %v1156
      %v1264 = vunpack.c.l.b16 %v1157
      %v1265 = vunpack.c.l.b16 %v1158
      %v1266 = vunpack.c.l.b16 %v1159
      %v1267 = vunpack.c.l.b16 %v1160
      %v1268 = vunpack.c.l.b16 %v1161
      %v1269 = vpack.c.b16 %v1254, %v1253
      %v1270 = vpack.c.b16 %v1256, %v1255
      %v1271 = vpack.c.b16 %v1258, %v1257
      %v1272 = vpack.c.b16 %v1260, %v1259
      %v1273 = vpack.c.b16 %v1262, %v1261
      %v1274 = vpack.c.b16 %v1264, %v1263
      %v1275 = vpack.c.b16 %v1266, %v1265
      %v1276 = vpack.c.b16 %v1268, %v1267
      %1285 = vmatprep.subr.bf16.mxu0 0
      %1286 = vmatpush1.bf16.msra.mxu0 %v1269
      %1287 = vmatprep.subr.bf16.mxu0 0
      %1288 = vmatpush1.bf16.msra.mxu0 %v1270
      %1289 = vmatprep.subr.bf16.mxu0 0
      %1290 = vmatpush1.bf16.msra.mxu0 %v1271
      %1291 = vmatprep.subr.bf16.mxu0 0
      %1292 = vmatpush1.bf16.msra.mxu0 %v1272
      %1293 = vmatprep.subr.bf16.mxu0 0
      %1294 = vmatpush1.bf16.msra.mxu0 %v1273
      %1295 = vmatprep.subr.bf16.mxu0 0
      %1296 = vmatpush1.bf16.msra.mxu0 %v1274
      %1297 = vmatprep.subr.bf16.mxu0 0
      %1298 = vmatpush1.bf16.msra.mxu0 %v1275
      %1299 = vmatprep.subr.bf16.mxu0 0
      %1300 = vmatpush1.bf16.msra.mxu0 %v1276
      %1301 = vmatprep.subr.bf16.mxu0 0
      %1302 = vmatpush1.bf16.msra.mxu0 0
      %1303 = vmatprep.subr.bf16.mxu0 0
      %1304 = vmatpush1.bf16.msra.mxu0 0
      %1305 = vmatprep.subr.bf16.mxu0 0
      %1306 = vmatpush1.bf16.msra.mxu0 0
      %1307 = vmatprep.subr.bf16.mxu0 0
      %1308 = vmatpush1.bf16.msra.mxu0 0
      %1309 = vmatprep.subr.bf16.mxu0 0
      %1310 = vmatpush1.bf16.msra.mxu0 0
      %1311 = vmatprep.subr.bf16.mxu0 0
      %1312 = vmatpush1.bf16.msra.mxu0 0
      %1313 = vmatprep.subr.bf16.mxu0 0
      %1314 = vmatpush1.bf16.msra.mxu0 0
      %1315 = vmatprep.subr.bf16.mxu0 0
      %1316 = vmatpush1.bf16.msra.mxu0 0
      %1317 = vmatprep.mubr.bf16.mxu0 0
      %1318 = vmatmul.mubr.bf16.gmra.mrb[0].mxu0 %v1184
      %v1319 = vpop.f32.mrb[0].mxu0
      %v1320 = vadd.f32 0.0, %v1319
      %v1321 = vpop.f32.mrb[0].mxu0
      %v1322 = vpop.f32.mrb[0].mxu0
      %v1323 = vadd.f32 0.0, %v1322
      %v1324 = vpop.f32.mrb[0].mxu0
      %1325 = vmatprep.mubr.bf16.mxu0 0
      %1326 = vmatmul.mubr.bf16.gmra.mrb[0].mxu0 %v1186
      %v1327 = vpop.f32.mrb[0].mxu0
      %v1328 = vadd.f32 0.0, %v1327
      %v1329 = vpop.f32.mrb[0].mxu0
      %v1330 = vpop.f32.mrb[0].mxu0
      %v1331 = vadd.f32 0.0, %v1330
      %v1332 = vpop.f32.mrb[0].mxu0
      %1333 = vmatprep.mubr.bf16.mxu0 0
      %1334 = vmatmul.mubr.bf16.gmra.mrb[0].mxu0 %v1188
      %v1335 = vpop.f32.mrb[0].mxu0
      %v1336 = vadd.f32 0.0, %v1335
      %v1337 = vpop.f32.mrb[0].mxu0
      %v1338 = vpop.f32.mrb[0].mxu0
      %v1339 = vadd.f32 0.0, %v1338
      %v1340 = vpop.f32.mrb[0].mxu0
      %1341 = vmatprep.mubr.bf16.mxu0 0
      %1342 = vmatmul.mubr.bf16.gmra.mrb[0].mxu0 %v1190
      %v1343 = vpop.f32.mrb[0].mxu0
      %v1344 = vadd.f32 0.0, %v1343
      %v1345 = vpop.f32.mrb[0].mxu0
      %v1346 = vpop.f32.mrb[0].mxu0
      %v1347 = vadd.f32 0.0, %v1346
      %v1348 = vpop.f32.mrb[0].mxu0
      %1349 = vmatprep.mubr.bf16.mxu0 0
      %1350 = vmatmul.mubr.bf16.gmra.mrb[0].mxu0 %v1192
      %v1351 = vpop.f32.mrb[0].mxu0
      %v1352 = vadd.f32 0.0, %v1351
      %v1353 = vpop.f32.mrb[0].mxu0
      %v1354 = vpop.f32.mrb[0].mxu0
      %v1355 = vadd.f32 0.0, %v1354
      %v1356 = vpop.f32.mrb[0].mxu0
      %1357 = vmatprep.mubr.bf16.mxu0 0
      %1358 = vmatmul.mubr.bf16.gmra.mrb[0].mxu0 %v1194
      %v1359 = vpop.f32.mrb[0].mxu0
      %v1360 = vadd.f32 0.0, %v1359
      %v1361 = vpop.f32.mrb[0].mxu0
      %v1362 = vpop.f32.mrb[0].mxu0
      %v1363 = vadd.f32 0.0, %v1362
      %v1364 = vpop.f32.mrb[0].mxu0
      %1365 = vmatprep.mubr.bf16.mxu0 0
      %1366 = vmatmul.mubr.bf16.gmra.mrb[0].mxu0 %v1196
      %v1367 = vpop.f32.mrb[0].mxu0
      %v1368 = vadd.f32 0.0, %v1367
      %v1369 = vpop.f32.mrb[0].mxu0
      %v1370 = vpop.f32.mrb[0].mxu0
      %v1371 = vadd.f32 0.0, %v1370
      %v1372 = vpop.f32.mrb[0].mxu0
      %1373 = vmatprep.mubr.bf16.mxu0 0
      %1374 = vmatmul.mubr.bf16.gmra.mrb[0].mxu0 %v1198
      %v1375 = vpop.f32.mrb[0].mxu0
      %v1376 = vadd.f32 0.0, %v1375
      %v1377 = vpop.f32.mrb[0].mxu0
      %v1378 = vpop.f32.mrb[0].mxu0
      %v1379 = vadd.f32 0.0, %v1378
      %v1380 = vpop.f32.mrb[0].mxu0
      %1381 = vmatprep.mubr.bf16.mxu0 0
      %1382 = vmatmul.mubr.bf16.gmra.mrb[0].mxu0 %v1200
      %v1383 = vpop.f32.mrb[0].mxu0
      %v1384 = vadd.f32 0.0, %v1383
      %v1385 = vpop.f32.mrb[0].mxu0
      %v1386 = vpop.f32.mrb[0].mxu0
      %v1387 = vadd.f32 0.0, %v1386
      %v1388 = vpop.f32.mrb[0].mxu0
      %1389 = vmatprep.mubr.bf16.mxu0 0
      %1390 = vmatmul.mubr.bf16.gmra.mrb[0].mxu0 %v1202
      %v1391 = vpop.f32.mrb[0].mxu0
      %v1392 = vadd.f32 0.0, %v1391
      %v1393 = vpop.f32.mrb[0].mxu0
      %v1394 = vpop.f32.mrb[0].mxu0
      %v1395 = vadd.f32 0.0, %v1394
      %v1396 = vpop.f32.mrb[0].mxu0
      %1397 = vmatprep.mubr.bf16.mxu0 0
      %1398 = vmatmul.mubr.bf16.gmra.mrb[0].mxu0 %v1204
      %v1399 = vpop.f32.mrb[0].mxu0
      %v1400 = vadd.f32 0.0, %v1399
      %v1401 = vpop.f32.mrb[0].mxu0
      %v1402 = vpop.f32.mrb[0].mxu0
      %v1403 = vadd.f32 0.0, %v1402
      %v1404 = vpop.f32.mrb[0].mxu0
      %1405 = vmatprep.mubr.bf16.mxu0 0
      %1406 = vmatmul.mubr.bf16.gmra.mrb[0].mxu0 %v1206
      %v1407 = vpop.f32.mrb[0].mxu0
      %v1408 = vadd.f32 0.0, %v1407
      %v1409 = vpop.f32.mrb[0].mxu0
      %v1410 = vpop.f32.mrb[0].mxu0
      %v1411 = vadd.f32 0.0, %v1410
      %v1412 = vpop.f32.mrb[0].mxu0
      %1413 = vmatprep.mubr.bf16.mxu0 0
      %1414 = vmatmul.mubr.bf16.gmra.mrb[0].mxu0 %v1208
      %v1415 = vpop.f32.mrb[0].mxu0
      %v1416 = vadd.f32 0.0, %v1415
      %v1417 = vpop.f32.mrb[0].mxu0
      %v1418 = vpop.f32.mrb[0].mxu0
      %v1419 = vadd.f32 0.0, %v1418
      %v1420 = vpop.f32.mrb[0].mxu0
      %1421 = vmatprep.mubr.bf16.mxu0 0
      %1422 = vmatmul.mubr.bf16.gmra.mrb[0].mxu0 %v1210
      %v1423 = vpop.f32.mrb[0].mxu0
      %v1424 = vadd.f32 0.0, %v1423
      %v1425 = vpop.f32.mrb[0].mxu0
      %v1426 = vpop.f32.mrb[0].mxu0
      %v1427 = vadd.f32 0.0, %v1426
      %v1428 = vpop.f32.mrb[0].mxu0
      %1429 = vmatprep.mubr.bf16.mxu0 0
      %1430 = vmatmul.mubr.bf16.gmra.mrb[0].mxu0 %v1212
      %v1431 = vpop.f32.mrb[0].mxu0
      %v1432 = vadd.f32 0.0, %v1431
      %v1433 = vpop.f32.mrb[0].mxu0
      %v1434 = vpop.f32.mrb[0].mxu0
      %v1435 = vadd.f32 0.0, %v1434
      %v1436 = vpop.f32.mrb[0].mxu0
      %1437 = vmatprep.mubr.bf16.mxu0 0
      %1438 = vmatmul.mubr.bf16.gmra.mrb[0].mxu0 %v1214
      %v1439 = vpop.f32.mrb[0].mxu0
      %v1440 = vadd.f32 0.0, %v1439
      %v1441 = vpop.f32.mrb[0].mxu0
      %v1442 = vpop.f32.mrb[0].mxu0
      %v1443 = vadd.f32 0.0, %v1442
      %v1444 = vpop.f32.mrb[0].mxu0
      %1445 = vmatprep.mubr.bf16.mxu0 0
      %1446 = vmatmul.mubr.bf16.gmra.mrb[0].mxu0 %v1216
      %v1447 = vpop.f32.mrb[0].mxu0
      %v1448 = vadd.f32 0.0, %v1447
      %v1449 = vpop.f32.mrb[0].mxu0
      %v1450 = vpop.f32.mrb[0].mxu0
      %v1451 = vadd.f32 0.0, %v1450
      %v1452 = vpop.f32.mrb[0].mxu0
      %1453 = vmatprep.mubr.bf16.mxu0 0
      %1454 = vmatmul.mubr.bf16.gmra.mrb[0].mxu0 %v1218
      %v1455 = vpop.f32.mrb[0].mxu0
      %v1456 = vadd.f32 0.0, %v1455
      %v1457 = vpop.f32.mrb[0].mxu0
      %v1458 = vpop.f32.mrb[0].mxu0
      %v1459 = vadd.f32 0.0, %v1458
      %v1460 = vpop.f32.mrb[0].mxu0
      %1461 = vdwg.mxu0
      %v1462 = vadd.f32 %v1003, %v1320
      %v1463 = vadd.f32 %v1006, %v1323
      %v1464 = vadd.f32 %v1011, %v1328
      %v1465 = vadd.f32 %v1014, %v1331
      %v1466 = vadd.f32 %v1019, %v1336
      %v1467 = vadd.f32 %v1022, %v1339
      %v1468 = vadd.f32 %v1027, %v1344
      %v1469 = vadd.f32 %v1030, %v1347
      %v1470 = vadd.f32 %v1035, %v1352
      %v1471 = vadd.f32 %v1038, %v1355
      %v1472 = vadd.f32 %v1043, %v1360
      %v1473 = vadd.f32 %v1046, %v1363
      %v1474 = vadd.f32 %v1051, %v1368
      %v1475 = vadd.f32 %v1054, %v1371
      %v1476 = vadd.f32 %v1059, %v1376
      %v1477 = vadd.f32 %v1062, %v1379
      %v1478 = vadd.f32 %v1067, %v1384
      %v1479 = vadd.f32 %v1070, %v1387
      %v1480 = vadd.f32 %v1075, %v1392
      %v1481 = vadd.f32 %v1078, %v1395
      %v1482 = vadd.f32 %v1083, %v1400
      %v1483 = vadd.f32 %v1086, %v1403
      %v1484 = vadd.f32 %v1091, %v1408
      %v1485 = vadd.f32 %v1094, %v1411
      %v1486 = vadd.f32 %v1099, %v1416
      %v1487 = vadd.f32 %v1102, %v1419
      %v1488 = vadd.f32 %v1107, %v1424
      %v1489 = vadd.f32 %v1110, %v1427
      %v1490 = vadd.f32 %v1115, %v1432
      %v1491 = vadd.f32 %v1118, %v1435
      %v1492 = vadd.f32 %v1123, %v1440
      %v1493 = vadd.f32 %v1126, %v1443
      %v1494 = vadd.f32 %v1131, %v1448
      %v1495 = vadd.f32 %v1134, %v1451
      %v1496 = vadd.f32 %v1139, %v1456
      %v1497 = vadd.f32 %v1142, %v1459
      %v1498 = vld [vmem:[#allocation2 + $0x8] sm:$0xfe]
      %v1499 = vld [vmem:[#allocation2 + $0x10] sm:$0xff]
      %v1500 = vld [vmem:[#allocation2 + $0x18] sm:$0xff]
      %v1501 = vld [vmem:[#allocation2 + $0x20] sm:$0xff]
      %v1502 = vld [vmem:[#allocation2 + $0x28] sm:$0xff]
      %v1503 = vld [vmem:[#allocation2 + $0x30] sm:$0xff]
      %v1504 = vld [vmem:[#allocation2 + $0x38] sm:$0xff]
      %v1505 = vld [vmem:[#allocation2 + $0x40] sm:$0xff]
      %v1506 = vld [vmem:[#allocation2 + $0x48] sm:$0xff]
      %v1507 = vld [vmem:[#allocation2 + $0x50] sm:$0xff]
      %v1508 = vld [vmem:[#allocation2 + $0x58] sm:$0xff]
      %v1509 = vld [vmem:[#allocation2 + $0x60] sm:$0xff]
      %v1510 = vld [vmem:[#allocation2 + $0x68] sm:$0xff]
      %v1511 = vld [vmem:[#allocation2 + $0x70] sm:$0xff]
      %v1512 = vld [vmem:[#allocation2 + $0x78] sm:$0xff]
      %v1513 = vld [vmem:[#allocation2 + $0x80] sm:$0xff]
      %v1514 = vld [vmem:[#allocation2 + $0x88] sm:$0xff]
      %v1515 = vld [vmem:[#allocation2 + $0x90] sm:$0xff]
      %v1516 = vld [vmem:[#allocation2 + $0x98] sm:$0x1]
      %v1517 = vld [vmem:[%s2 + $0xc0] sm:$0xf]
      %v1518 = vld [vmem:[%s2 + $0xc4] sm:$0xf]
      %v1519 = vld [vmem:[%s2 + $0xc8] sm:$0xf]
      %v1520 = vld [vmem:[%s2 + $0xcc] sm:$0xf]
      %v1521 = vld [vmem:[%s2 + $0xd0] sm:$0xf]
      %v1522 = vld [vmem:[%s2 + $0xd4] sm:$0xf]
      %v1523 = vld [vmem:[%s2 + $0xd8] sm:$0xf]
      %v1524 = vld [vmem:[%s2 + $0xdc] sm:$0xf]
      %v1525 = vld [vmem:[%s2 + $0xe0] sm:$0xf]
      %v1526 = vld [vmem:[%s2 + $0xe4] sm:$0xf]
      %v1527 = vld [vmem:[%s2 + $0xe8] sm:$0xf]
      %v1528 = vld [vmem:[%s2 + $0xec] sm:$0xf]
      %v1529 = vld [vmem:[%s2 + $0xf0] sm:$0xf]
      %v1530 = vld [vmem:[%s2 + $0xf4] sm:$0xf]
      %v1531 = vld [vmem:[%s2 + $0xf8] sm:$0xf]
      %v1532 = vld [vmem:[%s2 + $0xfc] sm:$0xf]
      %v1552 = vrot.slane %v1498, 1
      %v1553 = vrot.slane %v1499, 1
      %v1554 = vsel %vm1181, %v1552, %v1553
      %v1555 = vrot.slane %v1500, 1
      %v1556 = vsel %vm1181, %v1553, %v1555
      %v1557 = vrot.slane %v1501, 1
      %v1558 = vsel %vm1181, %v1555, %v1557
      %v1559 = vrot.slane %v1502, 1
      %v1560 = vsel %vm1181, %v1557, %v1559
      %v1561 = vrot.slane %v1503, 1
      %v1562 = vsel %vm1181, %v1559, %v1561
      %v1563 = vrot.slane %v1504, 1
      %v1564 = vsel %vm1181, %v1561, %v1563
      %v1565 = vrot.slane %v1505, 1
      %v1566 = vsel %vm1181, %v1563, %v1565
      %v1567 = vrot.slane %v1506, 1
      %v1568 = vsel %vm1181, %v1565, %v1567
      %v1569 = vrot.slane %v1507, 1
      %v1570 = vsel %vm1181, %v1567, %v1569
      %v1571 = vrot.slane %v1508, 1
      %v1572 = vsel %vm1181, %v1569, %v1571
      %v1573 = vrot.slane %v1509, 1
      %v1574 = vsel %vm1181, %v1571, %v1573
      %v1575 = vrot.slane %v1510, 1
      %v1576 = vsel %vm1181, %v1573, %v1575
      %v1577 = vrot.slane %v1511, 1
      %v1578 = vsel %vm1181, %v1575, %v1577
      %v1579 = vrot.slane %v1512, 1
      %v1580 = vsel %vm1181, %v1577, %v1579
      %v1581 = vrot.slane %v1513, 1
      %v1582 = vsel %vm1181, %v1579, %v1581
      %v1583 = vrot.slane %v1514, 1
      %v1584 = vsel %vm1181, %v1581, %v1583
      %v1585 = vrot.slane %v1515, 1
      %v1586 = vsel %vm1181, %v1583, %v1585
      %v1587 = vrot.slane %v1516, 1
      %v1588 = vsel %vm1181, %v1585, %v1587
      %v1623 = vunpack.c.l.b16 %v1517
      %v1624 = vunpack.c.l.b16 %v1518
      %v1625 = vunpack.c.l.b16 %v1519
      %v1626 = vunpack.c.l.b16 %v1520
      %v1627 = vunpack.c.l.b16 %v1521
      %v1628 = vunpack.c.l.b16 %v1522
      %v1629 = vunpack.c.l.b16 %v1523
      %v1630 = vunpack.c.l.b16 %v1524
      %v1631 = vunpack.c.l.b16 %v1525
      %v1632 = vunpack.c.l.b16 %v1526
      %v1633 = vunpack.c.l.b16 %v1527
      %v1634 = vunpack.c.l.b16 %v1528
      %v1635 = vunpack.c.l.b16 %v1529
      %v1636 = vunpack.c.l.b16 %v1530
      %v1637 = vunpack.c.l.b16 %v1531
      %v1638 = vunpack.c.l.b16 %v1532
      %v1639 = vpack.c.b16 %v1624, %v1623
      %v1640 = vpack.c.b16 %v1626, %v1625
      %v1641 = vpack.c.b16 %v1628, %v1627
      %v1642 = vpack.c.b16 %v1630, %v1629
      %v1643 = vpack.c.b16 %v1632, %v1631
      %v1644 = vpack.c.b16 %v1634, %v1633
      %v1645 = vpack.c.b16 %v1636, %v1635
      %v1646 = vpack.c.b16 %v1638, %v1637
      %1655 = vmatprep.subr.bf16.mxu0 0
      %1656 = vmatpush1.bf16.msra.mxu0 %v1639
      %1657 = vmatprep.subr.bf16.mxu0 0
      %1658 = vmatpush1.bf16.msra.mxu0 %v1640
      %1659 = vmatprep.subr.bf16.mxu0 0
      %1660 = vmatpush1.bf16.msra.mxu0 %v1641
      %1661 = vmatprep.subr.bf16.mxu0 0
      %1662 = vmatpush1.bf16.msra.mxu0 %v1642
      %1663 = vmatprep.subr.bf16.mxu0 0
      %1664 = vmatpush1.bf16.msra.mxu0 %v1643
      %1665 = vmatprep.subr.bf16.mxu0 0
      %1666 = vmatpush1.bf16.msra.mxu0 %v1644
      %1667 = vmatprep.subr.bf16.mxu0 0
      %1668 = vmatpush1.bf16.msra.mxu0 %v1645
      %1669 = vmatprep.subr.bf16.mxu0 0
      %1670 = vmatpush1.bf16.msra.mxu0 %v1646
      %1671 = vmatprep.subr.bf16.mxu0 0
      %1672 = vmatpush1.bf16.msra.mxu0 0
      %1673 = vmatprep.subr.bf16.mxu0 0
      %1674 = vmatpush1.bf16.msra.mxu0 0
      %1675 = vmatprep.subr.bf16.mxu0 0
      %1676 = vmatpush1.bf16.msra.mxu0 0
      %1677 = vmatprep.subr.bf16.mxu0 0
      %1678 = vmatpush1.bf16.msra.mxu0 0
      %1679 = vmatprep.subr.bf16.mxu0 0
      %1680 = vmatpush1.bf16.msra.mxu0 0
      %1681 = vmatprep.subr.bf16.mxu0 0
      %1682 = vmatpush1.bf16.msra.mxu0 0
      %1683 = vmatprep.subr.bf16.mxu0 0
      %1684 = vmatpush1.bf16.msra.mxu0 0
      %1685 = vmatprep.subr.bf16.mxu0 0
      %1686 = vmatpush1.bf16.msra.mxu0 0
      %1687 = vmatprep.mubr.bf16.mxu0 0
      %1688 = vmatmul.mubr.bf16.gmra.mrb[0].mxu0 %v1554
      %v1689 = vpop.f32.mrb[0].mxu0
      %v1690 = vadd.f32 0.0, %v1689
      %v1691 = vpop.f32.mrb[0].mxu0
      %v1692 = vpop.f32.mrb[0].mxu0
      %v1693 = vadd.f32 0.0, %v1692
      %v1694 = vpop.f32.mrb[0].mxu0
      %1695 = vmatprep.mubr.bf16.mxu0 0
      %1696 = vmatmul.mubr.bf16.gmra.mrb[0].mxu0 %v1556
      %v1697 = vpop.f32.mrb[0].mxu0
      %v1698 = vadd.f32 0.0, %v1697
      %v1699 = vpop.f32.mrb[0].mxu0
      %v1700 = vpop.f32.mrb[0].mxu0
      %v1701 = vadd.f32 0.0, %v1700
      %v1702 = vpop.f32.mrb[0].mxu0
      %1703 = vmatprep.mubr.bf16.mxu0 0
      %1704 = vmatmul.mubr.bf16.gmra.mrb[0].mxu0 %v1558
      %v1705 = vpop.f32.mrb[0].mxu0
      %v1706 = vadd.f32 0.0, %v1705
      %v1707 = vpop.f32.mrb[0].mxu0
      %v1708 = vpop.f32.mrb[0].mxu0
      %v1709 = vadd.f32 0.0, %v1708
      %v1710 = vpop.f32.mrb[0].mxu0
      %1711 = vmatprep.mubr.bf16.mxu0 0
      %1712 = vmatmul.mubr.bf16.gmra.mrb[0].mxu0 %v1560
      %v1713 = vpop.f32.mrb[0].mxu0
      %v1714 = vadd.f32 0.0, %v1713
      %v1715 = vpop.f32.mrb[0].mxu0
      %v1716 = vpop.f32.mrb[0].mxu0
      %v1717 = vadd.f32 0.0, %v1716
      %v1718 = vpop.f32.mrb[0].mxu0
      %1719 = vmatprep.mubr.bf16.mxu0 0
      %1720 = vmatmul.mubr.bf16.gmra.mrb[0].mxu0 %v1562
      %v1721 = vpop.f32.mrb[0].mxu0
      %v1722 = vadd.f32 0.0, %v1721
      %v1723 = vpop.f32.mrb[0].mxu0
      %v1724 = vpop.f32.mrb[0].mxu0
      %v1725 = vadd.f32 0.0, %v1724
      %v1726 = vpop.f32.mrb[0].mxu0
      %1727 = vmatprep.mubr.bf16.mxu0 0
      %1728 = vmatmul.mubr.bf16.gmra.mrb[0].mxu0 %v1564
      %v1729 = vpop.f32.mrb[0].mxu0
      %v1730 = vadd.f32 0.0, %v1729
      %v1731 = vpop.f32.mrb[0].mxu0
      %v1732 = vpop.f32.mrb[0].mxu0
      %v1733 = vadd.f32 0.0, %v1732
      %v1734 = vpop.f32.mrb[0].mxu0
      %1735 = vmatprep.mubr.bf16.mxu0 0
      %1736 = vmatmul.mubr.bf16.gmra.mrb[0].mxu0 %v1566
      %v1737 = vpop.f32.mrb[0].mxu0
      %v1738 = vadd.f32 0.0, %v1737
      %v1739 = vpop.f32.mrb[0].mxu0
      %v1740 = vpop.f32.mrb[0].mxu0
      %v1741 = vadd.f32 0.0, %v1740
      %v1742 = vpop.f32.mrb[0].mxu0
      %1743 = vmatprep.mubr.bf16.mxu0 0
      %1744 = vmatmul.mubr.bf16.gmra.mrb[0].mxu0 %v1568
      %v1745 = vpop.f32.mrb[0].mxu0
      %v1746 = vadd.f32 0.0, %v1745
      %v1747 = vpop.f32.mrb[0].mxu0
      %v1748 = vpop.f32.mrb[0].mxu0
      %v1749 = vadd.f32 0.0, %v1748
      %v1750 = vpop.f32.mrb[0].mxu0
      %1751 = vmatprep.mubr.bf16.mxu0 0
      %1752 = vmatmul.mubr.bf16.gmra.mrb[0].mxu0 %v1570
      %v1753 = vpop.f32.mrb[0].mxu0
      %v1754 = vadd.f32 0.0, %v1753
      %v1755 = vpop.f32.mrb[0].mxu0
      %v1756 = vpop.f32.mrb[0].mxu0
      %v1757 = vadd.f32 0.0, %v1756
      %v1758 = vpop.f32.mrb[0].mxu0
      %1759 = vmatprep.mubr.bf16.mxu0 0
      %1760 = vmatmul.mubr.bf16.gmra.mrb[0].mxu0 %v1572
      %v1761 = vpop.f32.mrb[0].mxu0
      %v1762 = vadd.f32 0.0, %v1761
      %v1763 = vpop.f32.mrb[0].mxu0
      %v1764 = vpop.f32.mrb[0].mxu0
      %v1765 = vadd.f32 0.0, %v1764
      %v1766 = vpop.f32.mrb[0].mxu0
      %1767 = vmatprep.mubr.bf16.mxu0 0
      %1768 = vmatmul.mubr.bf16.gmra.mrb[0].mxu0 %v1574
      %v1769 = vpop.f32.mrb[0].mxu0
      %v1770 = vadd.f32 0.0, %v1769
      %v1771 = vpop.f32.mrb[0].mxu0
      %v1772 = vpop.f32.mrb[0].mxu0
      %v1773 = vadd.f32 0.0, %v1772
      %v1774 = vpop.f32.mrb[0].mxu0
      %1775 = vmatprep.mubr.bf16.mxu0 0
      %1776 = vmatmul.mubr.bf16.gmra.mrb[0].mxu0 %v1576
      %v1777 = vpop.f32.mrb[0].mxu0
      %v1778 = vadd.f32 0.0, %v1777
      %v1779 = vpop.f32.mrb[0].mxu0
      %v1780 = vpop.f32.mrb[0].mxu0
      %v1781 = vadd.f32 0.0, %v1780
      %v1782 = vpop.f32.mrb[0].mxu0
      %1783 = vmatprep.mubr.bf16.mxu0 0
      %1784 = vmatmul.mubr.bf16.gmra.mrb[0].mxu0 %v1578
      %v1785 = vpop.f32.mrb[0].mxu0
      %v1786 = vadd.f32 0.0, %v1785
      %v1787 = vpop.f32.mrb[0].mxu0
      %v1788 = vpop.f32.mrb[0].mxu0
      %v1789 = vadd.f32 0.0, %v1788
      %v1790 = vpop.f32.mrb[0].mxu0
      %1791 = vmatprep.mubr.bf16.mxu0 0
      %1792 = vmatmul.mubr.bf16.gmra.mrb[0].mxu0 %v1580
      %v1793 = vpop.f32.mrb[0].mxu0
      %v1794 = vadd.f32 0.0, %v1793
      %v1795 = vpop.f32.mrb[0].mxu0
      %v1796 = vpop.f32.mrb[0].mxu0
      %v1797 = vadd.f32 0.0, %v1796
      %v1798 = vpop.f32.mrb[0].mxu0
      %1799 = vmatprep.mubr.bf16.mxu0 0
      %1800 = vmatmul.mubr.bf16.gmra.mrb[0].mxu0 %v1582
      %v1801 = vpop.f32.mrb[0].mxu0
      %v1802 = vadd.f32 0.0, %v1801
      %v1803 = vpop.f32.mrb[0].mxu0
      %v1804 = vpop.f32.mrb[0].mxu0
      %v1805 = vadd.f32 0.0, %v1804
      %v1806 = vpop.f32.mrb[0].mxu0
      %1807 = vmatprep.mubr.bf16.mxu0 0
      %1808 = vmatmul.mubr.bf16.gmra.mrb[0].mxu0 %v1584
      %v1809 = vpop.f32.mrb[0].mxu0
      %v1810 = vadd.f32 0.0, %v1809
      %v1811 = vpop.f32.mrb[0].mxu0
      %v1812 = vpop.f32.mrb[0].mxu0
      %v1813 = vadd.f32 0.0, %v1812
      %v1814 = vpop.f32.mrb[0].mxu0
      %1815 = vmatprep.mubr.bf16.mxu0 0
      %1816 = vmatmul.mubr.bf16.gmra.mrb[0].mxu0 %v1586
      %v1817 = vpop.f32.mrb[0].mxu0
      %v1818 = vadd.f32 0.0, %v1817
      %v1819 = vpop.f32.mrb[0].mxu0
      %v1820 = vpop.f32.mrb[0].mxu0
      %v1821 = vadd.f32 0.0, %v1820
      %v1822 = vpop.f32.mrb[0].mxu0
      %1823 = vmatprep.mubr.bf16.mxu0 0
      %1824 = vmatmul.mubr.bf16.gmra.mrb[0].mxu0 %v1588
      %v1825 = vpop.f32.mrb[0].mxu0
      %v1826 = vadd.f32 0.0, %v1825
      %v1827 = vpop.f32.mrb[0].mxu0
      %v1828 = vpop.f32.mrb[0].mxu0
      %v1829 = vadd.f32 0.0, %v1828
      %v1830 = vpop.f32.mrb[0].mxu0
      %1831 = vdwg.mxu0
      %v1832 = vadd.f32 %v1462, %v1690
      %v1833 = vadd.f32 %v1463, %v1693
      %v1834 = vadd.f32 %v1464, %v1698
      %v1835 = vadd.f32 %v1465, %v1701
      %v1836 = vadd.f32 %v1466, %v1706
      %v1837 = vadd.f32 %v1467, %v1709
      %v1838 = vadd.f32 %v1468, %v1714
      %v1839 = vadd.f32 %v1469, %v1717
      %v1840 = vadd.f32 %v1470, %v1722
      %v1841 = vadd.f32 %v1471, %v1725
      %v1842 = vadd.f32 %v1472, %v1730
      %v1843 = vadd.f32 %v1473, %v1733
      %v1844 = vadd.f32 %v1474, %v1738
      %v1845 = vadd.f32 %v1475, %v1741
      %v1846 = vadd.f32 %v1476, %v1746
      %v1847 = vadd.f32 %v1477, %v1749
      %v1848 = vadd.f32 %v1478, %v1754
      %v1849 = vadd.f32 %v1479, %v1757
      %v1850 = vadd.f32 %v1480, %v1762
      %v1851 = vadd.f32 %v1481, %v1765
      %v1852 = vadd.f32 %v1482, %v1770
      %v1853 = vadd.f32 %v1483, %v1773
      %v1854 = vadd.f32 %v1484, %v1778
      %v1855 = vadd.f32 %v1485, %v1781
      %v1856 = vadd.f32 %v1486, %v1786
      %v1857 = vadd.f32 %v1487, %v1789
      %v1858 = vadd.f32 %v1488, %v1794
      %v1859 = vadd.f32 %v1489, %v1797
      %v1860 = vadd.f32 %v1490, %v1802
      %v1861 = vadd.f32 %v1491, %v1805
      %v1862 = vadd.f32 %v1492, %v1810
      %v1863 = vadd.f32 %v1493, %v1813
      %v1864 = vadd.f32 %v1494, %v1818
      %v1865 = vadd.f32 %v1495, %v1821
      %v1866 = vadd.f32 %v1496, %v1826
      %v1867 = vadd.f32 %v1497, %v1829
      %v1868 = vld [vmem:[#allocation2 + $0x98] sm:$0x3]
      %v1869 = vld [vmem:[%s2 + $0x100] sm:$0xf]
      %v1870 = vld [vmem:[%s2 + $0x104] sm:$0xf]
      %v1871 = vld [vmem:[%s2 + $0x108] sm:$0xf]
      %v1872 = vld [vmem:[%s2 + $0x10c] sm:$0xf]
      %v1873 = vld [vmem:[%s2 + $0x110] sm:$0xf]
      %v1874 = vld [vmem:[%s2 + $0x114] sm:$0xf]
      %v1875 = vld [vmem:[%s2 + $0x118] sm:$0xf]
      %v1876 = vld [vmem:[%s2 + $0x11c] sm:$0xf]
      %v1877 = vld [vmem:[%s2 + $0x120] sm:$0xf]
      %v1878 = vld [vmem:[%s2 + $0x124] sm:$0xf]
      %v1879 = vld [vmem:[%s2 + $0x128] sm:$0xf]
      %v1880 = vld [vmem:[%s2 + $0x12c] sm:$0xf]
      %v1881 = vld [vmem:[%s2 + $0x130] sm:$0xf]
      %v1882 = vld [vmem:[%s2 + $0x134] sm:$0xf]
      %v1883 = vld [vmem:[%s2 + $0x138] sm:$0xf]
      %v1884 = vld [vmem:[%s2 + $0x13c] sm:$0xf]
      %vm1885 = vsmask.f32 6400
      %v1887 = vshrl.u32 %v1498, 16
      %v1889 = vrot.slane %v1887, 1
      %v1890 = vshll.u32 %v1498, 16
      %v1892 = vrot.slane %v1890, 2
      %v1893 = vor.u32 %v1889, %v1892
      %v1895 = vshrl.u32 %v1499, 16
      %v1897 = vrot.slane %v1895, 1
      %v1898 = vshll.u32 %v1499, 16
      %v1900 = vrot.slane %v1898, 2
      %v1901 = vor.u32 %v1897, %v1900
      %v1902 = vsel %vm1885, %v1893, %v1901
      %v1904 = vshrl.u32 %v1500, 16
      %v1906 = vrot.slane %v1904, 1
      %v1907 = vshll.u32 %v1500, 16
      %v1909 = vrot.slane %v1907, 2
      %v1910 = vor.u32 %v1906, %v1909
      %v1911 = vsel %vm1885, %v1901, %v1910
      %v1913 = vshrl.u32 %v1501, 16
      %v1915 = vrot.slane %v1913, 1
      %v1916 = vshll.u32 %v1501, 16
      %v1918 = vrot.slane %v1916, 2
      %v1919 = vor.u32 %v1915, %v1918
      %v1920 = vsel %vm1885, %v1910, %v1919
      %v1922 = vshrl.u32 %v1502, 16
      %v1924 = vrot.slane %v1922, 1
      %v1925 = vshll.u32 %v1502, 16
      %v1927 = vrot.slane %v1925, 2
      %v1928 = vor.u32 %v1924, %v1927
      %v1929 = vsel %vm1885, %v1919, %v1928
      %v1931 = vshrl.u32 %v1503, 16
      %v1933 = vrot.slane %v1931, 1
      %v1934 = vshll.u32 %v1503, 16
      %v1936 = vrot.slane %v1934, 2
      %v1937 = vor.u32 %v1933, %v1936
      %v1938 = vsel %vm1885, %v1928, %v1937
      %v1940 = vshrl.u32 %v1504, 16
      %v1942 = vrot.slane %v1940, 1
      %v1943 = vshll.u32 %v1504, 16
      %v1945 = vrot.slane %v1943, 2
      %v1946 = vor.u32 %v1942, %v1945
      %v1947 = vsel %vm1885, %v1937, %v1946
      %v1949 = vshrl.u32 %v1505, 16
      %v1951 = vrot.slane %v1949, 1
      %v1952 = vshll.u32 %v1505, 16
      %v1954 = vrot.slane %v1952, 2
      %v1955 = vor.u32 %v1951, %v1954
      %v1956 = vsel %vm1885, %v1946, %v1955
      %v1958 = vshrl.u32 %v1506, 16
      %v1960 = vrot.slane %v1958, 1
      %v1961 = vshll.u32 %v1506, 16
      %v1963 = vrot.slane %v1961, 2
      %v1964 = vor.u32 %v1960, %v1963
      %v1965 = vsel %vm1885, %v1955, %v1964
      %v1967 = vshrl.u32 %v1507, 16
      %v1969 = vrot.slane %v1967, 1
      %v1970 = vshll.u32 %v1507, 16
      %v1972 = vrot.slane %v1970, 2
      %v1973 = vor.u32 %v1969, %v1972
      %v1974 = vsel %vm1885, %v1964, %v1973
      %v1976 = vshrl.u32 %v1508, 16
      %v1978 = vrot.slane %v1976, 1
      %v1979 = vshll.u32 %v1508, 16
      %v1981 = vrot.slane %v1979, 2
      %v1982 = vor.u32 %v1978, %v1981
      %v1983 = vsel %vm1885, %v1973, %v1982
      %v1985 = vshrl.u32 %v1509, 16
      %v1987 = vrot.slane %v1985, 1
      %v1988 = vshll.u32 %v1509, 16
      %v1990 = vrot.slane %v1988, 2
      %v1991 = vor.u32 %v1987, %v1990
      %v1992 = vsel %vm1885, %v1982, %v1991
      %v1994 = vshrl.u32 %v1510, 16
      %v1996 = vrot.slane %v1994, 1
      %v1997 = vshll.u32 %v1510, 16
      %v1999 = vrot.slane %v1997, 2
      %v2000 = vor.u32 %v1996, %v1999
      %v2001 = vsel %vm1885, %v1991, %v2000
      %v2003 = vshrl.u32 %v1511, 16
      %v2005 = vrot.slane %v2003, 1
      %v2006 = vshll.u32 %v1511, 16
      %v2008 = vrot.slane %v2006, 2
      %v2009 = vor.u32 %v2005, %v2008
      %v2010 = vsel %vm1885, %v2000, %v2009
      %v2012 = vshrl.u32 %v1512, 16
      %v2014 = vrot.slane %v2012, 1
      %v2015 = vshll.u32 %v1512, 16
      %v2017 = vrot.slane %v2015, 2
      %v2018 = vor.u32 %v2014, %v2017
      %v2019 = vsel %vm1885, %v2009, %v2018
      %v2021 = vshrl.u32 %v1513, 16
      %v2023 = vrot.slane %v2021, 1
      %v2024 = vshll.u32 %v1513, 16
      %v2026 = vrot.slane %v2024, 2
      %v2027 = vor.u32 %v2023, %v2026
      %v2028 = vsel %vm1885, %v2018, %v2027
      %v2030 = vshrl.u32 %v1514, 16
      %v2032 = vrot.slane %v2030, 1
      %v2033 = vshll.u32 %v1514, 16
      %v2035 = vrot.slane %v2033, 2
      %v2036 = vor.u32 %v2032, %v2035
      %v2037 = vsel %vm1885, %v2027, %v2036
      %v2039 = vshrl.u32 %v1515, 16
      %v2041 = vrot.slane %v2039, 1
      %v2042 = vshll.u32 %v1515, 16
      %v2044 = vrot.slane %v2042, 2
      %v2045 = vor.u32 %v2041, %v2044
      %v2046 = vsel %vm1885, %v2036, %v2045
      %v2048 = vshrl.u32 %v1868, 16
      %v2050 = vrot.slane %v2048, 1
      %v2051 = vshll.u32 %v1868, 16
      %v2053 = vrot.slane %v2051, 2
      %v2054 = vor.u32 %v2050, %v2053
      %v2055 = vsel %vm1885, %v2045, %v2054
      %v2090 = vunpack.c.l.b16 %v1869
      %v2091 = vunpack.c.l.b16 %v1870
      %v2092 = vunpack.c.l.b16 %v1871
      %v2093 = vunpack.c.l.b16 %v1872
      %v2094 = vunpack.c.l.b16 %v1873
      %v2095 = vunpack.c.l.b16 %v1874
      %v2096 = vunpack.c.l.b16 %v1875
      %v2097 = vunpack.c.l.b16 %v1876
      %v2098 = vunpack.c.l.b16 %v1877
      %v2099 = vunpack.c.l.b16 %v1878
      %v2100 = vunpack.c.l.b16 %v1879
      %v2101 = vunpack.c.l.b16 %v1880
      %v2102 = vunpack.c.l.b16 %v1881
      %v2103 = vunpack.c.l.b16 %v1882
      %v2104 = vunpack.c.l.b16 %v1883
      %v2105 = vunpack.c.l.b16 %v1884
      %v2106 = vpack.c.b16 %v2091, %v2090
      %v2107 = vpack.c.b16 %v2093, %v2092
      %v2108 = vpack.c.b16 %v2095, %v2094
      %v2109 = vpack.c.b16 %v2097, %v2096
      %v2110 = vpack.c.b16 %v2099, %v2098
      %v2111 = vpack.c.b16 %v2101, %v2100
      %v2112 = vpack.c.b16 %v2103, %v2102
      %v2113 = vpack.c.b16 %v2105, %v2104
      %2122 = vmatprep.subr.bf16.mxu0 0
      %2123 = vmatpush1.bf16.msra.mxu0 %v2106
      %2124 = vmatprep.subr.bf16.mxu0 0
      %2125 = vmatpush1.bf16.msra.mxu0 %v2107
      %2126 = vmatprep.subr.bf16.mxu0 0
      %2127 = vmatpush1.bf16.msra.mxu0 %v2108
      %2128 = vmatprep.subr.bf16.mxu0 0
      %2129 = vmatpush1.bf16.msra.mxu0 %v2109
      %2130 = vmatprep.subr.bf16.mxu0 0
      %2131 = vmatpush1.bf16.msra.mxu0 %v2110
      %2132 = vmatprep.subr.bf16.mxu0 0
      %2133 = vmatpush1.bf16.msra.mxu0 %v2111
      %2134 = vmatprep.subr.bf16.mxu0 0
      %2135 = vmatpush1.bf16.msra.mxu0 %v2112
      %2136 = vmatprep.subr.bf16.mxu0 0
      %2137 = vmatpush1.bf16.msra.mxu0 %v2113
      %2138 = vmatprep.subr.bf16.mxu0 0
      %2139 = vmatpush1.bf16.msra.mxu0 0
      %2140 = vmatprep.subr.bf16.mxu0 0
      %2141 = vmatpush1.bf16.msra.mxu0 0
      %2142 = vmatprep.subr.bf16.mxu0 0
      %2143 = vmatpush1.bf16.msra.mxu0 0
      %2144 = vmatprep.subr.bf16.mxu0 0
      %2145 = vmatpush1.bf16.msra.mxu0 0
      %2146 = vmatprep.subr.bf16.mxu0 0
      %2147 = vmatpush1.bf16.msra.mxu0 0
      %2148 = vmatprep.subr.bf16.mxu0 0
      %2149 = vmatpush1.bf16.msra.mxu0 0
      %2150 = vmatprep.subr.bf16.mxu0 0
      %2151 = vmatpush1.bf16.msra.mxu0 0
      %2152 = vmatprep.subr.bf16.mxu0 0
      %2153 = vmatpush1.bf16.msra.mxu0 0
      %2154 = vmatprep.mubr.bf16.mxu0 0
      %2155 = vmatmul.mubr.bf16.gmra.mrb[0].mxu0 %v1902
      %v2156 = vpop.f32.mrb[0].mxu0
      %v2157 = vadd.f32 0.0, %v2156
      %v2158 = vpop.f32.mrb[0].mxu0
      %v2159 = vpop.f32.mrb[0].mxu0
      %v2160 = vadd.f32 0.0, %v2159
      %v2161 = vpop.f32.mrb[0].mxu0
      %2162 = vmatprep.mubr.bf16.mxu0 0
      %2163 = vmatmul.mubr.bf16.gmra.mrb[0].mxu0 %v1911
      %v2164 = vpop.f32.mrb[0].mxu0
      %v2165 = vadd.f32 0.0, %v2164
      %v2166 = vpop.f32.mrb[0].mxu0
      %v2167 = vpop.f32.mrb[0].mxu0
      %v2168 = vadd.f32 0.0, %v2167
      %v2169 = vpop.f32.mrb[0].mxu0
      %2170 = vmatprep.mubr.bf16.mxu0 0
      %2171 = vmatmul.mubr.bf16.gmra.mrb[0].mxu0 %v1920
      %v2172 = vpop.f32.mrb[0].mxu0
      %v2173 = vadd.f32 0.0, %v2172
      %v2174 = vpop.f32.mrb[0].mxu0
      %v2175 = vpop.f32.mrb[0].mxu0
      %v2176 = vadd.f32 0.0, %v2175
      %v2177 = vpop.f32.mrb[0].mxu0
      %2178 = vmatprep.mubr.bf16.mxu0 0
      %2179 = vmatmul.mubr.bf16.gmra.mrb[0].mxu0 %v1929
      %v2180 = vpop.f32.mrb[0].mxu0
      %v2181 = vadd.f32 0.0, %v2180
      %v2182 = vpop.f32.mrb[0].mxu0
      %v2183 = vpop.f32.mrb[0].mxu0
      %v2184 = vadd.f32 0.0, %v2183
      %v2185 = vpop.f32.mrb[0].mxu0
      %2186 = vmatprep.mubr.bf16.mxu0 0
      %2187 = vmatmul.mubr.bf16.gmra.mrb[0].mxu0 %v1938
      %v2188 = vpop.f32.mrb[0].mxu0
      %v2189 = vadd.f32 0.0, %v2188
      %v2190 = vpop.f32.mrb[0].mxu0
      %v2191 = vpop.f32.mrb[0].mxu0
      %v2192 = vadd.f32 0.0, %v2191
      %v2193 = vpop.f32.mrb[0].mxu0
      %2194 = vmatprep.mubr.bf16.mxu0 0
      %2195 = vmatmul.mubr.bf16.gmra.mrb[0].mxu0 %v1947
      %v2196 = vpop.f32.mrb[0].mxu0
      %v2197 = vadd.f32 0.0, %v2196
      %v2198 = vpop.f32.mrb[0].mxu0
      %v2199 = vpop.f32.mrb[0].mxu0
      %v2200 = vadd.f32 0.0, %v2199
      %v2201 = vpop.f32.mrb[0].mxu0
      %2202 = vmatprep.mubr.bf16.mxu0 0
      %2203 = vmatmul.mubr.bf16.gmra.mrb[0].mxu0 %v1956
      %v2204 = vpop.f32.mrb[0].mxu0
      %v2205 = vadd.f32 0.0, %v2204
      %v2206 = vpop.f32.mrb[0].mxu0
      %v2207 = vpop.f32.mrb[0].mxu0
      %v2208 = vadd.f32 0.0, %v2207
      %v2209 = vpop.f32.mrb[0].mxu0
      %2210 = vmatprep.mubr.bf16.mxu0 0
      %2211 = vmatmul.mubr.bf16.gmra.mrb[0].mxu0 %v1965
      %v2212 = vpop.f32.mrb[0].mxu0
      %v2213 = vadd.f32 0.0, %v2212
      %v2214 = vpop.f32.mrb[0].mxu0
      %v2215 = vpop.f32.mrb[0].mxu0
      %v2216 = vadd.f32 0.0, %v2215
      %v2217 = vpop.f32.mrb[0].mxu0
      %2218 = vmatprep.mubr.bf16.mxu0 0
      %2219 = vmatmul.mubr.bf16.gmra.mrb[0].mxu0 %v1974
      %v2220 = vpop.f32.mrb[0].mxu0
      %v2221 = vadd.f32 0.0, %v2220
      %v2222 = vpop.f32.mrb[0].mxu0
      %v2223 = vpop.f32.mrb[0].mxu0
      %v2224 = vadd.f32 0.0, %v2223
      %v2225 = vpop.f32.mrb[0].mxu0
      %2226 = vmatprep.mubr.bf16.mxu0 0
      %2227 = vmatmul.mubr.bf16.gmra.mrb[0].mxu0 %v1983
      %v2228 = vpop.f32.mrb[0].mxu0
      %v2229 = vadd.f32 0.0, %v2228
      %v2230 = vpop.f32.mrb[0].mxu0
      %v2231 = vpop.f32.mrb[0].mxu0
      %v2232 = vadd.f32 0.0, %v2231
      %v2233 = vpop.f32.mrb[0].mxu0
      %2234 = vmatprep.mubr.bf16.mxu0 0
      %2235 = vmatmul.mubr.bf16.gmra.mrb[0].mxu0 %v1992
      %v2236 = vpop.f32.mrb[0].mxu0
      %v2237 = vadd.f32 0.0, %v2236
      %v2238 = vpop.f32.mrb[0].mxu0
      %v2239 = vpop.f32.mrb[0].mxu0
      %v2240 = vadd.f32 0.0, %v2239
      %v2241 = vpop.f32.mrb[0].mxu0
      %2242 = vmatprep.mubr.bf16.mxu0 0
      %2243 = vmatmul.mubr.bf16.gmra.mrb[0].mxu0 %v2001
      %v2244 = vpop.f32.mrb[0].mxu0
      %v2245 = vadd.f32 0.0, %v2244
      %v2246 = vpop.f32.mrb[0].mxu0
      %v2247 = vpop.f32.mrb[0].mxu0
      %v2248 = vadd.f32 0.0, %v2247
      %v2249 = vpop.f32.mrb[0].mxu0
      %2250 = vmatprep.mubr.bf16.mxu0 0
      %2251 = vmatmul.mubr.bf16.gmra.mrb[0].mxu0 %v2010
      %v2252 = vpop.f32.mrb[0].mxu0
      %v2253 = vadd.f32 0.0, %v2252
      %v2254 = vpop.f32.mrb[0].mxu0
      %v2255 = vpop.f32.mrb[0].mxu0
      %v2256 = vadd.f32 0.0, %v2255
      %v2257 = vpop.f32.mrb[0].mxu0
      %2258 = vmatprep.mubr.bf16.mxu0 0
      %2259 = vmatmul.mubr.bf16.gmra.mrb[0].mxu0 %v2019
      %v2260 = vpop.f32.mrb[0].mxu0
      %v2261 = vadd.f32 0.0, %v2260
      %v2262 = vpop.f32.mrb[0].mxu0
      %v2263 = vpop.f32.mrb[0].mxu0
      %v2264 = vadd.f32 0.0, %v2263
      %v2265 = vpop.f32.mrb[0].mxu0
      %2266 = vmatprep.mubr.bf16.mxu0 0
      %2267 = vmatmul.mubr.bf16.gmra.mrb[0].mxu0 %v2028
      %v2268 = vpop.f32.mrb[0].mxu0
      %v2269 = vadd.f32 0.0, %v2268
      %v2270 = vpop.f32.mrb[0].mxu0
      %v2271 = vpop.f32.mrb[0].mxu0
      %v2272 = vadd.f32 0.0, %v2271
      %v2273 = vpop.f32.mrb[0].mxu0
      %2274 = vmatprep.mubr.bf16.mxu0 0
      %2275 = vmatmul.mubr.bf16.gmra.mrb[0].mxu0 %v2037
      %v2276 = vpop.f32.mrb[0].mxu0
      %v2277 = vadd.f32 0.0, %v2276
      %v2278 = vpop.f32.mrb[0].mxu0
      %v2279 = vpop.f32.mrb[0].mxu0
      %v2280 = vadd.f32 0.0, %v2279
      %v2281 = vpop.f32.mrb[0].mxu0
      %2282 = vmatprep.mubr.bf16.mxu0 0
      %2283 = vmatmul.mubr.bf16.gmra.mrb[0].mxu0 %v2046
      %v2284 = vpop.f32.mrb[0].mxu0
      %v2285 = vadd.f32 0.0, %v2284
      %v2286 = vpop.f32.mrb[0].mxu0
      %v2287 = vpop.f32.mrb[0].mxu0
      %v2288 = vadd.f32 0.0, %v2287
      %v2289 = vpop.f32.mrb[0].mxu0
      %2290 = vmatprep.mubr.bf16.mxu0 0
      %2291 = vmatmul.mubr.bf16.gmra.mrb[0].mxu0 %v2055
      %v2292 = vpop.f32.mrb[0].mxu0
      %v2293 = vadd.f32 0.0, %v2292
      %v2294 = vpop.f32.mrb[0].mxu0
      %v2295 = vpop.f32.mrb[0].mxu0
      %v2296 = vadd.f32 0.0, %v2295
      %v2297 = vpop.f32.mrb[0].mxu0
      %2298 = vdwg.mxu0
      %v2299 = vadd.f32 %v1832, %v2157
      %v2300 = vadd.f32 %v1833, %v2160
      %v2301 = vadd.f32 %v1834, %v2165
      %v2302 = vadd.f32 %v1835, %v2168
      %v2303 = vadd.f32 %v1836, %v2173
      %v2304 = vadd.f32 %v1837, %v2176
      %v2305 = vadd.f32 %v1838, %v2181
      %v2306 = vadd.f32 %v1839, %v2184
      %v2307 = vadd.f32 %v1840, %v2189
      %v2308 = vadd.f32 %v1841, %v2192
      %v2309 = vadd.f32 %v1842, %v2197
      %v2310 = vadd.f32 %v1843, %v2200
      %v2311 = vadd.f32 %v1844, %v2205
      %v2312 = vadd.f32 %v1845, %v2208
      %v2313 = vadd.f32 %v1846, %v2213
      %v2314 = vadd.f32 %v1847, %v2216
      %v2315 = vadd.f32 %v1848, %v2221
      %v2316 = vadd.f32 %v1849, %v2224
      %v2317 = vadd.f32 %v1850, %v2229
      %v2318 = vadd.f32 %v1851, %v2232
      %v2319 = vadd.f32 %v1852, %v2237
      %v2320 = vadd.f32 %v1853, %v2240
      %v2321 = vadd.f32 %v1854, %v2245
      %v2322 = vadd.f32 %v1855, %v2248
      %v2323 = vadd.f32 %v1856, %v2253
      %v2324 = vadd.f32 %v1857, %v2256
      %v2325 = vadd.f32 %v1858, %v2261
      %v2326 = vadd.f32 %v1859, %v2264
      %v2327 = vadd.f32 %v1860, %v2269
      %v2328 = vadd.f32 %v1861, %v2272
      %v2329 = vadd.f32 %v1862, %v2277
      %v2330 = vadd.f32 %v1863, %v2280
      %v2331 = vadd.f32 %v1864, %v2285
      %v2332 = vadd.f32 %v1865, %v2288
      %v2333 = vadd.f32 %v1866, %v2293
      %v2334 = vadd.f32 %v1867, %v2296
      %v2335 = vld [vmem:[#allocation2 + $0x8] sm:$0xfc]
      %v2336 = vld [vmem:[%s2 + $0x140] sm:$0xf]
      %v2337 = vld [vmem:[%s2 + $0x144] sm:$0xf]
      %v2338 = vld [vmem:[%s2 + $0x148] sm:$0xf]
      %v2339 = vld [vmem:[%s2 + $0x14c] sm:$0xf]
      %v2340 = vld [vmem:[%s2 + $0x150] sm:$0xf]
      %v2341 = vld [vmem:[%s2 + $0x154] sm:$0xf]
      %v2342 = vld [vmem:[%s2 + $0x158] sm:$0xf]
      %v2343 = vld [vmem:[%s2 + $0x15c] sm:$0xf]
      %v2344 = vld [vmem:[%s2 + $0x160] sm:$0xf]
      %v2345 = vld [vmem:[%s2 + $0x164] sm:$0xf]
      %v2346 = vld [vmem:[%s2 + $0x168] sm:$0xf]
      %v2347 = vld [vmem:[%s2 + $0x16c] sm:$0xf]
      %v2348 = vld [vmem:[%s2 + $0x170] sm:$0xf]
      %v2349 = vld [vmem:[%s2 + $0x174] sm:$0xf]
      %v2350 = vld [vmem:[%s2 + $0x178] sm:$0xf]
      %v2351 = vld [vmem:[%s2 + $0x17c] sm:$0xf]
      %vm2354 = vcmask 1045504
      %v2355 = vrot.slane %v2335, 2
      %v2356 = vrot.slane %v1499, 2
      %v2357 = vsel %vm2354, %v2355, %v2356
      %v2358 = vrot.slane %v1500, 2
      %v2359 = vsel %vm2354, %v2356, %v2358
      %v2360 = vrot.slane %v1501, 2
      %v2361 = vsel %vm2354, %v2358, %v2360
      %v2362 = vrot.slane %v1502, 2
      %v2363 = vsel %vm2354, %v2360, %v2362
      %v2364 = vrot.slane %v1503, 2
      %v2365 = vsel %vm2354, %v2362, %v2364
      %v2366 = vrot.slane %v1504, 2
      %v2367 = vsel %vm2354, %v2364, %v2366
      %v2368 = vrot.slane %v1505, 2
      %v2369 = vsel %vm2354, %v2366, %v2368
      %v2370 = vrot.slane %v1506, 2
      %v2371 = vsel %vm2354, %v2368, %v2370
      %v2372 = vrot.slane %v1507, 2
      %v2373 = vsel %vm2354, %v2370, %v2372
      %v2374 = vrot.slane %v1508, 2
      %v2375 = vsel %vm2354, %v2372, %v2374
      %v2376 = vrot.slane %v1509, 2
      %v2377 = vsel %vm2354, %v2374, %v2376
      %v2378 = vrot.slane %v1510, 2
      %v2379 = vsel %vm2354, %v2376, %v2378
      %v2380 = vrot.slane %v1511, 2
      %v2381 = vsel %vm2354, %v2378, %v2380
      %v2382 = vrot.slane %v1512, 2
      %v2383 = vsel %vm2354, %v2380, %v2382
      %v2384 = vrot.slane %v1513, 2
      %v2385 = vsel %vm2354, %v2382, %v2384
      %v2386 = vrot.slane %v1514, 2
      %v2387 = vsel %vm2354, %v2384, %v2386
      %v2388 = vrot.slane %v1515, 2
      %v2389 = vsel %vm2354, %v2386, %v2388
      %v2390 = vrot.slane %v1868, 2
      %v2391 = vsel %vm2354, %v2388, %v2390
      %v2426 = vunpack.c.l.b16 %v2336
      %v2427 = vunpack.c.l.b16 %v2337
      %v2428 = vunpack.c.l.b16 %v2338
      %v2429 = vunpack.c.l.b16 %v2339
      %v2430 = vunpack.c.l.b16 %v2340
      %v2431 = vunpack.c.l.b16 %v2341
      %v2432 = vunpack.c.l.b16 %v2342
      %v2433 = vunpack.c.l.b16 %v2343
      %v2434 = vunpack.c.l.b16 %v2344
      %v2435 = vunpack.c.l.b16 %v2345
      %v2436 = vunpack.c.l.b16 %v2346
      %v2437 = vunpack.c.l.b16 %v2347
      %v2438 = vunpack.c.l.b16 %v2348
      %v2439 = vunpack.c.l.b16 %v2349
      %v2440 = vunpack.c.l.b16 %v2350
      %v2441 = vunpack.c.l.b16 %v2351
      %v2442 = vpack.c.b16 %v2427, %v2426
      %v2443 = vpack.c.b16 %v2429, %v2428
      %v2444 = vpack.c.b16 %v2431, %v2430
      %v2445 = vpack.c.b16 %v2433, %v2432
      %v2446 = vpack.c.b16 %v2435, %v2434
      %v2447 = vpack.c.b16 %v2437, %v2436
      %v2448 = vpack.c.b16 %v2439, %v2438
      %v2449 = vpack.c.b16 %v2441, %v2440
      %2458 = vmatprep.subr.bf16.mxu0 0
      %2459 = vmatpush1.bf16.msra.mxu0 %v2442
      %2460 = vmatprep.subr.bf16.mxu0 0
      %2461 = vmatpush1.bf16.msra.mxu0 %v2443
      %2462 = vmatprep.subr.bf16.mxu0 0
      %2463 = vmatpush1.bf16.msra.mxu0 %v2444
      %2464 = vmatprep.subr.bf16.mxu0 0
      %2465 = vmatpush1.bf16.msra.mxu0 %v2445
      %2466 = vmatprep.subr.bf16.mxu0 0
      %2467 = vmatpush1.bf16.msra.mxu0 %v2446
      %2468 = vmatprep.subr.bf16.mxu0 0
      %2469 = vmatpush1.bf16.msra.mxu0 %v2447
      %2470 = vmatprep.subr.bf16.mxu0 0
      %2471 = vmatpush1.bf16.msra.mxu0 %v2448
      %2472 = vmatprep.subr.bf16.mxu0 0
      %2473 = vmatpush1.bf16.msra.mxu0 %v2449
      %2474 = vmatprep.subr.bf16.mxu0 0
      %2475 = vmatpush1.bf16.msra.mxu0 0
      %2476 = vmatprep.subr.bf16.mxu0 0
      %2477 = vmatpush1.bf16.msra.mxu0 0
      %2478 = vmatprep.subr.bf16.mxu0 0
      %2479 = vmatpush1.bf16.msra.mxu0 0
      %2480 = vmatprep.subr.bf16.mxu0 0
      %2481 = vmatpush1.bf16.msra.mxu0 0
      %2482 = vmatprep.subr.bf16.mxu0 0
      %2483 = vmatpush1.bf16.msra.mxu0 0
      %2484 = vmatprep.subr.bf16.mxu0 0
      %2485 = vmatpush1.bf16.msra.mxu0 0
      %2486 = vmatprep.subr.bf16.mxu0 0
      %2487 = vmatpush1.bf16.msra.mxu0 0
      %2488 = vmatprep.subr.bf16.mxu0 0
      %2489 = vmatpush1.bf16.msra.mxu0 0
      %2490 = vmatprep.mubr.bf16.mxu0 0
      %2491 = vmatmul.mubr.bf16.gmra.mrb[0].mxu0 %v2357
      %v2492 = vpop.f32.mrb[0].mxu0
      %v2493 = vadd.f32 0.0, %v2492
      %v2494 = vpop.f32.mrb[0].mxu0
      %v2495 = vpop.f32.mrb[0].mxu0
      %v2496 = vadd.f32 0.0, %v2495
      %v2497 = vpop.f32.mrb[0].mxu0
      %2498 = vmatprep.mubr.bf16.mxu0 0
      %2499 = vmatmul.mubr.bf16.gmra.mrb[0].mxu0 %v2359
      %v2500 = vpop.f32.mrb[0].mxu0
      %v2501 = vadd.f32 0.0, %v2500
      %v2502 = vpop.f32.mrb[0].mxu0
      %v2503 = vpop.f32.mrb[0].mxu0
      %v2504 = vadd.f32 0.0, %v2503
      %v2505 = vpop.f32.mrb[0].mxu0
      %2506 = vmatprep.mubr.bf16.mxu0 0
      %2507 = vmatmul.mubr.bf16.gmra.mrb[0].mxu0 %v2361
      %v2508 = vpop.f32.mrb[0].mxu0
      %v2509 = vadd.f32 0.0, %v2508
      %v2510 = vpop.f32.mrb[0].mxu0
      %v2511 = vpop.f32.mrb[0].mxu0
      %v2512 = vadd.f32 0.0, %v2511
      %v2513 = vpop.f32.mrb[0].mxu0
      %2514 = vmatprep.mubr.bf16.mxu0 0
      %2515 = vmatmul.mubr.bf16.gmra.mrb[0].mxu0 %v2363
      %v2516 = vpop.f32.mrb[0].mxu0
      %v2517 = vadd.f32 0.0, %v2516
      %v2518 = vpop.f32.mrb[0].mxu0
      %v2519 = vpop.f32.mrb[0].mxu0
      %v2520 = vadd.f32 0.0, %v2519
      %v2521 = vpop.f32.mrb[0].mxu0
      %2522 = vmatprep.mubr.bf16.mxu0 0
      %2523 = vmatmul.mubr.bf16.gmra.mrb[0].mxu0 %v2365
      %v2524 = vpop.f32.mrb[0].mxu0
      %v2525 = vadd.f32 0.0, %v2524
      %v2526 = vpop.f32.mrb[0].mxu0
      %v2527 = vpop.f32.mrb[0].mxu0
      %v2528 = vadd.f32 0.0, %v2527
      %v2529 = vpop.f32.mrb[0].mxu0
      %2530 = vmatprep.mubr.bf16.mxu0 0
      %2531 = vmatmul.mubr.bf16.gmra.mrb[0].mxu0 %v2367
      %v2532 = vpop.f32.mrb[0].mxu0
      %v2533 = vadd.f32 0.0, %v2532
      %v2534 = vpop.f32.mrb[0].mxu0
      %v2535 = vpop.f32.mrb[0].mxu0
      %v2536 = vadd.f32 0.0, %v2535
      %v2537 = vpop.f32.mrb[0].mxu0
      %2538 = vmatprep.mubr.bf16.mxu0 0
      %2539 = vmatmul.mubr.bf16.gmra.mrb[0].mxu0 %v2369
      %v2540 = vpop.f32.mrb[0].mxu0
      %v2541 = vadd.f32 0.0, %v2540
      %v2542 = vpop.f32.mrb[0].mxu0
      %v2543 = vpop.f32.mrb[0].mxu0
      %v2544 = vadd.f32 0.0, %v2543
      %v2545 = vpop.f32.mrb[0].mxu0
      %2546 = vmatprep.mubr.bf16.mxu0 0
      %2547 = vmatmul.mubr.bf16.gmra.mrb[0].mxu0 %v2371
      %v2548 = vpop.f32.mrb[0].mxu0
      %v2549 = vadd.f32 0.0, %v2548
      %v2550 = vpop.f32.mrb[0].mxu0
      %v2551 = vpop.f32.mrb[0].mxu0
      %v2552 = vadd.f32 0.0, %v2551
      %v2553 = vpop.f32.mrb[0].mxu0
      %2554 = vmatprep.mubr.bf16.mxu0 0
      %2555 = vmatmul.mubr.bf16.gmra.mrb[0].mxu0 %v2373
      %v2556 = vpop.f32.mrb[0].mxu0
      %v2557 = vadd.f32 0.0, %v2556
      %v2558 = vpop.f32.mrb[0].mxu0
      %v2559 = vpop.f32.mrb[0].mxu0
      %v2560 = vadd.f32 0.0, %v2559
      %v2561 = vpop.f32.mrb[0].mxu0
      %2562 = vmatprep.mubr.bf16.mxu0 0
      %2563 = vmatmul.mubr.bf16.gmra.mrb[0].mxu0 %v2375
      %v2564 = vpop.f32.mrb[0].mxu0
      %v2565 = vadd.f32 0.0, %v2564
      %v2566 = vpop.f32.mrb[0].mxu0
      %v2567 = vpop.f32.mrb[0].mxu0
      %v2568 = vadd.f32 0.0, %v2567
      %v2569 = vpop.f32.mrb[0].mxu0
      %2570 = vmatprep.mubr.bf16.mxu0 0
      %2571 = vmatmul.mubr.bf16.gmra.mrb[0].mxu0 %v2377
      %v2572 = vpop.f32.mrb[0].mxu0
      %v2573 = vadd.f32 0.0, %v2572
      %v2574 = vpop.f32.mrb[0].mxu0
      %v2575 = vpop.f32.mrb[0].mxu0
      %v2576 = vadd.f32 0.0, %v2575
      %v2577 = vpop.f32.mrb[0].mxu0
      %2578 = vmatprep.mubr.bf16.mxu0 0
      %2579 = vmatmul.mubr.bf16.gmra.mrb[0].mxu0 %v2379
      %v2580 = vpop.f32.mrb[0].mxu0
      %v2581 = vadd.f32 0.0, %v2580
      %v2582 = vpop.f32.mrb[0].mxu0
      %v2583 = vpop.f32.mrb[0].mxu0
      %v2584 = vadd.f32 0.0, %v2583
      %v2585 = vpop.f32.mrb[0].mxu0
      %2586 = vmatprep.mubr.bf16.mxu0 0
      %2587 = vmatmul.mubr.bf16.gmra.mrb[0].mxu0 %v2381
      %v2588 = vpop.f32.mrb[0].mxu0
      %v2589 = vadd.f32 0.0, %v2588
      %v2590 = vpop.f32.mrb[0].mxu0
      %v2591 = vpop.f32.mrb[0].mxu0
      %v2592 = vadd.f32 0.0, %v2591
      %v2593 = vpop.f32.mrb[0].mxu0
      %2594 = vmatprep.mubr.bf16.mxu0 0
      %2595 = vmatmul.mubr.bf16.gmra.mrb[0].mxu0 %v2383
      %v2596 = vpop.f32.mrb[0].mxu0
      %v2597 = vadd.f32 0.0, %v2596
      %v2598 = vpop.f32.mrb[0].mxu0
      %v2599 = vpop.f32.mrb[0].mxu0
      %v2600 = vadd.f32 0.0, %v2599
      %v2601 = vpop.f32.mrb[0].mxu0
      %2602 = vmatprep.mubr.bf16.mxu0 0
      %2603 = vmatmul.mubr.bf16.gmra.mrb[0].mxu0 %v2385
      %v2604 = vpop.f32.mrb[0].mxu0
      %v2605 = vadd.f32 0.0, %v2604
      %v2606 = vpop.f32.mrb[0].mxu0
      %v2607 = vpop.f32.mrb[0].mxu0
      %v2608 = vadd.f32 0.0, %v2607
      %v2609 = vpop.f32.mrb[0].mxu0
      %2610 = vmatprep.mubr.bf16.mxu0 0
      %2611 = vmatmul.mubr.bf16.gmra.mrb[0].mxu0 %v2387
      %v2612 = vpop.f32.mrb[0].mxu0
      %v2613 = vadd.f32 0.0, %v2612
      %v2614 = vpop.f32.mrb[0].mxu0
      %v2615 = vpop.f32.mrb[0].mxu0
      %v2616 = vadd.f32 0.0, %v2615
      %v2617 = vpop.f32.mrb[0].mxu0
      %2618 = vmatprep.mubr.bf16.mxu0 0
      %2619 = vmatmul.mubr.bf16.gmra.mrb[0].mxu0 %v2389
      %v2620 = vpop.f32.mrb[0].mxu0
      %v2621 = vadd.f32 0.0, %v2620
      %v2622 = vpop.f32.mrb[0].mxu0
      %v2623 = vpop.f32.mrb[0].mxu0
      %v2624 = vadd.f32 0.0, %v2623
      %v2625 = vpop.f32.mrb[0].mxu0
      %2626 = vmatprep.mubr.bf16.mxu0 0
      %2627 = vmatmul.mubr.bf16.gmra.mrb[0].mxu0 %v2391
      %v2628 = vpop.f32.mrb[0].mxu0
      %v2629 = vadd.f32 0.0, %v2628
      %v2630 = vpop.f32.mrb[0].mxu0
      %v2631 = vpop.f32.mrb[0].mxu0
      %v2632 = vadd.f32 0.0, %v2631
      %v2633 = vpop.f32.mrb[0].mxu0
      %2634 = vdwg.mxu0
      %v2635 = vadd.f32 %v2299, %v2493
      %v2636 = vadd.f32 %v2300, %v2496
      %v2637 = vadd.f32 %v2301, %v2501
      %v2638 = vadd.f32 %v2302, %v2504
      %v2639 = vadd.f32 %v2303, %v2509
      %v2640 = vadd.f32 %v2304, %v2512
      %v2641 = vadd.f32 %v2305, %v2517
      %v2642 = vadd.f32 %v2306, %v2520
      %v2643 = vadd.f32 %v2307, %v2525
      %v2644 = vadd.f32 %v2308, %v2528
      %v2645 = vadd.f32 %v2309, %v2533
      %v2646 = vadd.f32 %v2310, %v2536
      %v2647 = vadd.f32 %v2311, %v2541
      %v2648 = vadd.f32 %v2312, %v2544
      %v2649 = vadd.f32 %v2313, %v2549
      %v2650 = vadd.f32 %v2314, %v2552
      %v2651 = vadd.f32 %v2315, %v2557
      %v2652 = vadd.f32 %v2316, %v2560
      %v2653 = vadd.f32 %v2317, %v2565
      %v2654 = vadd.f32 %v2318, %v2568
      %v2655 = vadd.f32 %v2319, %v2573
      %v2656 = vadd.f32 %v2320, %v2576
      %v2657 = vadd.f32 %v2321, %v2581
      %v2658 = vadd.f32 %v2322, %v2584
      %v2659 = vadd.f32 %v2323, %v2589
      %v2660 = vadd.f32 %v2324, %v2592
      %v2661 = vadd.f32 %v2325, %v2597
      %v2662 = vadd.f32 %v2326, %v2600
      %v2663 = vadd.f32 %v2327, %v2605
      %v2664 = vadd.f32 %v2328, %v2608
      %v2665 = vadd.f32 %v2329, %v2613
      %v2666 = vadd.f32 %v2330, %v2616
      %v2667 = vadd.f32 %v2331, %v2621
      %v2668 = vadd.f32 %v2332, %v2624
      %v2669 = vadd.f32 %v2333, %v2629
      %v2670 = vadd.f32 %v2334, %v2632
      %v2671 = vld [vmem:[#allocation2 + $0x10] sm:$0xfc]
      %v2672 = vld [vmem:[#allocation2 + $0x18] sm:$0xff]
      %v2673 = vld [vmem:[#allocation2 + $0x20] sm:$0xff]
      %v2674 = vld [vmem:[#allocation2 + $0x28] sm:$0xff]
      %v2675 = vld [vmem:[#allocation2 + $0x30] sm:$0xff]
      %v2676 = vld [vmem:[#allocation2 + $0x38] sm:$0xff]
      %v2677 = vld [vmem:[#allocation2 + $0x40] sm:$0xff]
      %v2678 = vld [vmem:[#allocation2 + $0x48] sm:$0xff]
      %v2679 = vld [vmem:[#allocation2 + $0x50] sm:$0xff]
      %v2680 = vld [vmem:[#allocation2 + $0x58] sm:$0xff]
      %v2681 = vld [vmem:[#allocation2 + $0x60] sm:$0xff]
      %v2682 = vld [vmem:[#allocation2 + $0x68] sm:$0xff]
      %v2683 = vld [vmem:[#allocation2 + $0x70] sm:$0xff]
      %v2684 = vld [vmem:[#allocation2 + $0x78] sm:$0xff]
      %v2685 = vld [vmem:[#allocation2 + $0x80] sm:$0xff]
      %v2686 = vld [vmem:[#allocation2 + $0x88] sm:$0xff]
      %v2687 = vld [vmem:[#allocation2 + $0x90] sm:$0xff]
      %v2688 = vld [vmem:[#allocation2 + $0x98] sm:$0xff]
      %v2689 = vld [vmem:[#allocation2 + $0xa0] sm:$0x3]
      %v2690 = vld [vmem:[%s2 + $0x180] sm:$0xf]
      %v2691 = vld [vmem:[%s2 + $0x184] sm:$0xf]
      %v2692 = vld [vmem:[%s2 + $0x188] sm:$0xf]
      %v2693 = vld [vmem:[%s2 + $0x18c] sm:$0xf]
      %v2694 = vld [vmem:[%s2 + $0x190] sm:$0xf]
      %v2695 = vld [vmem:[%s2 + $0x194] sm:$0xf]
      %v2696 = vld [vmem:[%s2 + $0x198] sm:$0xf]
      %v2697 = vld [vmem:[%s2 + $0x19c] sm:$0xf]
      %v2698 = vld [vmem:[%s2 + $0x1a0] sm:$0xf]
      %v2699 = vld [vmem:[%s2 + $0x1a4] sm:$0xf]
      %v2700 = vld [vmem:[%s2 + $0x1a8] sm:$0xf]
      %v2701 = vld [vmem:[%s2 + $0x1ac] sm:$0xf]
      %v2702 = vld [vmem:[%s2 + $0x1b0] sm:$0xf]
      %v2703 = vld [vmem:[%s2 + $0x1b4] sm:$0xf]
      %v2704 = vld [vmem:[%s2 + $0x1b8] sm:$0xf]
      %v2705 = vld [vmem:[%s2 + $0x1bc] sm:$0xf]
      %v2725 = vrot.slane %v2671, 2
      %v2726 = vrot.slane %v2672, 2
      %v2727 = vsel %vm2354, %v2725, %v2726
      %v2728 = vrot.slane %v2673, 2
      %v2729 = vsel %vm2354, %v2726, %v2728
      %v2730 = vrot.slane %v2674, 2
      %v2731 = vsel %vm2354, %v2728, %v2730
      %v2732 = vrot.slane %v2675, 2
      %v2733 = vsel %vm2354, %v2730, %v2732
      %v2734 = vrot.slane %v2676, 2
      %v2735 = vsel %vm2354, %v2732, %v2734
      %v2736 = vrot.slane %v2677, 2
      %v2737 = vsel %vm2354, %v2734, %v2736
      %v2738 = vrot.slane %v2678, 2
      %v2739 = vsel %vm2354, %v2736, %v2738
      %v2740 = vrot.slane %v2679, 2
      %v2741 = vsel %vm2354, %v2738, %v2740
      %v2742 = vrot.slane %v2680, 2
      %v2743 = vsel %vm2354, %v2740, %v2742
      %v2744 = vrot.slane %v2681, 2
      %v2745 = vsel %vm2354, %v2742, %v2744
      %v2746 = vrot.slane %v2682, 2
      %v2747 = vsel %vm2354, %v2744, %v2746
      %v2748 = vrot.slane %v2683, 2
      %v2749 = vsel %vm2354, %v2746, %v2748
      %v2750 = vrot.slane %v2684, 2
      %v2751 = vsel %vm2354, %v2748, %v2750
      %v2752 = vrot.slane %v2685, 2
      %v2753 = vsel %vm2354, %v2750, %v2752
      %v2754 = vrot.slane %v2686, 2
      %v2755 = vsel %vm2354, %v2752, %v2754
      %v2756 = vrot.slane %v2687, 2
      %v2757 = vsel %vm2354, %v2754, %v2756
      %v2758 = vrot.slane %v2688, 2
      %v2759 = vsel %vm2354, %v2756, %v2758
      %v2760 = vrot.slane %v2689, 2
      %v2761 = vsel %vm2354, %v2758, %v2760
      %v2796 = vunpack.c.l.b16 %v2690
      %v2797 = vunpack.c.l.b16 %v2691
      %v2798 = vunpack.c.l.b16 %v2692
      %v2799 = vunpack.c.l.b16 %v2693
      %v2800 = vunpack.c.l.b16 %v2694
      %v2801 = vunpack.c.l.b16 %v2695
      %v2802 = vunpack.c.l.b16 %v2696
      %v2803 = vunpack.c.l.b16 %v2697
      %v2804 = vunpack.c.l.b16 %v2698
      %v2805 = vunpack.c.l.b16 %v2699
      %v2806 = vunpack.c.l.b16 %v2700
      %v2807 = vunpack.c.l.b16 %v2701
      %v2808 = vunpack.c.l.b16 %v2702
      %v2809 = vunpack.c.l.b16 %v2703
      %v2810 = vunpack.c.l.b16 %v2704
      %v2811 = vunpack.c.l.b16 %v2705
      %v2812 = vpack.c.b16 %v2797, %v2796
      %v2813 = vpack.c.b16 %v2799, %v2798
      %v2814 = vpack.c.b16 %v2801, %v2800
      %v2815 = vpack.c.b16 %v2803, %v2802
      %v2816 = vpack.c.b16 %v2805, %v2804
      %v2817 = vpack.c.b16 %v2807, %v2806
      %v2818 = vpack.c.b16 %v2809, %v2808
      %v2819 = vpack.c.b16 %v2811, %v2810
      %2828 = vmatprep.subr.bf16.mxu0 0
      %2829 = vmatpush1.bf16.msra.mxu0 %v2812
      %2830 = vmatprep.subr.bf16.mxu0 0
      %2831 = vmatpush1.bf16.msra.mxu0 %v2813
      %2832 = vmatprep.subr.bf16.mxu0 0
      %2833 = vmatpush1.bf16.msra.mxu0 %v2814
      %2834 = vmatprep.subr.bf16.mxu0 0
      %2835 = vmatpush1.bf16.msra.mxu0 %v2815
      %2836 = vmatprep.subr.bf16.mxu0 0
      %2837 = vmatpush1.bf16.msra.mxu0 %v2816
      %2838 = vmatprep.subr.bf16.mxu0 0
      %2839 = vmatpush1.bf16.msra.mxu0 %v2817
      %2840 = vmatprep.subr.bf16.mxu0 0
      %2841 = vmatpush1.bf16.msra.mxu0 %v2818
      %2842 = vmatprep.subr.bf16.mxu0 0
      %2843 = vmatpush1.bf16.msra.mxu0 %v2819
      %2844 = vmatprep.subr.bf16.mxu0 0
      %2845 = vmatpush1.bf16.msra.mxu0 0
      %2846 = vmatprep.subr.bf16.mxu0 0
      %2847 = vmatpush1.bf16.msra.mxu0 0
      %2848 = vmatprep.subr.bf16.mxu0 0
      %2849 = vmatpush1.bf16.msra.mxu0 0
      %2850 = vmatprep.subr.bf16.mxu0 0
      %2851 = vmatpush1.bf16.msra.mxu0 0
      %2852 = vmatprep.subr.bf16.mxu0 0
      %2853 = vmatpush1.bf16.msra.mxu0 0
      %2854 = vmatprep.subr.bf16.mxu0 0
      %2855 = vmatpush1.bf16.msra.mxu0 0
      %2856 = vmatprep.subr.bf16.mxu0 0
      %2857 = vmatpush1.bf16.msra.mxu0 0
      %2858 = vmatprep.subr.bf16.mxu0 0
      %2859 = vmatpush1.bf16.msra.mxu0 0
      %2860 = vmatprep.mubr.bf16.mxu0 0
      %2861 = vmatmul.mubr.bf16.gmra.mrb[0].mxu0 %v2727
      %v2862 = vpop.f32.mrb[0].mxu0
      %v2863 = vadd.f32 0.0, %v2862
      %v2864 = vpop.f32.mrb[0].mxu0
      %v2865 = vpop.f32.mrb[0].mxu0
      %v2866 = vadd.f32 0.0, %v2865
      %v2867 = vpop.f32.mrb[0].mxu0
      %2868 = vmatprep.mubr.bf16.mxu0 0
      %2869 = vmatmul.mubr.bf16.gmra.mrb[0].mxu0 %v2729
      %v2870 = vpop.f32.mrb[0].mxu0
      %v2871 = vadd.f32 0.0, %v2870
      %v2872 = vpop.f32.mrb[0].mxu0
      %v2873 = vpop.f32.mrb[0].mxu0
      %v2874 = vadd.f32 0.0, %v2873
      %v2875 = vpop.f32.mrb[0].mxu0
      %2876 = vmatprep.mubr.bf16.mxu0 0
      %2877 = vmatmul.mubr.bf16.gmra.mrb[0].mxu0 %v2731
      %v2878 = vpop.f32.mrb[0].mxu0
      %v2879 = vadd.f32 0.0, %v2878
      %v2880 = vpop.f32.mrb[0].mxu0
      %v2881 = vpop.f32.mrb[0].mxu0
      %v2882 = vadd.f32 0.0, %v2881
      %v2883 = vpop.f32.mrb[0].mxu0
      %2884 = vmatprep.mubr.bf16.mxu0 0
      %2885 = vmatmul.mubr.bf16.gmra.mrb[0].mxu0 %v2733
      %v2886 = vpop.f32.mrb[0].mxu0
      %v2887 = vadd.f32 0.0, %v2886
      %v2888 = vpop.f32.mrb[0].mxu0
      %v2889 = vpop.f32.mrb[0].mxu0
      %v2890 = vadd.f32 0.0, %v2889
      %v2891 = vpop.f32.mrb[0].mxu0
      %2892 = vmatprep.mubr.bf16.mxu0 0
      %2893 = vmatmul.mubr.bf16.gmra.mrb[0].mxu0 %v2735
      %v2894 = vpop.f32.mrb[0].mxu0
      %v2895 = vadd.f32 0.0, %v2894
      %v2896 = vpop.f32.mrb[0].mxu0
      %v2897 = vpop.f32.mrb[0].mxu0
      %v2898 = vadd.f32 0.0, %v2897
      %v2899 = vpop.f32.mrb[0].mxu0
      %2900 = vmatprep.mubr.bf16.mxu0 0
      %2901 = vmatmul.mubr.bf16.gmra.mrb[0].mxu0 %v2737
      %v2902 = vpop.f32.mrb[0].mxu0
      %v2903 = vadd.f32 0.0, %v2902
      %v2904 = vpop.f32.mrb[0].mxu0
      %v2905 = vpop.f32.mrb[0].mxu0
      %v2906 = vadd.f32 0.0, %v2905
      %v2907 = vpop.f32.mrb[0].mxu0
      %2908 = vmatprep.mubr.bf16.mxu0 0
      %2909 = vmatmul.mubr.bf16.gmra.mrb[0].mxu0 %v2739
      %v2910 = vpop.f32.mrb[0].mxu0
      %v2911 = vadd.f32 0.0, %v2910
      %v2912 = vpop.f32.mrb[0].mxu0
      %v2913 = vpop.f32.mrb[0].mxu0
      %v2914 = vadd.f32 0.0, %v2913
      %v2915 = vpop.f32.mrb[0].mxu0
      %2916 = vmatprep.mubr.bf16.mxu0 0
      %2917 = vmatmul.mubr.bf16.gmra.mrb[0].mxu0 %v2741
      %v2918 = vpop.f32.mrb[0].mxu0
      %v2919 = vadd.f32 0.0, %v2918
      %v2920 = vpop.f32.mrb[0].mxu0
      %v2921 = vpop.f32.mrb[0].mxu0
      %v2922 = vadd.f32 0.0, %v2921
      %v2923 = vpop.f32.mrb[0].mxu0
      %2924 = vmatprep.mubr.bf16.mxu0 0
      %2925 = vmatmul.mubr.bf16.gmra.mrb[0].mxu0 %v2743
      %v2926 = vpop.f32.mrb[0].mxu0
      %v2927 = vadd.f32 0.0, %v2926
      %v2928 = vpop.f32.mrb[0].mxu0
      %v2929 = vpop.f32.mrb[0].mxu0
      %v2930 = vadd.f32 0.0, %v2929
      %v2931 = vpop.f32.mrb[0].mxu0
      %2932 = vmatprep.mubr.bf16.mxu0 0
      %2933 = vmatmul.mubr.bf16.gmra.mrb[0].mxu0 %v2745
      %v2934 = vpop.f32.mrb[0].mxu0
      %v2935 = vadd.f32 0.0, %v2934
      %v2936 = vpop.f32.mrb[0].mxu0
      %v2937 = vpop.f32.mrb[0].mxu0
      %v2938 = vadd.f32 0.0, %v2937
      %v2939 = vpop.f32.mrb[0].mxu0
      %2940 = vmatprep.mubr.bf16.mxu0 0
      %2941 = vmatmul.mubr.bf16.gmra.mrb[0].mxu0 %v2747
      %v2942 = vpop.f32.mrb[0].mxu0
      %v2943 = vadd.f32 0.0, %v2942
      %v2944 = vpop.f32.mrb[0].mxu0
      %v2945 = vpop.f32.mrb[0].mxu0
      %v2946 = vadd.f32 0.0, %v2945
      %v2947 = vpop.f32.mrb[0].mxu0
      %2948 = vmatprep.mubr.bf16.mxu0 0
      %2949 = vmatmul.mubr.bf16.gmra.mrb[0].mxu0 %v2749
      %v2950 = vpop.f32.mrb[0].mxu0
      %v2951 = vadd.f32 0.0, %v2950
      %v2952 = vpop.f32.mrb[0].mxu0
      %v2953 = vpop.f32.mrb[0].mxu0
      %v2954 = vadd.f32 0.0, %v2953
      %v2955 = vpop.f32.mrb[0].mxu0
      %2956 = vmatprep.mubr.bf16.mxu0 0
      %2957 = vmatmul.mubr.bf16.gmra.mrb[0].mxu0 %v2751
      %v2958 = vpop.f32.mrb[0].mxu0
      %v2959 = vadd.f32 0.0, %v2958
      %v2960 = vpop.f32.mrb[0].mxu0
      %v2961 = vpop.f32.mrb[0].mxu0
      %v2962 = vadd.f32 0.0, %v2961
      %v2963 = vpop.f32.mrb[0].mxu0
      %2964 = vmatprep.mubr.bf16.mxu0 0
      %2965 = vmatmul.mubr.bf16.gmra.mrb[0].mxu0 %v2753
      %v2966 = vpop.f32.mrb[0].mxu0
      %v2967 = vadd.f32 0.0, %v2966
      %v2968 = vpop.f32.mrb[0].mxu0
      %v2969 = vpop.f32.mrb[0].mxu0
      %v2970 = vadd.f32 0.0, %v2969
      %v2971 = vpop.f32.mrb[0].mxu0
      %2972 = vmatprep.mubr.bf16.mxu0 0
      %2973 = vmatmul.mubr.bf16.gmra.mrb[0].mxu0 %v2755
      %v2974 = vpop.f32.mrb[0].mxu0
      %v2975 = vadd.f32 0.0, %v2974
      %v2976 = vpop.f32.mrb[0].mxu0
      %v2977 = vpop.f32.mrb[0].mxu0
      %v2978 = vadd.f32 0.0, %v2977
      %v2979 = vpop.f32.mrb[0].mxu0
      %2980 = vmatprep.mubr.bf16.mxu0 0
      %2981 = vmatmul.mubr.bf16.gmra.mrb[0].mxu0 %v2757
      %v2982 = vpop.f32.mrb[0].mxu0
      %v2983 = vadd.f32 0.0, %v2982
      %v2984 = vpop.f32.mrb[0].mxu0
      %v2985 = vpop.f32.mrb[0].mxu0
      %v2986 = vadd.f32 0.0, %v2985
      %v2987 = vpop.f32.mrb[0].mxu0
      %2988 = vmatprep.mubr.bf16.mxu0 0
      %2989 = vmatmul.mubr.bf16.gmra.mrb[0].mxu0 %v2759
      %v2990 = vpop.f32.mrb[0].mxu0
      %v2991 = vadd.f32 0.0, %v2990
      %v2992 = vpop.f32.mrb[0].mxu0
      %v2993 = vpop.f32.mrb[0].mxu0
      %v2994 = vadd.f32 0.0, %v2993
      %v2995 = vpop.f32.mrb[0].mxu0
      %2996 = vmatprep.mubr.bf16.mxu0 0
      %2997 = vmatmul.mubr.bf16.gmra.mrb[0].mxu0 %v2761
      %v2998 = vpop.f32.mrb[0].mxu0
      %v2999 = vadd.f32 0.0, %v2998
      %v3000 = vpop.f32.mrb[0].mxu0
      %v3001 = vpop.f32.mrb[0].mxu0
      %v3002 = vadd.f32 0.0, %v3001
      %v3003 = vpop.f32.mrb[0].mxu0
      %3004 = vdwg.mxu0
      %v3005 = vadd.f32 %v2635, %v2863
      %v3006 = vadd.f32 %v2636, %v2866
      %v3007 = vadd.f32 %v2637, %v2871
      %v3008 = vadd.f32 %v2638, %v2874
      %v3009 = vadd.f32 %v2639, %v2879
      %v3010 = vadd.f32 %v2640, %v2882
      %v3011 = vadd.f32 %v2641, %v2887
      %v3012 = vadd.f32 %v2642, %v2890
      %v3013 = vadd.f32 %v2643, %v2895
      %v3014 = vadd.f32 %v2644, %v2898
      %v3015 = vadd.f32 %v2645, %v2903
      %v3016 = vadd.f32 %v2646, %v2906
      %v3017 = vadd.f32 %v2647, %v2911
      %v3018 = vadd.f32 %v2648, %v2914
      %v3019 = vadd.f32 %v2649, %v2919
      %v3020 = vadd.f32 %v2650, %v2922
      %v3021 = vadd.f32 %v2651, %v2927
      %v3022 = vadd.f32 %v2652, %v2930
      %v3023 = vadd.f32 %v2653, %v2935
      %v3024 = vadd.f32 %v2654, %v2938
      %v3025 = vadd.f32 %v2655, %v2943
      %v3026 = vadd.f32 %v2656, %v2946
      %v3027 = vadd.f32 %v2657, %v2951
      %v3028 = vadd.f32 %v2658, %v2954
      %v3029 = vadd.f32 %v2659, %v2959
      %v3030 = vadd.f32 %v2660, %v2962
      %v3031 = vadd.f32 %v2661, %v2967
      %v3032 = vadd.f32 %v2662, %v2970
      %v3033 = vadd.f32 %v2663, %v2975
      %v3034 = vadd.f32 %v2664, %v2978
      %v3035 = vadd.f32 %v2665, %v2983
      %v3036 = vadd.f32 %v2666, %v2986
      %v3037 = vadd.f32 %v2667, %v2991
      %v3038 = vadd.f32 %v2668, %v2994
      %v3039 = vadd.f32 %v2669, %v2999
      %v3040 = vadd.f32 %v2670, %v3002
      %v3041 = vld [vmem:[#allocation2 + $0xa0] sm:$0x7]
      %v3042 = vld [vmem:[%s2 + $0x1c0] sm:$0xf]
      %v3043 = vld [vmem:[%s2 + $0x1c4] sm:$0xf]
      %v3044 = vld [vmem:[%s2 + $0x1c8] sm:$0xf]
      %v3045 = vld [vmem:[%s2 + $0x1cc] sm:$0xf]
      %v3046 = vld [vmem:[%s2 + $0x1d0] sm:$0xf]
      %v3047 = vld [vmem:[%s2 + $0x1d4] sm:$0xf]
      %v3048 = vld [vmem:[%s2 + $0x1d8] sm:$0xf]
      %v3049 = vld [vmem:[%s2 + $0x1dc] sm:$0xf]
      %v3050 = vld [vmem:[%s2 + $0x1e0] sm:$0xf]
      %v3051 = vld [vmem:[%s2 + $0x1e4] sm:$0xf]
      %v3052 = vld [vmem:[%s2 + $0x1e8] sm:$0xf]
      %v3053 = vld [vmem:[%s2 + $0x1ec] sm:$0xf]
      %v3054 = vld [vmem:[%s2 + $0x1f0] sm:$0xf]
      %v3055 = vld [vmem:[%s2 + $0x1f4] sm:$0xf]
      %v3056 = vld [vmem:[%s2 + $0x1f8] sm:$0xf]
      %v3057 = vld [vmem:[%s2 + $0x1fc] sm:$0xf]
      %vm3058 = vsmask.f32 5376
      %v3060 = vshrl.u32 %v2671, 16
      %v3062 = vrot.slane %v3060, 2
      %v3063 = vshll.u32 %v2671, 16
      %v3065 = vrot.slane %v3063, 3
      %v3066 = vor.u32 %v3062, %v3065
      %v3068 = vshrl.u32 %v2672, 16
      %v3070 = vrot.slane %v3068, 2
      %v3071 = vshll.u32 %v2672, 16
      %v3073 = vrot.slane %v3071, 3
      %v3074 = vor.u32 %v3070, %v3073
      %v3075 = vsel %vm3058, %v3066, %v3074
      %v3077 = vshrl.u32 %v2673, 16
      %v3079 = vrot.slane %v3077, 2
      %v3080 = vshll.u32 %v2673, 16
      %v3082 = vrot.slane %v3080, 3
      %v3083 = vor.u32 %v3079, %v3082
      %v3084 = vsel %vm3058, %v3074, %v3083
      %v3086 = vshrl.u32 %v2674, 16
      %v3088 = vrot.slane %v3086, 2
      %v3089 = vshll.u32 %v2674, 16
      %v3091 = vrot.slane %v3089, 3
      %v3092 = vor.u32 %v3088, %v3091
      %v3093 = vsel %vm3058, %v3083, %v3092
      %v3095 = vshrl.u32 %v2675, 16
      %v3097 = vrot.slane %v3095, 2
      %v3098 = vshll.u32 %v2675, 16
      %v3100 = vrot.slane %v3098, 3
      %v3101 = vor.u32 %v3097, %v3100
      %v3102 = vsel %vm3058, %v3092, %v3101
      %v3104 = vshrl.u32 %v2676, 16
      %v3106 = vrot.slane %v3104, 2
      %v3107 = vshll.u32 %v2676, 16
      %v3109 = vrot.slane %v3107, 3
      %v3110 = vor.u32 %v3106, %v3109
      %v3111 = vsel %vm3058, %v3101, %v3110
      %v3113 = vshrl.u32 %v2677, 16
      %v3115 = vrot.slane %v3113, 2
      %v3116 = vshll.u32 %v2677, 16
      %v3118 = vrot.slane %v3116, 3
      %v3119 = vor.u32 %v3115, %v3118
      %v3120 = vsel %vm3058, %v3110, %v3119
      %v3122 = vshrl.u32 %v2678, 16
      %v3124 = vrot.slane %v3122, 2
      %v3125 = vshll.u32 %v2678, 16
      %v3127 = vrot.slane %v3125, 3
      %v3128 = vor.u32 %v3124, %v3127
      %v3129 = vsel %vm3058, %v3119, %v3128
      %v3131 = vshrl.u32 %v2679, 16
      %v3133 = vrot.slane %v3131, 2
      %v3134 = vshll.u32 %v2679, 16
      %v3136 = vrot.slane %v3134, 3
      %v3137 = vor.u32 %v3133, %v3136
      %v3138 = vsel %vm3058, %v3128, %v3137
      %v3140 = vshrl.u32 %v2680, 16
      %v3142 = vrot.slane %v3140, 2
      %v3143 = vshll.u32 %v2680, 16
      %v3145 = vrot.slane %v3143, 3
      %v3146 = vor.u32 %v3142, %v3145
      %v3147 = vsel %vm3058, %v3137, %v3146
      %v3149 = vshrl.u32 %v2681, 16
      %v3151 = vrot.slane %v3149, 2
      %v3152 = vshll.u32 %v2681, 16
      %v3154 = vrot.slane %v3152, 3
      %v3155 = vor.u32 %v3151, %v3154
      %v3156 = vsel %vm3058, %v3146, %v3155
      %v3158 = vshrl.u32 %v2682, 16
      %v3160 = vrot.slane %v3158, 2
      %v3161 = vshll.u32 %v2682, 16
      %v3163 = vrot.slane %v3161, 3
      %v3164 = vor.u32 %v3160, %v3163
      %v3165 = vsel %vm3058, %v3155, %v3164
      %v3167 = vshrl.u32 %v2683, 16
      %v3169 = vrot.slane %v3167, 2
      %v3170 = vshll.u32 %v2683, 16
      %v3172 = vrot.slane %v3170, 3
      %v3173 = vor.u32 %v3169, %v3172
      %v3174 = vsel %vm3058, %v3164, %v3173
      %v3176 = vshrl.u32 %v2684, 16
      %v3178 = vrot.slane %v3176, 2
      %v3179 = vshll.u32 %v2684, 16
      %v3181 = vrot.slane %v3179, 3
      %v3182 = vor.u32 %v3178, %v3181
      %v3183 = vsel %vm3058, %v3173, %v3182
      %v3185 = vshrl.u32 %v2685, 16
      %v3187 = vrot.slane %v3185, 2
      %v3188 = vshll.u32 %v2685, 16
      %v3190 = vrot.slane %v3188, 3
      %v3191 = vor.u32 %v3187, %v3190
      %v3192 = vsel %vm3058, %v3182, %v3191
      %v3194 = vshrl.u32 %v2686, 16
      %v3196 = vrot.slane %v3194, 2
      %v3197 = vshll.u32 %v2686, 16
      %v3199 = vrot.slane %v3197, 3
      %v3200 = vor.u32 %v3196, %v3199
      %v3201 = vsel %vm3058, %v3191, %v3200
      %v3203 = vshrl.u32 %v2687, 16
      %v3205 = vrot.slane %v3203, 2
      %v3206 = vshll.u32 %v2687, 16
      %v3208 = vrot.slane %v3206, 3
      %v3209 = vor.u32 %v3205, %v3208
      %v3210 = vsel %vm3058, %v3200, %v3209
      %v3212 = vshrl.u32 %v2688, 16
      %v3214 = vrot.slane %v3212, 2
      %v3215 = vshll.u32 %v2688, 16
      %v3217 = vrot.slane %v3215, 3
      %v3218 = vor.u32 %v3214, %v3217
      %v3219 = vsel %vm3058, %v3209, %v3218
      %v3221 = vshrl.u32 %v3041, 16
      %v3223 = vrot.slane %v3221, 2
      %v3224 = vshll.u32 %v3041, 16
      %v3226 = vrot.slane %v3224, 3
      %v3227 = vor.u32 %v3223, %v3226
      %v3228 = vsel %vm3058, %v3218, %v3227
      %v3263 = vunpack.c.l.b16 %v3042
      %v3264 = vunpack.c.l.b16 %v3043
      %v3265 = vunpack.c.l.b16 %v3044
      %v3266 = vunpack.c.l.b16 %v3045
      %v3267 = vunpack.c.l.b16 %v3046
      %v3268 = vunpack.c.l.b16 %v3047
      %v3269 = vunpack.c.l.b16 %v3048
      %v3270 = vunpack.c.l.b16 %v3049
      %v3271 = vunpack.c.l.b16 %v3050
      %v3272 = vunpack.c.l.b16 %v3051
      %v3273 = vunpack.c.l.b16 %v3052
      %v3274 = vunpack.c.l.b16 %v3053
      %v3275 = vunpack.c.l.b16 %v3054
      %v3276 = vunpack.c.l.b16 %v3055
      %v3277 = vunpack.c.l.b16 %v3056
      %v3278 = vunpack.c.l.b16 %v3057
      %v3279 = vpack.c.b16 %v3264, %v3263
      %v3280 = vpack.c.b16 %v3266, %v3265
      %v3281 = vpack.c.b16 %v3268, %v3267
      %v3282 = vpack.c.b16 %v3270, %v3269
      %v3283 = vpack.c.b16 %v3272, %v3271
      %v3284 = vpack.c.b16 %v3274, %v3273
      %v3285 = vpack.c.b16 %v3276, %v3275
      %v3286 = vpack.c.b16 %v3278, %v3277
      %3295 = vmatprep.subr.bf16.mxu0 0
      %3296 = vmatpush1.bf16.msra.mxu0 %v3279
      %3297 = vmatprep.subr.bf16.mxu0 0
      %3298 = vmatpush1.bf16.msra.mxu0 %v3280
      %3299 = vmatprep.subr.bf16.mxu0 0
      %3300 = vmatpush1.bf16.msra.mxu0 %v3281
      %3301 = vmatprep.subr.bf16.mxu0 0
      %3302 = vmatpush1.bf16.msra.mxu0 %v3282
      %3303 = vmatprep.subr.bf16.mxu0 0
      %3304 = vmatpush1.bf16.msra.mxu0 %v3283
      %3305 = vmatprep.subr.bf16.mxu0 0
      %3306 = vmatpush1.bf16.msra.mxu0 %v3284
      %3307 = vmatprep.subr.bf16.mxu0 0
      %3308 = vmatpush1.bf16.msra.mxu0 %v3285
      %3309 = vmatprep.subr.bf16.mxu0 0
      %3310 = vmatpush1.bf16.msra.mxu0 %v3286
      %3311 = vmatprep.subr.bf16.mxu0 0
      %3312 = vmatpush1.bf16.msra.mxu0 0
      %3313 = vmatprep.subr.bf16.mxu0 0
      %3314 = vmatpush1.bf16.msra.mxu0 0
      %3315 = vmatprep.subr.bf16.mxu0 0
      %3316 = vmatpush1.bf16.msra.mxu0 0
      %3317 = vmatprep.subr.bf16.mxu0 0
      %3318 = vmatpush1.bf16.msra.mxu0 0
      %3319 = vmatprep.subr.bf16.mxu0 0
      %3320 = vmatpush1.bf16.msra.mxu0 0
      %3321 = vmatprep.subr.bf16.mxu0 0
      %3322 = vmatpush1.bf16.msra.mxu0 0
      %3323 = vmatprep.subr.bf16.mxu0 0
      %3324 = vmatpush1.bf16.msra.mxu0 0
      %3325 = vmatprep.subr.bf16.mxu0 0
      %3326 = vmatpush1.bf16.msra.mxu0 0
      %3327 = vmatprep.mubr.bf16.mxu0 0
      %3328 = vmatmul.mubr.bf16.gmra.mrb[0].mxu0 %v3075
      %v3329 = vpop.f32.mrb[0].mxu0
      %v3330 = vadd.f32 0.0, %v3329
      %v3331 = vpop.f32.mrb[0].mxu0
      %v3332 = vpop.f32.mrb[0].mxu0
      %v3333 = vadd.f32 0.0, %v3332
      %v3334 = vpop.f32.mrb[0].mxu0
      %3335 = vmatprep.mubr.bf16.mxu0 0
      %3336 = vmatmul.mubr.bf16.gmra.mrb[0].mxu0 %v3084
      %v3337 = vpop.f32.mrb[0].mxu0
      %v3338 = vadd.f32 0.0, %v3337
      %v3339 = vpop.f32.mrb[0].mxu0
      %v3340 = vpop.f32.mrb[0].mxu0
      %v3341 = vadd.f32 0.0, %v3340
      %v3342 = vpop.f32.mrb[0].mxu0
      %3343 = vmatprep.mubr.bf16.mxu0 0
      %3344 = vmatmul.mubr.bf16.gmra.mrb[0].mxu0 %v3093
      %v3345 = vpop.f32.mrb[0].mxu0
      %v3346 = vadd.f32 0.0, %v3345
      %v3347 = vpop.f32.mrb[0].mxu0
      %v3348 = vpop.f32.mrb[0].mxu0
      %v3349 = vadd.f32 0.0, %v3348
      %v3350 = vpop.f32.mrb[0].mxu0
      %3351 = vmatprep.mubr.bf16.mxu0 0
      %3352 = vmatmul.mubr.bf16.gmra.mrb[0].mxu0 %v3102
      %v3353 = vpop.f32.mrb[0].mxu0
      %v3354 = vadd.f32 0.0, %v3353
      %v3355 = vpop.f32.mrb[0].mxu0
      %v3356 = vpop.f32.mrb[0].mxu0
      %v3357 = vadd.f32 0.0, %v3356
      %v3358 = vpop.f32.mrb[0].mxu0
      %3359 = vmatprep.mubr.bf16.mxu0 0
      %3360 = vmatmul.mubr.bf16.gmra.mrb[0].mxu0 %v3111
      %v3361 = vpop.f32.mrb[0].mxu0
      %v3362 = vadd.f32 0.0, %v3361
      %v3363 = vpop.f32.mrb[0].mxu0
      %v3364 = vpop.f32.mrb[0].mxu0
      %v3365 = vadd.f32 0.0, %v3364
      %v3366 = vpop.f32.mrb[0].mxu0
      %3367 = vmatprep.mubr.bf16.mxu0 0
      %3368 = vmatmul.mubr.bf16.gmra.mrb[0].mxu0 %v3120
      %v3369 = vpop.f32.mrb[0].mxu0
      %v3370 = vadd.f32 0.0, %v3369
      %v3371 = vpop.f32.mrb[0].mxu0
      %v3372 = vpop.f32.mrb[0].mxu0
      %v3373 = vadd.f32 0.0, %v3372
      %v3374 = vpop.f32.mrb[0].mxu0
      %3375 = vmatprep.mubr.bf16.mxu0 0
      %3376 = vmatmul.mubr.bf16.gmra.mrb[0].mxu0 %v3129
      %v3377 = vpop.f32.mrb[0].mxu0
      %v3378 = vadd.f32 0.0, %v3377
      %v3379 = vpop.f32.mrb[0].mxu0
      %v3380 = vpop.f32.mrb[0].mxu0
      %v3381 = vadd.f32 0.0, %v3380
      %v3382 = vpop.f32.mrb[0].mxu0
      %3383 = vmatprep.mubr.bf16.mxu0 0
      %3384 = vmatmul.mubr.bf16.gmra.mrb[0].mxu0 %v3138
      %v3385 = vpop.f32.mrb[0].mxu0
      %v3386 = vadd.f32 0.0, %v3385
      %v3387 = vpop.f32.mrb[0].mxu0
      %v3388 = vpop.f32.mrb[0].mxu0
      %v3389 = vadd.f32 0.0, %v3388
      %v3390 = vpop.f32.mrb[0].mxu0
      %3391 = vmatprep.mubr.bf16.mxu0 0
      %3392 = vmatmul.mubr.bf16.gmra.mrb[0].mxu0 %v3147
      %v3393 = vpop.f32.mrb[0].mxu0
      %v3394 = vadd.f32 0.0, %v3393
      %v3395 = vpop.f32.mrb[0].mxu0
      %v3396 = vpop.f32.mrb[0].mxu0
      %v3397 = vadd.f32 0.0, %v3396
      %v3398 = vpop.f32.mrb[0].mxu0
      %3399 = vmatprep.mubr.bf16.mxu0 0
      %3400 = vmatmul.mubr.bf16.gmra.mrb[0].mxu0 %v3156
      %v3401 = vpop.f32.mrb[0].mxu0
      %v3402 = vadd.f32 0.0, %v3401
      %v3403 = vpop.f32.mrb[0].mxu0
      %v3404 = vpop.f32.mrb[0].mxu0
      %v3405 = vadd.f32 0.0, %v3404
      %v3406 = vpop.f32.mrb[0].mxu0
      %3407 = vmatprep.mubr.bf16.mxu0 0
      %3408 = vmatmul.mubr.bf16.gmra.mrb[0].mxu0 %v3165
      %v3409 = vpop.f32.mrb[0].mxu0
      %v3410 = vadd.f32 0.0, %v3409
      %v3411 = vpop.f32.mrb[0].mxu0
      %v3412 = vpop.f32.mrb[0].mxu0
      %v3413 = vadd.f32 0.0, %v3412
      %v3414 = vpop.f32.mrb[0].mxu0
      %3415 = vmatprep.mubr.bf16.mxu0 0
      %3416 = vmatmul.mubr.bf16.gmra.mrb[0].mxu0 %v3174
      %v3417 = vpop.f32.mrb[0].mxu0
      %v3418 = vadd.f32 0.0, %v3417
      %v3419 = vpop.f32.mrb[0].mxu0
      %v3420 = vpop.f32.mrb[0].mxu0
      %v3421 = vadd.f32 0.0, %v3420
      %v3422 = vpop.f32.mrb[0].mxu0
      %3423 = vmatprep.mubr.bf16.mxu0 0
      %3424 = vmatmul.mubr.bf16.gmra.mrb[0].mxu0 %v3183
      %v3425 = vpop.f32.mrb[0].mxu0
      %v3426 = vadd.f32 0.0, %v3425
      %v3427 = vpop.f32.mrb[0].mxu0
      %v3428 = vpop.f32.mrb[0].mxu0
      %v3429 = vadd.f32 0.0, %v3428
      %v3430 = vpop.f32.mrb[0].mxu0
      %3431 = vmatprep.mubr.bf16.mxu0 0
      %3432 = vmatmul.mubr.bf16.gmra.mrb[0].mxu0 %v3192
      %v3433 = vpop.f32.mrb[0].mxu0
      %v3434 = vadd.f32 0.0, %v3433
      %v3435 = vpop.f32.mrb[0].mxu0
      %v3436 = vpop.f32.mrb[0].mxu0
      %v3437 = vadd.f32 0.0, %v3436
      %v3438 = vpop.f32.mrb[0].mxu0
      %3439 = vmatprep.mubr.bf16.mxu0 0
      %3440 = vmatmul.mubr.bf16.gmra.mrb[0].mxu0 %v3201
      %v3441 = vpop.f32.mrb[0].mxu0
      %v3442 = vadd.f32 0.0, %v3441
      %v3443 = vpop.f32.mrb[0].mxu0
      %v3444 = vpop.f32.mrb[0].mxu0
      %v3445 = vadd.f32 0.0, %v3444
      %v3446 = vpop.f32.mrb[0].mxu0
      %3447 = vmatprep.mubr.bf16.mxu0 0
      %3448 = vmatmul.mubr.bf16.gmra.mrb[0].mxu0 %v3210
      %v3449 = vpop.f32.mrb[0].mxu0
      %v3450 = vadd.f32 0.0, %v3449
      %v3451 = vpop.f32.mrb[0].mxu0
      %v3452 = vpop.f32.mrb[0].mxu0
      %v3453 = vadd.f32 0.0, %v3452
      %v3454 = vpop.f32.mrb[0].mxu0
      %3455 = vmatprep.mubr.bf16.mxu0 0
      %3456 = vmatmul.mubr.bf16.gmra.mrb[0].mxu0 %v3219
      %v3457 = vpop.f32.mrb[0].mxu0
      %v3458 = vadd.f32 0.0, %v3457
      %v3459 = vpop.f32.mrb[0].mxu0
      %v3460 = vpop.f32.mrb[0].mxu0
      %v3461 = vadd.f32 0.0, %v3460
      %v3462 = vpop.f32.mrb[0].mxu0
      %3463 = vmatprep.mubr.bf16.mxu0 0
      %3464 = vmatmul.mubr.bf16.gmra.mrb[0].mxu0 %v3228
      %v3465 = vpop.f32.mrb[0].mxu0
      %v3466 = vadd.f32 0.0, %v3465
      %v3467 = vpop.f32.mrb[0].mxu0
      %v3468 = vpop.f32.mrb[0].mxu0
      %v3469 = vadd.f32 0.0, %v3468
      %v3470 = vpop.f32.mrb[0].mxu0
      %3471 = vdwg.mxu0
      %v3472 = vadd.f32 %v3005, %v3330
      %v3473 = vadd.f32 %v3006, %v3333
      %v3474 = vadd.f32 %v3007, %v3338
      %v3475 = vadd.f32 %v3008, %v3341
      %v3476 = vadd.f32 %v3009, %v3346
      %v3477 = vadd.f32 %v3010, %v3349
      %v3478 = vadd.f32 %v3011, %v3354
      %v3479 = vadd.f32 %v3012, %v3357
      %v3480 = vadd.f32 %v3013, %v3362
      %v3481 = vadd.f32 %v3014, %v3365
      %v3482 = vadd.f32 %v3015, %v3370
      %v3483 = vadd.f32 %v3016, %v3373
      %v3484 = vadd.f32 %v3017, %v3378
      %v3485 = vadd.f32 %v3018, %v3381
      %v3486 = vadd.f32 %v3019, %v3386
      %v3487 = vadd.f32 %v3020, %v3389
      %v3488 = vadd.f32 %v3021, %v3394
      %v3489 = vadd.f32 %v3022, %v3397
      %v3490 = vadd.f32 %v3023, %v3402
      %v3491 = vadd.f32 %v3024, %v3405
      %v3492 = vadd.f32 %v3025, %v3410
      %v3493 = vadd.f32 %v3026, %v3413
      %v3494 = vadd.f32 %v3027, %v3418
      %v3495 = vadd.f32 %v3028, %v3421
      %v3496 = vadd.f32 %v3029, %v3426
      %v3497 = vadd.f32 %v3030, %v3429
      %v3498 = vadd.f32 %v3031, %v3434
      %v3499 = vadd.f32 %v3032, %v3437
      %v3500 = vadd.f32 %v3033, %v3442
      %v3501 = vadd.f32 %v3034, %v3445
      %v3502 = vadd.f32 %v3035, %v3450
      %v3503 = vadd.f32 %v3036, %v3453
      %v3504 = vadd.f32 %v3037, %v3458
      %v3505 = vadd.f32 %v3038, %v3461
      %v3506 = vadd.f32 %v3039, %v3466
      %v3507 = vadd.f32 %v3040, %v3469
      %v3508 = vld [vmem:[#allocation2 + $0x10] sm:$0xf8]
      %v3509 = vld [vmem:[%s2 + $0x200] sm:$0xf]
      %v3510 = vld [vmem:[%s2 + $0x204] sm:$0xf]
      %v3511 = vld [vmem:[%s2 + $0x208] sm:$0xf]
      %v3512 = vld [vmem:[%s2 + $0x20c] sm:$0xf]
      %v3513 = vld [vmem:[%s2 + $0x210] sm:$0xf]
      %v3514 = vld [vmem:[%s2 + $0x214] sm:$0xf]
      %v3515 = vld [vmem:[%s2 + $0x218] sm:$0xf]
      %v3516 = vld [vmem:[%s2 + $0x21c] sm:$0xf]
      %v3517 = vld [vmem:[%s2 + $0x220] sm:$0xf]
      %v3518 = vld [vmem:[%s2 + $0x224] sm:$0xf]
      %v3519 = vld [vmem:[%s2 + $0x228] sm:$0xf]
      %v3520 = vld [vmem:[%s2 + $0x22c] sm:$0xf]
      %v3521 = vld [vmem:[%s2 + $0x230] sm:$0xf]
      %v3522 = vld [vmem:[%s2 + $0x234] sm:$0xf]
      %v3523 = vld [vmem:[%s2 + $0x238] sm:$0xf]
      %v3524 = vld [vmem:[%s2 + $0x23c] sm:$0xf]
      %vm3527 = vcmask 1044480
      %v3528 = vrot.slane %v3508, 3
      %v3529 = vrot.slane %v2672, 3
      %v3530 = vsel %vm3527, %v3528, %v3529
      %v3531 = vrot.slane %v2673, 3
      %v3532 = vsel %vm3527, %v3529, %v3531
      %v3533 = vrot.slane %v2674, 3
      %v3534 = vsel %vm3527, %v3531, %v3533
      %v3535 = vrot.slane %v2675, 3
      %v3536 = vsel %vm3527, %v3533, %v3535
      %v3537 = vrot.slane %v2676, 3
      %v3538 = vsel %vm3527, %v3535, %v3537
      %v3539 = vrot.slane %v2677, 3
      %v3540 = vsel %vm3527, %v3537, %v3539
      %v3541 = vrot.slane %v2678, 3
      %v3542 = vsel %vm3527, %v3539, %v3541
      %v3543 = vrot.slane %v2679, 3
      %v3544 = vsel %vm3527, %v3541, %v3543
      %v3545 = vrot.slane %v2680, 3
      %v3546 = vsel %vm3527, %v3543, %v3545
      %v3547 = vrot.slane %v2681, 3
      %v3548 = vsel %vm3527, %v3545, %v3547
      %v3549 = vrot.slane %v2682, 3
      %v3550 = vsel %vm3527, %v3547, %v3549
      %v3551 = vrot.slane %v2683, 3
      %v3552 = vsel %vm3527, %v3549, %v3551
      %v3553 = vrot.slane %v2684, 3
      %v3554 = vsel %vm3527, %v3551, %v3553
      %v3555 = vrot.slane %v2685, 3
      %v3556 = vsel %vm3527, %v3553, %v3555
      %v3557 = vrot.slane %v2686, 3
      %v3558 = vsel %vm3527, %v3555, %v3557
      %v3559 = vrot.slane %v2687, 3
      %v3560 = vsel %vm3527, %v3557, %v3559
      %v3561 = vrot.slane %v2688, 3
      %v3562 = vsel %vm3527, %v3559, %v3561
      %v3563 = vrot.slane %v3041, 3
      %v3564 = vsel %vm3527, %v3561, %v3563
      %v3599 = vunpack.c.l.b16 %v3509
      %v3600 = vunpack.c.l.b16 %v3510
      %v3601 = vunpack.c.l.b16 %v3511
      %v3602 = vunpack.c.l.b16 %v3512
      %v3603 = vunpack.c.l.b16 %v3513
      %v3604 = vunpack.c.l.b16 %v3514
      %v3605 = vunpack.c.l.b16 %v3515
      %v3606 = vunpack.c.l.b16 %v3516
      %v3607 = vunpack.c.l.b16 %v3517
      %v3608 = vunpack.c.l.b16 %v3518
      %v3609 = vunpack.c.l.b16 %v3519
      %v3610 = vunpack.c.l.b16 %v3520
      %v3611 = vunpack.c.l.b16 %v3521
      %v3612 = vunpack.c.l.b16 %v3522
      %v3613 = vunpack.c.l.b16 %v3523
      %v3614 = vunpack.c.l.b16 %v3524
      %v3615 = vpack.c.b16 %v3600, %v3599
      %v3616 = vpack.c.b16 %v3602, %v3601
      %v3617 = vpack.c.b16 %v3604, %v3603
      %v3618 = vpack.c.b16 %v3606, %v3605
      %v3619 = vpack.c.b16 %v3608, %v3607
      %v3620 = vpack.c.b16 %v3610, %v3609
      %v3621 = vpack.c.b16 %v3612, %v3611
      %v3622 = vpack.c.b16 %v3614, %v3613
      %3631 = vmatprep.subr.bf16.mxu0 0
      %3632 = vmatpush1.bf16.msra.mxu0 %v3615
      %3633 = vmatprep.subr.bf16.mxu0 0
      %3634 = vmatpush1.bf16.msra.mxu0 %v3616
      %3635 = vmatprep.subr.bf16.mxu0 0
      %3636 = vmatpush1.bf16.msra.mxu0 %v3617
      %3637 = vmatprep.subr.bf16.mxu0 0
      %3638 = vmatpush1.bf16.msra.mxu0 %v3618
      %3639 = vmatprep.subr.bf16.mxu0 0
      %3640 = vmatpush1.bf16.msra.mxu0 %v3619
      %3641 = vmatprep.subr.bf16.mxu0 0
      %3642 = vmatpush1.bf16.msra.mxu0 %v3620
      %3643 = vmatprep.subr.bf16.mxu0 0
      %3644 = vmatpush1.bf16.msra.mxu0 %v3621
      %3645 = vmatprep.subr.bf16.mxu0 0
      %3646 = vmatpush1.bf16.msra.mxu0 %v3622
      %3647 = vmatprep.subr.bf16.mxu0 0
      %3648 = vmatpush1.bf16.msra.mxu0 0
      %3649 = vmatprep.subr.bf16.mxu0 0
      %3650 = vmatpush1.bf16.msra.mxu0 0
      %3651 = vmatprep.subr.bf16.mxu0 0
      %3652 = vmatpush1.bf16.msra.mxu0 0
      %3653 = vmatprep.subr.bf16.mxu0 0
      %3654 = vmatpush1.bf16.msra.mxu0 0
      %3655 = vmatprep.subr.bf16.mxu0 0
      %3656 = vmatpush1.bf16.msra.mxu0 0
      %3657 = vmatprep.subr.bf16.mxu0 0
      %3658 = vmatpush1.bf16.msra.mxu0 0
      %3659 = vmatprep.subr.bf16.mxu0 0
      %3660 = vmatpush1.bf16.msra.mxu0 0
      %3661 = vmatprep.subr.bf16.mxu0 0
      %3662 = vmatpush1.bf16.msra.mxu0 0
      %3663 = vmatprep.mubr.bf16.mxu0 0
      %3664 = vmatmul.mubr.bf16.gmra.mrb[0].mxu0 %v3530
      %v3665 = vpop.f32.mrb[0].mxu0
      %v3666 = vadd.f32 0.0, %v3665
      %v3667 = vpop.f32.mrb[0].mxu0
      %v3668 = vpop.f32.mrb[0].mxu0
      %v3669 = vadd.f32 0.0, %v3668
      %v3670 = vpop.f32.mrb[0].mxu0
      %3671 = vmatprep.mubr.bf16.mxu0 0
      %3672 = vmatmul.mubr.bf16.gmra.mrb[0].mxu0 %v3532
      %v3673 = vpop.f32.mrb[0].mxu0
      %v3674 = vadd.f32 0.0, %v3673
      %v3675 = vpop.f32.mrb[0].mxu0
      %v3676 = vpop.f32.mrb[0].mxu0
      %v3677 = vadd.f32 0.0, %v3676
      %v3678 = vpop.f32.mrb[0].mxu0
      %3679 = vmatprep.mubr.bf16.mxu0 0
      %3680 = vmatmul.mubr.bf16.gmra.mrb[0].mxu0 %v3534
      %v3681 = vpop.f32.mrb[0].mxu0
      %v3682 = vadd.f32 0.0, %v3681
      %v3683 = vpop.f32.mrb[0].mxu0
      %v3684 = vpop.f32.mrb[0].mxu0
      %v3685 = vadd.f32 0.0, %v3684
      %v3686 = vpop.f32.mrb[0].mxu0
      %3687 = vmatprep.mubr.bf16.mxu0 0
      %3688 = vmatmul.mubr.bf16.gmra.mrb[0].mxu0 %v3536
      %v3689 = vpop.f32.mrb[0].mxu0
      %v3690 = vadd.f32 0.0, %v3689
      %v3691 = vpop.f32.mrb[0].mxu0
      %v3692 = vpop.f32.mrb[0].mxu0
      %v3693 = vadd.f32 0.0, %v3692
      %v3694 = vpop.f32.mrb[0].mxu0
      %3695 = vmatprep.mubr.bf16.mxu0 0
      %3696 = vmatmul.mubr.bf16.gmra.mrb[0].mxu0 %v3538
      %v3697 = vpop.f32.mrb[0].mxu0
      %v3698 = vadd.f32 0.0, %v3697
      %v3699 = vpop.f32.mrb[0].mxu0
      %v3700 = vpop.f32.mrb[0].mxu0
      %v3701 = vadd.f32 0.0, %v3700
      %v3702 = vpop.f32.mrb[0].mxu0
      %3703 = vmatprep.mubr.bf16.mxu0 0
      %3704 = vmatmul.mubr.bf16.gmra.mrb[0].mxu0 %v3540
      %v3705 = vpop.f32.mrb[0].mxu0
      %v3706 = vadd.f32 0.0, %v3705
      %v3707 = vpop.f32.mrb[0].mxu0
      %v3708 = vpop.f32.mrb[0].mxu0
      %v3709 = vadd.f32 0.0, %v3708
      %v3710 = vpop.f32.mrb[0].mxu0
      %3711 = vmatprep.mubr.bf16.mxu0 0
      %3712 = vmatmul.mubr.bf16.gmra.mrb[0].mxu0 %v3542
      %v3713 = vpop.f32.mrb[0].mxu0
      %v3714 = vadd.f32 0.0, %v3713
      %v3715 = vpop.f32.mrb[0].mxu0
      %v3716 = vpop.f32.mrb[0].mxu0
      %v3717 = vadd.f32 0.0, %v3716
      %v3718 = vpop.f32.mrb[0].mxu0
      %3719 = vmatprep.mubr.bf16.mxu0 0
      %3720 = vmatmul.mubr.bf16.gmra.mrb[0].mxu0 %v3544
      %v3721 = vpop.f32.mrb[0].mxu0
      %v3722 = vadd.f32 0.0, %v3721
      %v3723 = vpop.f32.mrb[0].mxu0
      %v3724 = vpop.f32.mrb[0].mxu0
      %v3725 = vadd.f32 0.0, %v3724
      %v3726 = vpop.f32.mrb[0].mxu0
      %3727 = vmatprep.mubr.bf16.mxu0 0
      %3728 = vmatmul.mubr.bf16.gmra.mrb[0].mxu0 %v3546
      %v3729 = vpop.f32.mrb[0].mxu0
      %v3730 = vadd.f32 0.0, %v3729
      %v3731 = vpop.f32.mrb[0].mxu0
      %v3732 = vpop.f32.mrb[0].mxu0
      %v3733 = vadd.f32 0.0, %v3732
      %v3734 = vpop.f32.mrb[0].mxu0
      %3735 = vmatprep.mubr.bf16.mxu0 0
      %3736 = vmatmul.mubr.bf16.gmra.mrb[0].mxu0 %v3548
      %v3737 = vpop.f32.mrb[0].mxu0
      %v3738 = vadd.f32 0.0, %v3737
      %v3739 = vpop.f32.mrb[0].mxu0
      %v3740 = vpop.f32.mrb[0].mxu0
      %v3741 = vadd.f32 0.0, %v3740
      %v3742 = vpop.f32.mrb[0].mxu0
      %3743 = vmatprep.mubr.bf16.mxu0 0
      %3744 = vmatmul.mubr.bf16.gmra.mrb[0].mxu0 %v3550
      %v3745 = vpop.f32.mrb[0].mxu0
      %v3746 = vadd.f32 0.0, %v3745
      %v3747 = vpop.f32.mrb[0].mxu0
      %v3748 = vpop.f32.mrb[0].mxu0
      %v3749 = vadd.f32 0.0, %v3748
      %v3750 = vpop.f32.mrb[0].mxu0
      %3751 = vmatprep.mubr.bf16.mxu0 0
      %3752 = vmatmul.mubr.bf16.gmra.mrb[0].mxu0 %v3552
      %v3753 = vpop.f32.mrb[0].mxu0
      %v3754 = vadd.f32 0.0, %v3753
      %v3755 = vpop.f32.mrb[0].mxu0
      %v3756 = vpop.f32.mrb[0].mxu0
      %v3757 = vadd.f32 0.0, %v3756
      %v3758 = vpop.f32.mrb[0].mxu0
      %3759 = vmatprep.mubr.bf16.mxu0 0
      %3760 = vmatmul.mubr.bf16.gmra.mrb[0].mxu0 %v3554
      %v3761 = vpop.f32.mrb[0].mxu0
      %v3762 = vadd.f32 0.0, %v3761
      %v3763 = vpop.f32.mrb[0].mxu0
      %v3764 = vpop.f32.mrb[0].mxu0
      %v3765 = vadd.f32 0.0, %v3764
      %v3766 = vpop.f32.mrb[0].mxu0
      %3767 = vmatprep.mubr.bf16.mxu0 0
      %3768 = vmatmul.mubr.bf16.gmra.mrb[0].mxu0 %v3556
      %v3769 = vpop.f32.mrb[0].mxu0
      %v3770 = vadd.f32 0.0, %v3769
      %v3771 = vpop.f32.mrb[0].mxu0
      %v3772 = vpop.f32.mrb[0].mxu0
      %v3773 = vadd.f32 0.0, %v3772
      %v3774 = vpop.f32.mrb[0].mxu0
      %3775 = vmatprep.mubr.bf16.mxu0 0
      %3776 = vmatmul.mubr.bf16.gmra.mrb[0].mxu0 %v3558
      %v3777 = vpop.f32.mrb[0].mxu0
      %v3778 = vadd.f32 0.0, %v3777
      %v3779 = vpop.f32.mrb[0].mxu0
      %v3780 = vpop.f32.mrb[0].mxu0
      %v3781 = vadd.f32 0.0, %v3780
      %v3782 = vpop.f32.mrb[0].mxu0
      %3783 = vmatprep.mubr.bf16.mxu0 0
      %3784 = vmatmul.mubr.bf16.gmra.mrb[0].mxu0 %v3560
      %v3785 = vpop.f32.mrb[0].mxu0
      %v3786 = vadd.f32 0.0, %v3785
      %v3787 = vpop.f32.mrb[0].mxu0
      %v3788 = vpop.f32.mrb[0].mxu0
      %v3789 = vadd.f32 0.0, %v3788
      %v3790 = vpop.f32.mrb[0].mxu0
      %3791 = vmatprep.mubr.bf16.mxu0 0
      %3792 = vmatmul.mubr.bf16.gmra.mrb[0].mxu0 %v3562
      %v3793 = vpop.f32.mrb[0].mxu0
      %v3794 = vadd.f32 0.0, %v3793
      %v3795 = vpop.f32.mrb[0].mxu0
      %v3796 = vpop.f32.mrb[0].mxu0
      %v3797 = vadd.f32 0.0, %v3796
      %v3798 = vpop.f32.mrb[0].mxu0
      %3799 = vmatprep.mubr.bf16.mxu0 0
      %3800 = vmatmul.mubr.bf16.gmra.mrb[0].mxu0 %v3564
      %v3801 = vpop.f32.mrb[0].mxu0
      %v3802 = vadd.f32 0.0, %v3801
      %v3803 = vpop.f32.mrb[0].mxu0
      %v3804 = vpop.f32.mrb[0].mxu0
      %v3805 = vadd.f32 0.0, %v3804
      %v3806 = vpop.f32.mrb[0].mxu0
      %3807 = vdwg.mxu0
      %v3808 = vadd.f32 %v3472, %v3666
      %v3809 = vadd.f32 %v3473, %v3669
      %v3810 = vadd.f32 %v3474, %v3674
      %v3811 = vadd.f32 %v3475, %v3677
      %v3812 = vadd.f32 %v3476, %v3682
      %v3813 = vadd.f32 %v3477, %v3685
      %v3814 = vadd.f32 %v3478, %v3690
      %v3815 = vadd.f32 %v3479, %v3693
      %v3816 = vadd.f32 %v3480, %v3698
      %v3817 = vadd.f32 %v3481, %v3701
      %v3818 = vadd.f32 %v3482, %v3706
      %v3819 = vadd.f32 %v3483, %v3709
      %v3820 = vadd.f32 %v3484, %v3714
      %v3821 = vadd.f32 %v3485, %v3717
      %v3822 = vadd.f32 %v3486, %v3722
      %v3823 = vadd.f32 %v3487, %v3725
      %v3824 = vadd.f32 %v3488, %v3730
      %v3825 = vadd.f32 %v3489, %v3733
      %v3826 = vadd.f32 %v3490, %v3738
      %v3827 = vadd.f32 %v3491, %v3741
      %v3828 = vadd.f32 %v3492, %v3746
      %v3829 = vadd.f32 %v3493, %v3749
      %v3830 = vadd.f32 %v3494, %v3754
      %v3831 = vadd.f32 %v3495, %v3757
      %v3832 = vadd.f32 %v3496, %v3762
      %v3833 = vadd.f32 %v3497, %v3765
      %v3834 = vadd.f32 %v3498, %v3770
      %v3835 = vadd.f32 %v3499, %v3773
      %v3836 = vadd.f32 %v3500, %v3778
      %v3837 = vadd.f32 %v3501, %v3781
      %v3838 = vadd.f32 %v3502, %v3786
      %v3839 = vadd.f32 %v3503, %v3789
      %v3840 = vadd.f32 %v3504, %v3794
      %v3841 = vadd.f32 %v3505, %v3797
      %v3842 = vadd.f32 %v3506, %v3802
      %v3843 = vadd.f32 %v3507, %v3805
      %v3844 = vld [vmem:[%s3] sm:$0x1]
      %v3846 = vlaneseq
      %v3847 = vshrl.u32 %v3846, 7
      %v3848 = vsub.s32 0, %v3847
      %v3849 = vrot.slane %v3844, %v3848
      %v3851 = vadd.f32 %v3808, %v3849
      %v3852 = vadd.f32 %v3809, %v3849
      %v3853 = vadd.f32 %v3810, %v3849
      %v3854 = vadd.f32 %v3811, %v3849
      %v3855 = vadd.f32 %v3812, %v3849
      %v3856 = vadd.f32 %v3813, %v3849
      %v3857 = vadd.f32 %v3814, %v3849
      %v3858 = vadd.f32 %v3815, %v3849
      %v3859 = vadd.f32 %v3816, %v3849
      %v3860 = vadd.f32 %v3817, %v3849
      %v3861 = vadd.f32 %v3818, %v3849
      %v3862 = vadd.f32 %v3819, %v3849
      %v3863 = vadd.f32 %v3820, %v3849
      %v3864 = vadd.f32 %v3821, %v3849
      %v3865 = vadd.f32 %v3822, %v3849
      %v3866 = vadd.f32 %v3823, %v3849
      %v3867 = vadd.f32 %v3824, %v3849
      %v3868 = vadd.f32 %v3825, %v3849
      %v3869 = vadd.f32 %v3826, %v3849
      %v3870 = vadd.f32 %v3827, %v3849
      %v3871 = vadd.f32 %v3828, %v3849
      %v3872 = vadd.f32 %v3829, %v3849
      %v3873 = vadd.f32 %v3830, %v3849
      %v3874 = vadd.f32 %v3831, %v3849
      %v3875 = vadd.f32 %v3832, %v3849
      %v3876 = vadd.f32 %v3833, %v3849
      %v3877 = vadd.f32 %v3834, %v3849
      %v3878 = vadd.f32 %v3835, %v3849
      %v3879 = vadd.f32 %v3836, %v3849
      %v3880 = vadd.f32 %v3837, %v3849
      %v3881 = vadd.f32 %v3838, %v3849
      %v3882 = vadd.f32 %v3839, %v3849
      %v3883 = vadd.f32 %v3840, %v3849
      %v3884 = vadd.f32 %v3841, %v3849
      %v3885 = vadd.f32 %v3842, %v3849
      %v3886 = vadd.f32 %v3843, %v3849
      %s3887 = smul.u32 %s20, 288
      %v3888 = vlaneseq
      %v3889 = vshrl.u32 %v3888, 7
      %v3890 = vadd.s32 %v3889, 8
      %v3891 = vadd.s32 %v3889, 16
      %v3892 = vadd.s32 %v3889, 24
      %v3893 = vadd.s32 %v3889, 32
      %v3894 = vadd.s32 %v3889, 40
      %v3895 = vadd.s32 %v3889, 48
      %v3896 = vadd.s32 %v3889, 56
      %v3897 = vadd.s32 %v3889, 64
      %v3898 = vadd.s32 %v3889, 72
      %v3899 = vadd.s32 %v3889, 80
      %v3900 = vadd.s32 %v3889, 88
      %v3901 = vadd.s32 %v3889, 96
      %v3902 = vadd.s32 %v3889, 104
      %v3903 = vadd.s32 %v3889, 112
      %v3904 = vadd.s32 %v3889, 120
      %v3905 = vadd.s32 %v3889, 128
      %v3906 = vadd.s32 %v3889, 136
      %v3907 = vadd.s32 %v3889, 144
      %v3908 = vadd.s32 %v3889, 152
      %v3909 = vadd.s32 %v3889, 160
      %v3910 = vadd.s32 %v3889, 168
      %v3911 = vadd.s32 %v3889, 176
      %v3912 = vadd.s32 %v3889, 184
      %v3913 = vadd.s32 %v3889, 192
      %v3914 = vadd.s32 %v3889, 200
      %v3915 = vadd.s32 %v3889, 208
      %v3916 = vadd.s32 %v3889, 216
      %v3917 = vadd.s32 %v3889, 224
      %v3918 = vadd.s32 %v3889, 232
      %v3919 = vadd.s32 %v3889, 240
      %v3920 = vadd.s32 %v3889, 248
      %v3921 = vadd.s32 %v3889, 256
      %v3922 = vadd.s32 %v3889, 264
      %v3923 = vadd.s32 %v3889, 272
      %v3924 = vadd.s32 %v3889, 280
      %v3925 = vstv %s3887
      %v3926 = vadd.s32 %v3925, %v3889
      %v3927 = vadd.s32 %v3925, %v3890
      %v3928 = vadd.s32 %v3925, %v3891
      %v3929 = vadd.s32 %v3925, %v3892
      %v3930 = vadd.s32 %v3925, %v3893
      %v3931 = vadd.s32 %v3925, %v3894
      %v3932 = vadd.s32 %v3925, %v3895
      %v3933 = vadd.s32 %v3925, %v3896
      %v3934 = vadd.s32 %v3925, %v3897
      %v3935 = vadd.s32 %v3925, %v3898
      %v3936 = vadd.s32 %v3925, %v3899
      %v3937 = vadd.s32 %v3925, %v3900
      %v3938 = vadd.s32 %v3925, %v3901
      %v3939 = vadd.s32 %v3925, %v3902
      %v3940 = vadd.s32 %v3925, %v3903
      %v3941 = vadd.s32 %v3925, %v3904
      %v3942 = vadd.s32 %v3925, %v3905
      %v3943 = vadd.s32 %v3925, %v3906
      %v3944 = vadd.s32 %v3925, %v3907
      %v3945 = vadd.s32 %v3925, %v3908
      %v3946 = vadd.s32 %v3925, %v3909
      %v3947 = vadd.s32 %v3925, %v3910
      %v3948 = vadd.s32 %v3925, %v3911
      %v3949 = vadd.s32 %v3925, %v3912
      %v3950 = vadd.s32 %v3925, %v3913
      %v3951 = vadd.s32 %v3925, %v3914
      %v3952 = vadd.s32 %v3925, %v3915
      %v3953 = vadd.s32 %v3925, %v3916
      %v3954 = vadd.s32 %v3925, %v3917
      %v3955 = vadd.s32 %v3925, %v3918
      %v3956 = vadd.s32 %v3925, %v3919
      %v3957 = vadd.s32 %v3925, %v3920
      %v3958 = vadd.s32 %v3925, %v3921
      %v3959 = vadd.s32 %v3925, %v3922
      %v3960 = vadd.s32 %v3925, %v3923
      %v3961 = vadd.s32 %v3925, %v3924
      %vm3962 = vcmp.lt.s32.totalorder %v3926, 0
      %v3963 = vsub.s32 0, %v3926
      %v3964 = vsel %vm3962, %v3963, %v3926
      %v3965 = vmul.u32.u64.compose %v3964, 3817748708
      %v3966 = vextract.low.u32 %v3965
      %v3967 = vextract.high.u32 %v3965
      %v3968 = vshrl.u32 %v3967, 4
      %v3969 = vmul.u32 %v3968, 18
      %v3970 = vsub.s32 %v3964, %v3969
      %v3971 = vsub.s32 0, %v3970
      %v3972 = vsel %vm3962, %v3971, %v3970
      %vm3973 = vcmp.lt.s32.totalorder %v3927, 0
      %v3974 = vsub.s32 0, %v3927
      %v3975 = vsel %vm3973, %v3974, %v3927
      %v3976 = vmul.u32.u64.compose %v3975, 3817748708
      %v3977 = vextract.low.u32 %v3976
      %v3978 = vextract.high.u32 %v3976
      %v3979 = vshrl.u32 %v3978, 4
      %v3980 = vmul.u32 %v3979, 18
      %v3981 = vsub.s32 %v3975, %v3980
      %v3982 = vsub.s32 0, %v3981
      %v3983 = vsel %vm3973, %v3982, %v3981
      %vm3984 = vcmp.lt.s32.totalorder %v3928, 0
      %v3985 = vsub.s32 0, %v3928
      %v3986 = vsel %vm3984, %v3985, %v3928
      %v3987 = vmul.u32.u64.compose %v3986, 3817748708
      %v3988 = vextract.low.u32 %v3987
      %v3989 = vextract.high.u32 %v3987
      %v3990 = vshrl.u32 %v3989, 4
      %v3991 = vmul.u32 %v3990, 18
      %v3992 = vsub.s32 %v3986, %v3991
      %v3993 = vsub.s32 0, %v3992
      %v3994 = vsel %vm3984, %v3993, %v3992
      %vm3995 = vcmp.lt.s32.totalorder %v3929, 0
      %v3996 = vsub.s32 0, %v3929
      %v3997 = vsel %vm3995, %v3996, %v3929
      %v3998 = vmul.u32.u64.compose %v3997, 3817748708
      %v3999 = vextract.low.u32 %v3998
      %v4000 = vextract.high.u32 %v3998
      %v4001 = vshrl.u32 %v4000, 4
      %v4002 = vmul.u32 %v4001, 18
      %v4003 = vsub.s32 %v3997, %v4002
      %v4004 = vsub.s32 0, %v4003
      %v4005 = vsel %vm3995, %v4004, %v4003
      %vm4006 = vcmp.lt.s32.totalorder %v3930, 0
      %v4007 = vsub.s32 0, %v3930
      %v4008 = vsel %vm4006, %v4007, %v3930
      %v4009 = vmul.u32.u64.compose %v4008, 3817748708
      %v4010 = vextract.low.u32 %v4009
      %v4011 = vextract.high.u32 %v4009
      %v4012 = vshrl.u32 %v4011, 4
      %v4013 = vmul.u32 %v4012, 18
      %v4014 = vsub.s32 %v4008, %v4013
      %v4015 = vsub.s32 0, %v4014
      %v4016 = vsel %vm4006, %v4015, %v4014
      %vm4017 = vcmp.lt.s32.totalorder %v3931, 0
      %v4018 = vsub.s32 0, %v3931
      %v4019 = vsel %vm4017, %v4018, %v3931
      %v4020 = vmul.u32.u64.compose %v4019, 3817748708
      %v4021 = vextract.low.u32 %v4020
      %v4022 = vextract.high.u32 %v4020
      %v4023 = vshrl.u32 %v4022, 4
      %v4024 = vmul.u32 %v4023, 18
      %v4025 = vsub.s32 %v4019, %v4024
      %v4026 = vsub.s32 0, %v4025
      %v4027 = vsel %vm4017, %v4026, %v4025
      %vm4028 = vcmp.lt.s32.totalorder %v3932, 0
      %v4029 = vsub.s32 0, %v3932
      %v4030 = vsel %vm4028, %v4029, %v3932
      %v4031 = vmul.u32.u64.compose %v4030, 3817748708
      %v4032 = vextract.low.u32 %v4031
      %v4033 = vextract.high.u32 %v4031
      %v4034 = vshrl.u32 %v4033, 4
      %v4035 = vmul.u32 %v4034, 18
      %v4036 = vsub.s32 %v4030, %v4035
      %v4037 = vsub.s32 0, %v4036
      %v4038 = vsel %vm4028, %v4037, %v4036
      %vm4039 = vcmp.lt.s32.totalorder %v3933, 0
      %v4040 = vsub.s32 0, %v3933
      %v4041 = vsel %vm4039, %v4040, %v3933
      %v4042 = vmul.u32.u64.compose %v4041, 3817748708
      %v4043 = vextract.low.u32 %v4042
      %v4044 = vextract.high.u32 %v4042
      %v4045 = vshrl.u32 %v4044, 4
      %v4046 = vmul.u32 %v4045, 18
      %v4047 = vsub.s32 %v4041, %v4046
      %v4048 = vsub.s32 0, %v4047
      %v4049 = vsel %vm4039, %v4048, %v4047
      %vm4050 = vcmp.lt.s32.totalorder %v3934, 0
      %v4051 = vsub.s32 0, %v3934
      %v4052 = vsel %vm4050, %v4051, %v3934
      %v4053 = vmul.u32.u64.compose %v4052, 3817748708
      %v4054 = vextract.low.u32 %v4053
      %v4055 = vextract.high.u32 %v4053
      %v4056 = vshrl.u32 %v4055, 4
      %v4057 = vmul.u32 %v4056, 18
      %v4058 = vsub.s32 %v4052, %v4057
      %v4059 = vsub.s32 0, %v4058
      %v4060 = vsel %vm4050, %v4059, %v4058
      %vm4061 = vcmp.lt.s32.totalorder %v3935, 0
      %v4062 = vsub.s32 0, %v3935
      %v4063 = vsel %vm4061, %v4062, %v3935
      %v4064 = vmul.u32.u64.compose %v4063, 3817748708
      %v4065 = vextract.low.u32 %v4064
      %v4066 = vextract.high.u32 %v4064
      %v4067 = vshrl.u32 %v4066, 4
      %v4068 = vmul.u32 %v4067, 18
      %v4069 = vsub.s32 %v4063, %v4068
      %v4070 = vsub.s32 0, %v4069
      %v4071 = vsel %vm4061, %v4070, %v4069
      %vm4072 = vcmp.lt.s32.totalorder %v3936, 0
      %v4073 = vsub.s32 0, %v3936
      %v4074 = vsel %vm4072, %v4073, %v3936
      %v4075 = vmul.u32.u64.compose %v4074, 3817748708
      %v4076 = vextract.low.u32 %v4075
      %v4077 = vextract.high.u32 %v4075
      %v4078 = vshrl.u32 %v4077, 4
      %v4079 = vmul.u32 %v4078, 18
      %v4080 = vsub.s32 %v4074, %v4079
      %v4081 = vsub.s32 0, %v4080
      %v4082 = vsel %vm4072, %v4081, %v4080
      %vm4083 = vcmp.lt.s32.totalorder %v3937, 0
      %v4084 = vsub.s32 0, %v3937
      %v4085 = vsel %vm4083, %v4084, %v3937
      %v4086 = vmul.u32.u64.compose %v4085, 3817748708
      %v4087 = vextract.low.u32 %v4086
      %v4088 = vextract.high.u32 %v4086
      %v4089 = vshrl.u32 %v4088, 4
      %v4090 = vmul.u32 %v4089, 18
      %v4091 = vsub.s32 %v4085, %v4090
      %v4092 = vsub.s32 0, %v4091
      %v4093 = vsel %vm4083, %v4092, %v4091
      %vm4094 = vcmp.lt.s32.totalorder %v3938, 0
      %v4095 = vsub.s32 0, %v3938
      %v4096 = vsel %vm4094, %v4095, %v3938
      %v4097 = vmul.u32.u64.compose %v4096, 3817748708
      %v4098 = vextract.low.u32 %v4097
      %v4099 = vextract.high.u32 %v4097
      %v4100 = vshrl.u32 %v4099, 4
      %v4101 = vmul.u32 %v4100, 18
      %v4102 = vsub.s32 %v4096, %v4101
      %v4103 = vsub.s32 0, %v4102
      %v4104 = vsel %vm4094, %v4103, %v4102
      %vm4105 = vcmp.lt.s32.totalorder %v3939, 0
      %v4106 = vsub.s32 0, %v3939
      %v4107 = vsel %vm4105, %v4106, %v3939
      %v4108 = vmul.u32.u64.compose %v4107, 3817748708
      %v4109 = vextract.low.u32 %v4108
      %v4110 = vextract.high.u32 %v4108
      %v4111 = vshrl.u32 %v4110, 4
      %v4112 = vmul.u32 %v4111, 18
      %v4113 = vsub.s32 %v4107, %v4112
      %v4114 = vsub.s32 0, %v4113
      %v4115 = vsel %vm4105, %v4114, %v4113
      %vm4116 = vcmp.lt.s32.totalorder %v3940, 0
      %v4117 = vsub.s32 0, %v3940
      %v4118 = vsel %vm4116, %v4117, %v3940
      %v4119 = vmul.u32.u64.compose %v4118, 3817748708
      %v4120 = vextract.low.u32 %v4119
      %v4121 = vextract.high.u32 %v4119
      %v4122 = vshrl.u32 %v4121, 4
      %v4123 = vmul.u32 %v4122, 18
      %v4124 = vsub.s32 %v4118, %v4123
      %v4125 = vsub.s32 0, %v4124
      %v4126 = vsel %vm4116, %v4125, %v4124
      %vm4127 = vcmp.lt.s32.totalorder %v3941, 0
      %v4128 = vsub.s32 0, %v3941
      %v4129 = vsel %vm4127, %v4128, %v3941
      %v4130 = vmul.u32.u64.compose %v4129, 3817748708
      %v4131 = vextract.low.u32 %v4130
      %v4132 = vextract.high.u32 %v4130
      %v4133 = vshrl.u32 %v4132, 4
      %v4134 = vmul.u32 %v4133, 18
      %v4135 = vsub.s32 %v4129, %v4134
      %v4136 = vsub.s32 0, %v4135
      %v4137 = vsel %vm4127, %v4136, %v4135
      %vm4138 = vcmp.lt.s32.totalorder %v3942, 0
      %v4139 = vsub.s32 0, %v3942
      %v4140 = vsel %vm4138, %v4139, %v3942
      %v4141 = vmul.u32.u64.compose %v4140, 3817748708
      %v4142 = vextract.low.u32 %v4141
      %v4143 = vextract.high.u32 %v4141
      %v4144 = vshrl.u32 %v4143, 4
      %v4145 = vmul.u32 %v4144, 18
      %v4146 = vsub.s32 %v4140, %v4145
      %v4147 = vsub.s32 0, %v4146
      %v4148 = vsel %vm4138, %v4147, %v4146
      %vm4149 = vcmp.lt.s32.totalorder %v3943, 0
      %v4150 = vsub.s32 0, %v3943
      %v4151 = vsel %vm4149, %v4150, %v3943
      %v4152 = vmul.u32.u64.compose %v4151, 3817748708
      %v4153 = vextract.low.u32 %v4152
      %v4154 = vextract.high.u32 %v4152
      %v4155 = vshrl.u32 %v4154, 4
      %v4156 = vmul.u32 %v4155, 18
      %v4157 = vsub.s32 %v4151, %v4156
      %v4158 = vsub.s32 0, %v4157
      %v4159 = vsel %vm4149, %v4158, %v4157
      %vm4160 = vcmp.lt.s32.totalorder %v3944, 0
      %v4161 = vsub.s32 0, %v3944
      %v4162 = vsel %vm4160, %v4161, %v3944
      %v4163 = vmul.u32.u64.compose %v4162, 3817748708
      %v4164 = vextract.low.u32 %v4163
      %v4165 = vextract.high.u32 %v4163
      %v4166 = vshrl.u32 %v4165, 4
      %v4167 = vmul.u32 %v4166, 18
      %v4168 = vsub.s32 %v4162, %v4167
      %v4169 = vsub.s32 0, %v4168
      %v4170 = vsel %vm4160, %v4169, %v4168
      %vm4171 = vcmp.lt.s32.totalorder %v3945, 0
      %v4172 = vsub.s32 0, %v3945
      %v4173 = vsel %vm4171, %v4172, %v3945
      %v4174 = vmul.u32.u64.compose %v4173, 3817748708
      %v4175 = vextract.low.u32 %v4174
      %v4176 = vextract.high.u32 %v4174
      %v4177 = vshrl.u32 %v4176, 4
      %v4178 = vmul.u32 %v4177, 18
      %v4179 = vsub.s32 %v4173, %v4178
      %v4180 = vsub.s32 0, %v4179
      %v4181 = vsel %vm4171, %v4180, %v4179
      %vm4182 = vcmp.lt.s32.totalorder %v3946, 0
      %v4183 = vsub.s32 0, %v3946
      %v4184 = vsel %vm4182, %v4183, %v3946
      %v4185 = vmul.u32.u64.compose %v4184, 3817748708
      %v4186 = vextract.low.u32 %v4185
      %v4187 = vextract.high.u32 %v4185
      %v4188 = vshrl.u32 %v4187, 4
      %v4189 = vmul.u32 %v4188, 18
      %v4190 = vsub.s32 %v4184, %v4189
      %v4191 = vsub.s32 0, %v4190
      %v4192 = vsel %vm4182, %v4191, %v4190
      %vm4193 = vcmp.lt.s32.totalorder %v3947, 0
      %v4194 = vsub.s32 0, %v3947
      %v4195 = vsel %vm4193, %v4194, %v3947
      %v4196 = vmul.u32.u64.compose %v4195, 3817748708
      %v4197 = vextract.low.u32 %v4196
      %v4198 = vextract.high.u32 %v4196
      %v4199 = vshrl.u32 %v4198, 4
      %v4200 = vmul.u32 %v4199, 18
      %v4201 = vsub.s32 %v4195, %v4200
      %v4202 = vsub.s32 0, %v4201
      %v4203 = vsel %vm4193, %v4202, %v4201
      %vm4204 = vcmp.lt.s32.totalorder %v3948, 0
      %v4205 = vsub.s32 0, %v3948
      %v4206 = vsel %vm4204, %v4205, %v3948
      %v4207 = vmul.u32.u64.compose %v4206, 3817748708
      %v4208 = vextract.low.u32 %v4207
      %v4209 = vextract.high.u32 %v4207
      %v4210 = vshrl.u32 %v4209, 4
      %v4211 = vmul.u32 %v4210, 18
      %v4212 = vsub.s32 %v4206, %v4211
      %v4213 = vsub.s32 0, %v4212
      %v4214 = vsel %vm4204, %v4213, %v4212
      %vm4215 = vcmp.lt.s32.totalorder %v3949, 0
      %v4216 = vsub.s32 0, %v3949
      %v4217 = vsel %vm4215, %v4216, %v3949
      %v4218 = vmul.u32.u64.compose %v4217, 3817748708
      %v4219 = vextract.low.u32 %v4218
      %v4220 = vextract.high.u32 %v4218
      %v4221 = vshrl.u32 %v4220, 4
      %v4222 = vmul.u32 %v4221, 18
      %v4223 = vsub.s32 %v4217, %v4222
      %v4224 = vsub.s32 0, %v4223
      %v4225 = vsel %vm4215, %v4224, %v4223
      %vm4226 = vcmp.lt.s32.totalorder %v3950, 0
      %v4227 = vsub.s32 0, %v3950
      %v4228 = vsel %vm4226, %v4227, %v3950
      %v4229 = vmul.u32.u64.compose %v4228, 3817748708
      %v4230 = vextract.low.u32 %v4229
      %v4231 = vextract.high.u32 %v4229
      %v4232 = vshrl.u32 %v4231, 4
      %v4233 = vmul.u32 %v4232, 18
      %v4234 = vsub.s32 %v4228, %v4233
      %v4235 = vsub.s32 0, %v4234
      %v4236 = vsel %vm4226, %v4235, %v4234
      %vm4237 = vcmp.lt.s32.totalorder %v3951, 0
      %v4238 = vsub.s32 0, %v3951
      %v4239 = vsel %vm4237, %v4238, %v3951
      %v4240 = vmul.u32.u64.compose %v4239, 3817748708
      %v4241 = vextract.low.u32 %v4240
      %v4242 = vextract.high.u32 %v4240
      %v4243 = vshrl.u32 %v4242, 4
      %v4244 = vmul.u32 %v4243, 18
      %v4245 = vsub.s32 %v4239, %v4244
      %v4246 = vsub.s32 0, %v4245
      %v4247 = vsel %vm4237, %v4246, %v4245
      %vm4248 = vcmp.lt.s32.totalorder %v3952, 0
      %v4249 = vsub.s32 0, %v3952
      %v4250 = vsel %vm4248, %v4249, %v3952
      %v4251 = vmul.u32.u64.compose %v4250, 3817748708
      %v4252 = vextract.low.u32 %v4251
      %v4253 = vextract.high.u32 %v4251
      %v4254 = vshrl.u32 %v4253, 4
      %v4255 = vmul.u32 %v4254, 18
      %v4256 = vsub.s32 %v4250, %v4255
      %v4257 = vsub.s32 0, %v4256
      %v4258 = vsel %vm4248, %v4257, %v4256
      %vm4259 = vcmp.lt.s32.totalorder %v3953, 0
      %v4260 = vsub.s32 0, %v3953
      %v4261 = vsel %vm4259, %v4260, %v3953
      %v4262 = vmul.u32.u64.compose %v4261, 3817748708
      %v4263 = vextract.low.u32 %v4262
      %v4264 = vextract.high.u32 %v4262
      %v4265 = vshrl.u32 %v4264, 4
      %v4266 = vmul.u32 %v4265, 18
      %v4267 = vsub.s32 %v4261, %v4266
      %v4268 = vsub.s32 0, %v4267
      %v4269 = vsel %vm4259, %v4268, %v4267
      %vm4270 = vcmp.lt.s32.totalorder %v3954, 0
      %v4271 = vsub.s32 0, %v3954
      %v4272 = vsel %vm4270, %v4271, %v3954
      %v4273 = vmul.u32.u64.compose %v4272, 3817748708
      %v4274 = vextract.low.u32 %v4273
      %v4275 = vextract.high.u32 %v4273
      %v4276 = vshrl.u32 %v4275, 4
      %v4277 = vmul.u32 %v4276, 18
      %v4278 = vsub.s32 %v4272, %v4277
      %v4279 = vsub.s32 0, %v4278
      %v4280 = vsel %vm4270, %v4279, %v4278
      %vm4281 = vcmp.lt.s32.totalorder %v3955, 0
      %v4282 = vsub.s32 0, %v3955
      %v4283 = vsel %vm4281, %v4282, %v3955
      %v4284 = vmul.u32.u64.compose %v4283, 3817748708
      %v4285 = vextract.low.u32 %v4284
      %v4286 = vextract.high.u32 %v4284
      %v4287 = vshrl.u32 %v4286, 4
      %v4288 = vmul.u32 %v4287, 18
      %v4289 = vsub.s32 %v4283, %v4288
      %v4290 = vsub.s32 0, %v4289
      %v4291 = vsel %vm4281, %v4290, %v4289
      %vm4292 = vcmp.lt.s32.totalorder %v3956, 0
      %v4293 = vsub.s32 0, %v3956
      %v4294 = vsel %vm4292, %v4293, %v3956
      %v4295 = vmul.u32.u64.compose %v4294, 3817748708
      %v4296 = vextract.low.u32 %v4295
      %v4297 = vextract.high.u32 %v4295
      %v4298 = vshrl.u32 %v4297, 4
      %v4299 = vmul.u32 %v4298, 18
      %v4300 = vsub.s32 %v4294, %v4299
      %v4301 = vsub.s32 0, %v4300
      %v4302 = vsel %vm4292, %v4301, %v4300
      %vm4303 = vcmp.lt.s32.totalorder %v3957, 0
      %v4304 = vsub.s32 0, %v3957
      %v4305 = vsel %vm4303, %v4304, %v3957
      %v4306 = vmul.u32.u64.compose %v4305, 3817748708
      %v4307 = vextract.low.u32 %v4306
      %v4308 = vextract.high.u32 %v4306
      %v4309 = vshrl.u32 %v4308, 4
      %v4310 = vmul.u32 %v4309, 18
      %v4311 = vsub.s32 %v4305, %v4310
      %v4312 = vsub.s32 0, %v4311
      %v4313 = vsel %vm4303, %v4312, %v4311
      %vm4314 = vcmp.lt.s32.totalorder %v3958, 0
      %v4315 = vsub.s32 0, %v3958
      %v4316 = vsel %vm4314, %v4315, %v3958
      %v4317 = vmul.u32.u64.compose %v4316, 3817748708
      %v4318 = vextract.low.u32 %v4317
      %v4319 = vextract.high.u32 %v4317
      %v4320 = vshrl.u32 %v4319, 4
      %v4321 = vmul.u32 %v4320, 18
      %v4322 = vsub.s32 %v4316, %v4321
      %v4323 = vsub.s32 0, %v4322
      %v4324 = vsel %vm4314, %v4323, %v4322
      %vm4325 = vcmp.lt.s32.totalorder %v3959, 0
      %v4326 = vsub.s32 0, %v3959
      %v4327 = vsel %vm4325, %v4326, %v3959
      %v4328 = vmul.u32.u64.compose %v4327, 3817748708
      %v4329 = vextract.low.u32 %v4328
      %v4330 = vextract.high.u32 %v4328
      %v4331 = vshrl.u32 %v4330, 4
      %v4332 = vmul.u32 %v4331, 18
      %v4333 = vsub.s32 %v4327, %v4332
      %v4334 = vsub.s32 0, %v4333
      %v4335 = vsel %vm4325, %v4334, %v4333
      %vm4336 = vcmp.lt.s32.totalorder %v3960, 0
      %v4337 = vsub.s32 0, %v3960
      %v4338 = vsel %vm4336, %v4337, %v3960
      %v4339 = vmul.u32.u64.compose %v4338, 3817748708
      %v4340 = vextract.low.u32 %v4339
      %v4341 = vextract.high.u32 %v4339
      %v4342 = vshrl.u32 %v4341, 4
      %v4343 = vmul.u32 %v4342, 18
      %v4344 = vsub.s32 %v4338, %v4343
      %v4345 = vsub.s32 0, %v4344
      %v4346 = vsel %vm4336, %v4345, %v4344
      %vm4347 = vcmp.lt.s32.totalorder %v3961, 0
      %v4348 = vsub.s32 0, %v3961
      %v4349 = vsel %vm4347, %v4348, %v3961
      %v4350 = vmul.u32.u64.compose %v4349, 3817748708
      %v4351 = vextract.low.u32 %v4350
      %v4352 = vextract.high.u32 %v4350
      %v4353 = vshrl.u32 %v4352, 4
      %v4354 = vmul.u32 %v4353, 18
      %v4355 = vsub.s32 %v4349, %v4354
      %v4356 = vsub.s32 0, %v4355
      %v4357 = vsel %vm4347, %v4356, %v4355
      %vm4358 = vcmp.lt.s32.totalorder %v3972, 16
      %vm4359 = vcmp.lt.s32.totalorder %v3983, 16
      %vm4360 = vcmp.lt.s32.totalorder %v3994, 16
      %vm4361 = vcmp.lt.s32.totalorder %v4005, 16
      %vm4362 = vcmp.lt.s32.totalorder %v4016, 16
      %vm4363 = vcmp.lt.s32.totalorder %v4027, 16
      %vm4364 = vcmp.lt.s32.totalorder %v4038, 16
      %vm4365 = vcmp.lt.s32.totalorder %v4049, 16
      %vm4366 = vcmp.lt.s32.totalorder %v4060, 16
      %vm4367 = vcmp.lt.s32.totalorder %v4071, 16
      %vm4368 = vcmp.lt.s32.totalorder %v4082, 16
      %vm4369 = vcmp.lt.s32.totalorder %v4093, 16
      %vm4370 = vcmp.lt.s32.totalorder %v4104, 16
      %vm4371 = vcmp.lt.s32.totalorder %v4115, 16
      %vm4372 = vcmp.lt.s32.totalorder %v4126, 16
      %vm4373 = vcmp.lt.s32.totalorder %v4137, 16
      %vm4374 = vcmp.lt.s32.totalorder %v4148, 16
      %vm4375 = vcmp.lt.s32.totalorder %v4159, 16
      %vm4376 = vcmp.lt.s32.totalorder %v4170, 16
      %vm4377 = vcmp.lt.s32.totalorder %v4181, 16
      %vm4378 = vcmp.lt.s32.totalorder %v4192, 16
      %vm4379 = vcmp.lt.s32.totalorder %v4203, 16
      %vm4380 = vcmp.lt.s32.totalorder %v4214, 16
      %vm4381 = vcmp.lt.s32.totalorder %v4225, 16
      %vm4382 = vcmp.lt.s32.totalorder %v4236, 16
      %vm4383 = vcmp.lt.s32.totalorder %v4247, 16
      %vm4384 = vcmp.lt.s32.totalorder %v4258, 16
      %vm4385 = vcmp.lt.s32.totalorder %v4269, 16
      %vm4386 = vcmp.lt.s32.totalorder %v4280, 16
      %vm4387 = vcmp.lt.s32.totalorder %v4291, 16
      %vm4388 = vcmp.lt.s32.totalorder %v4302, 16
      %vm4389 = vcmp.lt.s32.totalorder %v4313, 16
      %vm4390 = vcmp.lt.s32.totalorder %v4324, 16
      %vm4391 = vcmp.lt.s32.totalorder %v4335, 16
      %vm4392 = vcmp.lt.s32.totalorder %v4346, 16
      %vm4393 = vcmp.lt.s32.totalorder %v4357, 16
      %v4394 = vsel %vm4358, 1, 0
      %v4395 = vsel %vm4359, 1, 0
      %v4396 = vsel %vm4360, 1, 0
      %v4397 = vsel %vm4361, 1, 0
      %v4398 = vsel %vm4362, 1, 0
      %v4399 = vsel %vm4363, 1, 0
      %v4400 = vsel %vm4364, 1, 0
      %v4401 = vsel %vm4365, 1, 0
      %v4402 = vsel %vm4366, 1, 0
      %v4403 = vsel %vm4367, 1, 0
      %v4404 = vsel %vm4368, 1, 0
      %v4405 = vsel %vm4369, 1, 0
      %v4406 = vsel %vm4370, 1, 0
      %v4407 = vsel %vm4371, 1, 0
      %v4408 = vsel %vm4372, 1, 0
      %v4409 = vsel %vm4373, 1, 0
      %v4410 = vsel %vm4374, 1, 0
      %v4411 = vsel %vm4375, 1, 0
      %v4412 = vsel %vm4376, 1, 0
      %v4413 = vsel %vm4377, 1, 0
      %v4414 = vsel %vm4378, 1, 0
      %v4415 = vsel %vm4379, 1, 0
      %v4416 = vsel %vm4380, 1, 0
      %v4417 = vsel %vm4381, 1, 0
      %v4418 = vsel %vm4382, 1, 0
      %v4419 = vsel %vm4383, 1, 0
      %v4420 = vsel %vm4384, 1, 0
      %v4421 = vsel %vm4385, 1, 0
      %v4422 = vsel %vm4386, 1, 0
      %v4423 = vsel %vm4387, 1, 0
      %v4424 = vsel %vm4388, 1, 0
      %v4425 = vsel %vm4389, 1, 0
      %v4426 = vsel %vm4390, 1, 0
      %v4427 = vsel %vm4391, 1, 0
      %v4428 = vsel %vm4392, 1, 0
      %v4429 = vsel %vm4393, 1, 0
      %vm4430 = vcmp.eq.s32.totalorder %v4394, 1
      %vm4431 = vcmp.eq.s32.totalorder %v4395, 1
      %vm4432 = vcmp.eq.s32.totalorder %v4396, 1
      %vm4433 = vcmp.eq.s32.totalorder %v4397, 1
      %vm4434 = vcmp.eq.s32.totalorder %v4398, 1
      %vm4435 = vcmp.eq.s32.totalorder %v4399, 1
      %vm4436 = vcmp.eq.s32.totalorder %v4400, 1
      %vm4437 = vcmp.eq.s32.totalorder %v4401, 1
      %vm4438 = vcmp.eq.s32.totalorder %v4402, 1
      %vm4439 = vcmp.eq.s32.totalorder %v4403, 1
      %vm4440 = vcmp.eq.s32.totalorder %v4404, 1
      %vm4441 = vcmp.eq.s32.totalorder %v4405, 1
      %vm4442 = vcmp.eq.s32.totalorder %v4406, 1
      %vm4443 = vcmp.eq.s32.totalorder %v4407, 1
      %vm4444 = vcmp.eq.s32.totalorder %v4408, 1
      %vm4445 = vcmp.eq.s32.totalorder %v4409, 1
      %vm4446 = vcmp.eq.s32.totalorder %v4410, 1
      %vm4447 = vcmp.eq.s32.totalorder %v4411, 1
      %vm4448 = vcmp.eq.s32.totalorder %v4412, 1
      %vm4449 = vcmp.eq.s32.totalorder %v4413, 1
      %vm4450 = vcmp.eq.s32.totalorder %v4414, 1
      %vm4451 = vcmp.eq.s32.totalorder %v4415, 1
      %vm4452 = vcmp.eq.s32.totalorder %v4416, 1
      %vm4453 = vcmp.eq.s32.totalorder %v4417, 1
      %vm4454 = vcmp.eq.s32.totalorder %v4418, 1
      %vm4455 = vcmp.eq.s32.totalorder %v4419, 1
      %vm4456 = vcmp.eq.s32.totalorder %v4420, 1
      %vm4457 = vcmp.eq.s32.totalorder %v4421, 1
      %vm4458 = vcmp.eq.s32.totalorder %v4422, 1
      %vm4459 = vcmp.eq.s32.totalorder %v4423, 1
      %vm4460 = vcmp.eq.s32.totalorder %v4424, 1
      %vm4461 = vcmp.eq.s32.totalorder %v4425, 1
      %vm4462 = vcmp.eq.s32.totalorder %v4426, 1
      %vm4463 = vcmp.eq.s32.totalorder %v4427, 1
      %vm4464 = vcmp.eq.s32.totalorder %v4428, 1
      %vm4465 = vcmp.eq.s32.totalorder %v4429, 1
      %v4466 = vsel %vm4430, %v3851, 0.0
      %v4467 = vsel %vm4431, %v3852, 0.0
      %v4468 = vsel %vm4432, %v3853, 0.0
      %v4469 = vsel %vm4433, %v3854, 0.0
      %v4470 = vsel %vm4434, %v3855, 0.0
      %v4471 = vsel %vm4435, %v3856, 0.0
      %v4472 = vsel %vm4436, %v3857, 0.0
      %v4473 = vsel %vm4437, %v3858, 0.0
      %v4474 = vsel %vm4438, %v3859, 0.0
      %v4475 = vsel %vm4439, %v3860, 0.0
      %v4476 = vsel %vm4440, %v3861, 0.0
      %v4477 = vsel %vm4441, %v3862, 0.0
      %v4478 = vsel %vm4442, %v3863, 0.0
      %v4479 = vsel %vm4443, %v3864, 0.0
      %v4480 = vsel %vm4444, %v3865, 0.0
      %v4481 = vsel %vm4445, %v3866, 0.0
      %v4482 = vsel %vm4446, %v3867, 0.0
      %v4483 = vsel %vm4447, %v3868, 0.0
      %v4484 = vsel %vm4448, %v3869, 0.0
      %v4485 = vsel %vm4449, %v3870, 0.0
      %v4486 = vsel %vm4450, %v3871, 0.0
      %v4487 = vsel %vm4451, %v3872, 0.0
      %v4488 = vsel %vm4452, %v3873, 0.0
      %v4489 = vsel %vm4453, %v3874, 0.0
      %v4490 = vsel %vm4454, %v3875, 0.0
      %v4491 = vsel %vm4455, %v3876, 0.0
      %v4492 = vsel %vm4456, %v3877, 0.0
      %v4493 = vsel %vm4457, %v3878, 0.0
      %v4494 = vsel %vm4458, %v3879, 0.0
      %v4495 = vsel %vm4459, %v3880, 0.0
      %v4496 = vsel %vm4460, %v3881, 0.0
      %v4497 = vsel %vm4461, %v3882, 0.0
      %v4498 = vsel %vm4462, %v3883, 0.0
      %v4499 = vsel %vm4463, %v3884, 0.0
      %v4500 = vsel %vm4464, %v3885, 0.0
      %v4501 = vsel %vm4465, %v3886, 0.0
      %v4502 = vpack.c.bf16 %v4467, %v4466
      %v4503 = vpack.c.bf16 %v4469, %v4468
      %v4504 = vpack.c.bf16 %v4471, %v4470
      %v4505 = vpack.c.bf16 %v4473, %v4472
      %v4506 = vpack.c.bf16 %v4475, %v4474
      %v4507 = vpack.c.bf16 %v4477, %v4476
      %v4508 = vpack.c.bf16 %v4479, %v4478
      %v4509 = vpack.c.bf16 %v4481, %v4480
      %v4510 = vpack.c.bf16 %v4483, %v4482
      %v4511 = vpack.c.bf16 %v4485, %v4484
      %v4512 = vpack.c.bf16 %v4487, %v4486
      %v4513 = vpack.c.bf16 %v4489, %v4488
      %v4514 = vpack.c.bf16 %v4491, %v4490
      %v4515 = vpack.c.bf16 %v4493, %v4492
      %v4516 = vpack.c.bf16 %v4495, %v4494
      %v4517 = vpack.c.bf16 %v4497, %v4496
      %v4518 = vpack.c.bf16 %v4499, %v4498
      %v4519 = vpack.c.bf16 %v4501, %v4500
      %v4538 = vunpack.c.l.b16 %v4502
      %v4539 = vunpack.c.h.b16 %v4502
      %v4540 = vunpack.c.l.b16 %v4503
      %v4541 = vunpack.c.h.b16 %v4503
      %v4542 = vunpack.c.l.b16 %v4504
      %v4543 = vunpack.c.h.b16 %v4504
      %v4544 = vunpack.c.l.b16 %v4505
      %v4545 = vunpack.c.h.b16 %v4505
      %v4546 = vunpack.c.l.b16 %v4506
      %v4547 = vunpack.c.h.b16 %v4506
      %v4548 = vunpack.c.l.b16 %v4507
      %v4549 = vunpack.c.h.b16 %v4507
      %v4550 = vunpack.c.l.b16 %v4508
      %v4551 = vunpack.c.h.b16 %v4508
      %v4552 = vunpack.c.l.b16 %v4509
      %v4553 = vunpack.c.h.b16 %v4509
      %v4554 = vunpack.c.l.b16 %v4510
      %v4555 = vunpack.c.h.b16 %v4510
      %v4556 = vunpack.c.l.b16 %v4511
      %v4557 = vunpack.c.h.b16 %v4511
      %v4558 = vunpack.c.l.b16 %v4512
      %v4559 = vunpack.c.h.b16 %v4512
      %v4560 = vunpack.c.l.b16 %v4513
      %v4561 = vunpack.c.h.b16 %v4513
      %v4562 = vunpack.c.l.b16 %v4514
      %v4563 = vunpack.c.h.b16 %v4514
      %v4564 = vunpack.c.l.b16 %v4515
      %v4565 = vunpack.c.h.b16 %v4515
      %v4566 = vunpack.c.l.b16 %v4516
      %v4567 = vunpack.c.h.b16 %v4516
      %v4568 = vunpack.c.l.b16 %v4517
      %v4569 = vunpack.c.h.b16 %v4517
      %v4570 = vunpack.c.l.b16 %v4518
      %v4571 = vunpack.c.h.b16 %v4518
      %v4572 = vunpack.c.l.b16 %v4519
      %v4573 = vunpack.c.h.b16 %v4519
      %v4574 = vpack.c.b16 %v4538, %v4538
      %v4575 = vpack.c.b16 %v4539, %v4539
      %v4576 = vpack.c.b16 %v4540, %v4540
      %v4577 = vpack.c.b16 %v4541, %v4541
      %v4578 = vpack.c.b16 %v4542, %v4542
      %v4579 = vpack.c.b16 %v4543, %v4543
      %v4580 = vpack.c.b16 %v4544, %v4544
      %v4581 = vpack.c.b16 %v4545, %v4545
      %v4582 = vpack.c.b16 %v4546, %v4546
      %v4583 = vpack.c.b16 %v4547, %v4547
      %v4584 = vpack.c.b16 %v4548, %v4548
      %v4585 = vpack.c.b16 %v4549, %v4549
      %v4586 = vpack.c.b16 %v4550, %v4550
      %v4587 = vpack.c.b16 %v4551, %v4551
      %v4588 = vpack.c.b16 %v4552, %v4552
      %v4589 = vpack.c.b16 %v4553, %v4553
      %v4590 = vpack.c.b16 %v4554, %v4554
      %v4591 = vpack.c.b16 %v4555, %v4555
      %v4592 = vpack.c.b16 %v4556, %v4556
      %v4593 = vpack.c.b16 %v4557, %v4557
      %v4594 = vpack.c.b16 %v4558, %v4558
      %v4595 = vpack.c.b16 %v4559, %v4559
      %v4596 = vpack.c.b16 %v4560, %v4560
      %v4597 = vpack.c.b16 %v4561, %v4561
      %v4598 = vpack.c.b16 %v4562, %v4562
      %v4599 = vpack.c.b16 %v4563, %v4563
      %v4600 = vpack.c.b16 %v4564, %v4564
      %v4601 = vpack.c.b16 %v4565, %v4565
      %v4602 = vpack.c.b16 %v4566, %v4566
      %v4603 = vpack.c.b16 %v4567, %v4567
      %v4604 = vpack.c.b16 %v4568, %v4568
      %v4605 = vpack.c.b16 %v4569, %v4569
      %v4606 = vpack.c.b16 %v4570, %v4570
      %v4607 = vpack.c.b16 %v4571, %v4571
      %v4608 = vpack.c.b16 %v4572, %v4572
      %v4609 = vpack.c.b16 %v4573, %v4573
      %4646 = vst [vmem:[%s285] sm:$0xf] %v4574
      %4647 = vst [vmem:[%s285 + $0x4] sm:$0xf] %v4575
      %4648 = vst [vmem:[%s285 + $0x8] sm:$0xf] %v4576
      %4649 = vst [vmem:[%s285 + $0xc] sm:$0xf] %v4577
      %4650 = vst [vmem:[%s285 + $0x10] sm:$0xf] %v4578
      %4651 = vst [vmem:[%s285 + $0x14] sm:$0xf] %v4579
      %4652 = vst [vmem:[%s285 + $0x18] sm:$0xf] %v4580
      %4653 = vst [vmem:[%s285 + $0x1c] sm:$0xf] %v4581
      %4654 = vst [vmem:[%s285 + $0x20] sm:$0xf] %v4582
      %4655 = vst [vmem:[%s285 + $0x24] sm:$0xf] %v4583
      %4656 = vst [vmem:[%s285 + $0x28] sm:$0xf] %v4584
      %4657 = vst [vmem:[%s285 + $0x2c] sm:$0xf] %v4585
      %4658 = vst [vmem:[%s285 + $0x30] sm:$0xf] %v4586
      %4659 = vst [vmem:[%s285 + $0x34] sm:$0xf] %v4587
      %4660 = vst [vmem:[%s285 + $0x38] sm:$0xf] %v4588
      %4661 = vst [vmem:[%s285 + $0x3c] sm:$0xf] %v4589
      %4662 = vst [vmem:[%s285 + $0x40] sm:$0xf] %v4590
      %4663 = vst [vmem:[%s285 + $0x44] sm:$0xf] %v4591
      %4664 = vst [vmem:[%s285 + $0x48] sm:$0xf] %v4592
      %4665 = vst [vmem:[%s285 + $0x4c] sm:$0xf] %v4593
      %4666 = vst [vmem:[%s285 + $0x50] sm:$0xf] %v4594
      %4667 = vst [vmem:[%s285 + $0x54] sm:$0xf] %v4595
      %4668 = vst [vmem:[%s285 + $0x58] sm:$0xf] %v4596
      %4669 = vst [vmem:[%s285 + $0x5c] sm:$0xf] %v4597
      %4670 = vst [vmem:[%s285 + $0x60] sm:$0xf] %v4598
      %4671 = vst [vmem:[%s285 + $0x64] sm:$0xf] %v4599
      %4672 = vst [vmem:[%s285 + $0x68] sm:$0xf] %v4600
      %4673 = vst [vmem:[%s285 + $0x6c] sm:$0xf] %v4601
      %4674 = vst [vmem:[%s285 + $0x70] sm:$0xf] %v4602
      %4675 = vst [vmem:[%s285 + $0x74] sm:$0xf] %v4603
      %4676 = vst [vmem:[%s285 + $0x78] sm:$0xf] %v4604
      %4677 = vst [vmem:[%s285 + $0x7c] sm:$0xf] %v4605
      %4678 = vst [vmem:[%s285 + $0x80] sm:$0xf] %v4606
      %4679 = vst [vmem:[%s285 + $0x84] sm:$0xf] %v4607
      %4680 = vst [vmem:[%s285 + $0x88] sm:$0xf] %v4608
      %4681 = vst [vmem:[%s285 + $0x8c] sm:$0xf] %v4609
      %s4682 = smul.u32 36, %s20
      %p4683 = scmp.lt.s32.totalorder %s19, 1
      %s4684 = scalar_select %p4683, %s19, 1
      %p4685 = scmp.lt.s32.totalorder %s4682, 35
      %s4686 = scalar_select %p4685, %s4682, 35
      %s4687 = smul.addr %s4684, 36
      %s4688 = sadd.s32 %s4686, %s4687
      %s4689 = smul.addr %s4688, 4
      %s4690 = scalar_lea.vmem %s4, %s4689
      // Predicated region
      $region37: #{content_loss.11} parent=35 // pred_check
        %p4691 = pneg %p149
      $region38: #{content_loss.11} parent=35 // pred_check_branch
        %4693 = sbr.rel (%p4691) target = $region40
      $region39: #{content_loss.11} parent=35 // pred_region
        %s4694 = smul.u32 36, %s20
      $region40: #{content_loss.11} parent=35 // pred_fallthru
        _
    $region36: #{content_loss.11} parent=5 // pred_fallthru
      _
    %p4695 = scmp.le.s32.totalorder 2, %s10
    // Predicated region
    $region41: #{content_loss.11} parent=5 // pred_check
      %p4696 = pneg %p4695
    $region42: #{content_loss.11} parent=5 // pred_check_branch
      %4698 = sbr.rel (%p4696) target = $region44
    $region43: #{content_loss.11} parent=5 // pred_region
      %s4699 = ssub.s32 %s10, 2
      // Predicated region
      $region45: #{content_loss.11} parent=43 // pred_check
        %p4700 = pneg %p155
      $region46: #{content_loss.11} parent=43 // pred_check_branch
        %4702 = sbr.rel (%p4700) target = $region48
      $region47: #{content_loss.11} parent=43 // pred_region
        %s4703 = smul.u32 36, %s22
        %p4704 = scmp.lt.s32.totalorder %s21, 1
        %s4705 = scalar_select %p4704, %s21, 1
        %p4706 = scmp.lt.s32.totalorder %s4703, 35
        %s4707 = scalar_select %p4706, %s4703, 35
        %s4708 = smul.addr %s4705, 36
        %s4709 = sadd.s32 %s4707, %s4708
        %s4710 = smul.addr %s4709, 4
        %s4711 = scalar_lea.vmem %s4, %s4710
      $region48: #{content_loss.11} parent=43 // pred_fallthru
        _
    $region44: #{content_loss.11} parent=5 // pred_fallthru
      _
  $region6: #{content_loss.11} parent=0 // loop_footer
    %s14 = sadd.s32 1, %s10
  $region7: #{content_loss.11} parent=0 // loop_footer_branch
    %9 = sbr.rel target = $region3
  $region8: #{content_loss.11} parent=0 // loop_exit
    _

// kernel: content_loss.13
$region0: #{content_loss.13}
  #allocation0 [shape = 'u32[]', space=smem, size = 0x4, offset = 0x4, fixed_abs, tag = 'smem constant byte address 0x4 - core index']
  #allocation1 [shape = 'u32[144,128]{1,0:T(1,128)}', space=vmem, size = 0x12000, scoped, tag = 'internal scratch']
  #allocation2 [shape = 'bf16[120,128]{1,0:T(8,128)(2,1)}', space=vmem, size = 0x7800, scoped, tag = 'scratch operand']
  %s0 = inlined_call_operand.vmem [shape: bf16[2,160,128], index: 0, kind: input, shape index: {}, may-alias: {0,1}]
  %s1 = inlined_call_operand.vmem [shape: bf16[2,160,128], index: 1, kind: input, shape index: {}, may-alias: {0,1}]
  %s2 = inlined_call_operand.vmem [shape: bf16[1152,128], index: 2, kind: input, shape index: {}]
  %s3 = inlined_call_operand.vmem [shape: f32[1,128], index: 3, kind: input, shape index: {}]
  %s4 = inlined_call_operand.vmem [shape: bf16[2,80,128], index: 4, kind: output, shape index: {}]
  %s5 = sld [smem:[#allocation0]]
  $region49: #{content_loss.13} parent=0
    _
  %s7 = ssub.s32 1, %s5
  %s8 = scalar_select 0, %s7, %s5
  loop: start=0, step=1, limit=4
  $region2: #{content_loss.13} parent=0 // loop_pre_header
    _
  $region3: #{content_loss.13} parent=0 // loop_header
    %s10 = sphi 0, %s14
    %p11 = scmp.ge.s32.totalorder %s10, 4
    %s17 = sphi 0, %s29
    %s18 = sphi 0, %s25
    %s19 = sphi 0, %s17
    %s20 = sphi 0, %s18
    %s21 = sphi 0, %s19
    %s22 = sphi 0, %s20
    %s34 = sphi 0, %s36
    %s37 = sphi 0, %s34
    %s38 = sphi 0, %s37
    %s54 = sphi 0, %s38
    %s66 = sphi 0, %s68
    %s69 = sphi 0, %s66
    %s70 = sphi 0, %s69
    %s86 = sphi 0, %s70
    %s90 = sphi 0, %s90
    %s92 = sphi 0, %s90
    %s93 = sphi 0, %s92
    %s107 = sphi 0, %s93
    %s111 = sphi 0, %s111
    %s113 = sphi 0, %s111
    %s114 = sphi 0, %s113
    %s128 = sphi 0, %s114
    %s136 = sphi 0, %s138
    %s139 = sphi 0, %s136
    %s140 = sphi 0, %s139
    %s156 = sphi 0, %s140
  $region4: #{content_loss.13} parent=0 // loop_header_branch
    %13 = sbr.rel (%p11) target = $region8
  $region5: #{content_loss.13} parent=0 // loop_body
    %s15 = ssub.s32 %s10, 1
    %s16 = ssub.s32 %s10, 2
    %s23 = sadd.s32 1, %s18
    %p24 = scmp.ge.s32.totalorder %s23, 1
    %s25 = scalar_select %p24, 0, %s23
    %s26 = sadd.s32 1, %s17
    %s27 = scalar_select %p24, %s26, %s17
    %p28 = scmp.ge.s32.totalorder %s27, 2
    %s29 = scalar_select %p28, 0, %s27
    %s30 = ssub.s32 %s17, %s29
    %s31 = ssub.s32 %s18, %s25
    %s32 = sor.u32 %s30, %s31
    %p33 = scmp.eq.s32.totalorder %s32, 0
    %s35 = sadd.s32 %s34, 1
    %s36 = scalar_select %p33, %s34, %s35
    %p39 = pneg %p33
    %p40 = scmp.eq.s32.totalorder %s10, 1
    %p41 = por %p39, %p40
    %p42 = scmp.ne.s32.totalorder %s34, %s37
    %p43 = scmp.eq.s32.totalorder %s10, 0
    %p44 = por %p42, %p43
    %p45 = scmp.ne.s32.totalorder %s34, %s37
    %p46 = scmp.eq.s32.totalorder %s15, 1
    %p47 = por %p45, %p46
    %p48 = scmp.ne.s32.totalorder %s37, %s38
    %p49 = scmp.eq.s32.totalorder %s15, 0
    %p50 = por %p48, %p49
    %p51 = scmp.ne.s32.totalorder %s37, %s38
    %p52 = scmp.eq.s32.totalorder %s16, 1
    %p53 = por %p51, %p52
    %p55 = scmp.ne.s32.totalorder %s38, %s54
    %p56 = scmp.eq.s32.totalorder %s16, 0
    %p57 = por %p55, %p56
    %s58 = sadd.s32 %s18, 1
    %s59 = smul.u32 %s58, 2
    %s60 = sadd.s32 %s25, 1
    %s61 = smul.u32 %s60, 2
    %s62 = ssub.s32 %s17, %s29
    %s63 = ssub.s32 %s59, %s61
    %s64 = sor.u32 %s62, %s63
    %p65 = scmp.eq.s32.totalorder %s64, 0
    %s67 = sadd.s32 %s66, 1
    %s68 = scalar_select %p65, %s66, %s67
    %p71 = pneg %p65
    %p72 = scmp.eq.s32.totalorder %s10, 1
    %p73 = por %p71, %p72
    %p74 = scmp.ne.s32.totalorder %s66, %s69
    %p75 = scmp.eq.s32.totalorder %s10, 0
    %p76 = por %p74, %p75
    %p77 = scmp.ne.s32.totalorder %s66, %s69
    %p78 = scmp.eq.s32.totalorder %s15, 1
    %p79 = por %p77, %p78
    %p80 = scmp.ne.s32.totalorder %s69, %s70
    %p81 = scmp.eq.s32.totalorder %s15, 0
    %p82 = por %p80, %p81
    %p83 = scmp.ne.s32.totalorder %s69, %s70
    %p84 = scmp.eq.s32.totalorder %s16, 1
    %p85 = por %p83, %p84
    %p87 = scmp.ne.s32.totalorder %s70, %s86
    %p88 = scmp.eq.s32.totalorder %s16, 0
    %p89 = por %p87, %p88
    %s91 = sadd.s32 %s90, 1
    %p94 = scmp.eq.s32.totalorder %s10, 1
    %p95 = scmp.ne.s32.totalorder %s90, %s92
    %p96 = scmp.eq.s32.totalorder %s10, 0
    %p97 = por %p95, %p96
    %p98 = scmp.ne.s32.totalorder %s90, %s92
    %p99 = scmp.eq.s32.totalorder %s15, 1
    %p100 = por %p98, %p99
    %p101 = scmp.ne.s32.totalorder %s92, %s93
    %p102 = scmp.eq.s32.totalorder %s15, 0
    %p103 = por %p101, %p102
    %p104 = scmp.ne.s32.totalorder %s92, %s93
    %p105 = scmp.eq.s32.totalorder %s16, 1
    %p106 = por %p104, %p105
    %p108 = scmp.ne.s32.totalorder %s93, %s107
    %p109 = scmp.eq.s32.totalorder %s16, 0
    %p110 = por %p108, %p109
    %s112 = sadd.s32 %s111, 1
    %p115 = scmp.eq.s32.totalorder %s10, 1
    %p116 = scmp.ne.s32.totalorder %s111, %s113
    %p117 = scmp.eq.s32.totalorder %s10, 0
    %p118 = por %p116, %p117
    %p119 = scmp.ne.s32.totalorder %s111, %s113
    %p120 = scmp.eq.s32.totalorder %s15, 1
    %p121 = por %p119, %p120
    %p122 = scmp.ne.s32.totalorder %s113, %s114
    %p123 = scmp.eq.s32.totalorder %s15, 0
    %p124 = por %p122, %p123
    %p125 = scmp.ne.s32.totalorder %s113, %s114
    %p126 = scmp.eq.s32.totalorder %s16, 1
    %p127 = por %p125, %p126
    %p129 = scmp.ne.s32.totalorder %s114, %s128
    %p130 = scmp.eq.s32.totalorder %s16, 0
    %p131 = por %p129, %p130
    %s132 = ssub.s32 %s17, %s29
    %s133 = ssub.s32 %s18, %s25
    %s134 = sor.u32 %s132, %s133
    %p135 = scmp.eq.s32.totalorder %s134, 0
    %s137 = sadd.s32 %s136, 1
    %s138 = scalar_select %p135, %s136, %s137
    %p141 = pneg %p135
    %p142 = scmp.eq.s32.totalorder %s10, 1
    %p143 = por %p141, %p142
    %p144 = scmp.ne.s32.totalorder %s136, %s139
    %p145 = scmp.eq.s32.totalorder %s10, 0
    %p146 = por %p144, %p145
    %p147 = scmp.ne.s32.totalorder %s136, %s139
    %p148 = scmp.eq.s32.totalorder %s15, 1
    %p149 = por %p147, %p148
    %p150 = scmp.ne.s32.totalorder %s139, %s140
    %p151 = scmp.eq.s32.totalorder %s15, 0
    %p152 = por %p150, %p151
    %p153 = scmp.ne.s32.totalorder %s139, %s140
    %p154 = scmp.eq.s32.totalorder %s16, 1
    %p155 = por %p153, %p154
    %p157 = scmp.ne.s32.totalorder %s140, %s156
    %p158 = scmp.eq.s32.totalorder %s16, 0
    %p159 = por %p157, %p158
    %p160 = scmp.le.s32.totalorder 1, %s10
    %p161 = scmp.lt.s32.totalorder %s10, 3
    %p162 = pnand %p160, %p161
    %p163 = pneg %p162
    // Predicated region
    $region9: #{content_loss.13} parent=5 // pred_check
      _
    $region10: #{content_loss.13} parent=5 // pred_check_branch
      %165 = sbr.rel (%p162) target = $region12
    $region11: #{content_loss.13} parent=5 // pred_region
      %s166 = ssub.s32 %s10, 1
      // Predicated region
      $region13: #{content_loss.13} parent=11 // pred_check
        %p167 = pneg %p103
      $region14: #{content_loss.13} parent=11 // pred_check_branch
        %169 = sbr.rel (%p167) target = $region16
      $region15: #{content_loss.13} parent=11 // pred_region
        _
      $region16: #{content_loss.13} parent=11 // pred_fallthru
        _
      // Predicated region
      $region17: #{content_loss.13} parent=11 // pred_check
        %p170 = pneg %p124
      $region18: #{content_loss.13} parent=11 // pred_check_branch
        %172 = sbr.rel (%p170) target = $region20
      $region19: #{content_loss.13} parent=11 // pred_region
        _
      $region20: #{content_loss.13} parent=11 // pred_fallthru
        _
    $region12: #{content_loss.13} parent=5 // pred_fallthru
      _
    %p173 = scmp.lt.s32.totalorder %s10, 2
    // Predicated region
    $region21: #{content_loss.13} parent=5 // pred_check
      %p174 = pneg %p173
    $region22: #{content_loss.13} parent=5 // pred_check_branch
      %176 = sbr.rel (%p174) target = $region24
    $region23: #{content_loss.13} parent=5 // pred_region
      // Predicated region
      $region25: #{content_loss.13} parent=23 // pred_check
        %p177 = pneg %p44
      $region26: #{content_loss.13} parent=23 // pred_check_branch
        %179 = sbr.rel (%p177) target = $region28
      $region27: #{content_loss.13} parent=23 // pred_region
        %s180 = smul.u32 10, %s18
        %p181 = scmp.lt.s32.totalorder %s17, 1
        %s182 = scalar_select %p181, %s17, 1
        %p183 = scmp.lt.s32.totalorder %s180, 19
        %s184 = scalar_select %p183, %s180, 19
        %s185 = smul.addr %s182, 20
        %s186 = sadd.s32 %s184, %s185
        %s187 = smul.addr %s186, 4
        %s188 = scalar_lea.vmem %s0, %s187
        %s189 = smul.u32 10, %s18
      $region28: #{content_loss.13} parent=23 // pred_fallthru
        _
      // Predicated region
      $region29: #{content_loss.13} parent=23 // pred_check
        %p190 = pneg %p76
      $region30: #{content_loss.13} parent=23 // pred_check_branch
        %192 = sbr.rel (%p190) target = $region32
      $region31: #{content_loss.13} parent=23 // pred_region
        %s193 = sadd.s32 %s18, 1
        %s194 = smul.u32 %s193, 2
        %s195 = smul.u32 5, %s194
        %p196 = scmp.lt.s32.totalorder %s17, 1
        %s197 = scalar_select %p196, %s17, 1
        %p198 = scmp.lt.s32.totalorder %s195, 19
        %s199 = scalar_select %p198, %s195, 19
        %s200 = smul.addr %s197, 20
        %s201 = sadd.s32 %s199, %s200
        %s202 = smul.addr %s201, 4
        %s203 = scalar_lea.vmem %s1, %s202
        %s204 = sadd.s32 %s18, 1
        %s205 = smul.u32 %s204, 2
        %s206 = smul.u32 5, %s205
      $region32: #{content_loss.13} parent=23 // pred_fallthru
        _
    $region24: #{content_loss.13} parent=5 // pred_fallthru
      _
    %p207 = scmp.le.s32.totalorder 1, %s10
    %p208 = scmp.lt.s32.totalorder %s10, 3
    %p209 = pnand %p207, %p208
    %p210 = pneg %p209
    // Predicated region
    $region33: #{content_loss.13} parent=5 // pred_check
      _
    $region34: #{content_loss.13} parent=5 // pred_check_branch
      %212 = sbr.rel (%p209) target = $region36
    $region35: #{content_loss.13} parent=5 // pred_region
      %s213 = ssub.s32 %s10, 1
      %s214 = smul.u32 10, %s20
      %p215 = scmp.lt.s32.totalorder %s19, 1
      %s216 = scalar_select %p215, %s19, 1
      %p217 = scmp.lt.s32.totalorder %s214, 19
      %s218 = scalar_select %p217, %s214, 19
      %s219 = smul.addr %s216, 20
      %s220 = sadd.s32 %s218, %s219
      %s221 = smul.addr %s220, 4
      %s222 = scalar_lea.vmem %s0, %s221
      %p223 = pneg %p50
      %p224 = pneg %p47
      %s225 = sadd.s32 %s20, 1
      %s226 = smul.u32 %s225, 2
      %s227 = smul.u32 5, %s226
      %p228 = scmp.lt.s32.totalorder %s19, 1
      %s229 = scalar_select %p228, %s19, 1
      %p230 = scmp.lt.s32.totalorder %s227, 19
      %s231 = scalar_select %p230, %s227, 19
      %s232 = smul.addr %s229, 20
      %s233 = sadd.s32 %s231, %s232
      %s234 = smul.addr %s233, 4
      %s235 = scalar_lea.vmem %s1, %s234
      %p236 = pneg %p82
      %p237 = pneg %p79
      %p238 = pneg %p103
      %p239 = pneg %p100
      %p240 = pneg %p124
      %p241 = pneg %p121
      %p242 = pneg %p152
      %p243 = pneg %p149
      %s244 = smul.u32 10, %s20
      %p245 = scmp.lt.s32.totalorder %s19, 1
      %s246 = scalar_select %p245, %s19, 1
      %p247 = scmp.lt.s32.totalorder %s244, 9
      %s248 = scalar_select %p247, %s244, 9
      %s249 = smul.addr %s246, 10
      %s250 = sadd.s32 %s248, %s249
      %s251 = smul.addr %s250, 4
      %s252 = scalar_lea.vmem %s4, %s251
      %s253 = smul.u32 10, %s20
      %p254 = scmp.lt.s32.totalorder %s19, 1
      %s255 = scalar_select %p254, %s19, 1
      %p256 = scmp.lt.s32.totalorder %s253, 19
      %s257 = scalar_select %p256, %s253, 19
      %s258 = smul.addr %s255, 20
      %s259 = sadd.s32 %s257, %s258
      %s260 = smul.addr %s259, 4
      %s261 = scalar_lea.vmem %s0, %s260
      %s262 = smul.u32 10, %s20
      %s263 = sadd.s32 %s20, 1
      %s264 = smul.u32 %s263, 2
      %s265 = smul.u32 5, %s264
      %p266 = scmp.lt.s32.totalorder %s19, 1
      %s267 = scalar_select %p266, %s19, 1
      %p268 = scmp.lt.s32.totalorder %s265, 19
      %s269 = scalar_select %p268, %s265, 19
      %s270 = smul.addr %s267, 20
      %s271 = sadd.s32 %s269, %s270
      %s272 = smul.addr %s271, 4
      %s273 = scalar_lea.vmem %s1, %s272
      %s274 = sadd.s32 %s20, 1
      %s275 = smul.u32 %s274, 2
      %s276 = smul.u32 5, %s275
      %s277 = smul.u32 10, %s20
      %p278 = scmp.lt.s32.totalorder %s19, 1
      %s279 = scalar_select %p278, %s19, 1
      %p280 = scmp.lt.s32.totalorder %s277, 9
      %s281 = scalar_select %p280, %s277, 9
      %s282 = smul.addr %s279, 10
      %s283 = sadd.s32 %s281, %s282
      %s284 = smul.addr %s283, 4
      %s285 = scalar_lea.vmem %s4, %s284
      %s286 = smul.u32 10, %s20
      %v288 = vld [vmem:[%s261] sm:$0xf]
      %v289 = vld [vmem:[%s261 + $0x4] sm:$0xf]
      %v290 = vld [vmem:[%s261 + $0x8] sm:$0xf]
      %v291 = vld [vmem:[%s261 + $0xc] sm:$0xf]
      %v292 = vld [vmem:[%s261 + $0x10] sm:$0xf]
      %v293 = vld [vmem:[%s261 + $0x14] sm:$0xf]
      %v294 = vld [vmem:[%s261 + $0x18] sm:$0xf]
      %v295 = vld [vmem:[%s261 + $0x1c] sm:$0xf]
      %v296 = vld [vmem:[%s261 + $0x20] sm:$0xf]
      %v297 = vld [vmem:[%s261 + $0x24] sm:$0xf]
      %298 = vst [vmem:[#allocation2] sm:$0xf] %v288
      %299 = vst [vmem:[#allocation2 + $0x4] sm:$0xf] %v289
      %300 = vst [vmem:[#allocation2 + $0x8] sm:$0xf] %v290
      %301 = vst [vmem:[#allocation2 + $0xc] sm:$0xf] %v291
      %302 = vst [vmem:[#allocation2 + $0x10] sm:$0xf] %v292
      %303 = vst [vmem:[#allocation2 + $0x14] sm:$0xf] %v293
      %304 = vst [vmem:[#allocation2 + $0x18] sm:$0xf] %v294
      %305 = vst [vmem:[#allocation2 + $0x1c] sm:$0xf] %v295
      %306 = vst [vmem:[#allocation2 + $0x20] sm:$0xf] %v296
      %307 = vst [vmem:[#allocation2 + $0x24] sm:$0xf] %v297
      %v308 = vld [vmem:[%s273] sm:$0xf]
      %v309 = vld [vmem:[%s273 + $0x4] sm:$0xf]
      %v310 = vld [vmem:[%s273 + $0x8] sm:$0xf]
      %v311 = vld [vmem:[%s273 + $0xc] sm:$0xf]
      %v312 = vld [vmem:[%s273 + $0x10] sm:$0xf]
      %313 = vst [vmem:[#allocation2 + $0x28] sm:$0xf] %v308
      %314 = vst [vmem:[#allocation2 + $0x2c] sm:$0xf] %v309
      %315 = vst [vmem:[#allocation2 + $0x30] sm:$0xf] %v310
      %316 = vst [vmem:[#allocation2 + $0x34] sm:$0xf] %v311
      %317 = vst [vmem:[#allocation2 + $0x38] sm:$0xf] %v312
      %v318 = vld [vmem:[#allocation2] sm:$0xf]
      %v319 = vld [vmem:[#allocation2 + $0x4] sm:$0xf]
      %v320 = vld [vmem:[#allocation2 + $0x8] sm:$0xf]
      %v321 = vld [vmem:[#allocation2 + $0xc] sm:$0xf]
      %v322 = vld [vmem:[#allocation2 + $0x10] sm:$0xf]
      %v323 = vld [vmem:[#allocation2 + $0x14] sm:$0xf]
      %v324 = vld [vmem:[#allocation2 + $0x18] sm:$0xf]
      %v325 = vld [vmem:[#allocation2 + $0x1c] sm:$0xf]
      %v326 = vld [vmem:[#allocation2 + $0x20] sm:$0xf]
      %v327 = vld [vmem:[#allocation2 + $0x24] sm:$0xf]
      %v328 = vld [vmem:[%s2] sm:$0xf]
      %v329 = vld [vmem:[%s2 + $0x4] sm:$0xf]
      %v330 = vld [vmem:[%s2 + $0x8] sm:$0xf]
      %v331 = vld [vmem:[%s2 + $0xc] sm:$0xf]
      %v332 = vld [vmem:[%s2 + $0x10] sm:$0xf]
      %v333 = vld [vmem:[%s2 + $0x14] sm:$0xf]
      %v334 = vld [vmem:[%s2 + $0x18] sm:$0xf]
      %v335 = vld [vmem:[%s2 + $0x1c] sm:$0xf]
      %v336 = vld [vmem:[%s2 + $0x20] sm:$0xf]
      %v337 = vld [vmem:[%s2 + $0x24] sm:$0xf]
      %v338 = vld [vmem:[%s2 + $0x28] sm:$0xf]
      %v339 = vld [vmem:[%s2 + $0x2c] sm:$0xf]
      %v340 = vld [vmem:[%s2 + $0x30] sm:$0xf]
      %v341 = vld [vmem:[%s2 + $0x34] sm:$0xf]
      %v342 = vld [vmem:[%s2 + $0x38] sm:$0xf]
      %v343 = vld [vmem:[%s2 + $0x3c] sm:$0xf]
      %v344 = vld [vmem:[#allocation2 + $0x28] sm:$0x1]
      %v345 = vld [vmem:[%s2 + $0x40] sm:$0xf]
      %v346 = vld [vmem:[%s2 + $0x44] sm:$0xf]
      %v347 = vld [vmem:[%s2 + $0x48] sm:$0xf]
      %v348 = vld [vmem:[%s2 + $0x4c] sm:$0xf]
      %v349 = vld [vmem:[%s2 + $0x50] sm:$0xf]
      %v350 = vld [vmem:[%s2 + $0x54] sm:$0xf]
      %v351 = vld [vmem:[%s2 + $0x58] sm:$0xf]
      %v352 = vld [vmem:[%s2 + $0x5c] sm:$0xf]
      %v353 = vld [vmem:[%s2 + $0x60] sm:$0xf]
      %v354 = vld [vmem:[%s2 + $0x64] sm:$0xf]
      %v355 = vld [vmem:[%s2 + $0x68] sm:$0xf]
      %v356 = vld [vmem:[%s2 + $0x6c] sm:$0xf]
      %v357 = vld [vmem:[%s2 + $0x70] sm:$0xf]
      %v358 = vld [vmem:[%s2 + $0x74] sm:$0xf]
      %v359 = vld [vmem:[%s2 + $0x78] sm:$0xf]
      %v360 = vld [vmem:[%s2 + $0x7c] sm:$0xf]
      %v372 = vunpack.c.l.b16 %v318
      %v373 = vunpack.c.l.b16 %v319
      %v374 = vunpack.c.l.b16 %v320
      %v375 = vunpack.c.l.b16 %v321
      %v376 = vunpack.c.l.b16 %v322
      %v377 = vunpack.c.l.b16 %v323
      %v378 = vunpack.c.l.b16 %v324
      %v379 = vunpack.c.l.b16 %v325
      %v380 = vunpack.c.l.b16 %v326
      %v381 = vunpack.c.l.b16 %v327
      %v382 = vunpack.c.l.b16 %v344
      %v383 = vpack.c.b16 %v373, %v372
      %v384 = vpack.c.b16 %v375, %v374
      %v385 = vpack.c.b16 %v377, %v376
      %v386 = vpack.c.b16 %v379, %v378
      %v387 = vpack.c.b16 %v381, %v380
      %v388 = vpack.c.b16 %v382, %v382
      %vm389 = vsmask.f32 7424
      %v391 = vshrl.u32 %v383, 16
      %v393 = vshll.u32 %v383, 16
      %v395 = vrot.slane %v393, 1
      %v396 = vor.u32 %v391, %v395
      %v398 = vshll.u32 %v384, 16
      %v400 = vrot.slane %v398, 1
      %v401 = vsel %vm389, %v396, %v400
      %v402 = vshrl.u32 %v384, 16
      %v404 = vor.u32 %v402, %v400
      %v406 = vshll.u32 %v385, 16
      %v408 = vrot.slane %v406, 1
      %v409 = vsel %vm389, %v404, %v408
      %v410 = vshrl.u32 %v385, 16
      %v412 = vor.u32 %v410, %v408
      %v414 = vshll.u32 %v386, 16
      %v416 = vrot.slane %v414, 1
      %v417 = vsel %vm389, %v412, %v416
      %v418 = vshrl.u32 %v386, 16
      %v420 = vor.u32 %v418, %v416
      %v422 = vshll.u32 %v387, 16
      %v424 = vrot.slane %v422, 1
      %v425 = vsel %vm389, %v420, %v424
      %v426 = vshrl.u32 %v387, 16
      %v428 = vor.u32 %v426, %v424
      %v430 = vshll.u32 %v388, 16
      %v432 = vrot.slane %v430, 1
      %v433 = vsel %vm389, %v428, %v432
      %v455 = vunpack.c.l.b16 %v345
      %v456 = vunpack.c.l.b16 %v346
      %v457 = vunpack.c.l.b16 %v347
      %v458 = vunpack.c.l.b16 %v348
      %v459 = vunpack.c.l.b16 %v349
      %v460 = vunpack.c.l.b16 %v350
      %v461 = vunpack.c.l.b16 %v351
      %v462 = vunpack.c.l.b16 %v352
      %v463 = vunpack.c.l.b16 %v353
      %v464 = vunpack.c.l.b16 %v354
      %v465 = vunpack.c.l.b16 %v355
      %v466 = vunpack.c.l.b16 %v356
      %v467 = vunpack.c.l.b16 %v357
      %v468 = vunpack.c.l.b16 %v358
      %v469 = vunpack.c.l.b16 %v359
      %v470 = vunpack.c.l.b16 %v360
      %v471 = vpack.c.b16 %v456, %v455
      %v472 = vpack.c.b16 %v458, %v457
      %v473 = vpack.c.b16 %v460, %v459
      %v474 = vpack.c.b16 %v462, %v461
      %v475 = vpack.c.b16 %v464, %v463
      %v476 = vpack.c.b16 %v466, %v465
      %v477 = vpack.c.b16 %v468, %v467
      %v478 = vpack.c.b16 %v470, %v469
      %487 = vmatprep.subr.bf16.mxu0 0
      %488 = vmatpush1.bf16.msra.mxu0 %v471
      %489 = vmatprep.subr.bf16.mxu0 0
      %490 = vmatpush1.bf16.msra.mxu0 %v472
      %491 = vmatprep.subr.bf16.mxu0 0
      %492 = vmatpush1.bf16.msra.mxu0 %v473
      %493 = vmatprep.subr.bf16.mxu0 0
      %494 = vmatpush1.bf16.msra.mxu0 %v474
      %495 = vmatprep.subr.bf16.mxu0 0
      %496 = vmatpush1.bf16.msra.mxu0 %v475
      %497 = vmatprep.subr.bf16.mxu0 0
      %498 = vmatpush1.bf16.msra.mxu0 %v476
      %499 = vmatprep.subr.bf16.mxu0 0
      %500 = vmatpush1.bf16.msra.mxu0 %v477
      %501 = vmatprep.subr.bf16.mxu0 0
      %502 = vmatpush1.bf16.msra.mxu0 %v478
      %503 = vmatprep.subr.bf16.mxu0 0
      %504 = vmatpush1.bf16.msra.mxu0 0
      %505 = vmatprep.subr.bf16.mxu0 0
      %506 = vmatpush1.bf16.msra.mxu0 0
      %507 = vmatprep.subr.bf16.mxu0 0
      %508 = vmatpush1.bf16.msra.mxu0 0
      %509 = vmatprep.subr.bf16.mxu0 0
      %510 = vmatpush1.bf16.msra.mxu0 0
      %511 = vmatprep.subr.bf16.mxu0 0
      %512 = vmatpush1.bf16.msra.mxu0 0
      %513 = vmatprep.subr.bf16.mxu0 0
      %514 = vmatpush1.bf16.msra.mxu0 0
      %515 = vmatprep.subr.bf16.mxu0 0
      %516 = vmatpush1.bf16.msra.mxu0 0
      %517 = vmatprep.subr.bf16.mxu0 0
      %518 = vmatpush1.bf16.msra.mxu0 0
      %519 = vmatprep.mubr.bf16.mxu0 0
      %520 = vmatmul.mubr.bf16.gmra.mrb[0].mxu0 %v401
      %v521 = vpop.f32.mrb[0].mxu0
      %v522 = vadd.f32 0.0, %v521
      %v523 = vpop.f32.mrb[0].mxu0
      %v524 = vpop.f32.mrb[0].mxu0
      %v525 = vadd.f32 0.0, %v524
      %v526 = vpop.f32.mrb[0].mxu0
      %527 = vmatprep.mubr.bf16.mxu0 0
      %528 = vmatmul.mubr.bf16.gmra.mrb[0].mxu0 %v409
      %v529 = vpop.f32.mrb[0].mxu0
      %v530 = vadd.f32 0.0, %v529
      %v531 = vpop.f32.mrb[0].mxu0
      %v532 = vpop.f32.mrb[0].mxu0
      %v533 = vadd.f32 0.0, %v532
      %v534 = vpop.f32.mrb[0].mxu0
      %535 = vmatprep.mubr.bf16.mxu0 0
      %536 = vmatmul.mubr.bf16.gmra.mrb[0].mxu0 %v417
      %v537 = vpop.f32.mrb[0].mxu0
      %v538 = vadd.f32 0.0, %v537
      %v539 = vpop.f32.mrb[0].mxu0
      %v540 = vpop.f32.mrb[0].mxu0
      %v541 = vadd.f32 0.0, %v540
      %v542 = vpop.f32.mrb[0].mxu0
      %543 = vmatprep.mubr.bf16.mxu0 0
      %544 = vmatmul.mubr.bf16.gmra.mrb[0].mxu0 %v425
      %v545 = vpop.f32.mrb[0].mxu0
      %v546 = vadd.f32 0.0, %v545
      %v547 = vpop.f32.mrb[0].mxu0
      %v548 = vpop.f32.mrb[0].mxu0
      %v549 = vadd.f32 0.0, %v548
      %v550 = vpop.f32.mrb[0].mxu0
      %551 = vmatprep.mubr.bf16.mxu0 0
      %552 = vmatmul.mubr.bf16.gmra.mrb[0].mxu0 %v433
      %v553 = vpop.f32.mrb[0].mxu0
      %v554 = vadd.f32 0.0, %v553
      %v555 = vpop.f32.mrb[0].mxu0
      %v556 = vpop.f32.mrb[0].mxu0
      %v557 = vadd.f32 0.0, %v556
      %v558 = vpop.f32.mrb[0].mxu0
      %559 = vdwg.mxu0
      %v581 = vunpack.c.l.b16 %v328
      %v582 = vunpack.c.l.b16 %v329
      %v583 = vunpack.c.l.b16 %v330
      %v584 = vunpack.c.l.b16 %v331
      %v585 = vunpack.c.l.b16 %v332
      %v586 = vunpack.c.l.b16 %v333
      %v587 = vunpack.c.l.b16 %v334
      %v588 = vunpack.c.l.b16 %v335
      %v589 = vunpack.c.l.b16 %v336
      %v590 = vunpack.c.l.b16 %v337
      %v591 = vunpack.c.l.b16 %v338
      %v592 = vunpack.c.l.b16 %v339
      %v593 = vunpack.c.l.b16 %v340
      %v594 = vunpack.c.l.b16 %v341
      %v595 = vunpack.c.l.b16 %v342
      %v596 = vunpack.c.l.b16 %v343
      %v597 = vpack.c.b16 %v582, %v581
      %v598 = vpack.c.b16 %v584, %v583
      %v599 = vpack.c.b16 %v586, %v585
      %v600 = vpack.c.b16 %v588, %v587
      %v601 = vpack.c.b16 %v590, %v589
      %v602 = vpack.c.b16 %v592, %v591
      %v603 = vpack.c.b16 %v594, %v593
      %v604 = vpack.c.b16 %v596, %v595
      %613 = vmatprep.subr.bf16.mxu0 0
      %614 = vmatpush1.bf16.msra.mxu0 %v597
      %615 = vmatprep.subr.bf16.mxu0 0
      %616 = vmatpush1.bf16.msra.mxu0 %v598
      %617 = vmatprep.subr.bf16.mxu0 0
      %618 = vmatpush1.bf16.msra.mxu0 %v599
      %619 = vmatprep.subr.bf16.mxu0 0
      %620 = vmatpush1.bf16.msra.mxu0 %v600
      %621 = vmatprep.subr.bf16.mxu0 0
      %622 = vmatpush1.bf16.msra.mxu0 %v601
      %623 = vmatprep.subr.bf16.mxu0 0
      %624 = vmatpush1.bf16.msra.mxu0 %v602
      %625 = vmatprep.subr.bf16.mxu0 0
      %626 = vmatpush1.bf16.msra.mxu0 %v603
      %627 = vmatprep.subr.bf16.mxu0 0
      %628 = vmatpush1.bf16.msra.mxu0 %v604
      %629 = vmatprep.subr.bf16.mxu0 0
      %630 = vmatpush1.bf16.msra.mxu0 0
      %631 = vmatprep.subr.bf16.mxu0 0
      %632 = vmatpush1.bf16.msra.mxu0 0
      %633 = vmatprep.subr.bf16.mxu0 0
      %634 = vmatpush1.bf16.msra.mxu0 0
      %635 = vmatprep.subr.bf16.mxu0 0
      %636 = vmatpush1.bf16.msra.mxu0 0
      %637 = vmatprep.subr.bf16.mxu0 0
      %638 = vmatpush1.bf16.msra.mxu0 0
      %639 = vmatprep.subr.bf16.mxu0 0
      %640 = vmatpush1.bf16.msra.mxu0 0
      %641 = vmatprep.subr.bf16.mxu0 0
      %642 = vmatpush1.bf16.msra.mxu0 0
      %643 = vmatprep.subr.bf16.mxu0 0
      %644 = vmatpush1.bf16.msra.mxu0 0
      %645 = vmatprep.mubr.bf16.mxu0 0
      %646 = vmatmul.mubr.bf16.gmra.mrb[0].mxu0 %v383
      %v647 = vpop.f32.mrb[0].mxu0
      %v648 = vadd.f32 %v522, %v647
      %v649 = vpop.f32.mrb[0].mxu0
      %v650 = vpop.f32.mrb[0].mxu0
      %v651 = vadd.f32 %v525, %v650
      %v652 = vpop.f32.mrb[0].mxu0
      %653 = vmatprep.mubr.bf16.mxu0 0
      %654 = vmatmul.mubr.bf16.gmra.mrb[0].mxu0 %v384
      %v655 = vpop.f32.mrb[0].mxu0
      %v656 = vadd.f32 %v530, %v655
      %v657 = vpop.f32.mrb[0].mxu0
      %v658 = vpop.f32.mrb[0].mxu0
      %v659 = vadd.f32 %v533, %v658
      %v660 = vpop.f32.mrb[0].mxu0
      %661 = vmatprep.mubr.bf16.mxu0 0
      %662 = vmatmul.mubr.bf16.gmra.mrb[0].mxu0 %v385
      %v663 = vpop.f32.mrb[0].mxu0
      %v664 = vadd.f32 %v538, %v663
      %v665 = vpop.f32.mrb[0].mxu0
      %v666 = vpop.f32.mrb[0].mxu0
      %v667 = vadd.f32 %v541, %v666
      %v668 = vpop.f32.mrb[0].mxu0
      %669 = vmatprep.mubr.bf16.mxu0 0
      %670 = vmatmul.mubr.bf16.gmra.mrb[0].mxu0 %v386
      %v671 = vpop.f32.mrb[0].mxu0
      %v672 = vadd.f32 %v546, %v671
      %v673 = vpop.f32.mrb[0].mxu0
      %v674 = vpop.f32.mrb[0].mxu0
      %v675 = vadd.f32 %v549, %v674
      %v676 = vpop.f32.mrb[0].mxu0
      %677 = vmatprep.mubr.bf16.mxu0 0
      %678 = vmatmul.mubr.bf16.gmra.mrb[0].mxu0 %v387
      %v679 = vpop.f32.mrb[0].mxu0
      %v680 = vadd.f32 %v554, %v679
      %v681 = vpop.f32.mrb[0].mxu0
      %v682 = vpop.f32.mrb[0].mxu0
      %v683 = vadd.f32 %v557, %v682
      %v684 = vpop.f32.mrb[0].mxu0
      %685 = vdwg.mxu0
      %v686 = vld [vmem:[#allocation2] sm:$0xe]
      %v687 = vld [vmem:[%s2 + $0x80] sm:$0xf]
      %v688 = vld [vmem:[%s2 + $0x84] sm:$0xf]
      %v689 = vld [vmem:[%s2 + $0x88] sm:$0xf]
      %v690 = vld [vmem:[%s2 + $0x8c] sm:$0xf]
      %v691 = vld [vmem:[%s2 + $0x90] sm:$0xf]
      %v692 = vld [vmem:[%s2 + $0x94] sm:$0xf]
      %v693 = vld [vmem:[%s2 + $0x98] sm:$0xf]
      %v694 = vld [vmem:[%s2 + $0x9c] sm:$0xf]
      %v695 = vld [vmem:[%s2 + $0xa0] sm:$0xf]
      %v696 = vld [vmem:[%s2 + $0xa4] sm:$0xf]
      %v697 = vld [vmem:[%s2 + $0xa8] sm:$0xf]
      %v698 = vld [vmem:[%s2 + $0xac] sm:$0xf]
      %v699 = vld [vmem:[%s2 + $0xb0] sm:$0xf]
      %v700 = vld [vmem:[%s2 + $0xb4] sm:$0xf]
      %v701 = vld [vmem:[%s2 + $0xb8] sm:$0xf]
      %v702 = vld [vmem:[%s2 + $0xbc] sm:$0xf]
      %v704 = vunpack.c.l.b16 %v686
      %v705 = vpack.c.b16 %v373, %v704
      %vm706 = vcmask 1046528
      %v707 = vrot.slane %v705, 1
      %v708 = vrot.slane %v384, 1
      %v709 = vsel %vm706, %v707, %v708
      %v710 = vrot.slane %v385, 1
      %v711 = vsel %vm706, %v708, %v710
      %v712 = vrot.slane %v386, 1
      %v713 = vsel %vm706, %v710, %v712
      %v714 = vrot.slane %v387, 1
      %v715 = vsel %vm706, %v712, %v714
      %v716 = vrot.slane %v388, 1
      %v717 = vsel %vm706, %v714, %v716
      %v739 = vunpack.c.l.b16 %v687
      %v740 = vunpack.c.l.b16 %v688
      %v741 = vunpack.c.l.b16 %v689
      %v742 = vunpack.c.l.b16 %v690
      %v743 = vunpack.c.l.b16 %v691
      %v744 = vunpack.c.l.b16 %v692
      %v745 = vunpack.c.l.b16 %v693
      %v746 = vunpack.c.l.b16 %v694
      %v747 = vunpack.c.l.b16 %v695
      %v748 = vunpack.c.l.b16 %v696
      %v749 = vunpack.c.l.b16 %v697
      %v750 = vunpack.c.l.b16 %v698
      %v751 = vunpack.c.l.b16 %v699
      %v752 = vunpack.c.l.b16 %v700
      %v753 = vunpack.c.l.b16 %v701
      %v754 = vunpack.c.l.b16 %v702
      %v755 = vpack.c.b16 %v740, %v739
      %v756 = vpack.c.b16 %v742, %v741
      %v757 = vpack.c.b16 %v744, %v743
      %v758 = vpack.c.b16 %v746, %v745
      %v759 = vpack.c.b16 %v748, %v747
      %v760 = vpack.c.b16 %v750, %v749
      %v761 = vpack.c.b16 %v752, %v751
      %v762 = vpack.c.b16 %v754, %v753
      %771 = vmatprep.subr.bf16.mxu0 0
      %772 = vmatpush1.bf16.msra.mxu0 %v755
      %773 = vmatprep.subr.bf16.mxu0 0
      %774 = vmatpush1.bf16.msra.mxu0 %v756
      %775 = vmatprep.subr.bf16.mxu0 0
      %776 = vmatpush1.bf16.msra.mxu0 %v757
      %777 = vmatprep.subr.bf16.mxu0 0
      %778 = vmatpush1.bf16.msra.mxu0 %v758
      %779 = vmatprep.subr.bf16.mxu0 0
      %780 = vmatpush1.bf16.msra.mxu0 %v759
      %781 = vmatprep.subr.bf16.mxu0 0
      %782 = vmatpush1.bf16.msra.mxu0 %v760
      %783 = vmatprep.subr.bf16.mxu0 0
      %784 = vmatpush1.bf16.msra.mxu0 %v761
      %785 = vmatprep.subr.bf16.mxu0 0
      %786 = vmatpush1.bf16.msra.mxu0 %v762
      %787 = vmatprep.subr.bf16.mxu0 0
      %788 = vmatpush1.bf16.msra.mxu0 0
      %789 = vmatprep.subr.bf16.mxu0 0
      %790 = vmatpush1.bf16.msra.mxu0 0
      %791 = vmatprep.subr.bf16.mxu0 0
      %792 = vmatpush1.bf16.msra.mxu0 0
      %793 = vmatprep.subr.bf16.mxu0 0
      %794 = vmatpush1.bf16.msra.mxu0 0
      %795 = vmatprep.subr.bf16.mxu0 0
      %796 = vmatpush1.bf16.msra.mxu0 0
      %797 = vmatprep.subr.bf16.mxu0 0
      %798 = vmatpush1.bf16.msra.mxu0 0
      %799 = vmatprep.subr.bf16.mxu0 0
      %800 = vmatpush1.bf16.msra.mxu0 0
      %801 = vmatprep.subr.bf16.mxu0 0
      %802 = vmatpush1.bf16.msra.mxu0 0
      %803 = vmatprep.mubr.bf16.mxu0 0
      %804 = vmatmul.mubr.bf16.gmra.mrb[0].mxu0 %v709
      %v805 = vpop.f32.mrb[0].mxu0
      %v806 = vadd.f32 0.0, %v805
      %v807 = vpop.f32.mrb[0].mxu0
      %v808 = vpop.f32.mrb[0].mxu0
      %v809 = vadd.f32 0.0, %v808
      %v810 = vpop.f32.mrb[0].mxu0
      %811 = vmatprep.mubr.bf16.mxu0 0
      %812 = vmatmul.mubr.bf16.gmra.mrb[0].mxu0 %v711
      %v813 = vpop.f32.mrb[0].mxu0
      %v814 = vadd.f32 0.0, %v813
      %v815 = vpop.f32.mrb[0].mxu0
      %v816 = vpop.f32.mrb[0].mxu0
      %v817 = vadd.f32 0.0, %v816
      %v818 = vpop.f32.mrb[0].mxu0
      %819 = vmatprep.mubr.bf16.mxu0 0
      %820 = vmatmul.mubr.bf16.gmra.mrb[0].mxu0 %v713
      %v821 = vpop.f32.mrb[0].mxu0
      %v822 = vadd.f32 0.0, %v821
      %v823 = vpop.f32.mrb[0].mxu0
      %v824 = vpop.f32.mrb[0].mxu0
      %v825 = vadd.f32 0.0, %v824
      %v826 = vpop.f32.mrb[0].mxu0
      %827 = vmatprep.mubr.bf16.mxu0 0
      %828 = vmatmul.mubr.bf16.gmra.mrb[0].mxu0 %v715
      %v829 = vpop.f32.mrb[0].mxu0
      %v830 = vadd.f32 0.0, %v829
      %v831 = vpop.f32.mrb[0].mxu0
      %v832 = vpop.f32.mrb[0].mxu0
      %v833 = vadd.f32 0.0, %v832
      %v834 = vpop.f32.mrb[0].mxu0
      %835 = vmatprep.mubr.bf16.mxu0 0
      %836 = vmatmul.mubr.bf16.gmra.mrb[0].mxu0 %v717
      %v837 = vpop.f32.mrb[0].mxu0
      %v838 = vadd.f32 0.0, %v837
      %v839 = vpop.f32.mrb[0].mxu0
      %v840 = vpop.f32.mrb[0].mxu0
      %v841 = vadd.f32 0.0, %v840
      %v842 = vpop.f32.mrb[0].mxu0
      %843 = vdwg.mxu0
      %v844 = vadd.f32 %v648, %v806
      %v845 = vadd.f32 %v651, %v809
      %v846 = vadd.f32 %v656, %v814
      %v847 = vadd.f32 %v659, %v817
      %v848 = vadd.f32 %v664, %v822
      %v849 = vadd.f32 %v667, %v825
      %v850 = vadd.f32 %v672, %v830
      %v851 = vadd.f32 %v675, %v833
      %v852 = vadd.f32 %v680, %v838
      %v853 = vadd.f32 %v683, %v841
      %v854 = vld [vmem:[#allocation2 + $0x4] sm:$0xe]
      %v855 = vld [vmem:[#allocation2 + $0x8] sm:$0xf]
      %v856 = vld [vmem:[#allocation2 + $0xc] sm:$0xf]
      %v857 = vld [vmem:[#allocation2 + $0x10] sm:$0xf]
      %v858 = vld [vmem:[#allocation2 + $0x14] sm:$0xf]
      %v859 = vld [vmem:[#allocation2 + $0x18] sm:$0xf]
      %v860 = vld [vmem:[#allocation2 + $0x1c] sm:$0xf]
      %v861 = vld [vmem:[#allocation2 + $0x20] sm:$0xf]
      %v862 = vld [vmem:[#allocation2 + $0x24] sm:$0xf]
      %v863 = vld [vmem:[#allocation2 + $0x28] sm:$0xf]
      %v864 = vld [vmem:[#allocation2 + $0x2c] sm:$0x1]
      %v865 = vld [vmem:[%s2 + $0xc0] sm:$0xf]
      %v866 = vld [vmem:[%s2 + $0xc4] sm:$0xf]
      %v867 = vld [vmem:[%s2 + $0xc8] sm:$0xf]
      %v868 = vld [vmem:[%s2 + $0xcc] sm:$0xf]
      %v869 = vld [vmem:[%s2 + $0xd0] sm:$0xf]
      %v870 = vld [vmem:[%s2 + $0xd4] sm:$0xf]
      %v871 = vld [vmem:[%s2 + $0xd8] sm:$0xf]
      %v872 = vld [vmem:[%s2 + $0xdc] sm:$0xf]
      %v873 = vld [vmem:[%s2 + $0xe0] sm:$0xf]
      %v874 = vld [vmem:[%s2 + $0xe4] sm:$0xf]
      %v875 = vld [vmem:[%s2 + $0xe8] sm:$0xf]
      %v876 = vld [vmem:[%s2 + $0xec] sm:$0xf]
      %v877 = vld [vmem:[%s2 + $0xf0] sm:$0xf]
      %v878 = vld [vmem:[%s2 + $0xf4] sm:$0xf]
      %v879 = vld [vmem:[%s2 + $0xf8] sm:$0xf]
      %v880 = vld [vmem:[%s2 + $0xfc] sm:$0xf]
      %v892 = vunpack.c.l.b16 %v854
      %v893 = vunpack.c.l.b16 %v855
      %v894 = vunpack.c.l.b16 %v856
      %v895 = vunpack.c.l.b16 %v857
      %v896 = vunpack.c.l.b16 %v858
      %v897 = vunpack.c.l.b16 %v859
      %v898 = vunpack.c.l.b16 %v860
      %v899 = vunpack.c.l.b16 %v861
      %v900 = vunpack.c.l.b16 %v862
      %v901 = vunpack.c.l.b16 %v863
      %v902 = vunpack.c.l.b16 %v864
      %v903 = vpack.c.b16 %v893, %v892
      %v904 = vpack.c.b16 %v895, %v894
      %v905 = vpack.c.b16 %v897, %v896
      %v906 = vpack.c.b16 %v899, %v898
      %v907 = vpack.c.b16 %v901, %v900
      %v908 = vpack.c.b16 %v902, %v902
      %v909 = vrot.slane %v903, 1
      %v910 = vrot.slane %v904, 1
      %v911 = vsel %vm706, %v909, %v910
      %v912 = vrot.slane %v905, 1
      %v913 = vsel %vm706, %v910, %v912
      %v914 = vrot.slane %v906, 1
      %v915 = vsel %vm706, %v912, %v914
      %v916 = vrot.slane %v907, 1
      %v917 = vsel %vm706, %v914, %v916
      %v918 = vrot.slane %v908, 1
      %v919 = vsel %vm706, %v916, %v918
      %v941 = vunpack.c.l.b16 %v865
      %v942 = vunpack.c.l.b16 %v866
      %v943 = vunpack.c.l.b16 %v867
      %v944 = vunpack.c.l.b16 %v868
      %v945 = vunpack.c.l.b16 %v869
      %v946 = vunpack.c.l.b16 %v870
      %v947 = vunpack.c.l.b16 %v871
      %v948 = vunpack.c.l.b16 %v872
      %v949 = vunpack.c.l.b16 %v873
      %v950 = vunpack.c.l.b16 %v874
      %v951 = vunpack.c.l.b16 %v875
      %v952 = vunpack.c.l.b16 %v876
      %v953 = vunpack.c.l.b16 %v877
      %v954 = vunpack.c.l.b16 %v878
      %v955 = vunpack.c.l.b16 %v879
      %v956 = vunpack.c.l.b16 %v880
      %v957 = vpack.c.b16 %v942, %v941
      %v958 = vpack.c.b16 %v944, %v943
      %v959 = vpack.c.b16 %v946, %v945
      %v960 = vpack.c.b16 %v948, %v947
      %v961 = vpack.c.b16 %v950, %v949
      %v962 = vpack.c.b16 %v952, %v951
      %v963 = vpack.c.b16 %v954, %v953
      %v964 = vpack.c.b16 %v956, %v955
      %973 = vmatprep.subr.bf16.mxu0 0
      %974 = vmatpush1.bf16.msra.mxu0 %v957
      %975 = vmatprep.subr.bf16.mxu0 0
      %976 = vmatpush1.bf16.msra.mxu0 %v958
      %977 = vmatprep.subr.bf16.mxu0 0
      %978 = vmatpush1.bf16.msra.mxu0 %v959
      %979 = vmatprep.subr.bf16.mxu0 0
      %980 = vmatpush1.bf16.msra.mxu0 %v960
      %981 = vmatprep.subr.bf16.mxu0 0
      %982 = vmatpush1.bf16.msra.mxu0 %v961
      %983 = vmatprep.subr.bf16.mxu0 0
      %984 = vmatpush1.bf16.msra.mxu0 %v962
      %985 = vmatprep.subr.bf16.mxu0 0
      %986 = vmatpush1.bf16.msra.mxu0 %v963
      %987 = vmatprep.subr.bf16.mxu0 0
      %988 = vmatpush1.bf16.msra.mxu0 %v964
      %989 = vmatprep.subr.bf16.mxu0 0
      %990 = vmatpush1.bf16.msra.mxu0 0
      %991 = vmatprep.subr.bf16.mxu0 0
      %992 = vmatpush1.bf16.msra.mxu0 0
      %993 = vmatprep.subr.bf16.mxu0 0
      %994 = vmatpush1.bf16.msra.mxu0 0
      %995 = vmatprep.subr.bf16.mxu0 0
      %996 = vmatpush1.bf16.msra.mxu0 0
      %997 = vmatprep.subr.bf16.mxu0 0
      %998 = vmatpush1.bf16.msra.mxu0 0
      %999 = vmatprep.subr.bf16.mxu0 0
      %1000 = vmatpush1.bf16.msra.mxu0 0
      %1001 = vmatprep.subr.bf16.mxu0 0
      %1002 = vmatpush1.bf16.msra.mxu0 0
      %1003 = vmatprep.subr.bf16.mxu0 0
      %1004 = vmatpush1.bf16.msra.mxu0 0
      %1005 = vmatprep.mubr.bf16.mxu0 0
      %1006 = vmatmul.mubr.bf16.gmra.mrb[0].mxu0 %v911
      %v1007 = vpop.f32.mrb[0].mxu0
      %v1008 = vadd.f32 0.0, %v1007
      %v1009 = vpop.f32.mrb[0].mxu0
      %v1010 = vpop.f32.mrb[0].mxu0
      %v1011 = vadd.f32 0.0, %v1010
      %v1012 = vpop.f32.mrb[0].mxu0
      %1013 = vmatprep.mubr.bf16.mxu0 0
      %1014 = vmatmul.mubr.bf16.gmra.mrb[0].mxu0 %v913
      %v1015 = vpop.f32.mrb[0].mxu0
      %v1016 = vadd.f32 0.0, %v1015
      %v1017 = vpop.f32.mrb[0].mxu0
      %v1018 = vpop.f32.mrb[0].mxu0
      %v1019 = vadd.f32 0.0, %v1018
      %v1020 = vpop.f32.mrb[0].mxu0
      %1021 = vmatprep.mubr.bf16.mxu0 0
      %1022 = vmatmul.mubr.bf16.gmra.mrb[0].mxu0 %v915
      %v1023 = vpop.f32.mrb[0].mxu0
      %v1024 = vadd.f32 0.0, %v1023
      %v1025 = vpop.f32.mrb[0].mxu0
      %v1026 = vpop.f32.mrb[0].mxu0
      %v1027 = vadd.f32 0.0, %v1026
      %v1028 = vpop.f32.mrb[0].mxu0
      %1029 = vmatprep.mubr.bf16.mxu0 0
      %1030 = vmatmul.mubr.bf16.gmra.mrb[0].mxu0 %v917
      %v1031 = vpop.f32.mrb[0].mxu0
      %v1032 = vadd.f32 0.0, %v1031
      %v1033 = vpop.f32.mrb[0].mxu0
      %v1034 = vpop.f32.mrb[0].mxu0
      %v1035 = vadd.f32 0.0, %v1034
      %v1036 = vpop.f32.mrb[0].mxu0
      %1037 = vmatprep.mubr.bf16.mxu0 0
      %1038 = vmatmul.mubr.bf16.gmra.mrb[0].mxu0 %v919
      %v1039 = vpop.f32.mrb[0].mxu0
      %v1040 = vadd.f32 0.0, %v1039
      %v1041 = vpop.f32.mrb[0].mxu0
      %v1042 = vpop.f32.mrb[0].mxu0
      %v1043 = vadd.f32 0.0, %v1042
      %v1044 = vpop.f32.mrb[0].mxu0
      %1045 = vdwg.mxu0
      %v1046 = vadd.f32 %v844, %v1008
      %v1047 = vadd.f32 %v845, %v1011
      %v1048 = vadd.f32 %v846, %v1016
      %v1049 = vadd.f32 %v847, %v1019
      %v1050 = vadd.f32 %v848, %v1024
      %v1051 = vadd.f32 %v849, %v1027
      %v1052 = vadd.f32 %v850, %v1032
      %v1053 = vadd.f32 %v851, %v1035
      %v1054 = vadd.f32 %v852, %v1040
      %v1055 = vadd.f32 %v853, %v1043
      %v1056 = vld [vmem:[#allocation2 + $0x2c] sm:$0x3]
      %v1057 = vld [vmem:[%s2 + $0x100] sm:$0xf]
      %v1058 = vld [vmem:[%s2 + $0x104] sm:$0xf]
      %v1059 = vld [vmem:[%s2 + $0x108] sm:$0xf]
      %v1060 = vld [vmem:[%s2 + $0x10c] sm:$0xf]
      %v1061 = vld [vmem:[%s2 + $0x110] sm:$0xf]
      %v1062 = vld [vmem:[%s2 + $0x114] sm:$0xf]
      %v1063 = vld [vmem:[%s2 + $0x118] sm:$0xf]
      %v1064 = vld [vmem:[%s2 + $0x11c] sm:$0xf]
      %v1065 = vld [vmem:[%s2 + $0x120] sm:$0xf]
      %v1066 = vld [vmem:[%s2 + $0x124] sm:$0xf]
      %v1067 = vld [vmem:[%s2 + $0x128] sm:$0xf]
      %v1068 = vld [vmem:[%s2 + $0x12c] sm:$0xf]
      %v1069 = vld [vmem:[%s2 + $0x130] sm:$0xf]
      %v1070 = vld [vmem:[%s2 + $0x134] sm:$0xf]
      %v1071 = vld [vmem:[%s2 + $0x138] sm:$0xf]
      %v1072 = vld [vmem:[%s2 + $0x13c] sm:$0xf]
      %v1074 = vunpack.c.l.b16 %v1056
      %v1075 = vpack.c.b16 %v1074, %v1074
      %vm1076 = vsmask.f32 6400
      %v1078 = vshrl.u32 %v903, 16
      %v1080 = vrot.slane %v1078, 1
      %v1081 = vshll.u32 %v903, 16
      %v1083 = vrot.slane %v1081, 2
      %v1084 = vor.u32 %v1080, %v1083
      %v1086 = vshrl.u32 %v904, 16
      %v1088 = vrot.slane %v1086, 1
      %v1089 = vshll.u32 %v904, 16
      %v1091 = vrot.slane %v1089, 2
      %v1092 = vor.u32 %v1088, %v1091
      %v1093 = vsel %vm1076, %v1084, %v1092
      %v1095 = vshrl.u32 %v905, 16
      %v1097 = vrot.slane %v1095, 1
      %v1098 = vshll.u32 %v905, 16
      %v1100 = vrot.slane %v1098, 2
      %v1101 = vor.u32 %v1097, %v1100
      %v1102 = vsel %vm1076, %v1092, %v1101
      %v1104 = vshrl.u32 %v906, 16
      %v1106 = vrot.slane %v1104, 1
      %v1107 = vshll.u32 %v906, 16
      %v1109 = vrot.slane %v1107, 2
      %v1110 = vor.u32 %v1106, %v1109
      %v1111 = vsel %vm1076, %v1101, %v1110
      %v1113 = vshrl.u32 %v907, 16
      %v1115 = vrot.slane %v1113, 1
      %v1116 = vshll.u32 %v907, 16
      %v1118 = vrot.slane %v1116, 2
      %v1119 = vor.u32 %v1115, %v1118
      %v1120 = vsel %vm1076, %v1110, %v1119
      %v1122 = vshrl.u32 %v1075, 16
      %v1124 = vrot.slane %v1122, 1
      %v1125 = vshll.u32 %v1075, 16
      %v1127 = vrot.slane %v1125, 2
      %v1128 = vor.u32 %v1124, %v1127
      %v1129 = vsel %vm1076, %v1119, %v1128
      %v1151 = vunpack.c.l.b16 %v1057
      %v1152 = vunpack.c.l.b16 %v1058
      %v1153 = vunpack.c.l.b16 %v1059
      %v1154 = vunpack.c.l.b16 %v1060
      %v1155 = vunpack.c.l.b16 %v1061
      %v1156 = vunpack.c.l.b16 %v1062
      %v1157 = vunpack.c.l.b16 %v1063
      %v1158 = vunpack.c.l.b16 %v1064
      %v1159 = vunpack.c.l.b16 %v1065
      %v1160 = vunpack.c.l.b16 %v1066
      %v1161 = vunpack.c.l.b16 %v1067
      %v1162 = vunpack.c.l.b16 %v1068
      %v1163 = vunpack.c.l.b16 %v1069
      %v1164 = vunpack.c.l.b16 %v1070
      %v1165 = vunpack.c.l.b16 %v1071
      %v1166 = vunpack.c.l.b16 %v1072
      %v1167 = vpack.c.b16 %v1152, %v1151
      %v1168 = vpack.c.b16 %v1154, %v1153
      %v1169 = vpack.c.b16 %v1156, %v1155
      %v1170 = vpack.c.b16 %v1158, %v1157
      %v1171 = vpack.c.b16 %v1160, %v1159
      %v1172 = vpack.c.b16 %v1162, %v1161
      %v1173 = vpack.c.b16 %v1164, %v1163
      %v1174 = vpack.c.b16 %v1166, %v1165
      %1183 = vmatprep.subr.bf16.mxu0 0
      %1184 = vmatpush1.bf16.msra.mxu0 %v1167
      %1185 = vmatprep.subr.bf16.mxu0 0
      %1186 = vmatpush1.bf16.msra.mxu0 %v1168
      %1187 = vmatprep.subr.bf16.mxu0 0
      %1188 = vmatpush1.bf16.msra.mxu0 %v1169
      %1189 = vmatprep.subr.bf16.mxu0 0
      %1190 = vmatpush1.bf16.msra.mxu0 %v1170
      %1191 = vmatprep.subr.bf16.mxu0 0
      %1192 = vmatpush1.bf16.msra.mxu0 %v1171
      %1193 = vmatprep.subr.bf16.mxu0 0
      %1194 = vmatpush1.bf16.msra.mxu0 %v1172
      %1195 = vmatprep.subr.bf16.mxu0 0
      %1196 = vmatpush1.bf16.msra.mxu0 %v1173
      %1197 = vmatprep.subr.bf16.mxu0 0
      %1198 = vmatpush1.bf16.msra.mxu0 %v1174
      %1199 = vmatprep.subr.bf16.mxu0 0
      %1200 = vmatpush1.bf16.msra.mxu0 0
      %1201 = vmatprep.subr.bf16.mxu0 0
      %1202 = vmatpush1.bf16.msra.mxu0 0
      %1203 = vmatprep.subr.bf16.mxu0 0
      %1204 = vmatpush1.bf16.msra.mxu0 0
      %1205 = vmatprep.subr.bf16.mxu0 0
      %1206 = vmatpush1.bf16.msra.mxu0 0
      %1207 = vmatprep.subr.bf16.mxu0 0
      %1208 = vmatpush1.bf16.msra.mxu0 0
      %1209 = vmatprep.subr.bf16.mxu0 0
      %1210 = vmatpush1.bf16.msra.mxu0 0
      %1211 = vmatprep.subr.bf16.mxu0 0
      %1212 = vmatpush1.bf16.msra.mxu0 0
      %1213 = vmatprep.subr.bf16.mxu0 0
      %1214 = vmatpush1.bf16.msra.mxu0 0
      %1215 = vmatprep.mubr.bf16.mxu0 0
      %1216 = vmatmul.mubr.bf16.gmra.mrb[0].mxu0 %v1093
      %v1217 = vpop.f32.mrb[0].mxu0
      %v1218 = vadd.f32 0.0, %v1217
      %v1219 = vpop.f32.mrb[0].mxu0
      %v1220 = vpop.f32.mrb[0].mxu0
      %v1221 = vadd.f32 0.0, %v1220
      %v1222 = vpop.f32.mrb[0].mxu0
      %1223 = vmatprep.mubr.bf16.mxu0 0
      %1224 = vmatmul.mubr.bf16.gmra.mrb[0].mxu0 %v1102
      %v1225 = vpop.f32.mrb[0].mxu0
      %v1226 = vadd.f32 0.0, %v1225
      %v1227 = vpop.f32.mrb[0].mxu0
      %v1228 = vpop.f32.mrb[0].mxu0
      %v1229 = vadd.f32 0.0, %v1228
      %v1230 = vpop.f32.mrb[0].mxu0
      %1231 = vmatprep.mubr.bf16.mxu0 0
      %1232 = vmatmul.mubr.bf16.gmra.mrb[0].mxu0 %v1111
      %v1233 = vpop.f32.mrb[0].mxu0
      %v1234 = vadd.f32 0.0, %v1233
      %v1235 = vpop.f32.mrb[0].mxu0
      %v1236 = vpop.f32.mrb[0].mxu0
      %v1237 = vadd.f32 0.0, %v1236
      %v1238 = vpop.f32.mrb[0].mxu0
      %1239 = vmatprep.mubr.bf16.mxu0 0
      %1240 = vmatmul.mubr.bf16.gmra.mrb[0].mxu0 %v1120
      %v1241 = vpop.f32.mrb[0].mxu0
      %v1242 = vadd.f32 0.0, %v1241
      %v1243 = vpop.f32.mrb[0].mxu0
      %v1244 = vpop.f32.mrb[0].mxu0
      %v1245 = vadd.f32 0.0, %v1244
      %v1246 = vpop.f32.mrb[0].mxu0
      %1247 = vmatprep.mubr.bf16.mxu0 0
      %1248 = vmatmul.mubr.bf16.gmra.mrb[0].mxu0 %v1129
      %v1249 = vpop.f32.mrb[0].mxu0
      %v1250 = vadd.f32 0.0, %v1249
      %v1251 = vpop.f32.mrb[0].mxu0
      %v1252 = vpop.f32.mrb[0].mxu0
      %v1253 = vadd.f32 0.0, %v1252
      %v1254 = vpop.f32.mrb[0].mxu0
      %1255 = vdwg.mxu0
      %v1256 = vadd.f32 %v1046, %v1218
      %v1257 = vadd.f32 %v1047, %v1221
      %v1258 = vadd.f32 %v1048, %v1226
      %v1259 = vadd.f32 %v1049, %v1229
      %v1260 = vadd.f32 %v1050, %v1234
      %v1261 = vadd.f32 %v1051, %v1237
      %v1262 = vadd.f32 %v1052, %v1242
      %v1263 = vadd.f32 %v1053, %v1245
      %v1264 = vadd.f32 %v1054, %v1250
      %v1265 = vadd.f32 %v1055, %v1253
      %v1266 = vld [vmem:[#allocation2 + $0x4] sm:$0xc]
      %v1267 = vld [vmem:[%s2 + $0x140] sm:$0xf]
      %v1268 = vld [vmem:[%s2 + $0x144] sm:$0xf]
      %v1269 = vld [vmem:[%s2 + $0x148] sm:$0xf]
      %v1270 = vld [vmem:[%s2 + $0x14c] sm:$0xf]
      %v1271 = vld [vmem:[%s2 + $0x150] sm:$0xf]
      %v1272 = vld [vmem:[%s2 + $0x154] sm:$0xf]
      %v1273 = vld [vmem:[%s2 + $0x158] sm:$0xf]
      %v1274 = vld [vmem:[%s2 + $0x15c] sm:$0xf]
      %v1275 = vld [vmem:[%s2 + $0x160] sm:$0xf]
      %v1276 = vld [vmem:[%s2 + $0x164] sm:$0xf]
      %v1277 = vld [vmem:[%s2 + $0x168] sm:$0xf]
      %v1278 = vld [vmem:[%s2 + $0x16c] sm:$0xf]
      %v1279 = vld [vmem:[%s2 + $0x170] sm:$0xf]
      %v1280 = vld [vmem:[%s2 + $0x174] sm:$0xf]
      %v1281 = vld [vmem:[%s2 + $0x178] sm:$0xf]
      %v1282 = vld [vmem:[%s2 + $0x17c] sm:$0xf]
      %v1284 = vunpack.c.l.b16 %v1266
      %v1285 = vpack.c.b16 %v893, %v1284
      %vm1286 = vcmask 1045504
      %v1287 = vrot.slane %v1285, 2
      %v1288 = vrot.slane %v904, 2
      %v1289 = vsel %vm1286, %v1287, %v1288
      %v1290 = vrot.slane %v905, 2
      %v1291 = vsel %vm1286, %v1288, %v1290
      %v1292 = vrot.slane %v906, 2
      %v1293 = vsel %vm1286, %v1290, %v1292
      %v1294 = vrot.slane %v907, 2
      %v1295 = vsel %vm1286, %v1292, %v1294
      %v1296 = vrot.slane %v1075, 2
      %v1297 = vsel %vm1286, %v1294, %v1296
      %v1319 = vunpack.c.l.b16 %v1267
      %v1320 = vunpack.c.l.b16 %v1268
      %v1321 = vunpack.c.l.b16 %v1269
      %v1322 = vunpack.c.l.b16 %v1270
      %v1323 = vunpack.c.l.b16 %v1271
      %v1324 = vunpack.c.l.b16 %v1272
      %v1325 = vunpack.c.l.b16 %v1273
      %v1326 = vunpack.c.l.b16 %v1274
      %v1327 = vunpack.c.l.b16 %v1275
      %v1328 = vunpack.c.l.b16 %v1276
      %v1329 = vunpack.c.l.b16 %v1277
      %v1330 = vunpack.c.l.b16 %v1278
      %v1331 = vunpack.c.l.b16 %v1279
      %v1332 = vunpack.c.l.b16 %v1280
      %v1333 = vunpack.c.l.b16 %v1281
      %v1334 = vunpack.c.l.b16 %v1282
      %v1335 = vpack.c.b16 %v1320, %v1319
      %v1336 = vpack.c.b16 %v1322, %v1321
      %v1337 = vpack.c.b16 %v1324, %v1323
      %v1338 = vpack.c.b16 %v1326, %v1325
      %v1339 = vpack.c.b16 %v1328, %v1327
      %v1340 = vpack.c.b16 %v1330, %v1329
      %v1341 = vpack.c.b16 %v1332, %v1331
      %v1342 = vpack.c.b16 %v1334, %v1333
      %1351 = vmatprep.subr.bf16.mxu0 0
      %1352 = vmatpush1.bf16.msra.mxu0 %v1335
      %1353 = vmatprep.subr.bf16.mxu0 0
      %1354 = vmatpush1.bf16.msra.mxu0 %v1336
      %1355 = vmatprep.subr.bf16.mxu0 0
      %1356 = vmatpush1.bf16.msra.mxu0 %v1337
      %1357 = vmatprep.subr.bf16.mxu0 0
      %1358 = vmatpush1.bf16.msra.mxu0 %v1338
      %1359 = vmatprep.subr.bf16.mxu0 0
      %1360 = vmatpush1.bf16.msra.mxu0 %v1339
      %1361 = vmatprep.subr.bf16.mxu0 0
      %1362 = vmatpush1.bf16.msra.mxu0 %v1340
      %1363 = vmatprep.subr.bf16.mxu0 0
      %1364 = vmatpush1.bf16.msra.mxu0 %v1341
      %1365 = vmatprep.subr.bf16.mxu0 0
      %1366 = vmatpush1.bf16.msra.mxu0 %v1342
      %1367 = vmatprep.subr.bf16.mxu0 0
      %1368 = vmatpush1.bf16.msra.mxu0 0
      %1369 = vmatprep.subr.bf16.mxu0 0
      %1370 = vmatpush1.bf16.msra.mxu0 0
      %1371 = vmatprep.subr.bf16.mxu0 0
      %1372 = vmatpush1.bf16.msra.mxu0 0
      %1373 = vmatprep.subr.bf16.mxu0 0
      %1374 = vmatpush1.bf16.msra.mxu0 0
      %1375 = vmatprep.subr.bf16.mxu0 0
      %1376 = vmatpush1.bf16.msra.mxu0 0
      %1377 = vmatprep.subr.bf16.mxu0 0
      %1378 = vmatpush1.bf16.msra.mxu0 0
      %1379 = vmatprep.subr.bf16.mxu0 0
      %1380 = vmatpush1.bf16.msra.mxu0 0
      %1381 = vmatprep.subr.bf16.mxu0 0
      %1382 = vmatpush1.bf16.msra.mxu0 0
      %1383 = vmatprep.mubr.bf16.mxu0 0
      %1384 = vmatmul.mubr.bf16.gmra.mrb[0].mxu0 %v1289
      %v1385 = vpop.f32.mrb[0].mxu0
      %v1386 = vadd.f32 0.0, %v1385
      %v1387 = vpop.f32.mrb[0].mxu0
      %v1388 = vpop.f32.mrb[0].mxu0
      %v1389 = vadd.f32 0.0, %v1388
      %v1390 = vpop.f32.mrb[0].mxu0
      %1391 = vmatprep.mubr.bf16.mxu0 0
      %1392 = vmatmul.mubr.bf16.gmra.mrb[0].mxu0 %v1291
      %v1393 = vpop.f32.mrb[0].mxu0
      %v1394 = vadd.f32 0.0, %v1393
      %v1395 = vpop.f32.mrb[0].mxu0
      %v1396 = vpop.f32.mrb[0].mxu0
      %v1397 = vadd.f32 0.0, %v1396
      %v1398 = vpop.f32.mrb[0].mxu0
      %1399 = vmatprep.mubr.bf16.mxu0 0
      %1400 = vmatmul.mubr.bf16.gmra.mrb[0].mxu0 %v1293
      %v1401 = vpop.f32.mrb[0].mxu0
      %v1402 = vadd.f32 0.0, %v1401
      %v1403 = vpop.f32.mrb[0].mxu0
      %v1404 = vpop.f32.mrb[0].mxu0
      %v1405 = vadd.f32 0.0, %v1404
      %v1406 = vpop.f32.mrb[0].mxu0
      %1407 = vmatprep.mubr.bf16.mxu0 0
      %1408 = vmatmul.mubr.bf16.gmra.mrb[0].mxu0 %v1295
      %v1409 = vpop.f32.mrb[0].mxu0
      %v1410 = vadd.f32 0.0, %v1409
      %v1411 = vpop.f32.mrb[0].mxu0
      %v1412 = vpop.f32.mrb[0].mxu0
      %v1413 = vadd.f32 0.0, %v1412
      %v1414 = vpop.f32.mrb[0].mxu0
      %1415 = vmatprep.mubr.bf16.mxu0 0
      %1416 = vmatmul.mubr.bf16.gmra.mrb[0].mxu0 %v1297
      %v1417 = vpop.f32.mrb[0].mxu0
      %v1418 = vadd.f32 0.0, %v1417
      %v1419 = vpop.f32.mrb[0].mxu0
      %v1420 = vpop.f32.mrb[0].mxu0
      %v1421 = vadd.f32 0.0, %v1420
      %v1422 = vpop.f32.mrb[0].mxu0
      %1423 = vdwg.mxu0
      %v1424 = vadd.f32 %v1256, %v1386
      %v1425 = vadd.f32 %v1257, %v1389
      %v1426 = vadd.f32 %v1258, %v1394
      %v1427 = vadd.f32 %v1259, %v1397
      %v1428 = vadd.f32 %v1260, %v1402
      %v1429 = vadd.f32 %v1261, %v1405
      %v1430 = vadd.f32 %v1262, %v1410
      %v1431 = vadd.f32 %v1263, %v1413
      %v1432 = vadd.f32 %v1264, %v1418
      %v1433 = vadd.f32 %v1265, %v1421
      %v1434 = vld [vmem:[#allocation2 + $0x8] sm:$0xc]
      %v1435 = vld [vmem:[#allocation2 + $0xc] sm:$0xf]
      %v1436 = vld [vmem:[#allocation2 + $0x10] sm:$0xf]
      %v1437 = vld [vmem:[#allocation2 + $0x14] sm:$0xf]
      %v1438 = vld [vmem:[#allocation2 + $0x18] sm:$0xf]
      %v1439 = vld [vmem:[#allocation2 + $0x1c] sm:$0xf]
      %v1440 = vld [vmem:[#allocation2 + $0x20] sm:$0xf]
      %v1441 = vld [vmem:[#allocation2 + $0x24] sm:$0xf]
      %v1442 = vld [vmem:[#allocation2 + $0x28] sm:$0xf]
      %v1443 = vld [vmem:[#allocation2 + $0x2c] sm:$0xf]
      %v1444 = vld [vmem:[#allocation2 + $0x30] sm:$0x3]
      %v1445 = vld [vmem:[%s2 + $0x180] sm:$0xf]
      %v1446 = vld [vmem:[%s2 + $0x184] sm:$0xf]
      %v1447 = vld [vmem:[%s2 + $0x188] sm:$0xf]
      %v1448 = vld [vmem:[%s2 + $0x18c] sm:$0xf]
      %v1449 = vld [vmem:[%s2 + $0x190] sm:$0xf]
      %v1450 = vld [vmem:[%s2 + $0x194] sm:$0xf]
      %v1451 = vld [vmem:[%s2 + $0x198] sm:$0xf]
      %v1452 = vld [vmem:[%s2 + $0x19c] sm:$0xf]
      %v1453 = vld [vmem:[%s2 + $0x1a0] sm:$0xf]
      %v1454 = vld [vmem:[%s2 + $0x1a4] sm:$0xf]
      %v1455 = vld [vmem:[%s2 + $0x1a8] sm:$0xf]
      %v1456 = vld [vmem:[%s2 + $0x1ac] sm:$0xf]
      %v1457 = vld [vmem:[%s2 + $0x1b0] sm:$0xf]
      %v1458 = vld [vmem:[%s2 + $0x1b4] sm:$0xf]
      %v1459 = vld [vmem:[%s2 + $0x1b8] sm:$0xf]
      %v1460 = vld [vmem:[%s2 + $0x1bc] sm:$0xf]
      %v1472 = vunpack.c.l.b16 %v1434
      %v1473 = vunpack.c.l.b16 %v1435
      %v1474 = vunpack.c.l.b16 %v1436
      %v1475 = vunpack.c.l.b16 %v1437
      %v1476 = vunpack.c.l.b16 %v1438
      %v1477 = vunpack.c.l.b16 %v1439
      %v1478 = vunpack.c.l.b16 %v1440
      %v1479 = vunpack.c.l.b16 %v1441
      %v1480 = vunpack.c.l.b16 %v1442
      %v1481 = vunpack.c.l.b16 %v1443
      %v1482 = vunpack.c.l.b16 %v1444
      %v1483 = vpack.c.b16 %v1473, %v1472
      %v1484 = vpack.c.b16 %v1475, %v1474
      %v1485 = vpack.c.b16 %v1477, %v1476
      %v1486 = vpack.c.b16 %v1479, %v1478
      %v1487 = vpack.c.b16 %v1481, %v1480
      %v1488 = vpack.c.b16 %v1482, %v1482
      %v1489 = vrot.slane %v1483, 2
      %v1490 = vrot.slane %v1484, 2
      %v1491 = vsel %vm1286, %v1489, %v1490
      %v1492 = vrot.slane %v1485, 2
      %v1493 = vsel %vm1286, %v1490, %v1492
      %v1494 = vrot.slane %v1486, 2
      %v1495 = vsel %vm1286, %v1492, %v1494
      %v1496 = vrot.slane %v1487, 2
      %v1497 = vsel %vm1286, %v1494, %v1496
      %v1498 = vrot.slane %v1488, 2
      %v1499 = vsel %vm1286, %v1496, %v1498
      %v1521 = vunpack.c.l.b16 %v1445
      %v1522 = vunpack.c.l.b16 %v1446
      %v1523 = vunpack.c.l.b16 %v1447
      %v1524 = vunpack.c.l.b16 %v1448
      %v1525 = vunpack.c.l.b16 %v1449
      %v1526 = vunpack.c.l.b16 %v1450
      %v1527 = vunpack.c.l.b16 %v1451
      %v1528 = vunpack.c.l.b16 %v1452
      %v1529 = vunpack.c.l.b16 %v1453
      %v1530 = vunpack.c.l.b16 %v1454
      %v1531 = vunpack.c.l.b16 %v1455
      %v1532 = vunpack.c.l.b16 %v1456
      %v1533 = vunpack.c.l.b16 %v1457
      %v1534 = vunpack.c.l.b16 %v1458
      %v1535 = vunpack.c.l.b16 %v1459
      %v1536 = vunpack.c.l.b16 %v1460
      %v1537 = vpack.c.b16 %v1522, %v1521
      %v1538 = vpack.c.b16 %v1524, %v1523
      %v1539 = vpack.c.b16 %v1526, %v1525
      %v1540 = vpack.c.b16 %v1528, %v1527
      %v1541 = vpack.c.b16 %v1530, %v1529
      %v1542 = vpack.c.b16 %v1532, %v1531
      %v1543 = vpack.c.b16 %v1534, %v1533
      %v1544 = vpack.c.b16 %v1536, %v1535
      %1553 = vmatprep.subr.bf16.mxu0 0
      %1554 = vmatpush1.bf16.msra.mxu0 %v1537
      %1555 = vmatprep.subr.bf16.mxu0 0
      %1556 = vmatpush1.bf16.msra.mxu0 %v1538
      %1557 = vmatprep.subr.bf16.mxu0 0
      %1558 = vmatpush1.bf16.msra.mxu0 %v1539
      %1559 = vmatprep.subr.bf16.mxu0 0
      %1560 = vmatpush1.bf16.msra.mxu0 %v1540
      %1561 = vmatprep.subr.bf16.mxu0 0
      %1562 = vmatpush1.bf16.msra.mxu0 %v1541
      %1563 = vmatprep.subr.bf16.mxu0 0
      %1564 = vmatpush1.bf16.msra.mxu0 %v1542
      %1565 = vmatprep.subr.bf16.mxu0 0
      %1566 = vmatpush1.bf16.msra.mxu0 %v1543
      %1567 = vmatprep.subr.bf16.mxu0 0
      %1568 = vmatpush1.bf16.msra.mxu0 %v1544
      %1569 = vmatprep.subr.bf16.mxu0 0
      %1570 = vmatpush1.bf16.msra.mxu0 0
      %1571 = vmatprep.subr.bf16.mxu0 0
      %1572 = vmatpush1.bf16.msra.mxu0 0
      %1573 = vmatprep.subr.bf16.mxu0 0
      %1574 = vmatpush1.bf16.msra.mxu0 0
      %1575 = vmatprep.subr.bf16.mxu0 0
      %1576 = vmatpush1.bf16.msra.mxu0 0
      %1577 = vmatprep.subr.bf16.mxu0 0
      %1578 = vmatpush1.bf16.msra.mxu0 0
      %1579 = vmatprep.subr.bf16.mxu0 0
      %1580 = vmatpush1.bf16.msra.mxu0 0
      %1581 = vmatprep.subr.bf16.mxu0 0
      %1582 = vmatpush1.bf16.msra.mxu0 0
      %1583 = vmatprep.subr.bf16.mxu0 0
      %1584 = vmatpush1.bf16.msra.mxu0 0
      %1585 = vmatprep.mubr.bf16.mxu0 0
      %1586 = vmatmul.mubr.bf16.gmra.mrb[0].mxu0 %v1491
      %v1587 = vpop.f32.mrb[0].mxu0
      %v1588 = vadd.f32 0.0, %v1587
      %v1589 = vpop.f32.mrb[0].mxu0
      %v1590 = vpop.f32.mrb[0].mxu0
      %v1591 = vadd.f32 0.0, %v1590
      %v1592 = vpop.f32.mrb[0].mxu0
      %1593 = vmatprep.mubr.bf16.mxu0 0
      %1594 = vmatmul.mubr.bf16.gmra.mrb[0].mxu0 %v1493
      %v1595 = vpop.f32.mrb[0].mxu0
      %v1596 = vadd.f32 0.0, %v1595
      %v1597 = vpop.f32.mrb[0].mxu0
      %v1598 = vpop.f32.mrb[0].mxu0
      %v1599 = vadd.f32 0.0, %v1598
      %v1600 = vpop.f32.mrb[0].mxu0
      %1601 = vmatprep.mubr.bf16.mxu0 0
      %1602 = vmatmul.mubr.bf16.gmra.mrb[0].mxu0 %v1495
      %v1603 = vpop.f32.mrb[0].mxu0
      %v1604 = vadd.f32 0.0, %v1603
      %v1605 = vpop.f32.mrb[0].mxu0
      %v1606 = vpop.f32.mrb[0].mxu0
      %v1607 = vadd.f32 0.0, %v1606
      %v1608 = vpop.f32.mrb[0].mxu0
      %1609 = vmatprep.mubr.bf16.mxu0 0
      %1610 = vmatmul.mubr.bf16.gmra.mrb[0].mxu0 %v1497
      %v1611 = vpop.f32.mrb[0].mxu0
      %v1612 = vadd.f32 0.0, %v1611
      %v1613 = vpop.f32.mrb[0].mxu0
      %v1614 = vpop.f32.mrb[0].mxu0
      %v1615 = vadd.f32 0.0, %v1614
      %v1616 = vpop.f32.mrb[0].mxu0
      %1617 = vmatprep.mubr.bf16.mxu0 0
      %1618 = vmatmul.mubr.bf16.gmra.mrb[0].mxu0 %v1499
      %v1619 = vpop.f32.mrb[0].mxu0
      %v1620 = vadd.f32 0.0, %v1619
      %v1621 = vpop.f32.mrb[0].mxu0
      %v1622 = vpop.f32.mrb[0].mxu0
      %v1623 = vadd.f32 0.0, %v1622
      %v1624 = vpop.f32.mrb[0].mxu0
      %1625 = vdwg.mxu0
      %v1626 = vadd.f32 %v1424, %v1588
      %v1627 = vadd.f32 %v1425, %v1591
      %v1628 = vadd.f32 %v1426, %v1596
      %v1629 = vadd.f32 %v1427, %v1599
      %v1630 = vadd.f32 %v1428, %v1604
      %v1631 = vadd.f32 %v1429, %v1607
      %v1632 = vadd.f32 %v1430, %v1612
      %v1633 = vadd.f32 %v1431, %v1615
      %v1634 = vadd.f32 %v1432, %v1620
      %v1635 = vadd.f32 %v1433, %v1623
      %v1636 = vld [vmem:[#allocation2 + $0x30] sm:$0x7]
      %v1637 = vld [vmem:[%s2 + $0x1c0] sm:$0xf]
      %v1638 = vld [vmem:[%s2 + $0x1c4] sm:$0xf]
      %v1639 = vld [vmem:[%s2 + $0x1c8] sm:$0xf]
      %v1640 = vld [vmem:[%s2 + $0x1cc] sm:$0xf]
      %v1641 = vld [vmem:[%s2 + $0x1d0] sm:$0xf]
      %v1642 = vld [vmem:[%s2 + $0x1d4] sm:$0xf]
      %v1643 = vld [vmem:[%s2 + $0x1d8] sm:$0xf]
      %v1644 = vld [vmem:[%s2 + $0x1dc] sm:$0xf]
      %v1645 = vld [vmem:[%s2 + $0x1e0] sm:$0xf]
      %v1646 = vld [vmem:[%s2 + $0x1e4] sm:$0xf]
      %v1647 = vld [vmem:[%s2 + $0x1e8] sm:$0xf]
      %v1648 = vld [vmem:[%s2 + $0x1ec] sm:$0xf]
      %v1649 = vld [vmem:[%s2 + $0x1f0] sm:$0xf]
      %v1650 = vld [vmem:[%s2 + $0x1f4] sm:$0xf]
      %v1651 = vld [vmem:[%s2 + $0x1f8] sm:$0xf]
      %v1652 = vld [vmem:[%s2 + $0x1fc] sm:$0xf]
      %v1654 = vunpack.c.l.b16 %v1636
      %v1655 = vpack.c.b16 %v1654, %v1654
      %vm1656 = vsmask.f32 5376
      %v1658 = vshrl.u32 %v1483, 16
      %v1660 = vrot.slane %v1658, 2
      %v1661 = vshll.u32 %v1483, 16
      %v1663 = vrot.slane %v1661, 3
      %v1664 = vor.u32 %v1660, %v1663
      %v1666 = vshrl.u32 %v1484, 16
      %v1668 = vrot.slane %v1666, 2
      %v1669 = vshll.u32 %v1484, 16
      %v1671 = vrot.slane %v1669, 3
      %v1672 = vor.u32 %v1668, %v1671
      %v1673 = vsel %vm1656, %v1664, %v1672
      %v1675 = vshrl.u32 %v1485, 16
      %v1677 = vrot.slane %v1675, 2
      %v1678 = vshll.u32 %v1485, 16
      %v1680 = vrot.slane %v1678, 3
      %v1681 = vor.u32 %v1677, %v1680
      %v1682 = vsel %vm1656, %v1672, %v1681
      %v1684 = vshrl.u32 %v1486, 16
      %v1686 = vrot.slane %v1684, 2
      %v1687 = vshll.u32 %v1486, 16
      %v1689 = vrot.slane %v1687, 3
      %v1690 = vor.u32 %v1686, %v1689
      %v1691 = vsel %vm1656, %v1681, %v1690
      %v1693 = vshrl.u32 %v1487, 16
      %v1695 = vrot.slane %v1693, 2
      %v1696 = vshll.u32 %v1487, 16
      %v1698 = vrot.slane %v1696, 3
      %v1699 = vor.u32 %v1695, %v1698
      %v1700 = vsel %vm1656, %v1690, %v1699
      %v1702 = vshrl.u32 %v1655, 16
      %v1704 = vrot.slane %v1702, 2
      %v1705 = vshll.u32 %v1655, 16
      %v1707 = vrot.slane %v1705, 3
      %v1708 = vor.u32 %v1704, %v1707
      %v1709 = vsel %vm1656, %v1699, %v1708
      %v1731 = vunpack.c.l.b16 %v1637
      %v1732 = vunpack.c.l.b16 %v1638
      %v1733 = vunpack.c.l.b16 %v1639
      %v1734 = vunpack.c.l.b16 %v1640
      %v1735 = vunpack.c.l.b16 %v1641
      %v1736 = vunpack.c.l.b16 %v1642
      %v1737 = vunpack.c.l.b16 %v1643
      %v1738 = vunpack.c.l.b16 %v1644
      %v1739 = vunpack.c.l.b16 %v1645
      %v1740 = vunpack.c.l.b16 %v1646
      %v1741 = vunpack.c.l.b16 %v1647
      %v1742 = vunpack.c.l.b16 %v1648
      %v1743 = vunpack.c.l.b16 %v1649
      %v1744 = vunpack.c.l.b16 %v1650
      %v1745 = vunpack.c.l.b16 %v1651
      %v1746 = vunpack.c.l.b16 %v1652
      %v1747 = vpack.c.b16 %v1732, %v1731
      %v1748 = vpack.c.b16 %v1734, %v1733
      %v1749 = vpack.c.b16 %v1736, %v1735
      %v1750 = vpack.c.b16 %v1738, %v1737
      %v1751 = vpack.c.b16 %v1740, %v1739
      %v1752 = vpack.c.b16 %v1742, %v1741
      %v1753 = vpack.c.b16 %v1744, %v1743
      %v1754 = vpack.c.b16 %v1746, %v1745
      %1763 = vmatprep.subr.bf16.mxu0 0
      %1764 = vmatpush1.bf16.msra.mxu0 %v1747
      %1765 = vmatprep.subr.bf16.mxu0 0
      %1766 = vmatpush1.bf16.msra.mxu0 %v1748
      %1767 = vmatprep.subr.bf16.mxu0 0
      %1768 = vmatpush1.bf16.msra.mxu0 %v1749
      %1769 = vmatprep.subr.bf16.mxu0 0
      %1770 = vmatpush1.bf16.msra.mxu0 %v1750
      %1771 = vmatprep.subr.bf16.mxu0 0
      %1772 = vmatpush1.bf16.msra.mxu0 %v1751
      %1773 = vmatprep.subr.bf16.mxu0 0
      %1774 = vmatpush1.bf16.msra.mxu0 %v1752
      %1775 = vmatprep.subr.bf16.mxu0 0
      %1776 = vmatpush1.bf16.msra.mxu0 %v1753
      %1777 = vmatprep.subr.bf16.mxu0 0
      %1778 = vmatpush1.bf16.msra.mxu0 %v1754
      %1779 = vmatprep.subr.bf16.mxu0 0
      %1780 = vmatpush1.bf16.msra.mxu0 0
      %1781 = vmatprep.subr.bf16.mxu0 0
      %1782 = vmatpush1.bf16.msra.mxu0 0
      %1783 = vmatprep.subr.bf16.mxu0 0
      %1784 = vmatpush1.bf16.msra.mxu0 0
      %1785 = vmatprep.subr.bf16.mxu0 0
      %1786 = vmatpush1.bf16.msra.mxu0 0
      %1787 = vmatprep.subr.bf16.mxu0 0
      %1788 = vmatpush1.bf16.msra.mxu0 0
      %1789 = vmatprep.subr.bf16.mxu0 0
      %1790 = vmatpush1.bf16.msra.mxu0 0
      %1791 = vmatprep.subr.bf16.mxu0 0
      %1792 = vmatpush1.bf16.msra.mxu0 0
      %1793 = vmatprep.subr.bf16.mxu0 0
      %1794 = vmatpush1.bf16.msra.mxu0 0
      %1795 = vmatprep.mubr.bf16.mxu0 0
      %1796 = vmatmul.mubr.bf16.gmra.mrb[0].mxu0 %v1673
      %v1797 = vpop.f32.mrb[0].mxu0
      %v1798 = vadd.f32 0.0, %v1797
      %v1799 = vpop.f32.mrb[0].mxu0
      %v1800 = vpop.f32.mrb[0].mxu0
      %v1801 = vadd.f32 0.0, %v1800
      %v1802 = vpop.f32.mrb[0].mxu0
      %1803 = vmatprep.mubr.bf16.mxu0 0
      %1804 = vmatmul.mubr.bf16.gmra.mrb[0].mxu0 %v1682
      %v1805 = vpop.f32.mrb[0].mxu0
      %v1806 = vadd.f32 0.0, %v1805
      %v1807 = vpop.f32.mrb[0].mxu0
      %v1808 = vpop.f32.mrb[0].mxu0
      %v1809 = vadd.f32 0.0, %v1808
      %v1810 = vpop.f32.mrb[0].mxu0
      %1811 = vmatprep.mubr.bf16.mxu0 0
      %1812 = vmatmul.mubr.bf16.gmra.mrb[0].mxu0 %v1691
      %v1813 = vpop.f32.mrb[0].mxu0
      %v1814 = vadd.f32 0.0, %v1813
      %v1815 = vpop.f32.mrb[0].mxu0
      %v1816 = vpop.f32.mrb[0].mxu0
      %v1817 = vadd.f32 0.0, %v1816
      %v1818 = vpop.f32.mrb[0].mxu0
      %1819 = vmatprep.mubr.bf16.mxu0 0
      %1820 = vmatmul.mubr.bf16.gmra.mrb[0].mxu0 %v1700
      %v1821 = vpop.f32.mrb[0].mxu0
      %v1822 = vadd.f32 0.0, %v1821
      %v1823 = vpop.f32.mrb[0].mxu0
      %v1824 = vpop.f32.mrb[0].mxu0
      %v1825 = vadd.f32 0.0, %v1824
      %v1826 = vpop.f32.mrb[0].mxu0
      %1827 = vmatprep.mubr.bf16.mxu0 0
      %1828 = vmatmul.mubr.bf16.gmra.mrb[0].mxu0 %v1709
      %v1829 = vpop.f32.mrb[0].mxu0
      %v1830 = vadd.f32 0.0, %v1829
      %v1831 = vpop.f32.mrb[0].mxu0
      %v1832 = vpop.f32.mrb[0].mxu0
      %v1833 = vadd.f32 0.0, %v1832
      %v1834 = vpop.f32.mrb[0].mxu0
      %1835 = vdwg.mxu0
      %v1836 = vadd.f32 %v1626, %v1798
      %v1837 = vadd.f32 %v1627, %v1801
      %v1838 = vadd.f32 %v1628, %v1806
      %v1839 = vadd.f32 %v1629, %v1809
      %v1840 = vadd.f32 %v1630, %v1814
      %v1841 = vadd.f32 %v1631, %v1817
      %v1842 = vadd.f32 %v1632, %v1822
      %v1843 = vadd.f32 %v1633, %v1825
      %v1844 = vadd.f32 %v1634, %v1830
      %v1845 = vadd.f32 %v1635, %v1833
      %v1846 = vld [vmem:[#allocation2 + $0x8] sm:$0x8]
      %v1847 = vld [vmem:[%s2 + $0x200] sm:$0xf]
      %v1848 = vld [vmem:[%s2 + $0x204] sm:$0xf]
      %v1849 = vld [vmem:[%s2 + $0x208] sm:$0xf]
      %v1850 = vld [vmem:[%s2 + $0x20c] sm:$0xf]
      %v1851 = vld [vmem:[%s2 + $0x210] sm:$0xf]
      %v1852 = vld [vmem:[%s2 + $0x214] sm:$0xf]
      %v1853 = vld [vmem:[%s2 + $0x218] sm:$0xf]
      %v1854 = vld [vmem:[%s2 + $0x21c] sm:$0xf]
      %v1855 = vld [vmem:[%s2 + $0x220] sm:$0xf]
      %v1856 = vld [vmem:[%s2 + $0x224] sm:$0xf]
      %v1857 = vld [vmem:[%s2 + $0x228] sm:$0xf]
      %v1858 = vld [vmem:[%s2 + $0x22c] sm:$0xf]
      %v1859 = vld [vmem:[%s2 + $0x230] sm:$0xf]
      %v1860 = vld [vmem:[%s2 + $0x234] sm:$0xf]
      %v1861 = vld [vmem:[%s2 + $0x238] sm:$0xf]
      %v1862 = vld [vmem:[%s2 + $0x23c] sm:$0xf]
      %v1864 = vunpack.c.l.b16 %v1846
      %v1865 = vpack.c.b16 %v1473, %v1864
      %vm1866 = vcmask 1044480
      %v1867 = vrot.slane %v1865, 3
      %v1868 = vrot.slane %v1484, 3
      %v1869 = vsel %vm1866, %v1867, %v1868
      %v1870 = vrot.slane %v1485, 3
      %v1871 = vsel %vm1866, %v1868, %v1870
      %v1872 = vrot.slane %v1486, 3
      %v1873 = vsel %vm1866, %v1870, %v1872
      %v1874 = vrot.slane %v1487, 3
      %v1875 = vsel %vm1866, %v1872, %v1874
      %v1876 = vrot.slane %v1655, 3
      %v1877 = vsel %vm1866, %v1874, %v1876
      %v1899 = vunpack.c.l.b16 %v1847
      %v1900 = vunpack.c.l.b16 %v1848
      %v1901 = vunpack.c.l.b16 %v1849
      %v1902 = vunpack.c.l.b16 %v1850
      %v1903 = vunpack.c.l.b16 %v1851
      %v1904 = vunpack.c.l.b16 %v1852
      %v1905 = vunpack.c.l.b16 %v1853
      %v1906 = vunpack.c.l.b16 %v1854
      %v1907 = vunpack.c.l.b16 %v1855
      %v1908 = vunpack.c.l.b16 %v1856
      %v1909 = vunpack.c.l.b16 %v1857
      %v1910 = vunpack.c.l.b16 %v1858
      %v1911 = vunpack.c.l.b16 %v1859
      %v1912 = vunpack.c.l.b16 %v1860
      %v1913 = vunpack.c.l.b16 %v1861
      %v1914 = vunpack.c.l.b16 %v1862
      %v1915 = vpack.c.b16 %v1900, %v1899
      %v1916 = vpack.c.b16 %v1902, %v1901
      %v1917 = vpack.c.b16 %v1904, %v1903
      %v1918 = vpack.c.b16 %v1906, %v1905
      %v1919 = vpack.c.b16 %v1908, %v1907
      %v1920 = vpack.c.b16 %v1910, %v1909
      %v1921 = vpack.c.b16 %v1912, %v1911
      %v1922 = vpack.c.b16 %v1914, %v1913
      %1931 = vmatprep.subr.bf16.mxu0 0
      %1932 = vmatpush1.bf16.msra.mxu0 %v1915
      %1933 = vmatprep.subr.bf16.mxu0 0
      %1934 = vmatpush1.bf16.msra.mxu0 %v1916
      %1935 = vmatprep.subr.bf16.mxu0 0
      %1936 = vmatpush1.bf16.msra.mxu0 %v1917
      %1937 = vmatprep.subr.bf16.mxu0 0
      %1938 = vmatpush1.bf16.msra.mxu0 %v1918
      %1939 = vmatprep.subr.bf16.mxu0 0
      %1940 = vmatpush1.bf16.msra.mxu0 %v1919
      %1941 = vmatprep.subr.bf16.mxu0 0
      %1942 = vmatpush1.bf16.msra.mxu0 %v1920
      %1943 = vmatprep.subr.bf16.mxu0 0
      %1944 = vmatpush1.bf16.msra.mxu0 %v1921
      %1945 = vmatprep.subr.bf16.mxu0 0
      %1946 = vmatpush1.bf16.msra.mxu0 %v1922
      %1947 = vmatprep.subr.bf16.mxu0 0
      %1948 = vmatpush1.bf16.msra.mxu0 0
      %1949 = vmatprep.subr.bf16.mxu0 0
      %1950 = vmatpush1.bf16.msra.mxu0 0
      %1951 = vmatprep.subr.bf16.mxu0 0
      %1952 = vmatpush1.bf16.msra.mxu0 0
      %1953 = vmatprep.subr.bf16.mxu0 0
      %1954 = vmatpush1.bf16.msra.mxu0 0
      %1955 = vmatprep.subr.bf16.mxu0 0
      %1956 = vmatpush1.bf16.msra.mxu0 0
      %1957 = vmatprep.subr.bf16.mxu0 0
      %1958 = vmatpush1.bf16.msra.mxu0 0
      %1959 = vmatprep.subr.bf16.mxu0 0
      %1960 = vmatpush1.bf16.msra.mxu0 0
      %1961 = vmatprep.subr.bf16.mxu0 0
      %1962 = vmatpush1.bf16.msra.mxu0 0
      %1963 = vmatprep.mubr.bf16.mxu0 0
      %1964 = vmatmul.mubr.bf16.gmra.mrb[0].mxu0 %v1869
      %v1965 = vpop.f32.mrb[0].mxu0
      %v1966 = vadd.f32 0.0, %v1965
      %v1967 = vpop.f32.mrb[0].mxu0
      %v1968 = vpop.f32.mrb[0].mxu0
      %v1969 = vadd.f32 0.0, %v1968
      %v1970 = vpop.f32.mrb[0].mxu0
      %1971 = vmatprep.mubr.bf16.mxu0 0
      %1972 = vmatmul.mubr.bf16.gmra.mrb[0].mxu0 %v1871
      %v1973 = vpop.f32.mrb[0].mxu0
      %v1974 = vadd.f32 0.0, %v1973
      %v1975 = vpop.f32.mrb[0].mxu0
      %v1976 = vpop.f32.mrb[0].mxu0
      %v1977 = vadd.f32 0.0, %v1976
      %v1978 = vpop.f32.mrb[0].mxu0
      %1979 = vmatprep.mubr.bf16.mxu0 0
      %1980 = vmatmul.mubr.bf16.gmra.mrb[0].mxu0 %v1873
      %v1981 = vpop.f32.mrb[0].mxu0
      %v1982 = vadd.f32 0.0, %v1981
      %v1983 = vpop.f32.mrb[0].mxu0
      %v1984 = vpop.f32.mrb[0].mxu0
      %v1985 = vadd.f32 0.0, %v1984
      %v1986 = vpop.f32.mrb[0].mxu0
      %1987 = vmatprep.mubr.bf16.mxu0 0
      %1988 = vmatmul.mubr.bf16.gmra.mrb[0].mxu0 %v1875
      %v1989 = vpop.f32.mrb[0].mxu0
      %v1990 = vadd.f32 0.0, %v1989
      %v1991 = vpop.f32.mrb[0].mxu0
      %v1992 = vpop.f32.mrb[0].mxu0
      %v1993 = vadd.f32 0.0, %v1992
      %v1994 = vpop.f32.mrb[0].mxu0
      %1995 = vmatprep.mubr.bf16.mxu0 0
      %1996 = vmatmul.mubr.bf16.gmra.mrb[0].mxu0 %v1877
      %v1997 = vpop.f32.mrb[0].mxu0
      %v1998 = vadd.f32 0.0, %v1997
      %v1999 = vpop.f32.mrb[0].mxu0
      %v2000 = vpop.f32.mrb[0].mxu0
      %v2001 = vadd.f32 0.0, %v2000
      %v2002 = vpop.f32.mrb[0].mxu0
      %2003 = vdwg.mxu0
      %v2004 = vadd.f32 %v1836, %v1966
      %v2005 = vadd.f32 %v1837, %v1969
      %v2006 = vadd.f32 %v1838, %v1974
      %v2007 = vadd.f32 %v1839, %v1977
      %v2008 = vadd.f32 %v1840, %v1982
      %v2009 = vadd.f32 %v1841, %v1985
      %v2010 = vadd.f32 %v1842, %v1990
      %v2011 = vadd.f32 %v1843, %v1993
      %v2012 = vadd.f32 %v1844, %v1998
      %v2013 = vadd.f32 %v1845, %v2001
      %v2014 = vld [vmem:[%s3] sm:$0x1]
      %v2016 = vlaneseq
      %v2017 = vshrl.u32 %v2016, 7
      %v2018 = vsub.s32 0, %v2017
      %v2019 = vrot.slane %v2014, %v2018
      %v2021 = vadd.f32 %v2004, %v2019
      %v2022 = vadd.f32 %v2005, %v2019
      %v2023 = vadd.f32 %v2006, %v2019
      %v2024 = vadd.f32 %v2007, %v2019
      %v2025 = vadd.f32 %v2008, %v2019
      %v2026 = vadd.f32 %v2009, %v2019
      %v2027 = vadd.f32 %v2010, %v2019
      %v2028 = vadd.f32 %v2011, %v2019
      %v2029 = vadd.f32 %v2012, %v2019
      %v2030 = vadd.f32 %v2013, %v2019
      %s2031 = smul.u32 %s20, 80
      %v2032 = vlaneseq
      %v2033 = vshrl.u32 %v2032, 7
      %v2034 = vadd.s32 %v2033, 8
      %v2035 = vadd.s32 %v2033, 16
      %v2036 = vadd.s32 %v2033, 24
      %v2037 = vadd.s32 %v2033, 32
      %v2038 = vadd.s32 %v2033, 40
      %v2039 = vadd.s32 %v2033, 48
      %v2040 = vadd.s32 %v2033, 56
      %v2041 = vadd.s32 %v2033, 64
      %v2042 = vadd.s32 %v2033, 72
      %v2043 = vstv %s2031
      %v2044 = vadd.s32 %v2043, %v2033
      %v2045 = vadd.s32 %v2043, %v2034
      %v2046 = vadd.s32 %v2043, %v2035
      %v2047 = vadd.s32 %v2043, %v2036
      %v2048 = vadd.s32 %v2043, %v2037
      %v2049 = vadd.s32 %v2043, %v2038
      %v2050 = vadd.s32 %v2043, %v2039
      %v2051 = vadd.s32 %v2043, %v2040
      %v2052 = vadd.s32 %v2043, %v2041
      %v2053 = vadd.s32 %v2043, %v2042
      %vm2054 = vcmp.lt.s32.totalorder %v2044, 0
      %v2055 = vsub.s32 0, %v2044
      %v2056 = vsel %vm2054, %v2055, %v2044
      %v2057 = vmul.u32.u64.compose %v2056, 3435973837
      %v2058 = vextract.low.u32 %v2057
      %v2059 = vextract.high.u32 %v2057
      %v2060 = vshrl.u32 %v2059, 3
      %v2061 = vmul.u32 %v2060, 10
      %v2062 = vsub.s32 %v2056, %v2061
      %v2063 = vsub.s32 0, %v2062
      %v2064 = vsel %vm2054, %v2063, %v2062
      %vm2065 = vcmp.lt.s32.totalorder %v2045, 0
      %v2066 = vsub.s32 0, %v2045
      %v2067 = vsel %vm2065, %v2066, %v2045
      %v2068 = vmul.u32.u64.compose %v2067, 3435973837
      %v2069 = vextract.low.u32 %v2068
      %v2070 = vextract.high.u32 %v2068
      %v2071 = vshrl.u32 %v2070, 3
      %v2072 = vmul.u32 %v2071, 10
      %v2073 = vsub.s32 %v2067, %v2072
      %v2074 = vsub.s32 0, %v2073
      %v2075 = vsel %vm2065, %v2074, %v2073
      %vm2076 = vcmp.lt.s32.totalorder %v2046, 0
      %v2077 = vsub.s32 0, %v2046
      %v2078 = vsel %vm2076, %v2077, %v2046
      %v2079 = vmul.u32.u64.compose %v2078, 3435973837
      %v2080 = vextract.low.u32 %v2079
      %v2081 = vextract.high.u32 %v2079
      %v2082 = vshrl.u32 %v2081, 3
      %v2083 = vmul.u32 %v2082, 10
      %v2084 = vsub.s32 %v2078, %v2083
      %v2085 = vsub.s32 0, %v2084
      %v2086 = vsel %vm2076, %v2085, %v2084
      %vm2087 = vcmp.lt.s32.totalorder %v2047, 0
      %v2088 = vsub.s32 0, %v2047
      %v2089 = vsel %vm2087, %v2088, %v2047
      %v2090 = vmul.u32.u64.compose %v2089, 3435973837
      %v2091 = vextract.low.u32 %v2090
      %v2092 = vextract.high.u32 %v2090
      %v2093 = vshrl.u32 %v2092, 3
      %v2094 = vmul.u32 %v2093, 10
      %v2095 = vsub.s32 %v2089, %v2094
      %v2096 = vsub.s32 0, %v2095
      %v2097 = vsel %vm2087, %v2096, %v2095
      %vm2098 = vcmp.lt.s32.totalorder %v2048, 0
      %v2099 = vsub.s32 0, %v2048
      %v2100 = vsel %vm2098, %v2099, %v2048
      %v2101 = vmul.u32.u64.compose %v2100, 3435973837
      %v2102 = vextract.low.u32 %v2101
      %v2103 = vextract.high.u32 %v2101
      %v2104 = vshrl.u32 %v2103, 3
      %v2105 = vmul.u32 %v2104, 10
      %v2106 = vsub.s32 %v2100, %v2105
      %v2107 = vsub.s32 0, %v2106
      %v2108 = vsel %vm2098, %v2107, %v2106
      %vm2109 = vcmp.lt.s32.totalorder %v2049, 0
      %v2110 = vsub.s32 0, %v2049
      %v2111 = vsel %vm2109, %v2110, %v2049
      %v2112 = vmul.u32.u64.compose %v2111, 3435973837
      %v2113 = vextract.low.u32 %v2112
      %v2114 = vextract.high.u32 %v2112
      %v2115 = vshrl.u32 %v2114, 3
      %v2116 = vmul.u32 %v2115, 10
      %v2117 = vsub.s32 %v2111, %v2116
      %v2118 = vsub.s32 0, %v2117
      %v2119 = vsel %vm2109, %v2118, %v2117
      %vm2120 = vcmp.lt.s32.totalorder %v2050, 0
      %v2121 = vsub.s32 0, %v2050
      %v2122 = vsel %vm2120, %v2121, %v2050
      %v2123 = vmul.u32.u64.compose %v2122, 3435973837
      %v2124 = vextract.low.u32 %v2123
      %v2125 = vextract.high.u32 %v2123
      %v2126 = vshrl.u32 %v2125, 3
      %v2127 = vmul.u32 %v2126, 10
      %v2128 = vsub.s32 %v2122, %v2127
      %v2129 = vsub.s32 0, %v2128
      %v2130 = vsel %vm2120, %v2129, %v2128
      %vm2131 = vcmp.lt.s32.totalorder %v2051, 0
      %v2132 = vsub.s32 0, %v2051
      %v2133 = vsel %vm2131, %v2132, %v2051
      %v2134 = vmul.u32.u64.compose %v2133, 3435973837
      %v2135 = vextract.low.u32 %v2134
      %v2136 = vextract.high.u32 %v2134
      %v2137 = vshrl.u32 %v2136, 3
      %v2138 = vmul.u32 %v2137, 10
      %v2139 = vsub.s32 %v2133, %v2138
      %v2140 = vsub.s32 0, %v2139
      %v2141 = vsel %vm2131, %v2140, %v2139
      %vm2142 = vcmp.lt.s32.totalorder %v2052, 0
      %v2143 = vsub.s32 0, %v2052
      %v2144 = vsel %vm2142, %v2143, %v2052
      %v2145 = vmul.u32.u64.compose %v2144, 3435973837
      %v2146 = vextract.low.u32 %v2145
      %v2147 = vextract.high.u32 %v2145
      %v2148 = vshrl.u32 %v2147, 3
      %v2149 = vmul.u32 %v2148, 10
      %v2150 = vsub.s32 %v2144, %v2149
      %v2151 = vsub.s32 0, %v2150
      %v2152 = vsel %vm2142, %v2151, %v2150
      %vm2153 = vcmp.lt.s32.totalorder %v2053, 0
      %v2154 = vsub.s32 0, %v2053
      %v2155 = vsel %vm2153, %v2154, %v2053
      %v2156 = vmul.u32.u64.compose %v2155, 3435973837
      %v2157 = vextract.low.u32 %v2156
      %v2158 = vextract.high.u32 %v2156
      %v2159 = vshrl.u32 %v2158, 3
      %v2160 = vmul.u32 %v2159, 10
      %v2161 = vsub.s32 %v2155, %v2160
      %v2162 = vsub.s32 0, %v2161
      %v2163 = vsel %vm2153, %v2162, %v2161
      %vm2164 = vcmp.lt.s32.totalorder %v2064, 8
      %vm2165 = vcmp.lt.s32.totalorder %v2075, 8
      %vm2166 = vcmp.lt.s32.totalorder %v2086, 8
      %vm2167 = vcmp.lt.s32.totalorder %v2097, 8
      %vm2168 = vcmp.lt.s32.totalorder %v2108, 8
      %vm2169 = vcmp.lt.s32.totalorder %v2119, 8
      %vm2170 = vcmp.lt.s32.totalorder %v2130, 8
      %vm2171 = vcmp.lt.s32.totalorder %v2141, 8
      %vm2172 = vcmp.lt.s32.totalorder %v2152, 8
      %vm2173 = vcmp.lt.s32.totalorder %v2163, 8
      %v2174 = vsel %vm2164, 1, 0
      %v2175 = vsel %vm2165, 1, 0
      %v2176 = vsel %vm2166, 1, 0
      %v2177 = vsel %vm2167, 1, 0
      %v2178 = vsel %vm2168, 1, 0
      %v2179 = vsel %vm2169, 1, 0
      %v2180 = vsel %vm2170, 1, 0
      %v2181 = vsel %vm2171, 1, 0
      %v2182 = vsel %vm2172, 1, 0
      %v2183 = vsel %vm2173, 1, 0
      %vm2184 = vcmp.eq.s32.totalorder %v2174, 1
      %vm2185 = vcmp.eq.s32.totalorder %v2175, 1
      %vm2186 = vcmp.eq.s32.totalorder %v2176, 1
      %vm2187 = vcmp.eq.s32.totalorder %v2177, 1
      %vm2188 = vcmp.eq.s32.totalorder %v2178, 1
      %vm2189 = vcmp.eq.s32.totalorder %v2179, 1
      %vm2190 = vcmp.eq.s32.totalorder %v2180, 1
      %vm2191 = vcmp.eq.s32.totalorder %v2181, 1
      %vm2192 = vcmp.eq.s32.totalorder %v2182, 1
      %vm2193 = vcmp.eq.s32.totalorder %v2183, 1
      %v2194 = vsel %vm2184, %v2021, 0.0
      %v2195 = vsel %vm2185, %v2022, 0.0
      %v2196 = vsel %vm2186, %v2023, 0.0
      %v2197 = vsel %vm2187, %v2024, 0.0
      %v2198 = vsel %vm2188, %v2025, 0.0
      %v2199 = vsel %vm2189, %v2026, 0.0
      %v2200 = vsel %vm2190, %v2027, 0.0
      %v2201 = vsel %vm2191, %v2028, 0.0
      %v2202 = vsel %vm2192, %v2029, 0.0
      %v2203 = vsel %vm2193, %v2030, 0.0
      %v2204 = vpack.c.bf16 %v2195, %v2194
      %v2205 = vpack.c.bf16 %v2197, %v2196
      %v2206 = vpack.c.bf16 %v2199, %v2198
      %v2207 = vpack.c.bf16 %v2201, %v2200
      %v2208 = vpack.c.bf16 %v2203, %v2202
      %v2214 = vunpack.c.l.b16 %v2204
      %v2215 = vunpack.c.h.b16 %v2204
      %v2216 = vunpack.c.l.b16 %v2205
      %v2217 = vunpack.c.h.b16 %v2205
      %v2218 = vunpack.c.l.b16 %v2206
      %v2219 = vunpack.c.h.b16 %v2206
      %v2220 = vunpack.c.l.b16 %v2207
      %v2221 = vunpack.c.h.b16 %v2207
      %v2222 = vunpack.c.l.b16 %v2208
      %v2223 = vunpack.c.h.b16 %v2208
      %v2224 = vpack.c.b16 %v2214, %v2214
      %v2225 = vpack.c.b16 %v2215, %v2215
      %v2226 = vpack.c.b16 %v2216, %v2216
      %v2227 = vpack.c.b16 %v2217, %v2217
      %v2228 = vpack.c.b16 %v2218, %v2218
      %v2229 = vpack.c.b16 %v2219, %v2219
      %v2230 = vpack.c.b16 %v2220, %v2220
      %v2231 = vpack.c.b16 %v2221, %v2221
      %v2232 = vpack.c.b16 %v2222, %v2222
      %v2233 = vpack.c.b16 %v2223, %v2223
      %2244 = vst [vmem:[%s285] sm:$0xf] %v2224
      %2245 = vst [vmem:[%s285 + $0x4] sm:$0xf] %v2225
      %2246 = vst [vmem:[%s285 + $0x8] sm:$0xf] %v2226
      %2247 = vst [vmem:[%s285 + $0xc] sm:$0xf] %v2227
      %2248 = vst [vmem:[%s285 + $0x10] sm:$0xf] %v2228
      %2249 = vst [vmem:[%s285 + $0x14] sm:$0xf] %v2229
      %2250 = vst [vmem:[%s285 + $0x18] sm:$0xf] %v2230
      %2251 = vst [vmem:[%s285 + $0x1c] sm:$0xf] %v2231
      %2252 = vst [vmem:[%s285 + $0x20] sm:$0xf] %v2232
      %2253 = vst [vmem:[%s285 + $0x24] sm:$0xf] %v2233
      %s2254 = smul.u32 10, %s20
      %p2255 = scmp.lt.s32.totalorder %s19, 1
      %s2256 = scalar_select %p2255, %s19, 1
      %p2257 = scmp.lt.s32.totalorder %s2254, 9
      %s2258 = scalar_select %p2257, %s2254, 9
      %s2259 = smul.addr %s2256, 10
      %s2260 = sadd.s32 %s2258, %s2259
      %s2261 = smul.addr %s2260, 4
      %s2262 = scalar_lea.vmem %s4, %s2261
      // Predicated region
      $region37: #{content_loss.13} parent=35 // pred_check
        %p2263 = pneg %p149
      $region38: #{content_loss.13} parent=35 // pred_check_branch
        %2265 = sbr.rel (%p2263) target = $region40
      $region39: #{content_loss.13} parent=35 // pred_region
        %s2266 = smul.u32 10, %s20
      $region40: #{content_loss.13} parent=35 // pred_fallthru
        _
    $region36: #{content_loss.13} parent=5 // pred_fallthru
      _
    %p2267 = scmp.le.s32.totalorder 2, %s10
    // Predicated region
    $region41: #{content_loss.13} parent=5 // pred_check
      %p2268 = pneg %p2267
    $region42: #{content_loss.13} parent=5 // pred_check_branch
      %2270 = sbr.rel (%p2268) target = $region44
    $region43: #{content_loss.13} parent=5 // pred_region
      %s2271 = ssub.s32 %s10, 2
      // Predicated region
      $region45: #{content_loss.13} parent=43 // pred_check
        %p2272 = pneg %p155
      $region46: #{content_loss.13} parent=43 // pred_check_branch
        %2274 = sbr.rel (%p2272) target = $region48
      $region47: #{content_loss.13} parent=43 // pred_region
        %s2275 = smul.u32 10, %s22
        %p2276 = scmp.lt.s32.totalorder %s21, 1
        %s2277 = scalar_select %p2276, %s21, 1
        %p2278 = scmp.lt.s32.totalorder %s2275, 9
        %s2279 = scalar_select %p2278, %s2275, 9
        %s2280 = smul.addr %s2277, 10
        %s2281 = sadd.s32 %s2279, %s2280
        %s2282 = smul.addr %s2281, 4
        %s2283 = scalar_lea.vmem %s4, %s2282
      $region48: #{content_loss.13} parent=43 // pred_fallthru
        _
    $region44: #{content_loss.13} parent=5 // pred_fallthru
      _
  $region6: #{content_loss.13} parent=0 // loop_footer
    %s14 = sadd.s32 1, %s10
  $region7: #{content_loss.13} parent=0 // loop_footer_branch
    %9 = sbr.rel target = $region3
  $region8: #{content_loss.13} parent=0 // loop_exit
    _

</llo_original>
